<compile_context>
chip_gen: v5e
topology: v5e:2x2
jax: 0.10.0
libtpu: 0.0.40
codegen_flags: <defaults>
</compile_context>

<pallas_src>
import jax
import jax.numpy as jnp
from jax.experimental import pallas as pl
from jax.experimental.pallas import tpu as pltpu

# ----------------------------- model dimensions (logical) --------------------
D_WORD = 32        # args.d_word_vec
D_H1 = 100         # args.d_h1   (lin_1 = Linear(2*d_h1, 100))
D_MODEL = 100      # cont_gru / AttGRU hidden (hard-coded 100 in the module)
NUM_CLASSES = 7    # emodict.n_words
VOCAB = 50
HOPS = 2           # args.hops
WIND1 = 3          # args.wind1
BATCH = 6          # utterances per dialogue
SEQ = 8            # words per utterance

HP = 128                       # lane-padded hidden size (100 -> 128)
CP = 128                       # lane-padded class dim for the log-prob output
NEG_FILL = -10000000000.0      # masked_fill_ value used by AttGRU
NEG_BIG = -1e30                # bias for padded (non-existent) classes


# ------------------------------- kernel helpers -------------------------------
def _log_softmax(x):
    m = jnp.max(x, axis=-1, keepdims=True)
    lse = m + jnp.log(jnp.sum(jnp.exp(x - m), axis=-1, keepdims=True))
    return x - lse


def _gru_gate(xp, hp, h, H):
    """Packed GRU step.  xp = x@Wi + (bi [+ bh for r,z]);  hp = h@Wh + [0,0,bh_n]."""
    r = jax.nn.sigmoid(xp[:, 0 * H:1 * H] + hp[:, 0 * H:1 * H])
    z = jax.nn.sigmoid(xp[:, 1 * H:2 * H] + hp[:, 1 * H:2 * H])
    n = jnp.tanh(xp[:, 2 * H:3 * H] + r * hp[:, 2 * H:3 * H])
    return (1.0 - z) * n + z * h


# ------------------------------- fused kernel ---------------------------------
def _fused_kernel(ids_ref, lens_ref, emb_ref,
                  wg_wi_ref, wg_bi_ref, wg_wh_ref, wg_bh_ref,
                  w1a_ref, w1b_ref, b1_ref,
                  cg_wi_ref, cg_bi_ref, cg_wh_ref, cg_bh_ref,
                  at_wc_ref, at_bc_ref, at_uh_ref, at_bh_ref,
                  cls_w_ref, cls_b_ref,
                  pred_ref, scores_ref,
                  ctx_ref, mem_ref):
    f32 = jnp.float32
    B = lens_ref.shape[0]
    SB = ids_ref.shape[0]
    S = SB // B
    V = emb_ref.shape[0]
    H = wg_wh_ref.shape[1]          # lane-padded hidden (128)
    Bm = B - 1
    W = WIND1

    ids = ids_ref[...]              # (S*B, 1) int32, time-major rows
    lens = lens_ref[...]            # (B, 1)   int32

    # -------- embedding lookup as a one-hot matmul (gather-free, MXU) --------
    vocab_iota = jax.lax.broadcasted_iota(jnp.int32, (SB, V), 1)
    onehot = (vocab_iota == ids).astype(f32)
    x_emb = jnp.dot(onehot, emb_ref[...], preferred_element_type=f32)   # (S*B, D_WORD)

    # -------- word-level bidirectional GRU + max-pool + lin_1 ----------------
    # hoisted input projections (input biases folded in)
    xprj_f = jnp.dot(x_emb, wg_wi_ref[0], preferred_element_type=f32) + wg_bi_ref[0]
    xprj_b = jnp.dot(x_emb, wg_wi_ref[1], preferred_element_type=f32) + wg_bi_ref[1]
    wh_f = wg_wh_ref[0]; bh_f = wg_bh_ref[0]
    wh_b = wg_wh_ref[1]; bh_b = wg_bh_ref[1]

    h_f = jnp.zeros((B, H), f32)
    h_b = jnp.zeros((B, H), f32)
    m_f = jnp.full((B, H), -jnp.inf, f32)
    m_b = jnp.full((B, H), -jnp.inf, f32)
    for t in range(S):
        # forward: hidden advances only while t < length (packed-sequence semantics)
        valid_f = t < lens
        hp = jnp.dot(h_f, wh_f, preferred_element_type=f32) + bh_f
        h_new = _gru_gate(xprj_f[t * B:(t + 1) * B, :], hp, h_f, H)
        h_f = jnp.where(valid_f, h_new, h_f)
        # padded time steps contribute exact zeros to the max-pool (pad_packed_sequence)
        m_f = jnp.maximum(m_f, jnp.where(valid_f, h_f, 0.0))
        # backward direction (reverse time; starts at each sequence's last real token)
        tb = S - 1 - t
        valid_b = tb < lens
        hpb = jnp.dot(h_b, wh_b, preferred_element_type=f32) + bh_b
        h_newb = _gru_gate(xprj_b[tb * B:(tb + 1) * B, :], hpb, h_b, H)
        h_b = jnp.where(valid_b, h_newb, h_b)
        m_b = jnp.maximum(m_b, jnp.where(valid_b, h_b, 0.0))

    # s_utt = tanh(lin_1([max_fwd, max_bwd]))     (dropout_in: identity)
    s_utt = jnp.tanh(jnp.dot(m_f, w1a_ref[...], preferred_element_type=f32)
                     + jnp.dot(m_b, w1b_ref[...], preferred_element_type=f32)
                     + b1_ref[...])                                      # (B, H)

    # -------- causal context windows, left zero-padded to WIND1 --------------
    # ctx row (w*Bm + (i-1)) = s_utt[i - WIND1 + w]  (zeros when the index is < 0)
    for w in range(W):
        nz = W - 1 - w
        if nz > 0:
            ctx_ref[pl.ds(w * Bm, nz), :] = jnp.zeros((nz, H), f32)
            ctx_ref[pl.ds(w * Bm + nz, Bm - nz), :] = s_utt[0:Bm - nz, :]
        else:
            ctx_ref[pl.ds(w * Bm, Bm), :] = s_utt[0:Bm, :]
    ctx = ctx_ref[...]                                                   # (W*Bm, H)

    # -------- bidirectional context GRU ("cont_gru") --------------------------
    cprj_f = jnp.dot(ctx, cg_wi_ref[0], preferred_element_type=f32) + cg_bi_ref[0]
    cprj_b = jnp.dot(ctx, cg_wi_ref[1], preferred_element_type=f32) + cg_bi_ref[1]
    cwh_f = cg_wh_ref[0]; cbh_f = cg_bh_ref[0]
    cwh_b = cg_wh_ref[1]; cbh_b = cg_bh_ref[1]

    fwd_hs = [None] * W
    h = jnp.zeros((Bm, H), f32)
    for w in range(W):
        hp = jnp.dot(h, cwh_f, preferred_element_type=f32) + cbh_f
        h = _gru_gate(cprj_f[w * Bm:(w + 1) * Bm, :], hp, h, H)
        fwd_hs[w] = h
    bwd_hs = [None] * W
    h = jnp.zeros((Bm, H), f32)
    for w in range(W - 1, -1, -1):
        hp = jnp.dot(h, cwh_b, preferred_element_type=f32) + cbh_b
        h = _gru_gate(cprj_b[w * Bm:(w + 1) * Bm, :], hp, h, H)
        bwd_hs[w] = h

    # mem_bank = batches + fwd outputs + bwd outputs   (dropout_mid: identity)
    mem_steps = [None] * W
    for w in range(W):
        mem_steps[w] = ctx[w * Bm:(w + 1) * Bm, :] + fwd_hs[w] + bwd_hs[w]
        mem_ref[pl.ds(w * Bm, Bm), :] = mem_steps[w]
    mem_flat = mem_ref[...]                                              # (W*Bm, H)

    # -------- multi-hop bidirectional AttGRU ----------------------------------
    row_iota = jax.lax.broadcasted_iota(jnp.int32, (Bm, 1), 0)   # row r <-> utterance i=r+1
    lane_iota = jax.lax.broadcasted_iota(jnp.int32, (Bm, CP), 1)
    eps = s_utt[1:B, :]                                          # (Bm, H)  query / eps_mem
    for hop in range(HOPS):
        # masked attention over the window; softmax over W (pad positions -> exactly 0)
        sc = []
        for w in range(W):
            a_w = jnp.sum(mem_steps[w] * eps, axis=1, keepdims=True)     # (Bm, 1)
            valid_w = row_iota >= (W - 1 - w)          # slot w holds a real utterance
            sc.append(jnp.where(valid_w, a_w, NEG_FILL))
        mx = sc[0]
        for w in range(1, W):
            mx = jnp.maximum(mx, sc[w])
        es = [jnp.exp(s - mx) for s in sc]
        den = es[0]
        for w in range(1, W):
            den = den + es[w]
        gates = [e / den for e in es]                                    # each (Bm, 1)

        # lane-dense attention-score output (first W lanes valid, rest zero)
        sc_out = jnp.zeros((Bm, CP), f32)
        for w in range(W):
            sc_out = sc_out + jnp.where(lane_iota == w, gates[w], 0.0)
        scores_ref[hop] = sc_out

        # forward + backward AttnGRUCell passes (per-hop weights, zero init each hop)
        for d in range(2):
            idx = hop * 2 + d
            wc = at_wc_ref[idx]; bc = at_bc_ref[idx]
            uh = at_uh_ref[idx]; bh = at_bh_ref[idx]
            cprj_a = jnp.dot(mem_flat, wc, preferred_element_type=f32) + bc   # (W*Bm, 2H)
            h = jnp.zeros((Bm, H), f32)
            order = range(W) if d == 0 else range(W - 1, -1, -1)
            for w in order:
                cp = cprj_a[w * Bm:(w + 1) * Bm, :]
                hp = jnp.dot(h, uh, preferred_element_type=f32) + bh          # (Bm, 2H)
                r = jax.nn.sigmoid(cp[:, 0:H] + hp[:, 0:H])
                h_til = jnp.tanh(cp[:, H:2 * H] + r * hp[:, H:2 * H])
                h = gates[w] * h_til + (1.0 - gates[w]) * h
            # eps_mem += attn_out fwd-half + bwd-half   (dropout_mid: identity)
            eps = eps + h

    # -------- classifier + log_softmax (class dim lane-padded to 128) ---------
    cls_w = cls_w_ref[...]; cls_b = cls_b_ref[...]
    logit0 = jnp.dot(s_utt[0:1, :], cls_w, preferred_element_type=f32) + cls_b
    logit_rest = jnp.dot(eps, cls_w, preferred_element_type=f32) + cls_b
    pred_ref[pl.ds(0, 1), :] = _log_softmax(logit0)
    pred_ref[pl.ds(1, Bm), :] = _log_softmax(logit_rest)


# ------------------------------- wrappers --------------------------------------
def _vmem():
    return pl.BlockSpec(memory_space=pltpu.MemorySpace.VMEM)


def _fused_forward_call(ids_tm, lens_b1, pp):
    B = lens_b1.shape[0]
    Bm = B - 1
    args = (ids_tm, lens_b1, pp["emb"],
            pp["wg_wi"], pp["wg_bi"], pp["wg_wh"], pp["wg_bh"],
            pp["w1a"], pp["w1b"], pp["b1"],
            pp["cg_wi"], pp["cg_bi"], pp["cg_wh"], pp["cg_bh"],
            pp["at_wc"], pp["at_bc"], pp["at_uh"], pp["at_bh"],
            pp["cls_w"], pp["cls_b"])
    return pl.pallas_call(
        _fused_kernel,
        out_shape=(jax.ShapeDtypeStruct((B, CP), jnp.float32),
                   jax.ShapeDtypeStruct((HOPS, Bm, CP), jnp.float32)),
        in_specs=[_vmem() for _ in args],
        out_specs=(_vmem(), _vmem()),
        scratch_shapes=[pltpu.VMEM((WIND1 * Bm, HP), jnp.float32),   # context windows
                        pltpu.VMEM((WIND1 * Bm, HP), jnp.float32)],  # memory bank
    )(*args)


@jax.jit
def bif_biagru_forward(sents, lengths, pp):
    """sents: (B, S) int token ids; lengths: (B,) word counts; pp: packed params."""
    B, S = sents.shape
    # TODO(synk): B == 1 dialogues (no context-window / AttGRU branch) are not handled
    # by the fused kernel; the reference falls back to classifier(s_utt[:1]) there.
    ids_tm = jnp.transpose(sents).reshape(S * B, 1).astype(jnp.int32)   # time-major ids
    lens_b1 = lengths.reshape(B, 1).astype(jnp.int32)
    pred_pad, scores_pad = _fused_forward_call(ids_tm, lens_b1, pp)
    pred_s = pred_pad[:, :NUM_CLASSES]
    attn_weights = tuple(scores_pad[h, :, :WIND1] for h in range(HOPS))
    return pred_s, attn_weights


# ------------------------------ parameter init ---------------------------------
def init_params(key):
    """Logical (torch-layout-equivalent) params; gate order (r, z, n), x @ W form."""
    keys = iter(jax.random.split(key, 64))

    def nxt():
        return next(keys)

    def w(shape):
        fan_in, fan_out = shape[-2], shape[-1]
        scale = (2.0 / (fan_in + fan_out)) ** 0.5
        return scale * jax.random.normal(nxt(), shape, dtype=jnp.float32)

    def b(shape):
        return 0.01 * jax.random.normal(nxt(), shape, dtype=jnp.float32)

    p = {"emb": 0.1 * jax.random.normal(nxt(), (VOCAB, D_WORD), dtype=jnp.float32)}
    for d in ("f", "b"):                      # word-level bidirectional GRU (GRUencoder)
        p[f"wg_wi_{d}"] = w((3, D_WORD, D_H1)); p[f"wg_wh_{d}"] = w((3, D_H1, D_H1))
        p[f"wg_bi_{d}"] = b((3, 1, D_H1));      p[f"wg_bh_{d}"] = b((3, 1, D_H1))
    p["w1"] = w((2 * D_H1, D_MODEL)); p["b1"] = b((1, D_MODEL))          # lin_1
    for d in ("f", "b"):                      # cont_gru = GRU(100, 100, bidirectional)
        p[f"cg_wi_{d}"] = w((3, D_MODEL, D_MODEL)); p[f"cg_wh_{d}"] = w((3, D_MODEL, D_MODEL))
        p[f"cg_bi_{d}"] = b((3, 1, D_MODEL));       p[f"cg_bh_{d}"] = b((3, 1, D_MODEL))
    p["att"] = []                             # AttGRU[hop].{rnn, rnn_bwd} AttnGRUCells
    for _hop in range(HOPS):
        cells = []
        for _d in range(2):
            cells.append(dict(wr=w((D_MODEL, D_MODEL)), ur=w((D_MODEL, D_MODEL)),
                              w=w((D_MODEL, D_MODEL)), u=w((D_MODEL, D_MODEL)),
                              br=b((1, D_MODEL)), bur=b((1, D_MODEL)),
                              bw=b((1, D_MODEL)), bu=b((1, D_MODEL))))
        p["att"].append(cells)
    p["cls_w"] = w((D_MODEL, NUM_CLASSES)); p["cls_b"] = b((1, NUM_CLASSES))
    return p


# ------------------------- packing / padding for the kernel --------------------
def _pack_gru(wi, wh, bi, bh, in_pad):
    """Pack one GRU direction: x@Wi+Bi hoisted, h@Wh+Bh per step (biases folded)."""
    in_dim, Hl = wi.shape[1], wi.shape[2]
    Wi = jnp.zeros((in_pad, 3 * HP), jnp.float32)
    Wh = jnp.zeros((HP, 3 * HP), jnp.float32)
    Bi = jnp.zeros((1, 3 * HP), jnp.float32)
    Bh = jnp.zeros((1, 3 * HP), jnp.float32)
    for g in range(3):
        Wi = Wi.at[:in_dim, g * HP:g * HP + Hl].set(wi[g])
        Wh = Wh.at[:Hl, g * HP:g * HP + Hl].set(wh[g])
    Bi = Bi.at[0, 0 * HP:0 * HP + Hl].set(bi[0, 0] + bh[0, 0])   # r: bi+bh folded
    Bi = Bi.at[0, 1 * HP:1 * HP + Hl].set(bi[1, 0] + bh[1, 0])   # z: bi+bh folded
    Bi = Bi.at[0, 2 * HP:2 * HP + Hl].set(bi[2, 0])              # n: bi only
    Bh = Bh.at[0, 2 * HP:2 * HP + Hl].set(bh[2, 0])              # n: bh stays with h-proj
    return Wi, Bi, Wh, Bh


def _pack_attcell(c):
    """Pack an AttnGRUCell: c@[Wr|W]+[br+bur, bw] hoisted, h@[Ur|U]+[0, bu] per step."""
    Hl = c["wr"].shape[0]
    Wc = jnp.zeros((HP, 2 * HP), jnp.float32)
    Uh = jnp.zeros((HP, 2 * HP), jnp.float32)
    Bc = jnp.zeros((1, 2 * HP), jnp.float32)
    Bh = jnp.zeros((1, 2 * HP), jnp.float32)
    Wc = Wc.at[:Hl, 0:Hl].set(c["wr"]);  Wc = Wc.at[:Hl, HP:HP + Hl].set(c["w"])
    Uh = Uh.at[:Hl, 0:Hl].set(c["ur"]);  Uh = Uh.at[:Hl, HP:HP + Hl].set(c["u"])
    Bc = Bc.at[0, 0:Hl].set(c["br"][0] + c["bur"][0])
    Bc = Bc.at[0, HP:HP + Hl].set(c["bw"][0])
    Bh = Bh.at[0, HP:HP + Hl].set(c["bu"][0])
    return Wc, Bc, Uh, Bh


def prepare_params(p):
    """Pad H 100->128, stack gates, fold biases -> kernel-ready packed weights."""
    pp = {"emb": p["emb"]}

    packs = [_pack_gru(p[f"wg_wi_{d}"], p[f"wg_wh_{d}"], p[f"wg_bi_{d}"], p[f"wg_bh_{d}"],
                       D_WORD) for d in ("f", "b")]
    pp["wg_wi"] = jnp.stack([x[0] for x in packs])   # (2, D_WORD, 3*HP)
    pp["wg_bi"] = jnp.stack([x[1] for x in packs])   # (2, 1, 3*HP)
    pp["wg_wh"] = jnp.stack([x[2] for x in packs])   # (2, HP, 3*HP)
    pp["wg_bh"] = jnp.stack([x[3] for x in packs])

    pp["w1a"] = jnp.zeros((HP, HP), jnp.float32).at[:D_H1, :D_MODEL].set(p["w1"][:D_H1])
    pp["w1b"] = jnp.zeros((HP, HP), jnp.float32).at[:D_H1, :D_MODEL].set(p["w1"][D_H1:])
    pp["b1"] = jnp.zeros((1, HP), jnp.float32).at[:, :D_MODEL].set(p["b1"])

    packs = [_pack_gru(p[f"cg_wi_{d}"], p[f"cg_wh_{d}"], p[f"cg_bi_{d}"], p[f"cg_bh_{d}"],
                       HP) for d in ("f", "b")]
    pp["cg_wi"] = jnp.stack([x[0] for x in packs])   # (2, HP, 3*HP)
    pp["cg_bi"] = jnp.stack([x[1] for x in packs])
    pp["cg_wh"] = jnp.stack([x[2] for x in packs])
    pp["cg_bh"] = jnp.stack([x[3] for x in packs])

    cells = [p["att"][hop][d] for hop in range(HOPS) for d in range(2)]
    packs = [_pack_attcell(c) for c in cells]
    pp["at_wc"] = jnp.stack([x[0] for x in packs])   # (2*HOPS, HP, 2*HP)
    pp["at_bc"] = jnp.stack([x[1] for x in packs])
    pp["at_uh"] = jnp.stack([x[2] for x in packs])
    pp["at_bh"] = jnp.stack([x[3] for x in packs])

    pp["cls_w"] = jnp.zeros((HP, CP), jnp.float32).at[:D_MODEL, :NUM_CLASSES].set(p["cls_w"])
    pp["cls_b"] = (jnp.full((1, CP), NEG_BIG, jnp.float32)
                   .at[0, :NUM_CLASSES].set(p["cls_b"][0]))
    return pp


# ---------------------------------- main ----------------------------------------
if __name__ == "__main__":
    key = jax.random.PRNGKey(0)
    pkey, dkey = jax.random.split(key)
    params = init_params(pkey)
    packed = prepare_params(params)

    sents = jax.random.randint(dkey, (BATCH, SEQ), 0, VOCAB, dtype=jnp.int32)
    lengths = jnp.array([SEQ, 5, SEQ, 3, 7, 6], dtype=jnp.int32)  # per-utterance lengths

    pred_s, attn_weights = bif_biagru_forward(sents, lengths, packed)
    pred_s = jax.block_until_ready(pred_s)
    for wgt in attn_weights:
        jax.block_until_ready(wgt)

    assert pred_s.shape == (BATCH, NUM_CLASSES)
    assert len(attn_weights) == HOPS
    assert attn_weights[0].shape == (BATCH - 1, WIND1)
    assert bool(jnp.all(jnp.isfinite(pred_s)))
    print("KERNEL_OK")
</pallas_src>

<mosaic_0001>
module attributes {stable_mosaic.version = 11 : i64} {
  func.func @_fused_kernel(%arg0: memref<48x1xi32, #tpu.memory_space<vmem>>, %arg1: memref<6x1xi32, #tpu.memory_space<vmem>>, %arg2: memref<50x32xf32, #tpu.memory_space<vmem>>, %arg3: memref<2x32x384xf32, #tpu.memory_space<vmem>>, %arg4: memref<2x1x384xf32, #tpu.memory_space<vmem>>, %arg5: memref<2x128x384xf32, #tpu.memory_space<vmem>>, %arg6: memref<2x1x384xf32, #tpu.memory_space<vmem>>, %arg7: memref<128x128xf32, #tpu.memory_space<vmem>>, %arg8: memref<128x128xf32, #tpu.memory_space<vmem>>, %arg9: memref<1x128xf32, #tpu.memory_space<vmem>>, %arg10: memref<2x128x384xf32, #tpu.memory_space<vmem>>, %arg11: memref<2x1x384xf32, #tpu.memory_space<vmem>>, %arg12: memref<2x128x384xf32, #tpu.memory_space<vmem>>, %arg13: memref<2x1x384xf32, #tpu.memory_space<vmem>>, %arg14: memref<4x128x256xf32, #tpu.memory_space<vmem>>, %arg15: memref<4x1x256xf32, #tpu.memory_space<vmem>>, %arg16: memref<4x128x256xf32, #tpu.memory_space<vmem>>, %arg17: memref<4x1x256xf32, #tpu.memory_space<vmem>>, %arg18: memref<128x128xf32, #tpu.memory_space<vmem>>, %arg19: memref<1x128xf32, #tpu.memory_space<vmem>>, %arg20: memref<6x128xf32, #tpu.memory_space<vmem>>, %arg21: memref<2x5x128xf32, #tpu.memory_space<vmem>>, %arg22: memref<15x128xf32, #tpu.memory_space<vmem>>, %arg23: memref<15x128xf32, #tpu.memory_space<vmem>>) attributes {dimension_semantics = [], scalar_prefetch = 0 : i64, scratch_operands = 2 : i64, tpu.core_type = #tpu.core_type<tc>} {
    %c0 = arith.constant 0 : index
    %c0_0 = arith.constant 0 : index
    %0 = vector.load %arg0[%c0, %c0_0] : memref<48x1xi32, #tpu.memory_space<vmem>>, vector<48x1xi32>
    %c0_1 = arith.constant 0 : index
    %c0_2 = arith.constant 0 : index
    %1 = vector.load %arg1[%c0_1, %c0_2] : memref<6x1xi32, #tpu.memory_space<vmem>>, vector<6x1xi32>
    %2 = tpu.iota {dimensions = array<i32: 1>} : vector<48x50xi32>
    %3 = vector.broadcast %0 : vector<48x1xi32> to vector<48x50xi32>
    %4 = arith.cmpi eq, %2, %3 : vector<48x50xi32>
    %5 = arith.extui %4 : vector<48x50xi1> to vector<48x50xi32>
    %6 = arith.sitofp %5 : vector<48x50xi32> to vector<48x50xf32>
    %c0_3 = arith.constant 0 : index
    %c0_4 = arith.constant 0 : index
    %7 = vector.load %arg2[%c0_3, %c0_4] : memref<50x32xf32, #tpu.memory_space<vmem>>, vector<50x32xf32>
    %cst = arith.constant dense<0.000000e+00> : vector<48x32xf32>
    %8 = tpu.matmul %6, %7, %cst {dimension_numbers = #tpu.dot_dimension_numbers<[1], [0], [0], [1], [0, 0, 1, 1], [], []>} : vector<48x50xf32>, vector<50x32xf32>, vector<48x32xf32> -> vector<48x32xf32>
    %c0_5 = arith.constant 0 : index
    %c0_6 = arith.constant 0 : index
    %c0_7 = arith.constant 0 : index
    %9 = vector.load %arg3[%c0_5, %c0_6, %c0_7] : memref<2x32x384xf32, #tpu.memory_space<vmem>>, vector<1x32x384xf32>
    %10 = vector.shape_cast %9 : vector<1x32x384xf32> to vector<32x384xf32>
    %cst_8 = arith.constant dense<0.000000e+00> : vector<48x384xf32>
    %11 = tpu.matmul %8, %10, %cst_8 {dimension_numbers = #tpu.dot_dimension_numbers<[1], [0], [0], [1], [0, 0, 1, 1], [], []>} : vector<48x32xf32>, vector<32x384xf32>, vector<48x384xf32> -> vector<48x384xf32>
    %c0_9 = arith.constant 0 : index
    %c0_10 = arith.constant 0 : index
    %c0_11 = arith.constant 0 : index
    %12 = vector.load %arg4[%c0_9, %c0_10, %c0_11] : memref<2x1x384xf32, #tpu.memory_space<vmem>>, vector<1x1x384xf32>
    %13 = vector.shape_cast %12 : vector<1x1x384xf32> to vector<1x384xf32>
    %14 = vector.broadcast %13 : vector<1x384xf32> to vector<48x384xf32>
    %15 = arith.addf %11, %14 : vector<48x384xf32>
    %c1 = arith.constant 1 : index
    %c0_12 = arith.constant 0 : index
    %c0_13 = arith.constant 0 : index
    %16 = vector.load %arg3[%c1, %c0_12, %c0_13] : memref<2x32x384xf32, #tpu.memory_space<vmem>>, vector<1x32x384xf32>
    %17 = vector.shape_cast %16 : vector<1x32x384xf32> to vector<32x384xf32>
    %cst_14 = arith.constant dense<0.000000e+00> : vector<48x384xf32>
    %18 = tpu.matmul %8, %17, %cst_14 {dimension_numbers = #tpu.dot_dimension_numbers<[1], [0], [0], [1], [0, 0, 1, 1], [], []>} : vector<48x32xf32>, vector<32x384xf32>, vector<48x384xf32> -> vector<48x384xf32>
    %c1_15 = arith.constant 1 : index
    %c0_16 = arith.constant 0 : index
    %c0_17 = arith.constant 0 : index
    %19 = vector.load %arg4[%c1_15, %c0_16, %c0_17] : memref<2x1x384xf32, #tpu.memory_space<vmem>>, vector<1x1x384xf32>
    %20 = vector.shape_cast %19 : vector<1x1x384xf32> to vector<1x384xf32>
    %21 = vector.broadcast %20 : vector<1x384xf32> to vector<48x384xf32>
    %22 = arith.addf %18, %21 : vector<48x384xf32>
    %c0_18 = arith.constant 0 : index
    %c0_19 = arith.constant 0 : index
    %c0_20 = arith.constant 0 : index
    %23 = vector.load %arg5[%c0_18, %c0_19, %c0_20] : memref<2x128x384xf32, #tpu.memory_space<vmem>>, vector<1x128x384xf32>
    %24 = vector.shape_cast %23 : vector<1x128x384xf32> to vector<128x384xf32>
    %c0_21 = arith.constant 0 : index
    %c0_22 = arith.constant 0 : index
    %c0_23 = arith.constant 0 : index
    %25 = vector.load %arg6[%c0_21, %c0_22, %c0_23] : memref<2x1x384xf32, #tpu.memory_space<vmem>>, vector<1x1x384xf32>
    %26 = vector.shape_cast %25 : vector<1x1x384xf32> to vector<1x384xf32>
    %c1_24 = arith.constant 1 : index
    %c0_25 = arith.constant 0 : index
    %c0_26 = arith.constant 0 : index
    %27 = vector.load %arg5[%c1_24, %c0_25, %c0_26] : memref<2x128x384xf32, #tpu.memory_space<vmem>>, vector<1x128x384xf32>
    %28 = vector.shape_cast %27 : vector<1x128x384xf32> to vector<128x384xf32>
    %c1_27 = arith.constant 1 : index
    %c0_28 = arith.constant 0 : index
    %c0_29 = arith.constant 0 : index
    %29 = vector.load %arg6[%c1_27, %c0_28, %c0_29] : memref<2x1x384xf32, #tpu.memory_space<vmem>>, vector<1x1x384xf32>
    %30 = vector.shape_cast %29 : vector<1x1x384xf32> to vector<1x384xf32>
    %cst_30 = arith.constant 0.000000e+00 : f32
    %31 = vector.broadcast %cst_30 : f32 to vector<6x128xf32>
    %cst_31 = arith.constant 0.000000e+00 : f32
    %32 = vector.broadcast %cst_31 : f32 to vector<6x128xf32>
    %cst_32 = arith.constant 0xFF800000 : f32
    %33 = vector.broadcast %cst_32 : f32 to vector<6x128xf32>
    %cst_33 = arith.constant 0xFF800000 : f32
    %34 = vector.broadcast %cst_33 : f32 to vector<6x128xf32>
    %c0_i32 = arith.constant 0 : i32
    %35 = vector.broadcast %c0_i32 : i32 to vector<6x1xi32>
    %36 = arith.cmpi sgt, %1, %35 : vector<6x1xi32>
    %cst_34 = arith.constant dense<0.000000e+00> : vector<6x384xf32>
    %37 = tpu.matmul %31, %24, %cst_34 {dimension_numbers = #tpu.dot_dimension_numbers<[1], [0], [0], [1], [0, 0, 1, 1], [], []>} : vector<6x128xf32>, vector<128x384xf32>, vector<6x384xf32> -> vector<6x384xf32>
    %38 = vector.broadcast %26 : vector<1x384xf32> to vector<6x384xf32>
    %39 = arith.addf %37, %38 : vector<6x384xf32>
    %40 = vector.extract_strided_slice %15 {offsets = [0, 0], sizes = [6, 384], strides = [1, 1]} : vector<48x384xf32> to vector<6x384xf32>
    %41 = vector.extract_strided_slice %40 {offsets = [0, 0], sizes = [6, 128], strides = [1, 1]} : vector<6x384xf32> to vector<6x128xf32>
    %42 = vector.extract_strided_slice %39 {offsets = [0, 0], sizes = [6, 128], strides = [1, 1]} : vector<6x384xf32> to vector<6x128xf32>
    %43 = arith.addf %41, %42 : vector<6x128xf32>
    %44 = arith.negf %43 : vector<6x128xf32>
    %45 = math.exp %44 : vector<6x128xf32>
    %cst_35 = arith.constant 1.000000e+00 : f32
    %46 = vector.broadcast %cst_35 : f32 to vector<6x128xf32>
    %47 = arith.addf %46, %45 : vector<6x128xf32>
    %48 = arith.divf %46, %47 : vector<6x128xf32>
    %49 = vector.extract_strided_slice %40 {offsets = [0, 128], sizes = [6, 128], strides = [1, 1]} : vector<6x384xf32> to vector<6x128xf32>
    %50 = vector.extract_strided_slice %39 {offsets = [0, 128], sizes = [6, 128], strides = [1, 1]} : vector<6x384xf32> to vector<6x128xf32>
    %51 = arith.addf %49, %50 : vector<6x128xf32>
    %52 = arith.negf %51 : vector<6x128xf32>
    %53 = math.exp %52 : vector<6x128xf32>
    %cst_36 = arith.constant 1.000000e+00 : f32
    %54 = vector.broadcast %cst_36 : f32 to vector<6x128xf32>
    %55 = arith.addf %54, %53 : vector<6x128xf32>
    %56 = arith.divf %54, %55 : vector<6x128xf32>
    %57 = vector.extract_strided_slice %40 {offsets = [0, 256], sizes = [6, 128], strides = [1, 1]} : vector<6x384xf32> to vector<6x128xf32>
    %58 = vector.extract_strided_slice %39 {offsets = [0, 256], sizes = [6, 128], strides = [1, 1]} : vector<6x384xf32> to vector<6x128xf32>
    %59 = arith.mulf %48, %58 : vector<6x128xf32>
    %60 = arith.addf %57, %59 : vector<6x128xf32>
    %61 = math.tanh %60 : vector<6x128xf32>
    %cst_37 = arith.constant 1.000000e+00 : f32
    %62 = vector.broadcast %cst_37 : f32 to vector<6x128xf32>
    %63 = arith.subf %62, %56 : vector<6x128xf32>
    %64 = arith.mulf %63, %61 : vector<6x128xf32>
    %65 = arith.mulf %56, %31 : vector<6x128xf32>
    %66 = arith.addf %64, %65 : vector<6x128xf32>
    %67 = vector.shape_cast %36 : vector<6x1xi1> to vector<6x1xi1>
    %68 = vector.broadcast %67 : vector<6x1xi1> to vector<6x128xi1>
    %69 = arith.select %68, %66, %31 : vector<6x128xi1>, vector<6x128xf32>
    %cst_38 = arith.constant 0.000000e+00 : f32
    %70 = vector.shape_cast %36 : vector<6x1xi1> to vector<6x1xi1>
    %71 = vector.broadcast %70 : vector<6x1xi1> to vector<6x128xi1>
    %72 = vector.broadcast %cst_38 : f32 to vector<6x128xf32>
    %73 = arith.select %71, %69, %72 : vector<6x128xi1>, vector<6x128xf32>
    %74 = arith.maximumf %33, %73 : vector<6x128xf32>
    %c7_i32 = arith.constant 7 : i32
    %75 = vector.broadcast %c7_i32 : i32 to vector<6x1xi32>
    %76 = arith.cmpi sgt, %1, %75 : vector<6x1xi32>
    %cst_39 = arith.constant dense<0.000000e+00> : vector<6x384xf32>
    %77 = tpu.matmul %32, %28, %cst_39 {dimension_numbers = #tpu.dot_dimension_numbers<[1], [0], [0], [1], [0, 0, 1, 1], [], []>} : vector<6x128xf32>, vector<128x384xf32>, vector<6x384xf32> -> vector<6x384xf32>
    %78 = vector.broadcast %30 : vector<1x384xf32> to vector<6x384xf32>
    %79 = arith.addf %77, %78 : vector<6x384xf32>
    %80 = vector.extract_strided_slice %22 {offsets = [42, 0], sizes = [6, 384], strides = [1, 1]} : vector<48x384xf32> to vector<6x384xf32>
    %81 = vector.extract_strided_slice %80 {offsets = [0, 0], sizes = [6, 128], strides = [1, 1]} : vector<6x384xf32> to vector<6x128xf32>
    %82 = vector.extract_strided_slice %79 {offsets = [0, 0], sizes = [6, 128], strides = [1, 1]} : vector<6x384xf32> to vector<6x128xf32>
    %83 = arith.addf %81, %82 : vector<6x128xf32>
    %84 = arith.negf %83 : vector<6x128xf32>
    %85 = math.exp %84 : vector<6x128xf32>
    %cst_40 = arith.constant 1.000000e+00 : f32
    %86 = vector.broadcast %cst_40 : f32 to vector<6x128xf32>
    %87 = arith.addf %86, %85 : vector<6x128xf32>
    %88 = arith.divf %86, %87 : vector<6x128xf32>
    %89 = vector.extract_strided_slice %80 {offsets = [0, 128], sizes = [6, 128], strides = [1, 1]} : vector<6x384xf32> to vector<6x128xf32>
    %90 = vector.extract_strided_slice %79 {offsets = [0, 128], sizes = [6, 128], strides = [1, 1]} : vector<6x384xf32> to vector<6x128xf32>
    %91 = arith.addf %89, %90 : vector<6x128xf32>
    %92 = arith.negf %91 : vector<6x128xf32>
    %93 = math.exp %92 : vector<6x128xf32>
    %cst_41 = arith.constant 1.000000e+00 : f32
    %94 = vector.broadcast %cst_41 : f32 to vector<6x128xf32>
    %95 = arith.addf %94, %93 : vector<6x128xf32>
    %96 = arith.divf %94, %95 : vector<6x128xf32>
    %97 = vector.extract_strided_slice %80 {offsets = [0, 256], sizes = [6, 128], strides = [1, 1]} : vector<6x384xf32> to vector<6x128xf32>
    %98 = vector.extract_strided_slice %79 {offsets = [0, 256], sizes = [6, 128], strides = [1, 1]} : vector<6x384xf32> to vector<6x128xf32>
    %99 = arith.mulf %88, %98 : vector<6x128xf32>
    %100 = arith.addf %97, %99 : vector<6x128xf32>
    %101 = math.tanh %100 : vector<6x128xf32>
    %cst_42 = arith.constant 1.000000e+00 : f32
    %102 = vector.broadcast %cst_42 : f32 to vector<6x128xf32>
    %103 = arith.subf %102, %96 : vector<6x128xf32>
    %104 = arith.mulf %103, %101 : vector<6x128xf32>
    %105 = arith.mulf %96, %32 : vector<6x128xf32>
    %106 = arith.addf %104, %105 : vector<6x128xf32>
    %107 = vector.shape_cast %76 : vector<6x1xi1> to vector<6x1xi1>
    %108 = vector.broadcast %107 : vector<6x1xi1> to vector<6x128xi1>
    %109 = arith.select %108, %106, %32 : vector<6x128xi1>, vector<6x128xf32>
    %cst_43 = arith.constant 0.000000e+00 : f32
    %110 = vector.shape_cast %76 : vector<6x1xi1> to vector<6x1xi1>
    %111 = vector.broadcast %110 : vector<6x1xi1> to vector<6x128xi1>
    %112 = vector.broadcast %cst_43 : f32 to vector<6x128xf32>
    %113 = arith.select %111, %109, %112 : vector<6x128xi1>, vector<6x128xf32>
    %114 = arith.maximumf %34, %113 : vector<6x128xf32>
    %c1_i32 = arith.constant 1 : i32
    %115 = vector.broadcast %c1_i32 : i32 to vector<6x1xi32>
    %116 = arith.cmpi sgt, %1, %115 : vector<6x1xi32>
    %cst_44 = arith.constant dense<0.000000e+00> : vector<6x384xf32>
    %117 = tpu.matmul %69, %24, %cst_44 {dimension_numbers = #tpu.dot_dimension_numbers<[1], [0], [0], [1], [0, 0, 1, 1], [], []>} : vector<6x128xf32>, vector<128x384xf32>, vector<6x384xf32> -> vector<6x384xf32>
    %118 = vector.broadcast %26 : vector<1x384xf32> to vector<6x384xf32>
    %119 = arith.addf %117, %118 : vector<6x384xf32>
    %120 = vector.extract_strided_slice %15 {offsets = [6, 0], sizes = [6, 384], strides = [1, 1]} : vector<48x384xf32> to vector<6x384xf32>
    %121 = vector.extract_strided_slice %120 {offsets = [0, 0], sizes = [6, 128], strides = [1, 1]} : vector<6x384xf32> to vector<6x128xf32>
    %122 = vector.extract_strided_slice %119 {offsets = [0, 0], sizes = [6, 128], strides = [1, 1]} : vector<6x384xf32> to vector<6x128xf32>
    %123 = arith.addf %121, %122 : vector<6x128xf32>
    %124 = arith.negf %123 : vector<6x128xf32>
    %125 = math.exp %124 : vector<6x128xf32>
    %cst_45 = arith.constant 1.000000e+00 : f32
    %126 = vector.broadcast %cst_45 : f32 to vector<6x128xf32>
    %127 = arith.addf %126, %125 : vector<6x128xf32>
    %128 = arith.divf %126, %127 : vector<6x128xf32>
    %129 = vector.extract_strided_slice %120 {offsets = [0, 128], sizes = [6, 128], strides = [1, 1]} : vector<6x384xf32> to vector<6x128xf32>
    %130 = vector.extract_strided_slice %119 {offsets = [0, 128], sizes = [6, 128], strides = [1, 1]} : vector<6x384xf32> to vector<6x128xf32>
    %131 = arith.addf %129, %130 : vector<6x128xf32>
    %132 = arith.negf %131 : vector<6x128xf32>
    %133 = math.exp %132 : vector<6x128xf32>
    %cst_46 = arith.constant 1.000000e+00 : f32
    %134 = vector.broadcast %cst_46 : f32 to vector<6x128xf32>
    %135 = arith.addf %134, %133 : vector<6x128xf32>
    %136 = arith.divf %134, %135 : vector<6x128xf32>
    %137 = vector.extract_strided_slice %120 {offsets = [0, 256], sizes = [6, 128], strides = [1, 1]} : vector<6x384xf32> to vector<6x128xf32>
    %138 = vector.extract_strided_slice %119 {offsets = [0, 256], sizes = [6, 128], strides = [1, 1]} : vector<6x384xf32> to vector<6x128xf32>
    %139 = arith.mulf %128, %138 : vector<6x128xf32>
    %140 = arith.addf %137, %139 : vector<6x128xf32>
    %141 = math.tanh %140 : vector<6x128xf32>
    %cst_47 = arith.constant 1.000000e+00 : f32
    %142 = vector.broadcast %cst_47 : f32 to vector<6x128xf32>
    %143 = arith.subf %142, %136 : vector<6x128xf32>
    %144 = arith.mulf %143, %141 : vector<6x128xf32>
    %145 = arith.mulf %136, %69 : vector<6x128xf32>
    %146 = arith.addf %144, %145 : vector<6x128xf32>
    %147 = vector.shape_cast %116 : vector<6x1xi1> to vector<6x1xi1>
    %148 = vector.broadcast %147 : vector<6x1xi1> to vector<6x128xi1>
    %149 = arith.select %148, %146, %69 : vector<6x128xi1>, vector<6x128xf32>
    %cst_48 = arith.constant 0.000000e+00 : f32
    %150 = vector.shape_cast %116 : vector<6x1xi1> to vector<6x1xi1>
    %151 = vector.broadcast %150 : vector<6x1xi1> to vector<6x128xi1>
    %152 = vector.broadcast %cst_48 : f32 to vector<6x128xf32>
    %153 = arith.select %151, %149, %152 : vector<6x128xi1>, vector<6x128xf32>
    %154 = arith.maximumf %74, %153 : vector<6x128xf32>
    %c6_i32 = arith.constant 6 : i32
    %155 = vector.broadcast %c6_i32 : i32 to vector<6x1xi32>
    %156 = arith.cmpi sgt, %1, %155 : vector<6x1xi32>
    %cst_49 = arith.constant dense<0.000000e+00> : vector<6x384xf32>
    %157 = tpu.matmul %109, %28, %cst_49 {dimension_numbers = #tpu.dot_dimension_numbers<[1], [0], [0], [1], [0, 0, 1, 1], [], []>} : vector<6x128xf32>, vector<128x384xf32>, vector<6x384xf32> -> vector<6x384xf32>
    %158 = vector.broadcast %30 : vector<1x384xf32> to vector<6x384xf32>
    %159 = arith.addf %157, %158 : vector<6x384xf32>
    %160 = vector.extract_strided_slice %22 {offsets = [36, 0], sizes = [6, 384], strides = [1, 1]} : vector<48x384xf32> to vector<6x384xf32>
    %161 = vector.extract_strided_slice %160 {offsets = [0, 0], sizes = [6, 128], strides = [1, 1]} : vector<6x384xf32> to vector<6x128xf32>
    %162 = vector.extract_strided_slice %159 {offsets = [0, 0], sizes = [6, 128], strides = [1, 1]} : vector<6x384xf32> to vector<6x128xf32>
    %163 = arith.addf %161, %162 : vector<6x128xf32>
    %164 = arith.negf %163 : vector<6x128xf32>
    %165 = math.exp %164 : vector<6x128xf32>
    %cst_50 = arith.constant 1.000000e+00 : f32
    %166 = vector.broadcast %cst_50 : f32 to vector<6x128xf32>
    %167 = arith.addf %166, %165 : vector<6x128xf32>
    %168 = arith.divf %166, %167 : vector<6x128xf32>
    %169 = vector.extract_strided_slice %160 {offsets = [0, 128], sizes = [6, 128], strides = [1, 1]} : vector<6x384xf32> to vector<6x128xf32>
    %170 = vector.extract_strided_slice %159 {offsets = [0, 128], sizes = [6, 128], strides = [1, 1]} : vector<6x384xf32> to vector<6x128xf32>
    %171 = arith.addf %169, %170 : vector<6x128xf32>
    %172 = arith.negf %171 : vector<6x128xf32>
    %173 = math.exp %172 : vector<6x128xf32>
    %cst_51 = arith.constant 1.000000e+00 : f32
    %174 = vector.broadcast %cst_51 : f32 to vector<6x128xf32>
    %175 = arith.addf %174, %173 : vector<6x128xf32>
    %176 = arith.divf %174, %175 : vector<6x128xf32>
    %177 = vector.extract_strided_slice %160 {offsets = [0, 256], sizes = [6, 128], strides = [1, 1]} : vector<6x384xf32> to vector<6x128xf32>
    %178 = vector.extract_strided_slice %159 {offsets = [0, 256], sizes = [6, 128], strides = [1, 1]} : vector<6x384xf32> to vector<6x128xf32>
    %179 = arith.mulf %168, %178 : vector<6x128xf32>
    %180 = arith.addf %177, %179 : vector<6x128xf32>
    %181 = math.tanh %180 : vector<6x128xf32>
    %cst_52 = arith.constant 1.000000e+00 : f32
    %182 = vector.broadcast %cst_52 : f32 to vector<6x128xf32>
    %183 = arith.subf %182, %176 : vector<6x128xf32>
    %184 = arith.mulf %183, %181 : vector<6x128xf32>
    %185 = arith.mulf %176, %109 : vector<6x128xf32>
    %186 = arith.addf %184, %185 : vector<6x128xf32>
    %187 = vector.shape_cast %156 : vector<6x1xi1> to vector<6x1xi1>
    %188 = vector.broadcast %187 : vector<6x1xi1> to vector<6x128xi1>
    %189 = arith.select %188, %186, %109 : vector<6x128xi1>, vector<6x128xf32>
    %cst_53 = arith.constant 0.000000e+00 : f32
    %190 = vector.shape_cast %156 : vector<6x1xi1> to vector<6x1xi1>
    %191 = vector.broadcast %190 : vector<6x1xi1> to vector<6x128xi1>
    %192 = vector.broadcast %cst_53 : f32 to vector<6x128xf32>
    %193 = arith.select %191, %189, %192 : vector<6x128xi1>, vector<6x128xf32>
    %194 = arith.maximumf %114, %193 : vector<6x128xf32>
    %c2_i32 = arith.constant 2 : i32
    %195 = vector.broadcast %c2_i32 : i32 to vector<6x1xi32>
    %196 = arith.cmpi sgt, %1, %195 : vector<6x1xi32>
    %cst_54 = arith.constant dense<0.000000e+00> : vector<6x384xf32>
    %197 = tpu.matmul %149, %24, %cst_54 {dimension_numbers = #tpu.dot_dimension_numbers<[1], [0], [0], [1], [0, 0, 1, 1], [], []>} : vector<6x128xf32>, vector<128x384xf32>, vector<6x384xf32> -> vector<6x384xf32>
    %198 = vector.broadcast %26 : vector<1x384xf32> to vector<6x384xf32>
    %199 = arith.addf %197, %198 : vector<6x384xf32>
    %200 = vector.extract_strided_slice %15 {offsets = [12, 0], sizes = [6, 384], strides = [1, 1]} : vector<48x384xf32> to vector<6x384xf32>
    %201 = vector.extract_strided_slice %200 {offsets = [0, 0], sizes = [6, 128], strides = [1, 1]} : vector<6x384xf32> to vector<6x128xf32>
    %202 = vector.extract_strided_slice %199 {offsets = [0, 0], sizes = [6, 128], strides = [1, 1]} : vector<6x384xf32> to vector<6x128xf32>
    %203 = arith.addf %201, %202 : vector<6x128xf32>
    %204 = arith.negf %203 : vector<6x128xf32>
    %205 = math.exp %204 : vector<6x128xf32>
    %cst_55 = arith.constant 1.000000e+00 : f32
    %206 = vector.broadcast %cst_55 : f32 to vector<6x128xf32>
    %207 = arith.addf %206, %205 : vector<6x128xf32>
    %208 = arith.divf %206, %207 : vector<6x128xf32>
    %209 = vector.extract_strided_slice %200 {offsets = [0, 128], sizes = [6, 128], strides = [1, 1]} : vector<6x384xf32> to vector<6x128xf32>
    %210 = vector.extract_strided_slice %199 {offsets = [0, 128], sizes = [6, 128], strides = [1, 1]} : vector<6x384xf32> to vector<6x128xf32>
    %211 = arith.addf %209, %210 : vector<6x128xf32>
    %212 = arith.negf %211 : vector<6x128xf32>
    %213 = math.exp %212 : vector<6x128xf32>
    %cst_56 = arith.constant 1.000000e+00 : f32
    %214 = vector.broadcast %cst_56 : f32 to vector<6x128xf32>
    %215 = arith.addf %214, %213 : vector<6x128xf32>
    %216 = arith.divf %214, %215 : vector<6x128xf32>
    %217 = vector.extract_strided_slice %200 {offsets = [0, 256], sizes = [6, 128], strides = [1, 1]} : vector<6x384xf32> to vector<6x128xf32>
    %218 = vector.extract_strided_slice %199 {offsets = [0, 256], sizes = [6, 128], strides = [1, 1]} : vector<6x384xf32> to vector<6x128xf32>
    %219 = arith.mulf %208, %218 : vector<6x128xf32>
    %220 = arith.addf %217, %219 : vector<6x128xf32>
    %221 = math.tanh %220 : vector<6x128xf32>
    %cst_57 = arith.constant 1.000000e+00 : f32
    %222 = vector.broadcast %cst_57 : f32 to vector<6x128xf32>
    %223 = arith.subf %222, %216 : vector<6x128xf32>
    %224 = arith.mulf %223, %221 : vector<6x128xf32>
    %225 = arith.mulf %216, %149 : vector<6x128xf32>
    %226 = arith.addf %224, %225 : vector<6x128xf32>
    %227 = vector.shape_cast %196 : vector<6x1xi1> to vector<6x1xi1>
    %228 = vector.broadcast %227 : vector<6x1xi1> to vector<6x128xi1>
    %229 = arith.select %228, %226, %149 : vector<6x128xi1>, vector<6x128xf32>
    %cst_58 = arith.constant 0.000000e+00 : f32
    %230 = vector.shape_cast %196 : vector<6x1xi1> to vector<6x1xi1>
    %231 = vector.broadcast %230 : vector<6x1xi1> to vector<6x128xi1>
    %232 = vector.broadcast %cst_58 : f32 to vector<6x128xf32>
    %233 = arith.select %231, %229, %232 : vector<6x128xi1>, vector<6x128xf32>
    %234 = arith.maximumf %154, %233 : vector<6x128xf32>
    %c5_i32 = arith.constant 5 : i32
    %235 = vector.broadcast %c5_i32 : i32 to vector<6x1xi32>
    %236 = arith.cmpi sgt, %1, %235 : vector<6x1xi32>
    %cst_59 = arith.constant dense<0.000000e+00> : vector<6x384xf32>
    %237 = tpu.matmul %189, %28, %cst_59 {dimension_numbers = #tpu.dot_dimension_numbers<[1], [0], [0], [1], [0, 0, 1, 1], [], []>} : vector<6x128xf32>, vector<128x384xf32>, vector<6x384xf32> -> vector<6x384xf32>
    %238 = vector.broadcast %30 : vector<1x384xf32> to vector<6x384xf32>
    %239 = arith.addf %237, %238 : vector<6x384xf32>
    %240 = vector.extract_strided_slice %22 {offsets = [30, 0], sizes = [6, 384], strides = [1, 1]} : vector<48x384xf32> to vector<6x384xf32>
    %241 = vector.extract_strided_slice %240 {offsets = [0, 0], sizes = [6, 128], strides = [1, 1]} : vector<6x384xf32> to vector<6x128xf32>
    %242 = vector.extract_strided_slice %239 {offsets = [0, 0], sizes = [6, 128], strides = [1, 1]} : vector<6x384xf32> to vector<6x128xf32>
    %243 = arith.addf %241, %242 : vector<6x128xf32>
    %244 = arith.negf %243 : vector<6x128xf32>
    %245 = math.exp %244 : vector<6x128xf32>
    %cst_60 = arith.constant 1.000000e+00 : f32
    %246 = vector.broadcast %cst_60 : f32 to vector<6x128xf32>
    %247 = arith.addf %246, %245 : vector<6x128xf32>
    %248 = arith.divf %246, %247 : vector<6x128xf32>
    %249 = vector.extract_strided_slice %240 {offsets = [0, 128], sizes = [6, 128], strides = [1, 1]} : vector<6x384xf32> to vector<6x128xf32>
    %250 = vector.extract_strided_slice %239 {offsets = [0, 128], sizes = [6, 128], strides = [1, 1]} : vector<6x384xf32> to vector<6x128xf32>
    %251 = arith.addf %249, %250 : vector<6x128xf32>
    %252 = arith.negf %251 : vector<6x128xf32>
    %253 = math.exp %252 : vector<6x128xf32>
    %cst_61 = arith.constant 1.000000e+00 : f32
    %254 = vector.broadcast %cst_61 : f32 to vector<6x128xf32>
    %255 = arith.addf %254, %253 : vector<6x128xf32>
    %256 = arith.divf %254, %255 : vector<6x128xf32>
    %257 = vector.extract_strided_slice %240 {offsets = [0, 256], sizes = [6, 128], strides = [1, 1]} : vector<6x384xf32> to vector<6x128xf32>
    %258 = vector.extract_strided_slice %239 {offsets = [0, 256], sizes = [6, 128], strides = [1, 1]} : vector<6x384xf32> to vector<6x128xf32>
    %259 = arith.mulf %248, %258 : vector<6x128xf32>
    %260 = arith.addf %257, %259 : vector<6x128xf32>
    %261 = math.tanh %260 : vector<6x128xf32>
    %cst_62 = arith.constant 1.000000e+00 : f32
    %262 = vector.broadcast %cst_62 : f32 to vector<6x128xf32>
    %263 = arith.subf %262, %256 : vector<6x128xf32>
    %264 = arith.mulf %263, %261 : vector<6x128xf32>
    %265 = arith.mulf %256, %189 : vector<6x128xf32>
    %266 = arith.addf %264, %265 : vector<6x128xf32>
    %267 = vector.shape_cast %236 : vector<6x1xi1> to vector<6x1xi1>
    %268 = vector.broadcast %267 : vector<6x1xi1> to vector<6x128xi1>
    %269 = arith.select %268, %266, %189 : vector<6x128xi1>, vector<6x128xf32>
    %cst_63 = arith.constant 0.000000e+00 : f32
    %270 = vector.shape_cast %236 : vector<6x1xi1> to vector<6x1xi1>
    %271 = vector.broadcast %270 : vector<6x1xi1> to vector<6x128xi1>
    %272 = vector.broadcast %cst_63 : f32 to vector<6x128xf32>
    %273 = arith.select %271, %269, %272 : vector<6x128xi1>, vector<6x128xf32>
    %274 = arith.maximumf %194, %273 : vector<6x128xf32>
    %c3_i32 = arith.constant 3 : i32
    %275 = vector.broadcast %c3_i32 : i32 to vector<6x1xi32>
    %276 = arith.cmpi sgt, %1, %275 : vector<6x1xi32>
    %cst_64 = arith.constant dense<0.000000e+00> : vector<6x384xf32>
    %277 = tpu.matmul %229, %24, %cst_64 {dimension_numbers = #tpu.dot_dimension_numbers<[1], [0], [0], [1], [0, 0, 1, 1], [], []>} : vector<6x128xf32>, vector<128x384xf32>, vector<6x384xf32> -> vector<6x384xf32>
    %278 = vector.broadcast %26 : vector<1x384xf32> to vector<6x384xf32>
    %279 = arith.addf %277, %278 : vector<6x384xf32>
    %280 = vector.extract_strided_slice %15 {offsets = [18, 0], sizes = [6, 384], strides = [1, 1]} : vector<48x384xf32> to vector<6x384xf32>
    %281 = vector.extract_strided_slice %280 {offsets = [0, 0], sizes = [6, 128], strides = [1, 1]} : vector<6x384xf32> to vector<6x128xf32>
    %282 = vector.extract_strided_slice %279 {offsets = [0, 0], sizes = [6, 128], strides = [1, 1]} : vector<6x384xf32> to vector<6x128xf32>
    %283 = arith.addf %281, %282 : vector<6x128xf32>
    %284 = arith.negf %283 : vector<6x128xf32>
    %285 = math.exp %284 : vector<6x128xf32>
    %cst_65 = arith.constant 1.000000e+00 : f32
    %286 = vector.broadcast %cst_65 : f32 to vector<6x128xf32>
    %287 = arith.addf %286, %285 : vector<6x128xf32>
    %288 = arith.divf %286, %287 : vector<6x128xf32>
    %289 = vector.extract_strided_slice %280 {offsets = [0, 128], sizes = [6, 128], strides = [1, 1]} : vector<6x384xf32> to vector<6x128xf32>
    %290 = vector.extract_strided_slice %279 {offsets = [0, 128], sizes = [6, 128], strides = [1, 1]} : vector<6x384xf32> to vector<6x128xf32>
    %291 = arith.addf %289, %290 : vector<6x128xf32>
    %292 = arith.negf %291 : vector<6x128xf32>
    %293 = math.exp %292 : vector<6x128xf32>
    %cst_66 = arith.constant 1.000000e+00 : f32
    %294 = vector.broadcast %cst_66 : f32 to vector<6x128xf32>
    %295 = arith.addf %294, %293 : vector<6x128xf32>
    %296 = arith.divf %294, %295 : vector<6x128xf32>
    %297 = vector.extract_strided_slice %280 {offsets = [0, 256], sizes = [6, 128], strides = [1, 1]} : vector<6x384xf32> to vector<6x128xf32>
    %298 = vector.extract_strided_slice %279 {offsets = [0, 256], sizes = [6, 128], strides = [1, 1]} : vector<6x384xf32> to vector<6x128xf32>
    %299 = arith.mulf %288, %298 : vector<6x128xf32>
    %300 = arith.addf %297, %299 : vector<6x128xf32>
    %301 = math.tanh %300 : vector<6x128xf32>
    %cst_67 = arith.constant 1.000000e+00 : f32
    %302 = vector.broadcast %cst_67 : f32 to vector<6x128xf32>
    %303 = arith.subf %302, %296 : vector<6x128xf32>
    %304 = arith.mulf %303, %301 : vector<6x128xf32>
    %305 = arith.mulf %296, %229 : vector<6x128xf32>
    %306 = arith.addf %304, %305 : vector<6x128xf32>
    %307 = vector.shape_cast %276 : vector<6x1xi1> to vector<6x1xi1>
    %308 = vector.broadcast %307 : vector<6x1xi1> to vector<6x128xi1>
    %309 = arith.select %308, %306, %229 : vector<6x128xi1>, vector<6x128xf32>
    %cst_68 = arith.constant 0.000000e+00 : f32
    %310 = vector.shape_cast %276 : vector<6x1xi1> to vector<6x1xi1>
    %311 = vector.broadcast %310 : vector<6x1xi1> to vector<6x128xi1>
    %312 = vector.broadcast %cst_68 : f32 to vector<6x128xf32>
    %313 = arith.select %311, %309, %312 : vector<6x128xi1>, vector<6x128xf32>
    %314 = arith.maximumf %234, %313 : vector<6x128xf32>
    %c4_i32 = arith.constant 4 : i32
    %315 = vector.broadcast %c4_i32 : i32 to vector<6x1xi32>
    %316 = arith.cmpi sgt, %1, %315 : vector<6x1xi32>
    %cst_69 = arith.constant dense<0.000000e+00> : vector<6x384xf32>
    %317 = tpu.matmul %269, %28, %cst_69 {dimension_numbers = #tpu.dot_dimension_numbers<[1], [0], [0], [1], [0, 0, 1, 1], [], []>} : vector<6x128xf32>, vector<128x384xf32>, vector<6x384xf32> -> vector<6x384xf32>
    %318 = vector.broadcast %30 : vector<1x384xf32> to vector<6x384xf32>
    %319 = arith.addf %317, %318 : vector<6x384xf32>
    %320 = vector.extract_strided_slice %22 {offsets = [24, 0], sizes = [6, 384], strides = [1, 1]} : vector<48x384xf32> to vector<6x384xf32>
    %321 = vector.extract_strided_slice %320 {offsets = [0, 0], sizes = [6, 128], strides = [1, 1]} : vector<6x384xf32> to vector<6x128xf32>
    %322 = vector.extract_strided_slice %319 {offsets = [0, 0], sizes = [6, 128], strides = [1, 1]} : vector<6x384xf32> to vector<6x128xf32>
    %323 = arith.addf %321, %322 : vector<6x128xf32>
    %324 = arith.negf %323 : vector<6x128xf32>
    %325 = math.exp %324 : vector<6x128xf32>
    %cst_70 = arith.constant 1.000000e+00 : f32
    %326 = vector.broadcast %cst_70 : f32 to vector<6x128xf32>
    %327 = arith.addf %326, %325 : vector<6x128xf32>
    %328 = arith.divf %326, %327 : vector<6x128xf32>
    %329 = vector.extract_strided_slice %320 {offsets = [0, 128], sizes = [6, 128], strides = [1, 1]} : vector<6x384xf32> to vector<6x128xf32>
    %330 = vector.extract_strided_slice %319 {offsets = [0, 128], sizes = [6, 128], strides = [1, 1]} : vector<6x384xf32> to vector<6x128xf32>
    %331 = arith.addf %329, %330 : vector<6x128xf32>
    %332 = arith.negf %331 : vector<6x128xf32>
    %333 = math.exp %332 : vector<6x128xf32>
    %cst_71 = arith.constant 1.000000e+00 : f32
    %334 = vector.broadcast %cst_71 : f32 to vector<6x128xf32>
    %335 = arith.addf %334, %333 : vector<6x128xf32>
    %336 = arith.divf %334, %335 : vector<6x128xf32>
    %337 = vector.extract_strided_slice %320 {offsets = [0, 256], sizes = [6, 128], strides = [1, 1]} : vector<6x384xf32> to vector<6x128xf32>
    %338 = vector.extract_strided_slice %319 {offsets = [0, 256], sizes = [6, 128], strides = [1, 1]} : vector<6x384xf32> to vector<6x128xf32>
    %339 = arith.mulf %328, %338 : vector<6x128xf32>
    %340 = arith.addf %337, %339 : vector<6x128xf32>
    %341 = math.tanh %340 : vector<6x128xf32>
    %cst_72 = arith.constant 1.000000e+00 : f32
    %342 = vector.broadcast %cst_72 : f32 to vector<6x128xf32>
    %343 = arith.subf %342, %336 : vector<6x128xf32>
    %344 = arith.mulf %343, %341 : vector<6x128xf32>
    %345 = arith.mulf %336, %269 : vector<6x128xf32>
    %346 = arith.addf %344, %345 : vector<6x128xf32>
    %347 = vector.shape_cast %316 : vector<6x1xi1> to vector<6x1xi1>
    %348 = vector.broadcast %347 : vector<6x1xi1> to vector<6x128xi1>
    %349 = arith.select %348, %346, %269 : vector<6x128xi1>, vector<6x128xf32>
    %cst_73 = arith.constant 0.000000e+00 : f32
    %350 = vector.shape_cast %316 : vector<6x1xi1> to vector<6x1xi1>
    %351 = vector.broadcast %350 : vector<6x1xi1> to vector<6x128xi1>
    %352 = vector.broadcast %cst_73 : f32 to vector<6x128xf32>
    %353 = arith.select %351, %349, %352 : vector<6x128xi1>, vector<6x128xf32>
    %354 = arith.maximumf %274, %353 : vector<6x128xf32>
    %c4_i32_74 = arith.constant 4 : i32
    %355 = vector.broadcast %c4_i32_74 : i32 to vector<6x1xi32>
    %356 = arith.cmpi sgt, %1, %355 : vector<6x1xi32>
    %cst_75 = arith.constant dense<0.000000e+00> : vector<6x384xf32>
    %357 = tpu.matmul %309, %24, %cst_75 {dimension_numbers = #tpu.dot_dimension_numbers<[1], [0], [0], [1], [0, 0, 1, 1], [], []>} : vector<6x128xf32>, vector<128x384xf32>, vector<6x384xf32> -> vector<6x384xf32>
    %358 = vector.broadcast %26 : vector<1x384xf32> to vector<6x384xf32>
    %359 = arith.addf %357, %358 : vector<6x384xf32>
    %360 = vector.extract_strided_slice %15 {offsets = [24, 0], sizes = [6, 384], strides = [1, 1]} : vector<48x384xf32> to vector<6x384xf32>
    %361 = vector.extract_strided_slice %360 {offsets = [0, 0], sizes = [6, 128], strides = [1, 1]} : vector<6x384xf32> to vector<6x128xf32>
    %362 = vector.extract_strided_slice %359 {offsets = [0, 0], sizes = [6, 128], strides = [1, 1]} : vector<6x384xf32> to vector<6x128xf32>
    %363 = arith.addf %361, %362 : vector<6x128xf32>
    %364 = arith.negf %363 : vector<6x128xf32>
    %365 = math.exp %364 : vector<6x128xf32>
    %cst_76 = arith.constant 1.000000e+00 : f32
    %366 = vector.broadcast %cst_76 : f32 to vector<6x128xf32>
    %367 = arith.addf %366, %365 : vector<6x128xf32>
    %368 = arith.divf %366, %367 : vector<6x128xf32>
    %369 = vector.extract_strided_slice %360 {offsets = [0, 128], sizes = [6, 128], strides = [1, 1]} : vector<6x384xf32> to vector<6x128xf32>
    %370 = vector.extract_strided_slice %359 {offsets = [0, 128], sizes = [6, 128], strides = [1, 1]} : vector<6x384xf32> to vector<6x128xf32>
    %371 = arith.addf %369, %370 : vector<6x128xf32>
    %372 = arith.negf %371 : vector<6x128xf32>
    %373 = math.exp %372 : vector<6x128xf32>
    %cst_77 = arith.constant 1.000000e+00 : f32
    %374 = vector.broadcast %cst_77 : f32 to vector<6x128xf32>
    %375 = arith.addf %374, %373 : vector<6x128xf32>
    %376 = arith.divf %374, %375 : vector<6x128xf32>
    %377 = vector.extract_strided_slice %360 {offsets = [0, 256], sizes = [6, 128], strides = [1, 1]} : vector<6x384xf32> to vector<6x128xf32>
    %378 = vector.extract_strided_slice %359 {offsets = [0, 256], sizes = [6, 128], strides = [1, 1]} : vector<6x384xf32> to vector<6x128xf32>
    %379 = arith.mulf %368, %378 : vector<6x128xf32>
    %380 = arith.addf %377, %379 : vector<6x128xf32>
    %381 = math.tanh %380 : vector<6x128xf32>
    %cst_78 = arith.constant 1.000000e+00 : f32
    %382 = vector.broadcast %cst_78 : f32 to vector<6x128xf32>
    %383 = arith.subf %382, %376 : vector<6x128xf32>
    %384 = arith.mulf %383, %381 : vector<6x128xf32>
    %385 = arith.mulf %376, %309 : vector<6x128xf32>
    %386 = arith.addf %384, %385 : vector<6x128xf32>
    %387 = vector.shape_cast %356 : vector<6x1xi1> to vector<6x1xi1>
    %388 = vector.broadcast %387 : vector<6x1xi1> to vector<6x128xi1>
    %389 = arith.select %388, %386, %309 : vector<6x128xi1>, vector<6x128xf32>
    %cst_79 = arith.constant 0.000000e+00 : f32
    %390 = vector.shape_cast %356 : vector<6x1xi1> to vector<6x1xi1>
    %391 = vector.broadcast %390 : vector<6x1xi1> to vector<6x128xi1>
    %392 = vector.broadcast %cst_79 : f32 to vector<6x128xf32>
    %393 = arith.select %391, %389, %392 : vector<6x128xi1>, vector<6x128xf32>
    %394 = arith.maximumf %314, %393 : vector<6x128xf32>
    %c3_i32_80 = arith.constant 3 : i32
    %395 = vector.broadcast %c3_i32_80 : i32 to vector<6x1xi32>
    %396 = arith.cmpi sgt, %1, %395 : vector<6x1xi32>
    %cst_81 = arith.constant dense<0.000000e+00> : vector<6x384xf32>
    %397 = tpu.matmul %349, %28, %cst_81 {dimension_numbers = #tpu.dot_dimension_numbers<[1], [0], [0], [1], [0, 0, 1, 1], [], []>} : vector<6x128xf32>, vector<128x384xf32>, vector<6x384xf32> -> vector<6x384xf32>
    %398 = vector.broadcast %30 : vector<1x384xf32> to vector<6x384xf32>
    %399 = arith.addf %397, %398 : vector<6x384xf32>
    %400 = vector.extract_strided_slice %22 {offsets = [18, 0], sizes = [6, 384], strides = [1, 1]} : vector<48x384xf32> to vector<6x384xf32>
    %401 = vector.extract_strided_slice %400 {offsets = [0, 0], sizes = [6, 128], strides = [1, 1]} : vector<6x384xf32> to vector<6x128xf32>
    %402 = vector.extract_strided_slice %399 {offsets = [0, 0], sizes = [6, 128], strides = [1, 1]} : vector<6x384xf32> to vector<6x128xf32>
    %403 = arith.addf %401, %402 : vector<6x128xf32>
    %404 = arith.negf %403 : vector<6x128xf32>
    %405 = math.exp %404 : vector<6x128xf32>
    %cst_82 = arith.constant 1.000000e+00 : f32
    %406 = vector.broadcast %cst_82 : f32 to vector<6x128xf32>
    %407 = arith.addf %406, %405 : vector<6x128xf32>
    %408 = arith.divf %406, %407 : vector<6x128xf32>
    %409 = vector.extract_strided_slice %400 {offsets = [0, 128], sizes = [6, 128], strides = [1, 1]} : vector<6x384xf32> to vector<6x128xf32>
    %410 = vector.extract_strided_slice %399 {offsets = [0, 128], sizes = [6, 128], strides = [1, 1]} : vector<6x384xf32> to vector<6x128xf32>
    %411 = arith.addf %409, %410 : vector<6x128xf32>
    %412 = arith.negf %411 : vector<6x128xf32>
    %413 = math.exp %412 : vector<6x128xf32>
    %cst_83 = arith.constant 1.000000e+00 : f32
    %414 = vector.broadcast %cst_83 : f32 to vector<6x128xf32>
    %415 = arith.addf %414, %413 : vector<6x128xf32>
    %416 = arith.divf %414, %415 : vector<6x128xf32>
    %417 = vector.extract_strided_slice %400 {offsets = [0, 256], sizes = [6, 128], strides = [1, 1]} : vector<6x384xf32> to vector<6x128xf32>
    %418 = vector.extract_strided_slice %399 {offsets = [0, 256], sizes = [6, 128], strides = [1, 1]} : vector<6x384xf32> to vector<6x128xf32>
    %419 = arith.mulf %408, %418 : vector<6x128xf32>
    %420 = arith.addf %417, %419 : vector<6x128xf32>
    %421 = math.tanh %420 : vector<6x128xf32>
    %cst_84 = arith.constant 1.000000e+00 : f32
    %422 = vector.broadcast %cst_84 : f32 to vector<6x128xf32>
    %423 = arith.subf %422, %416 : vector<6x128xf32>
    %424 = arith.mulf %423, %421 : vector<6x128xf32>
    %425 = arith.mulf %416, %349 : vector<6x128xf32>
    %426 = arith.addf %424, %425 : vector<6x128xf32>
    %427 = vector.shape_cast %396 : vector<6x1xi1> to vector<6x1xi1>
    %428 = vector.broadcast %427 : vector<6x1xi1> to vector<6x128xi1>
    %429 = arith.select %428, %426, %349 : vector<6x128xi1>, vector<6x128xf32>
    %cst_85 = arith.constant 0.000000e+00 : f32
    %430 = vector.shape_cast %396 : vector<6x1xi1> to vector<6x1xi1>
    %431 = vector.broadcast %430 : vector<6x1xi1> to vector<6x128xi1>
    %432 = vector.broadcast %cst_85 : f32 to vector<6x128xf32>
    %433 = arith.select %431, %429, %432 : vector<6x128xi1>, vector<6x128xf32>
    %434 = arith.maximumf %354, %433 : vector<6x128xf32>
    %c5_i32_86 = arith.constant 5 : i32
    %435 = vector.broadcast %c5_i32_86 : i32 to vector<6x1xi32>
    %436 = arith.cmpi sgt, %1, %435 : vector<6x1xi32>
    %cst_87 = arith.constant dense<0.000000e+00> : vector<6x384xf32>
    %437 = tpu.matmul %389, %24, %cst_87 {dimension_numbers = #tpu.dot_dimension_numbers<[1], [0], [0], [1], [0, 0, 1, 1], [], []>} : vector<6x128xf32>, vector<128x384xf32>, vector<6x384xf32> -> vector<6x384xf32>
    %438 = vector.broadcast %26 : vector<1x384xf32> to vector<6x384xf32>
    %439 = arith.addf %437, %438 : vector<6x384xf32>
    %440 = vector.extract_strided_slice %15 {offsets = [30, 0], sizes = [6, 384], strides = [1, 1]} : vector<48x384xf32> to vector<6x384xf32>
    %441 = vector.extract_strided_slice %440 {offsets = [0, 0], sizes = [6, 128], strides = [1, 1]} : vector<6x384xf32> to vector<6x128xf32>
    %442 = vector.extract_strided_slice %439 {offsets = [0, 0], sizes = [6, 128], strides = [1, 1]} : vector<6x384xf32> to vector<6x128xf32>
    %443 = arith.addf %441, %442 : vector<6x128xf32>
    %444 = arith.negf %443 : vector<6x128xf32>
    %445 = math.exp %444 : vector<6x128xf32>
    %cst_88 = arith.constant 1.000000e+00 : f32
    %446 = vector.broadcast %cst_88 : f32 to vector<6x128xf32>
    %447 = arith.addf %446, %445 : vector<6x128xf32>
    %448 = arith.divf %446, %447 : vector<6x128xf32>
    %449 = vector.extract_strided_slice %440 {offsets = [0, 128], sizes = [6, 128], strides = [1, 1]} : vector<6x384xf32> to vector<6x128xf32>
    %450 = vector.extract_strided_slice %439 {offsets = [0, 128], sizes = [6, 128], strides = [1, 1]} : vector<6x384xf32> to vector<6x128xf32>
    %451 = arith.addf %449, %450 : vector<6x128xf32>
    %452 = arith.negf %451 : vector<6x128xf32>
    %453 = math.exp %452 : vector<6x128xf32>
    %cst_89 = arith.constant 1.000000e+00 : f32
    %454 = vector.broadcast %cst_89 : f32 to vector<6x128xf32>
    %455 = arith.addf %454, %453 : vector<6x128xf32>
    %456 = arith.divf %454, %455 : vector<6x128xf32>
    %457 = vector.extract_strided_slice %440 {offsets = [0, 256], sizes = [6, 128], strides = [1, 1]} : vector<6x384xf32> to vector<6x128xf32>
    %458 = vector.extract_strided_slice %439 {offsets = [0, 256], sizes = [6, 128], strides = [1, 1]} : vector<6x384xf32> to vector<6x128xf32>
    %459 = arith.mulf %448, %458 : vector<6x128xf32>
    %460 = arith.addf %457, %459 : vector<6x128xf32>
    %461 = math.tanh %460 : vector<6x128xf32>
    %cst_90 = arith.constant 1.000000e+00 : f32
    %462 = vector.broadcast %cst_90 : f32 to vector<6x128xf32>
    %463 = arith.subf %462, %456 : vector<6x128xf32>
    %464 = arith.mulf %463, %461 : vector<6x128xf32>
    %465 = arith.mulf %456, %389 : vector<6x128xf32>
    %466 = arith.addf %464, %465 : vector<6x128xf32>
    %467 = vector.shape_cast %436 : vector<6x1xi1> to vector<6x1xi1>
    %468 = vector.broadcast %467 : vector<6x1xi1> to vector<6x128xi1>
    %469 = arith.select %468, %466, %389 : vector<6x128xi1>, vector<6x128xf32>
    %cst_91 = arith.constant 0.000000e+00 : f32
    %470 = vector.shape_cast %436 : vector<6x1xi1> to vector<6x1xi1>
    %471 = vector.broadcast %470 : vector<6x1xi1> to vector<6x128xi1>
    %472 = vector.broadcast %cst_91 : f32 to vector<6x128xf32>
    %473 = arith.select %471, %469, %472 : vector<6x128xi1>, vector<6x128xf32>
    %474 = arith.maximumf %394, %473 : vector<6x128xf32>
    %c2_i32_92 = arith.constant 2 : i32
    %475 = vector.broadcast %c2_i32_92 : i32 to vector<6x1xi32>
    %476 = arith.cmpi sgt, %1, %475 : vector<6x1xi32>
    %cst_93 = arith.constant dense<0.000000e+00> : vector<6x384xf32>
    %477 = tpu.matmul %429, %28, %cst_93 {dimension_numbers = #tpu.dot_dimension_numbers<[1], [0], [0], [1], [0, 0, 1, 1], [], []>} : vector<6x128xf32>, vector<128x384xf32>, vector<6x384xf32> -> vector<6x384xf32>
    %478 = vector.broadcast %30 : vector<1x384xf32> to vector<6x384xf32>
    %479 = arith.addf %477, %478 : vector<6x384xf32>
    %480 = vector.extract_strided_slice %22 {offsets = [12, 0], sizes = [6, 384], strides = [1, 1]} : vector<48x384xf32> to vector<6x384xf32>
    %481 = vector.extract_strided_slice %480 {offsets = [0, 0], sizes = [6, 128], strides = [1, 1]} : vector<6x384xf32> to vector<6x128xf32>
    %482 = vector.extract_strided_slice %479 {offsets = [0, 0], sizes = [6, 128], strides = [1, 1]} : vector<6x384xf32> to vector<6x128xf32>
    %483 = arith.addf %481, %482 : vector<6x128xf32>
    %484 = arith.negf %483 : vector<6x128xf32>
    %485 = math.exp %484 : vector<6x128xf32>
    %cst_94 = arith.constant 1.000000e+00 : f32
    %486 = vector.broadcast %cst_94 : f32 to vector<6x128xf32>
    %487 = arith.addf %486, %485 : vector<6x128xf32>
    %488 = arith.divf %486, %487 : vector<6x128xf32>
    %489 = vector.extract_strided_slice %480 {offsets = [0, 128], sizes = [6, 128], strides = [1, 1]} : vector<6x384xf32> to vector<6x128xf32>
    %490 = vector.extract_strided_slice %479 {offsets = [0, 128], sizes = [6, 128], strides = [1, 1]} : vector<6x384xf32> to vector<6x128xf32>
    %491 = arith.addf %489, %490 : vector<6x128xf32>
    %492 = arith.negf %491 : vector<6x128xf32>
    %493 = math.exp %492 : vector<6x128xf32>
    %cst_95 = arith.constant 1.000000e+00 : f32
    %494 = vector.broadcast %cst_95 : f32 to vector<6x128xf32>
    %495 = arith.addf %494, %493 : vector<6x128xf32>
    %496 = arith.divf %494, %495 : vector<6x128xf32>
    %497 = vector.extract_strided_slice %480 {offsets = [0, 256], sizes = [6, 128], strides = [1, 1]} : vector<6x384xf32> to vector<6x128xf32>
    %498 = vector.extract_strided_slice %479 {offsets = [0, 256], sizes = [6, 128], strides = [1, 1]} : vector<6x384xf32> to vector<6x128xf32>
    %499 = arith.mulf %488, %498 : vector<6x128xf32>
    %500 = arith.addf %497, %499 : vector<6x128xf32>
    %501 = math.tanh %500 : vector<6x128xf32>
    %cst_96 = arith.constant 1.000000e+00 : f32
    %502 = vector.broadcast %cst_96 : f32 to vector<6x128xf32>
    %503 = arith.subf %502, %496 : vector<6x128xf32>
    %504 = arith.mulf %503, %501 : vector<6x128xf32>
    %505 = arith.mulf %496, %429 : vector<6x128xf32>
    %506 = arith.addf %504, %505 : vector<6x128xf32>
    %507 = vector.shape_cast %476 : vector<6x1xi1> to vector<6x1xi1>
    %508 = vector.broadcast %507 : vector<6x1xi1> to vector<6x128xi1>
    %509 = arith.select %508, %506, %429 : vector<6x128xi1>, vector<6x128xf32>
    %cst_97 = arith.constant 0.000000e+00 : f32
    %510 = vector.shape_cast %476 : vector<6x1xi1> to vector<6x1xi1>
    %511 = vector.broadcast %510 : vector<6x1xi1> to vector<6x128xi1>
    %512 = vector.broadcast %cst_97 : f32 to vector<6x128xf32>
    %513 = arith.select %511, %509, %512 : vector<6x128xi1>, vector<6x128xf32>
    %514 = arith.maximumf %434, %513 : vector<6x128xf32>
    %c6_i32_98 = arith.constant 6 : i32
    %515 = vector.broadcast %c6_i32_98 : i32 to vector<6x1xi32>
    %516 = arith.cmpi sgt, %1, %515 : vector<6x1xi32>
    %cst_99 = arith.constant dense<0.000000e+00> : vector<6x384xf32>
    %517 = tpu.matmul %469, %24, %cst_99 {dimension_numbers = #tpu.dot_dimension_numbers<[1], [0], [0], [1], [0, 0, 1, 1], [], []>} : vector<6x128xf32>, vector<128x384xf32>, vector<6x384xf32> -> vector<6x384xf32>
    %518 = vector.broadcast %26 : vector<1x384xf32> to vector<6x384xf32>
    %519 = arith.addf %517, %518 : vector<6x384xf32>
    %520 = vector.extract_strided_slice %15 {offsets = [36, 0], sizes = [6, 384], strides = [1, 1]} : vector<48x384xf32> to vector<6x384xf32>
    %521 = vector.extract_strided_slice %520 {offsets = [0, 0], sizes = [6, 128], strides = [1, 1]} : vector<6x384xf32> to vector<6x128xf32>
    %522 = vector.extract_strided_slice %519 {offsets = [0, 0], sizes = [6, 128], strides = [1, 1]} : vector<6x384xf32> to vector<6x128xf32>
    %523 = arith.addf %521, %522 : vector<6x128xf32>
    %524 = arith.negf %523 : vector<6x128xf32>
    %525 = math.exp %524 : vector<6x128xf32>
    %cst_100 = arith.constant 1.000000e+00 : f32
    %526 = vector.broadcast %cst_100 : f32 to vector<6x128xf32>
    %527 = arith.addf %526, %525 : vector<6x128xf32>
    %528 = arith.divf %526, %527 : vector<6x128xf32>
    %529 = vector.extract_strided_slice %520 {offsets = [0, 128], sizes = [6, 128], strides = [1, 1]} : vector<6x384xf32> to vector<6x128xf32>
    %530 = vector.extract_strided_slice %519 {offsets = [0, 128], sizes = [6, 128], strides = [1, 1]} : vector<6x384xf32> to vector<6x128xf32>
    %531 = arith.addf %529, %530 : vector<6x128xf32>
    %532 = arith.negf %531 : vector<6x128xf32>
    %533 = math.exp %532 : vector<6x128xf32>
    %cst_101 = arith.constant 1.000000e+00 : f32
    %534 = vector.broadcast %cst_101 : f32 to vector<6x128xf32>
    %535 = arith.addf %534, %533 : vector<6x128xf32>
    %536 = arith.divf %534, %535 : vector<6x128xf32>
    %537 = vector.extract_strided_slice %520 {offsets = [0, 256], sizes = [6, 128], strides = [1, 1]} : vector<6x384xf32> to vector<6x128xf32>
    %538 = vector.extract_strided_slice %519 {offsets = [0, 256], sizes = [6, 128], strides = [1, 1]} : vector<6x384xf32> to vector<6x128xf32>
    %539 = arith.mulf %528, %538 : vector<6x128xf32>
    %540 = arith.addf %537, %539 : vector<6x128xf32>
    %541 = math.tanh %540 : vector<6x128xf32>
    %cst_102 = arith.constant 1.000000e+00 : f32
    %542 = vector.broadcast %cst_102 : f32 to vector<6x128xf32>
    %543 = arith.subf %542, %536 : vector<6x128xf32>
    %544 = arith.mulf %543, %541 : vector<6x128xf32>
    %545 = arith.mulf %536, %469 : vector<6x128xf32>
    %546 = arith.addf %544, %545 : vector<6x128xf32>
    %547 = vector.shape_cast %516 : vector<6x1xi1> to vector<6x1xi1>
    %548 = vector.broadcast %547 : vector<6x1xi1> to vector<6x128xi1>
    %549 = arith.select %548, %546, %469 : vector<6x128xi1>, vector<6x128xf32>
    %cst_103 = arith.constant 0.000000e+00 : f32
    %550 = vector.shape_cast %516 : vector<6x1xi1> to vector<6x1xi1>
    %551 = vector.broadcast %550 : vector<6x1xi1> to vector<6x128xi1>
    %552 = vector.broadcast %cst_103 : f32 to vector<6x128xf32>
    %553 = arith.select %551, %549, %552 : vector<6x128xi1>, vector<6x128xf32>
    %554 = arith.maximumf %474, %553 : vector<6x128xf32>
    %c1_i32_104 = arith.constant 1 : i32
    %555 = vector.broadcast %c1_i32_104 : i32 to vector<6x1xi32>
    %556 = arith.cmpi sgt, %1, %555 : vector<6x1xi32>
    %cst_105 = arith.constant dense<0.000000e+00> : vector<6x384xf32>
    %557 = tpu.matmul %509, %28, %cst_105 {dimension_numbers = #tpu.dot_dimension_numbers<[1], [0], [0], [1], [0, 0, 1, 1], [], []>} : vector<6x128xf32>, vector<128x384xf32>, vector<6x384xf32> -> vector<6x384xf32>
    %558 = vector.broadcast %30 : vector<1x384xf32> to vector<6x384xf32>
    %559 = arith.addf %557, %558 : vector<6x384xf32>
    %560 = vector.extract_strided_slice %22 {offsets = [6, 0], sizes = [6, 384], strides = [1, 1]} : vector<48x384xf32> to vector<6x384xf32>
    %561 = vector.extract_strided_slice %560 {offsets = [0, 0], sizes = [6, 128], strides = [1, 1]} : vector<6x384xf32> to vector<6x128xf32>
    %562 = vector.extract_strided_slice %559 {offsets = [0, 0], sizes = [6, 128], strides = [1, 1]} : vector<6x384xf32> to vector<6x128xf32>
    %563 = arith.addf %561, %562 : vector<6x128xf32>
    %564 = arith.negf %563 : vector<6x128xf32>
    %565 = math.exp %564 : vector<6x128xf32>
    %cst_106 = arith.constant 1.000000e+00 : f32
    %566 = vector.broadcast %cst_106 : f32 to vector<6x128xf32>
    %567 = arith.addf %566, %565 : vector<6x128xf32>
    %568 = arith.divf %566, %567 : vector<6x128xf32>
    %569 = vector.extract_strided_slice %560 {offsets = [0, 128], sizes = [6, 128], strides = [1, 1]} : vector<6x384xf32> to vector<6x128xf32>
    %570 = vector.extract_strided_slice %559 {offsets = [0, 128], sizes = [6, 128], strides = [1, 1]} : vector<6x384xf32> to vector<6x128xf32>
    %571 = arith.addf %569, %570 : vector<6x128xf32>
    %572 = arith.negf %571 : vector<6x128xf32>
    %573 = math.exp %572 : vector<6x128xf32>
    %cst_107 = arith.constant 1.000000e+00 : f32
    %574 = vector.broadcast %cst_107 : f32 to vector<6x128xf32>
    %575 = arith.addf %574, %573 : vector<6x128xf32>
    %576 = arith.divf %574, %575 : vector<6x128xf32>
    %577 = vector.extract_strided_slice %560 {offsets = [0, 256], sizes = [6, 128], strides = [1, 1]} : vector<6x384xf32> to vector<6x128xf32>
    %578 = vector.extract_strided_slice %559 {offsets = [0, 256], sizes = [6, 128], strides = [1, 1]} : vector<6x384xf32> to vector<6x128xf32>
    %579 = arith.mulf %568, %578 : vector<6x128xf32>
    %580 = arith.addf %577, %579 : vector<6x128xf32>
    %581 = math.tanh %580 : vector<6x128xf32>
    %cst_108 = arith.constant 1.000000e+00 : f32
    %582 = vector.broadcast %cst_108 : f32 to vector<6x128xf32>
    %583 = arith.subf %582, %576 : vector<6x128xf32>
    %584 = arith.mulf %583, %581 : vector<6x128xf32>
    %585 = arith.mulf %576, %509 : vector<6x128xf32>
    %586 = arith.addf %584, %585 : vector<6x128xf32>
    %587 = vector.shape_cast %556 : vector<6x1xi1> to vector<6x1xi1>
    %588 = vector.broadcast %587 : vector<6x1xi1> to vector<6x128xi1>
    %589 = arith.select %588, %586, %509 : vector<6x128xi1>, vector<6x128xf32>
    %cst_109 = arith.constant 0.000000e+00 : f32
    %590 = vector.shape_cast %556 : vector<6x1xi1> to vector<6x1xi1>
    %591 = vector.broadcast %590 : vector<6x1xi1> to vector<6x128xi1>
    %592 = vector.broadcast %cst_109 : f32 to vector<6x128xf32>
    %593 = arith.select %591, %589, %592 : vector<6x128xi1>, vector<6x128xf32>
    %594 = arith.maximumf %514, %593 : vector<6x128xf32>
    %c7_i32_110 = arith.constant 7 : i32
    %595 = vector.broadcast %c7_i32_110 : i32 to vector<6x1xi32>
    %596 = arith.cmpi sgt, %1, %595 : vector<6x1xi32>
    %cst_111 = arith.constant dense<0.000000e+00> : vector<6x384xf32>
    %597 = tpu.matmul %549, %24, %cst_111 {dimension_numbers = #tpu.dot_dimension_numbers<[1], [0], [0], [1], [0, 0, 1, 1], [], []>} : vector<6x128xf32>, vector<128x384xf32>, vector<6x384xf32> -> vector<6x384xf32>
    %598 = vector.broadcast %26 : vector<1x384xf32> to vector<6x384xf32>
    %599 = arith.addf %597, %598 : vector<6x384xf32>
    %600 = vector.extract_strided_slice %15 {offsets = [42, 0], sizes = [6, 384], strides = [1, 1]} : vector<48x384xf32> to vector<6x384xf32>
    %601 = vector.extract_strided_slice %600 {offsets = [0, 0], sizes = [6, 128], strides = [1, 1]} : vector<6x384xf32> to vector<6x128xf32>
    %602 = vector.extract_strided_slice %599 {offsets = [0, 0], sizes = [6, 128], strides = [1, 1]} : vector<6x384xf32> to vector<6x128xf32>
    %603 = arith.addf %601, %602 : vector<6x128xf32>
    %604 = arith.negf %603 : vector<6x128xf32>
    %605 = math.exp %604 : vector<6x128xf32>
    %cst_112 = arith.constant 1.000000e+00 : f32
    %606 = vector.broadcast %cst_112 : f32 to vector<6x128xf32>
    %607 = arith.addf %606, %605 : vector<6x128xf32>
    %608 = arith.divf %606, %607 : vector<6x128xf32>
    %609 = vector.extract_strided_slice %600 {offsets = [0, 128], sizes = [6, 128], strides = [1, 1]} : vector<6x384xf32> to vector<6x128xf32>
    %610 = vector.extract_strided_slice %599 {offsets = [0, 128], sizes = [6, 128], strides = [1, 1]} : vector<6x384xf32> to vector<6x128xf32>
    %611 = arith.addf %609, %610 : vector<6x128xf32>
    %612 = arith.negf %611 : vector<6x128xf32>
    %613 = math.exp %612 : vector<6x128xf32>
    %cst_113 = arith.constant 1.000000e+00 : f32
    %614 = vector.broadcast %cst_113 : f32 to vector<6x128xf32>
    %615 = arith.addf %614, %613 : vector<6x128xf32>
    %616 = arith.divf %614, %615 : vector<6x128xf32>
    %617 = vector.extract_strided_slice %600 {offsets = [0, 256], sizes = [6, 128], strides = [1, 1]} : vector<6x384xf32> to vector<6x128xf32>
    %618 = vector.extract_strided_slice %599 {offsets = [0, 256], sizes = [6, 128], strides = [1, 1]} : vector<6x384xf32> to vector<6x128xf32>
    %619 = arith.mulf %608, %618 : vector<6x128xf32>
    %620 = arith.addf %617, %619 : vector<6x128xf32>
    %621 = math.tanh %620 : vector<6x128xf32>
    %cst_114 = arith.constant 1.000000e+00 : f32
    %622 = vector.broadcast %cst_114 : f32 to vector<6x128xf32>
    %623 = arith.subf %622, %616 : vector<6x128xf32>
    %624 = arith.mulf %623, %621 : vector<6x128xf32>
    %625 = arith.mulf %616, %549 : vector<6x128xf32>
    %626 = arith.addf %624, %625 : vector<6x128xf32>
    %627 = vector.shape_cast %596 : vector<6x1xi1> to vector<6x1xi1>
    %628 = vector.broadcast %627 : vector<6x1xi1> to vector<6x128xi1>
    %629 = arith.select %628, %626, %549 : vector<6x128xi1>, vector<6x128xf32>
    %cst_115 = arith.constant 0.000000e+00 : f32
    %630 = vector.shape_cast %596 : vector<6x1xi1> to vector<6x1xi1>
    %631 = vector.broadcast %630 : vector<6x1xi1> to vector<6x128xi1>
    %632 = vector.broadcast %cst_115 : f32 to vector<6x128xf32>
    %633 = arith.select %631, %629, %632 : vector<6x128xi1>, vector<6x128xf32>
    %634 = arith.maximumf %554, %633 : vector<6x128xf32>
    %c0_i32_116 = arith.constant 0 : i32
    %635 = vector.broadcast %c0_i32_116 : i32 to vector<6x1xi32>
    %636 = arith.cmpi sgt, %1, %635 : vector<6x1xi32>
    %cst_117 = arith.constant dense<0.000000e+00> : vector<6x384xf32>
    %637 = tpu.matmul %589, %28, %cst_117 {dimension_numbers = #tpu.dot_dimension_numbers<[1], [0], [0], [1], [0, 0, 1, 1], [], []>} : vector<6x128xf32>, vector<128x384xf32>, vector<6x384xf32> -> vector<6x384xf32>
    %638 = vector.broadcast %30 : vector<1x384xf32> to vector<6x384xf32>
    %639 = arith.addf %637, %638 : vector<6x384xf32>
    %640 = vector.extract_strided_slice %22 {offsets = [0, 0], sizes = [6, 384], strides = [1, 1]} : vector<48x384xf32> to vector<6x384xf32>
    %641 = vector.extract_strided_slice %640 {offsets = [0, 0], sizes = [6, 128], strides = [1, 1]} : vector<6x384xf32> to vector<6x128xf32>
    %642 = vector.extract_strided_slice %639 {offsets = [0, 0], sizes = [6, 128], strides = [1, 1]} : vector<6x384xf32> to vector<6x128xf32>
    %643 = arith.addf %641, %642 : vector<6x128xf32>
    %644 = arith.negf %643 : vector<6x128xf32>
    %645 = math.exp %644 : vector<6x128xf32>
    %cst_118 = arith.constant 1.000000e+00 : f32
    %646 = vector.broadcast %cst_118 : f32 to vector<6x128xf32>
    %647 = arith.addf %646, %645 : vector<6x128xf32>
    %648 = arith.divf %646, %647 : vector<6x128xf32>
    %649 = vector.extract_strided_slice %640 {offsets = [0, 128], sizes = [6, 128], strides = [1, 1]} : vector<6x384xf32> to vector<6x128xf32>
    %650 = vector.extract_strided_slice %639 {offsets = [0, 128], sizes = [6, 128], strides = [1, 1]} : vector<6x384xf32> to vector<6x128xf32>
    %651 = arith.addf %649, %650 : vector<6x128xf32>
    %652 = arith.negf %651 : vector<6x128xf32>
    %653 = math.exp %652 : vector<6x128xf32>
    %cst_119 = arith.constant 1.000000e+00 : f32
    %654 = vector.broadcast %cst_119 : f32 to vector<6x128xf32>
    %655 = arith.addf %654, %653 : vector<6x128xf32>
    %656 = arith.divf %654, %655 : vector<6x128xf32>
    %657 = vector.extract_strided_slice %640 {offsets = [0, 256], sizes = [6, 128], strides = [1, 1]} : vector<6x384xf32> to vector<6x128xf32>
    %658 = vector.extract_strided_slice %639 {offsets = [0, 256], sizes = [6, 128], strides = [1, 1]} : vector<6x384xf32> to vector<6x128xf32>
    %659 = arith.mulf %648, %658 : vector<6x128xf32>
    %660 = arith.addf %657, %659 : vector<6x128xf32>
    %661 = math.tanh %660 : vector<6x128xf32>
    %cst_120 = arith.constant 1.000000e+00 : f32
    %662 = vector.broadcast %cst_120 : f32 to vector<6x128xf32>
    %663 = arith.subf %662, %656 : vector<6x128xf32>
    %664 = arith.mulf %663, %661 : vector<6x128xf32>
    %665 = arith.mulf %656, %589 : vector<6x128xf32>
    %666 = arith.addf %664, %665 : vector<6x128xf32>
    %667 = vector.shape_cast %636 : vector<6x1xi1> to vector<6x1xi1>
    %668 = vector.broadcast %667 : vector<6x1xi1> to vector<6x128xi1>
    %669 = arith.select %668, %666, %589 : vector<6x128xi1>, vector<6x128xf32>
    %cst_121 = arith.constant 0.000000e+00 : f32
    %670 = vector.shape_cast %636 : vector<6x1xi1> to vector<6x1xi1>
    %671 = vector.broadcast %670 : vector<6x1xi1> to vector<6x128xi1>
    %672 = vector.broadcast %cst_121 : f32 to vector<6x128xf32>
    %673 = arith.select %671, %669, %672 : vector<6x128xi1>, vector<6x128xf32>
    %674 = arith.maximumf %594, %673 : vector<6x128xf32>
    %c0_122 = arith.constant 0 : index
    %c0_123 = arith.constant 0 : index
    %675 = vector.load %arg7[%c0_122, %c0_123] : memref<128x128xf32, #tpu.memory_space<vmem>>, vector<128x128xf32>
    %cst_124 = arith.constant dense<0.000000e+00> : vector<6x128xf32>
    %676 = tpu.matmul %634, %675, %cst_124 {dimension_numbers = #tpu.dot_dimension_numbers<[1], [0], [0], [1], [0, 0, 1, 1], [], []>} : vector<6x128xf32>, vector<128x128xf32>, vector<6x128xf32> -> vector<6x128xf32>
    %c0_125 = arith.constant 0 : index
    %c0_126 = arith.constant 0 : index
    %677 = vector.load %arg8[%c0_125, %c0_126] : memref<128x128xf32, #tpu.memory_space<vmem>>, vector<128x128xf32>
    %cst_127 = arith.constant dense<0.000000e+00> : vector<6x128xf32>
    %678 = tpu.matmul %674, %677, %cst_127 {dimension_numbers = #tpu.dot_dimension_numbers<[1], [0], [0], [1], [0, 0, 1, 1], [], []>} : vector<6x128xf32>, vector<128x128xf32>, vector<6x128xf32> -> vector<6x128xf32>
    %679 = arith.addf %676, %678 : vector<6x128xf32>
    %c0_128 = arith.constant 0 : index
    %c0_129 = arith.constant 0 : index
    %680 = vector.load %arg9[%c0_128, %c0_129] : memref<1x128xf32, #tpu.memory_space<vmem>>, vector<1x128xf32>
    %681 = vector.broadcast %680 : vector<1x128xf32> to vector<6x128xf32>
    %682 = arith.addf %679, %681 : vector<6x128xf32>
    %683 = math.tanh %682 : vector<6x128xf32>
    %cst_130 = arith.constant 0.000000e+00 : f32
    %684 = vector.broadcast %cst_130 : f32 to vector<2x128xf32>
    %c0_131 = arith.constant 0 : index
    %c0_132 = arith.constant 0 : index
    %685 = vector.load %arg22[%c0_131, %c0_132] : memref<15x128xf32, #tpu.memory_space<vmem>>, vector<2x128xf32>
    tpu.vector_store %arg22[%c0_131, %c0_132], %684 {strides = array<i32>} : memref<15x128xf32, #tpu.memory_space<vmem>>, vector<2x128xf32>,
    %686 = vector.extract_strided_slice %683 {offsets = [0, 0], sizes = [3, 128], strides = [1, 1]} : vector<6x128xf32> to vector<3x128xf32>
    %c2 = arith.constant 2 : index
    %c0_133 = arith.constant 0 : index
    %687 = vector.load %arg22[%c2, %c0_133] : memref<15x128xf32, #tpu.memory_space<vmem>>, vector<3x128xf32>
    tpu.vector_store %arg22[%c2, %c0_133], %686 {strides = array<i32>} : memref<15x128xf32, #tpu.memory_space<vmem>>, vector<3x128xf32>,
    %cst_134 = arith.constant 0.000000e+00 : f32
    %688 = vector.broadcast %cst_134 : f32 to vector<1x128xf32>
    %c5 = arith.constant 5 : index
    %c0_135 = arith.constant 0 : index
    %689 = vector.load %arg22[%c5, %c0_135] : memref<15x128xf32, #tpu.memory_space<vmem>>, vector<1x128xf32>
    tpu.vector_store %arg22[%c5, %c0_135], %688 {strides = array<i32>} : memref<15x128xf32, #tpu.memory_space<vmem>>, vector<1x128xf32>,
    %690 = vector.extract_strided_slice %683 {offsets = [0, 0], sizes = [4, 128], strides = [1, 1]} : vector<6x128xf32> to vector<4x128xf32>
    %c6 = arith.constant 6 : index
    %c0_136 = arith.constant 0 : index
    %691 = vector.load %arg22[%c6, %c0_136] : memref<15x128xf32, #tpu.memory_space<vmem>>, vector<4x128xf32>
    tpu.vector_store %arg22[%c6, %c0_136], %690 {strides = array<i32>} : memref<15x128xf32, #tpu.memory_space<vmem>>, vector<4x128xf32>,
    %692 = vector.extract_strided_slice %683 {offsets = [0, 0], sizes = [5, 128], strides = [1, 1]} : vector<6x128xf32> to vector<5x128xf32>
    %c10 = arith.constant 10 : index
    %c0_137 = arith.constant 0 : index
    %693 = vector.load %arg22[%c10, %c0_137] : memref<15x128xf32, #tpu.memory_space<vmem>>, vector<5x128xf32>
    tpu.vector_store %arg22[%c10, %c0_137], %692 {strides = array<i32>} : memref<15x128xf32, #tpu.memory_space<vmem>>, vector<5x128xf32>,
    %c0_138 = arith.constant 0 : index
    %c0_139 = arith.constant 0 : index
    %694 = vector.load %arg22[%c0_138, %c0_139] : memref<15x128xf32, #tpu.memory_space<vmem>>, vector<15x128xf32>
    %c0_140 = arith.constant 0 : index
    %c0_141 = arith.constant 0 : index
    %c0_142 = arith.constant 0 : index
    %695 = vector.load %arg10[%c0_140, %c0_141, %c0_142] : memref<2x128x384xf32, #tpu.memory_space<vmem>>, vector<1x128x384xf32>
    %696 = vector.shape_cast %695 : vector<1x128x384xf32> to vector<128x384xf32>
    %cst_143 = arith.constant dense<0.000000e+00> : vector<15x384xf32>
    %697 = tpu.matmul %694, %696, %cst_143 {dimension_numbers = #tpu.dot_dimension_numbers<[1], [0], [0], [1], [0, 0, 1, 1], [], []>} : vector<15x128xf32>, vector<128x384xf32>, vector<15x384xf32> -> vector<15x384xf32>
    %c0_144 = arith.constant 0 : index
    %c0_145 = arith.constant 0 : index
    %c0_146 = arith.constant 0 : index
    %698 = vector.load %arg11[%c0_144, %c0_145, %c0_146] : memref<2x1x384xf32, #tpu.memory_space<vmem>>, vector<1x1x384xf32>
    %699 = vector.shape_cast %698 : vector<1x1x384xf32> to vector<1x384xf32>
    %700 = vector.broadcast %699 : vector<1x384xf32> to vector<15x384xf32>
    %701 = arith.addf %697, %700 : vector<15x384xf32>
    %c1_147 = arith.constant 1 : index
    %c0_148 = arith.constant 0 : index
    %c0_149 = arith.constant 0 : index
    %702 = vector.load %arg10[%c1_147, %c0_148, %c0_149] : memref<2x128x384xf32, #tpu.memory_space<vmem>>, vector<1x128x384xf32>
    %703 = vector.shape_cast %702 : vector<1x128x384xf32> to vector<128x384xf32>
    %cst_150 = arith.constant dense<0.000000e+00> : vector<15x384xf32>
    %704 = tpu.matmul %694, %703, %cst_150 {dimension_numbers = #tpu.dot_dimension_numbers<[1], [0], [0], [1], [0, 0, 1, 1], [], []>} : vector<15x128xf32>, vector<128x384xf32>, vector<15x384xf32> -> vector<15x384xf32>
    %c1_151 = arith.constant 1 : index
    %c0_152 = arith.constant 0 : index
    %c0_153 = arith.constant 0 : index
    %705 = vector.load %arg11[%c1_151, %c0_152, %c0_153] : memref<2x1x384xf32, #tpu.memory_space<vmem>>, vector<1x1x384xf32>
    %706 = vector.shape_cast %705 : vector<1x1x384xf32> to vector<1x384xf32>
    %707 = vector.broadcast %706 : vector<1x384xf32> to vector<15x384xf32>
    %708 = arith.addf %704, %707 : vector<15x384xf32>
    %c0_154 = arith.constant 0 : index
    %c0_155 = arith.constant 0 : index
    %c0_156 = arith.constant 0 : index
    %709 = vector.load %arg12[%c0_154, %c0_155, %c0_156] : memref<2x128x384xf32, #tpu.memory_space<vmem>>, vector<1x128x384xf32>
    %710 = vector.shape_cast %709 : vector<1x128x384xf32> to vector<128x384xf32>
    %c0_157 = arith.constant 0 : index
    %c0_158 = arith.constant 0 : index
    %c0_159 = arith.constant 0 : index
    %711 = vector.load %arg13[%c0_157, %c0_158, %c0_159] : memref<2x1x384xf32, #tpu.memory_space<vmem>>, vector<1x1x384xf32>
    %712 = vector.shape_cast %711 : vector<1x1x384xf32> to vector<1x384xf32>
    %c1_160 = arith.constant 1 : index
    %c0_161 = arith.constant 0 : index
    %c0_162 = arith.constant 0 : index
    %713 = vector.load %arg12[%c1_160, %c0_161, %c0_162] : memref<2x128x384xf32, #tpu.memory_space<vmem>>, vector<1x128x384xf32>
    %714 = vector.shape_cast %713 : vector<1x128x384xf32> to vector<128x384xf32>
    %c1_163 = arith.constant 1 : index
    %c0_164 = arith.constant 0 : index
    %c0_165 = arith.constant 0 : index
    %715 = vector.load %arg13[%c1_163, %c0_164, %c0_165] : memref<2x1x384xf32, #tpu.memory_space<vmem>>, vector<1x1x384xf32>
    %716 = vector.shape_cast %715 : vector<1x1x384xf32> to vector<1x384xf32>
    %cst_166 = arith.constant 0.000000e+00 : f32
    %717 = vector.broadcast %cst_166 : f32 to vector<5x128xf32>
    %cst_167 = arith.constant dense<0.000000e+00> : vector<5x384xf32>
    %718 = tpu.matmul %717, %710, %cst_167 {dimension_numbers = #tpu.dot_dimension_numbers<[1], [0], [0], [1], [0, 0, 1, 1], [], []>} : vector<5x128xf32>, vector<128x384xf32>, vector<5x384xf32> -> vector<5x384xf32>
    %719 = vector.broadcast %712 : vector<1x384xf32> to vector<5x384xf32>
    %720 = arith.addf %718, %719 : vector<5x384xf32>
    %721 = vector.extract_strided_slice %701 {offsets = [0, 0], sizes = [5, 384], strides = [1, 1]} : vector<15x384xf32> to vector<5x384xf32>
    %722 = vector.extract_strided_slice %721 {offsets = [0, 0], sizes = [5, 128], strides = [1, 1]} : vector<5x384xf32> to vector<5x128xf32>
    %723 = vector.extract_strided_slice %720 {offsets = [0, 0], sizes = [5, 128], strides = [1, 1]} : vector<5x384xf32> to vector<5x128xf32>
    %724 = arith.addf %722, %723 : vector<5x128xf32>
    %725 = arith.negf %724 : vector<5x128xf32>
    %726 = math.exp %725 : vector<5x128xf32>
    %cst_168 = arith.constant 1.000000e+00 : f32
    %727 = vector.broadcast %cst_168 : f32 to vector<5x128xf32>
    %728 = arith.addf %727, %726 : vector<5x128xf32>
    %729 = arith.divf %727, %728 : vector<5x128xf32>
    %730 = vector.extract_strided_slice %721 {offsets = [0, 128], sizes = [5, 128], strides = [1, 1]} : vector<5x384xf32> to vector<5x128xf32>
    %731 = vector.extract_strided_slice %720 {offsets = [0, 128], sizes = [5, 128], strides = [1, 1]} : vector<5x384xf32> to vector<5x128xf32>
    %732 = arith.addf %730, %731 : vector<5x128xf32>
    %733 = arith.negf %732 : vector<5x128xf32>
    %734 = math.exp %733 : vector<5x128xf32>
    %cst_169 = arith.constant 1.000000e+00 : f32
    %735 = vector.broadcast %cst_169 : f32 to vector<5x128xf32>
    %736 = arith.addf %735, %734 : vector<5x128xf32>
    %737 = arith.divf %735, %736 : vector<5x128xf32>
    %738 = vector.extract_strided_slice %721 {offsets = [0, 256], sizes = [5, 128], strides = [1, 1]} : vector<5x384xf32> to vector<5x128xf32>
    %739 = vector.extract_strided_slice %720 {offsets = [0, 256], sizes = [5, 128], strides = [1, 1]} : vector<5x384xf32> to vector<5x128xf32>
    %740 = arith.mulf %729, %739 : vector<5x128xf32>
    %741 = arith.addf %738, %740 : vector<5x128xf32>
    %742 = math.tanh %741 : vector<5x128xf32>
    %cst_170 = arith.constant 1.000000e+00 : f32
    %743 = vector.broadcast %cst_170 : f32 to vector<5x128xf32>
    %744 = arith.subf %743, %737 : vector<5x128xf32>
    %745 = arith.mulf %744, %742 : vector<5x128xf32>
    %746 = arith.mulf %737, %717 : vector<5x128xf32>
    %747 = arith.addf %745, %746 : vector<5x128xf32>
    %cst_171 = arith.constant dense<0.000000e+00> : vector<5x384xf32>
    %748 = tpu.matmul %747, %710, %cst_171 {dimension_numbers = #tpu.dot_dimension_numbers<[1], [0], [0], [1], [0, 0, 1, 1], [], []>} : vector<5x128xf32>, vector<128x384xf32>, vector<5x384xf32> -> vector<5x384xf32>
    %749 = vector.broadcast %712 : vector<1x384xf32> to vector<5x384xf32>
    %750 = arith.addf %748, %749 : vector<5x384xf32>
    %751 = vector.extract_strided_slice %701 {offsets = [5, 0], sizes = [5, 384], strides = [1, 1]} : vector<15x384xf32> to vector<5x384xf32>
    %752 = vector.extract_strided_slice %751 {offsets = [0, 0], sizes = [5, 128], strides = [1, 1]} : vector<5x384xf32> to vector<5x128xf32>
    %753 = vector.extract_strided_slice %750 {offsets = [0, 0], sizes = [5, 128], strides = [1, 1]} : vector<5x384xf32> to vector<5x128xf32>
    %754 = arith.addf %752, %753 : vector<5x128xf32>
    %755 = arith.negf %754 : vector<5x128xf32>
    %756 = math.exp %755 : vector<5x128xf32>
    %cst_172 = arith.constant 1.000000e+00 : f32
    %757 = vector.broadcast %cst_172 : f32 to vector<5x128xf32>
    %758 = arith.addf %757, %756 : vector<5x128xf32>
    %759 = arith.divf %757, %758 : vector<5x128xf32>
    %760 = vector.extract_strided_slice %751 {offsets = [0, 128], sizes = [5, 128], strides = [1, 1]} : vector<5x384xf32> to vector<5x128xf32>
    %761 = vector.extract_strided_slice %750 {offsets = [0, 128], sizes = [5, 128], strides = [1, 1]} : vector<5x384xf32> to vector<5x128xf32>
    %762 = arith.addf %760, %761 : vector<5x128xf32>
    %763 = arith.negf %762 : vector<5x128xf32>
    %764 = math.exp %763 : vector<5x128xf32>
    %cst_173 = arith.constant 1.000000e+00 : f32
    %765 = vector.broadcast %cst_173 : f32 to vector<5x128xf32>
    %766 = arith.addf %765, %764 : vector<5x128xf32>
    %767 = arith.divf %765, %766 : vector<5x128xf32>
    %768 = vector.extract_strided_slice %751 {offsets = [0, 256], sizes = [5, 128], strides = [1, 1]} : vector<5x384xf32> to vector<5x128xf32>
    %769 = vector.extract_strided_slice %750 {offsets = [0, 256], sizes = [5, 128], strides = [1, 1]} : vector<5x384xf32> to vector<5x128xf32>
    %770 = arith.mulf %759, %769 : vector<5x128xf32>
    %771 = arith.addf %768, %770 : vector<5x128xf32>
    %772 = math.tanh %771 : vector<5x128xf32>
    %cst_174 = arith.constant 1.000000e+00 : f32
    %773 = vector.broadcast %cst_174 : f32 to vector<5x128xf32>
    %774 = arith.subf %773, %767 : vector<5x128xf32>
    %775 = arith.mulf %774, %772 : vector<5x128xf32>
    %776 = arith.mulf %767, %747 : vector<5x128xf32>
    %777 = arith.addf %775, %776 : vector<5x128xf32>
    %cst_175 = arith.constant dense<0.000000e+00> : vector<5x384xf32>
    %778 = tpu.matmul %777, %710, %cst_175 {dimension_numbers = #tpu.dot_dimension_numbers<[1], [0], [0], [1], [0, 0, 1, 1], [], []>} : vector<5x128xf32>, vector<128x384xf32>, vector<5x384xf32> -> vector<5x384xf32>
    %779 = vector.broadcast %712 : vector<1x384xf32> to vector<5x384xf32>
    %780 = arith.addf %778, %779 : vector<5x384xf32>
    %781 = vector.extract_strided_slice %701 {offsets = [10, 0], sizes = [5, 384], strides = [1, 1]} : vector<15x384xf32> to vector<5x384xf32>
    %782 = vector.extract_strided_slice %781 {offsets = [0, 0], sizes = [5, 128], strides = [1, 1]} : vector<5x384xf32> to vector<5x128xf32>
    %783 = vector.extract_strided_slice %780 {offsets = [0, 0], sizes = [5, 128], strides = [1, 1]} : vector<5x384xf32> to vector<5x128xf32>
    %784 = arith.addf %782, %783 : vector<5x128xf32>
    %785 = arith.negf %784 : vector<5x128xf32>
    %786 = math.exp %785 : vector<5x128xf32>
    %cst_176 = arith.constant 1.000000e+00 : f32
    %787 = vector.broadcast %cst_176 : f32 to vector<5x128xf32>
    %788 = arith.addf %787, %786 : vector<5x128xf32>
    %789 = arith.divf %787, %788 : vector<5x128xf32>
    %790 = vector.extract_strided_slice %781 {offsets = [0, 128], sizes = [5, 128], strides = [1, 1]} : vector<5x384xf32> to vector<5x128xf32>
    %791 = vector.extract_strided_slice %780 {offsets = [0, 128], sizes = [5, 128], strides = [1, 1]} : vector<5x384xf32> to vector<5x128xf32>
    %792 = arith.addf %790, %791 : vector<5x128xf32>
    %793 = arith.negf %792 : vector<5x128xf32>
    %794 = math.exp %793 : vector<5x128xf32>
    %cst_177 = arith.constant 1.000000e+00 : f32
    %795 = vector.broadcast %cst_177 : f32 to vector<5x128xf32>
    %796 = arith.addf %795, %794 : vector<5x128xf32>
    %797 = arith.divf %795, %796 : vector<5x128xf32>
    %798 = vector.extract_strided_slice %781 {offsets = [0, 256], sizes = [5, 128], strides = [1, 1]} : vector<5x384xf32> to vector<5x128xf32>
    %799 = vector.extract_strided_slice %780 {offsets = [0, 256], sizes = [5, 128], strides = [1, 1]} : vector<5x384xf32> to vector<5x128xf32>
    %800 = arith.mulf %789, %799 : vector<5x128xf32>
    %801 = arith.addf %798, %800 : vector<5x128xf32>
    %802 = math.tanh %801 : vector<5x128xf32>
    %cst_178 = arith.constant 1.000000e+00 : f32
    %803 = vector.broadcast %cst_178 : f32 to vector<5x128xf32>
    %804 = arith.subf %803, %797 : vector<5x128xf32>
    %805 = arith.mulf %804, %802 : vector<5x128xf32>
    %806 = arith.mulf %797, %777 : vector<5x128xf32>
    %807 = arith.addf %805, %806 : vector<5x128xf32>
    %cst_179 = arith.constant 0.000000e+00 : f32
    %808 = vector.broadcast %cst_179 : f32 to vector<5x128xf32>
    %cst_180 = arith.constant dense<0.000000e+00> : vector<5x384xf32>
    %809 = tpu.matmul %808, %714, %cst_180 {dimension_numbers = #tpu.dot_dimension_numbers<[1], [0], [0], [1], [0, 0, 1, 1], [], []>} : vector<5x128xf32>, vector<128x384xf32>, vector<5x384xf32> -> vector<5x384xf32>
    %810 = vector.broadcast %716 : vector<1x384xf32> to vector<5x384xf32>
    %811 = arith.addf %809, %810 : vector<5x384xf32>
    %812 = vector.extract_strided_slice %708 {offsets = [10, 0], sizes = [5, 384], strides = [1, 1]} : vector<15x384xf32> to vector<5x384xf32>
    %813 = vector.extract_strided_slice %812 {offsets = [0, 0], sizes = [5, 128], strides = [1, 1]} : vector<5x384xf32> to vector<5x128xf32>
    %814 = vector.extract_strided_slice %811 {offsets = [0, 0], sizes = [5, 128], strides = [1, 1]} : vector<5x384xf32> to vector<5x128xf32>
    %815 = arith.addf %813, %814 : vector<5x128xf32>
    %816 = arith.negf %815 : vector<5x128xf32>
    %817 = math.exp %816 : vector<5x128xf32>
    %cst_181 = arith.constant 1.000000e+00 : f32
    %818 = vector.broadcast %cst_181 : f32 to vector<5x128xf32>
    %819 = arith.addf %818, %817 : vector<5x128xf32>
    %820 = arith.divf %818, %819 : vector<5x128xf32>
    %821 = vector.extract_strided_slice %812 {offsets = [0, 128], sizes = [5, 128], strides = [1, 1]} : vector<5x384xf32> to vector<5x128xf32>
    %822 = vector.extract_strided_slice %811 {offsets = [0, 128], sizes = [5, 128], strides = [1, 1]} : vector<5x384xf32> to vector<5x128xf32>
    %823 = arith.addf %821, %822 : vector<5x128xf32>
    %824 = arith.negf %823 : vector<5x128xf32>
    %825 = math.exp %824 : vector<5x128xf32>
    %cst_182 = arith.constant 1.000000e+00 : f32
    %826 = vector.broadcast %cst_182 : f32 to vector<5x128xf32>
    %827 = arith.addf %826, %825 : vector<5x128xf32>
    %828 = arith.divf %826, %827 : vector<5x128xf32>
    %829 = vector.extract_strided_slice %812 {offsets = [0, 256], sizes = [5, 128], strides = [1, 1]} : vector<5x384xf32> to vector<5x128xf32>
    %830 = vector.extract_strided_slice %811 {offsets = [0, 256], sizes = [5, 128], strides = [1, 1]} : vector<5x384xf32> to vector<5x128xf32>
    %831 = arith.mulf %820, %830 : vector<5x128xf32>
    %832 = arith.addf %829, %831 : vector<5x128xf32>
    %833 = math.tanh %832 : vector<5x128xf32>
    %cst_183 = arith.constant 1.000000e+00 : f32
    %834 = vector.broadcast %cst_183 : f32 to vector<5x128xf32>
    %835 = arith.subf %834, %828 : vector<5x128xf32>
    %836 = arith.mulf %835, %833 : vector<5x128xf32>
    %837 = arith.mulf %828, %808 : vector<5x128xf32>
    %838 = arith.addf %836, %837 : vector<5x128xf32>
    %cst_184 = arith.constant dense<0.000000e+00> : vector<5x384xf32>
    %839 = tpu.matmul %838, %714, %cst_184 {dimension_numbers = #tpu.dot_dimension_numbers<[1], [0], [0], [1], [0, 0, 1, 1], [], []>} : vector<5x128xf32>, vector<128x384xf32>, vector<5x384xf32> -> vector<5x384xf32>
    %840 = vector.broadcast %716 : vector<1x384xf32> to vector<5x384xf32>
    %841 = arith.addf %839, %840 : vector<5x384xf32>
    %842 = vector.extract_strided_slice %708 {offsets = [5, 0], sizes = [5, 384], strides = [1, 1]} : vector<15x384xf32> to vector<5x384xf32>
    %843 = vector.extract_strided_slice %842 {offsets = [0, 0], sizes = [5, 128], strides = [1, 1]} : vector<5x384xf32> to vector<5x128xf32>
    %844 = vector.extract_strided_slice %841 {offsets = [0, 0], sizes = [5, 128], strides = [1, 1]} : vector<5x384xf32> to vector<5x128xf32>
    %845 = arith.addf %843, %844 : vector<5x128xf32>
    %846 = arith.negf %845 : vector<5x128xf32>
    %847 = math.exp %846 : vector<5x128xf32>
    %cst_185 = arith.constant 1.000000e+00 : f32
    %848 = vector.broadcast %cst_185 : f32 to vector<5x128xf32>
    %849 = arith.addf %848, %847 : vector<5x128xf32>
    %850 = arith.divf %848, %849 : vector<5x128xf32>
    %851 = vector.extract_strided_slice %842 {offsets = [0, 128], sizes = [5, 128], strides = [1, 1]} : vector<5x384xf32> to vector<5x128xf32>
    %852 = vector.extract_strided_slice %841 {offsets = [0, 128], sizes = [5, 128], strides = [1, 1]} : vector<5x384xf32> to vector<5x128xf32>
    %853 = arith.addf %851, %852 : vector<5x128xf32>
    %854 = arith.negf %853 : vector<5x128xf32>
    %855 = math.exp %854 : vector<5x128xf32>
    %cst_186 = arith.constant 1.000000e+00 : f32
    %856 = vector.broadcast %cst_186 : f32 to vector<5x128xf32>
    %857 = arith.addf %856, %855 : vector<5x128xf32>
    %858 = arith.divf %856, %857 : vector<5x128xf32>
    %859 = vector.extract_strided_slice %842 {offsets = [0, 256], sizes = [5, 128], strides = [1, 1]} : vector<5x384xf32> to vector<5x128xf32>
    %860 = vector.extract_strided_slice %841 {offsets = [0, 256], sizes = [5, 128], strides = [1, 1]} : vector<5x384xf32> to vector<5x128xf32>
    %861 = arith.mulf %850, %860 : vector<5x128xf32>
    %862 = arith.addf %859, %861 : vector<5x128xf32>
    %863 = math.tanh %862 : vector<5x128xf32>
    %cst_187 = arith.constant 1.000000e+00 : f32
    %864 = vector.broadcast %cst_187 : f32 to vector<5x128xf32>
    %865 = arith.subf %864, %858 : vector<5x128xf32>
    %866 = arith.mulf %865, %863 : vector<5x128xf32>
    %867 = arith.mulf %858, %838 : vector<5x128xf32>
    %868 = arith.addf %866, %867 : vector<5x128xf32>
    %cst_188 = arith.constant dense<0.000000e+00> : vector<5x384xf32>
    %869 = tpu.matmul %868, %714, %cst_188 {dimension_numbers = #tpu.dot_dimension_numbers<[1], [0], [0], [1], [0, 0, 1, 1], [], []>} : vector<5x128xf32>, vector<128x384xf32>, vector<5x384xf32> -> vector<5x384xf32>
    %870 = vector.broadcast %716 : vector<1x384xf32> to vector<5x384xf32>
    %871 = arith.addf %869, %870 : vector<5x384xf32>
    %872 = vector.extract_strided_slice %708 {offsets = [0, 0], sizes = [5, 384], strides = [1, 1]} : vector<15x384xf32> to vector<5x384xf32>
    %873 = vector.extract_strided_slice %872 {offsets = [0, 0], sizes = [5, 128], strides = [1, 1]} : vector<5x384xf32> to vector<5x128xf32>
    %874 = vector.extract_strided_slice %871 {offsets = [0, 0], sizes = [5, 128], strides = [1, 1]} : vector<5x384xf32> to vector<5x128xf32>
    %875 = arith.addf %873, %874 : vector<5x128xf32>
    %876 = arith.negf %875 : vector<5x128xf32>
    %877 = math.exp %876 : vector<5x128xf32>
    %cst_189 = arith.constant 1.000000e+00 : f32
    %878 = vector.broadcast %cst_189 : f32 to vector<5x128xf32>
    %879 = arith.addf %878, %877 : vector<5x128xf32>
    %880 = arith.divf %878, %879 : vector<5x128xf32>
    %881 = vector.extract_strided_slice %872 {offsets = [0, 128], sizes = [5, 128], strides = [1, 1]} : vector<5x384xf32> to vector<5x128xf32>
    %882 = vector.extract_strided_slice %871 {offsets = [0, 128], sizes = [5, 128], strides = [1, 1]} : vector<5x384xf32> to vector<5x128xf32>
    %883 = arith.addf %881, %882 : vector<5x128xf32>
    %884 = arith.negf %883 : vector<5x128xf32>
    %885 = math.exp %884 : vector<5x128xf32>
    %cst_190 = arith.constant 1.000000e+00 : f32
    %886 = vector.broadcast %cst_190 : f32 to vector<5x128xf32>
    %887 = arith.addf %886, %885 : vector<5x128xf32>
    %888 = arith.divf %886, %887 : vector<5x128xf32>
    %889 = vector.extract_strided_slice %872 {offsets = [0, 256], sizes = [5, 128], strides = [1, 1]} : vector<5x384xf32> to vector<5x128xf32>
    %890 = vector.extract_strided_slice %871 {offsets = [0, 256], sizes = [5, 128], strides = [1, 1]} : vector<5x384xf32> to vector<5x128xf32>
    %891 = arith.mulf %880, %890 : vector<5x128xf32>
    %892 = arith.addf %889, %891 : vector<5x128xf32>
    %893 = math.tanh %892 : vector<5x128xf32>
    %cst_191 = arith.constant 1.000000e+00 : f32
    %894 = vector.broadcast %cst_191 : f32 to vector<5x128xf32>
    %895 = arith.subf %894, %888 : vector<5x128xf32>
    %896 = arith.mulf %895, %893 : vector<5x128xf32>
    %897 = arith.mulf %888, %868 : vector<5x128xf32>
    %898 = arith.addf %896, %897 : vector<5x128xf32>
    %899 = vector.extract_strided_slice %694 {offsets = [0, 0], sizes = [5, 128], strides = [1, 1]} : vector<15x128xf32> to vector<5x128xf32>
    %900 = arith.addf %899, %747 : vector<5x128xf32>
    %901 = arith.addf %900, %898 : vector<5x128xf32>
    %c0_192 = arith.constant 0 : index
    %c0_193 = arith.constant 0 : index
    %902 = vector.load %arg23[%c0_192, %c0_193] : memref<15x128xf32, #tpu.memory_space<vmem>>, vector<5x128xf32>
    tpu.vector_store %arg23[%c0_192, %c0_193], %901 {strides = array<i32>} : memref<15x128xf32, #tpu.memory_space<vmem>>, vector<5x128xf32>,
    %903 = vector.extract_strided_slice %694 {offsets = [5, 0], sizes = [5, 128], strides = [1, 1]} : vector<15x128xf32> to vector<5x128xf32>
    %904 = arith.addf %903, %777 : vector<5x128xf32>
    %905 = arith.addf %904, %868 : vector<5x128xf32>
    %c5_194 = arith.constant 5 : index
    %c0_195 = arith.constant 0 : index
    %906 = vector.load %arg23[%c5_194, %c0_195] : memref<15x128xf32, #tpu.memory_space<vmem>>, vector<5x128xf32>
    tpu.vector_store %arg23[%c5_194, %c0_195], %905 {strides = array<i32>} : memref<15x128xf32, #tpu.memory_space<vmem>>, vector<5x128xf32>,
    %907 = vector.extract_strided_slice %694 {offsets = [10, 0], sizes = [5, 128], strides = [1, 1]} : vector<15x128xf32> to vector<5x128xf32>
    %908 = arith.addf %907, %807 : vector<5x128xf32>
    %909 = arith.addf %908, %838 : vector<5x128xf32>
    %c10_196 = arith.constant 10 : index
    %c0_197 = arith.constant 0 : index
    %910 = vector.load %arg23[%c10_196, %c0_197] : memref<15x128xf32, #tpu.memory_space<vmem>>, vector<5x128xf32>
    tpu.vector_store %arg23[%c10_196, %c0_197], %909 {strides = array<i32>} : memref<15x128xf32, #tpu.memory_space<vmem>>, vector<5x128xf32>,
    %c0_198 = arith.constant 0 : index
    %c0_199 = arith.constant 0 : index
    %911 = vector.load %arg23[%c0_198, %c0_199] : memref<15x128xf32, #tpu.memory_space<vmem>>, vector<15x128xf32>
    %912 = tpu.iota {dimensions = array<i32: 0>} : vector<5x1xi32>
    %913 = tpu.iota {dimensions = array<i32: 1>} : vector<5x128xi32>
    %914 = vector.extract_strided_slice %683 {offsets = [1, 0], sizes = [5, 128], strides = [1, 1]} : vector<6x128xf32> to vector<5x128xf32>
    %915 = arith.mulf %901, %914 : vector<5x128xf32>
    %cst_200 = arith.constant dense<0.000000e+00> : vector<5xf32>
    %916 = vector.multi_reduction <add>, %915, %cst_200 [1] : vector<5x128xf32> to vector<5xf32>
    %917 = vector.shape_cast %916 : vector<5xf32> to vector<5x1xf32>
    %c2_i32_201 = arith.constant 2 : i32
    %918 = vector.broadcast %c2_i32_201 : i32 to vector<5x1xi32>
    %919 = arith.cmpi sge, %912, %918 : vector<5x1xi32>
    %cst_202 = arith.constant -1.000000e+10 : f32
    %920 = vector.broadcast %cst_202 : f32 to vector<5x1xf32>
    %921 = arith.select %919, %917, %920 : vector<5x1xi1>, vector<5x1xf32>
    %922 = arith.mulf %905, %914 : vector<5x128xf32>
    %cst_203 = arith.constant dense<0.000000e+00> : vector<5xf32>
    %923 = vector.multi_reduction <add>, %922, %cst_203 [1] : vector<5x128xf32> to vector<5xf32>
    %924 = vector.shape_cast %923 : vector<5xf32> to vector<5x1xf32>
    %c1_i32_204 = arith.constant 1 : i32
    %925 = vector.broadcast %c1_i32_204 : i32 to vector<5x1xi32>
    %926 = arith.cmpi sge, %912, %925 : vector<5x1xi32>
    %cst_205 = arith.constant -1.000000e+10 : f32
    %927 = vector.broadcast %cst_205 : f32 to vector<5x1xf32>
    %928 = arith.select %926, %924, %927 : vector<5x1xi1>, vector<5x1xf32>
    %929 = arith.mulf %909, %914 : vector<5x128xf32>
    %cst_206 = arith.constant dense<0.000000e+00> : vector<5xf32>
    %930 = vector.multi_reduction <add>, %929, %cst_206 [1] : vector<5x128xf32> to vector<5xf32>
    %931 = vector.shape_cast %930 : vector<5xf32> to vector<5x1xf32>
    %c0_i32_207 = arith.constant 0 : i32
    %932 = vector.broadcast %c0_i32_207 : i32 to vector<5x1xi32>
    %933 = arith.cmpi sge, %912, %932 : vector<5x1xi32>
    %cst_208 = arith.constant -1.000000e+10 : f32
    %934 = vector.broadcast %cst_208 : f32 to vector<5x1xf32>
    %935 = arith.select %933, %931, %934 : vector<5x1xi1>, vector<5x1xf32>
    %936 = arith.maximumf %921, %928 : vector<5x1xf32>
    %937 = arith.maximumf %936, %935 : vector<5x1xf32>
    %938 = arith.subf %921, %937 : vector<5x1xf32>
    %939 = math.exp %938 : vector<5x1xf32>
    %940 = arith.subf %928, %937 : vector<5x1xf32>
    %941 = math.exp %940 : vector<5x1xf32>
    %942 = arith.subf %935, %937 : vector<5x1xf32>
    %943 = math.exp %942 : vector<5x1xf32>
    %944 = arith.addf %939, %941 : vector<5x1xf32>
    %945 = arith.addf %944, %943 : vector<5x1xf32>
    %946 = arith.divf %939, %945 : vector<5x1xf32>
    %947 = arith.divf %941, %945 : vector<5x1xf32>
    %948 = arith.divf %943, %945 : vector<5x1xf32>
    %cst_209 = arith.constant 0.000000e+00 : f32
    %949 = vector.broadcast %cst_209 : f32 to vector<5x128xf32>
    %c0_i32_210 = arith.constant 0 : i32
    %950 = vector.broadcast %c0_i32_210 : i32 to vector<5x128xi32>
    %951 = arith.cmpi eq, %913, %950 : vector<5x128xi32>
    %cst_211 = arith.constant 0.000000e+00 : f32
    %952 = vector.shape_cast %946 : vector<5x1xf32> to vector<5x1xf32>
    %953 = vector.broadcast %952 : vector<5x1xf32> to vector<5x128xf32>
    %954 = vector.broadcast %cst_211 : f32 to vector<5x128xf32>
    %955 = arith.select %951, %953, %954 : vector<5x128xi1>, vector<5x128xf32>
    %956 = arith.addf %949, %955 : vector<5x128xf32>
    %c1_i32_212 = arith.constant 1 : i32
    %957 = vector.broadcast %c1_i32_212 : i32 to vector<5x128xi32>
    %958 = arith.cmpi eq, %913, %957 : vector<5x128xi32>
    %cst_213 = arith.constant 0.000000e+00 : f32
    %959 = vector.shape_cast %947 : vector<5x1xf32> to vector<5x1xf32>
    %960 = vector.broadcast %959 : vector<5x1xf32> to vector<5x128xf32>
    %961 = vector.broadcast %cst_213 : f32 to vector<5x128xf32>
    %962 = arith.select %958, %960, %961 : vector<5x128xi1>, vector<5x128xf32>
    %963 = arith.addf %956, %962 : vector<5x128xf32>
    %c2_i32_214 = arith.constant 2 : i32
    %964 = vector.broadcast %c2_i32_214 : i32 to vector<5x128xi32>
    %965 = arith.cmpi eq, %913, %964 : vector<5x128xi32>
    %cst_215 = arith.constant 0.000000e+00 : f32
    %966 = vector.shape_cast %948 : vector<5x1xf32> to vector<5x1xf32>
    %967 = vector.broadcast %966 : vector<5x1xf32> to vector<5x128xf32>
    %968 = vector.broadcast %cst_215 : f32 to vector<5x128xf32>
    %969 = arith.select %965, %967, %968 : vector<5x128xi1>, vector<5x128xf32>
    %970 = arith.addf %963, %969 : vector<5x128xf32>
    %c0_216 = arith.constant 0 : index
    %c0_217 = arith.constant 0 : index
    %c0_218 = arith.constant 0 : index
    %971 = vector.load %arg21[%c0_216, %c0_217, %c0_218] : memref<2x5x128xf32, #tpu.memory_space<vmem>>, vector<1x5x128xf32>
    %972 = vector.shape_cast %971 : vector<1x5x128xf32> to vector<5x128xf32>
    %973 = vector.shape_cast %970 : vector<5x128xf32> to vector<1x5x128xf32>
    tpu.vector_store %arg21[%c0_216, %c0_217, %c0_218], %973 {strides = array<i32>} : memref<2x5x128xf32, #tpu.memory_space<vmem>>, vector<1x5x128xf32>,
    %c0_219 = arith.constant 0 : index
    %c0_220 = arith.constant 0 : index
    %c0_221 = arith.constant 0 : index
    %974 = vector.load %arg14[%c0_219, %c0_220, %c0_221] : memref<4x128x256xf32, #tpu.memory_space<vmem>>, vector<1x128x256xf32>
    %975 = vector.shape_cast %974 : vector<1x128x256xf32> to vector<128x256xf32>
    %c0_222 = arith.constant 0 : index
    %c0_223 = arith.constant 0 : index
    %c0_224 = arith.constant 0 : index
    %976 = vector.load %arg15[%c0_222, %c0_223, %c0_224] : memref<4x1x256xf32, #tpu.memory_space<vmem>>, vector<1x1x256xf32>
    %977 = vector.shape_cast %976 : vector<1x1x256xf32> to vector<1x256xf32>
    %c0_225 = arith.constant 0 : index
    %c0_226 = arith.constant 0 : index
    %c0_227 = arith.constant 0 : index
    %978 = vector.load %arg16[%c0_225, %c0_226, %c0_227] : memref<4x128x256xf32, #tpu.memory_space<vmem>>, vector<1x128x256xf32>
    %979 = vector.shape_cast %978 : vector<1x128x256xf32> to vector<128x256xf32>
    %c0_228 = arith.constant 0 : index
    %c0_229 = arith.constant 0 : index
    %c0_230 = arith.constant 0 : index
    %980 = vector.load %arg17[%c0_228, %c0_229, %c0_230] : memref<4x1x256xf32, #tpu.memory_space<vmem>>, vector<1x1x256xf32>
    %981 = vector.shape_cast %980 : vector<1x1x256xf32> to vector<1x256xf32>
    %cst_231 = arith.constant dense<0.000000e+00> : vector<15x256xf32>
    %982 = tpu.matmul %911, %975, %cst_231 {dimension_numbers = #tpu.dot_dimension_numbers<[1], [0], [0], [1], [0, 0, 1, 1], [], []>} : vector<15x128xf32>, vector<128x256xf32>, vector<15x256xf32> -> vector<15x256xf32>
    %983 = vector.broadcast %977 : vector<1x256xf32> to vector<15x256xf32>
    %984 = arith.addf %982, %983 : vector<15x256xf32>
    %cst_232 = arith.constant 0.000000e+00 : f32
    %985 = vector.broadcast %cst_232 : f32 to vector<5x128xf32>
    %986 = vector.extract_strided_slice %984 {offsets = [0, 0], sizes = [5, 256], strides = [1, 1]} : vector<15x256xf32> to vector<5x256xf32>
    %cst_233 = arith.constant dense<0.000000e+00> : vector<5x256xf32>
    %987 = tpu.matmul %985, %979, %cst_233 {dimension_numbers = #tpu.dot_dimension_numbers<[1], [0], [0], [1], [0, 0, 1, 1], [], []>} : vector<5x128xf32>, vector<128x256xf32>, vector<5x256xf32> -> vector<5x256xf32>
    %988 = vector.broadcast %981 : vector<1x256xf32> to vector<5x256xf32>
    %989 = arith.addf %987, %988 : vector<5x256xf32>
    %990 = vector.extract_strided_slice %986 {offsets = [0, 0], sizes = [5, 128], strides = [1, 1]} : vector<5x256xf32> to vector<5x128xf32>
    %991 = vector.extract_strided_slice %989 {offsets = [0, 0], sizes = [5, 128], strides = [1, 1]} : vector<5x256xf32> to vector<5x128xf32>
    %992 = arith.addf %990, %991 : vector<5x128xf32>
    %993 = arith.negf %992 : vector<5x128xf32>
    %994 = math.exp %993 : vector<5x128xf32>
    %cst_234 = arith.constant 1.000000e+00 : f32
    %995 = vector.broadcast %cst_234 : f32 to vector<5x128xf32>
    %996 = arith.addf %995, %994 : vector<5x128xf32>
    %997 = arith.divf %995, %996 : vector<5x128xf32>
    %998 = vector.extract_strided_slice %986 {offsets = [0, 128], sizes = [5, 128], strides = [1, 1]} : vector<5x256xf32> to vector<5x128xf32>
    %999 = vector.extract_strided_slice %989 {offsets = [0, 128], sizes = [5, 128], strides = [1, 1]} : vector<5x256xf32> to vector<5x128xf32>
    %1000 = arith.mulf %997, %999 : vector<5x128xf32>
    %1001 = arith.addf %998, %1000 : vector<5x128xf32>
    %1002 = math.tanh %1001 : vector<5x128xf32>
    %1003 = vector.broadcast %946 : vector<5x1xf32> to vector<5x128xf32>
    %1004 = arith.mulf %1003, %1002 : vector<5x128xf32>
    %cst_235 = arith.constant 1.000000e+00 : f32
    %1005 = vector.broadcast %cst_235 : f32 to vector<5x1xf32>
    %1006 = arith.subf %1005, %946 : vector<5x1xf32>
    %1007 = vector.broadcast %1006 : vector<5x1xf32> to vector<5x128xf32>
    %1008 = arith.mulf %1007, %985 : vector<5x128xf32>
    %1009 = arith.addf %1004, %1008 : vector<5x128xf32>
    %1010 = vector.extract_strided_slice %984 {offsets = [5, 0], sizes = [5, 256], strides = [1, 1]} : vector<15x256xf32> to vector<5x256xf32>
    %cst_236 = arith.constant dense<0.000000e+00> : vector<5x256xf32>
    %1011 = tpu.matmul %1009, %979, %cst_236 {dimension_numbers = #tpu.dot_dimension_numbers<[1], [0], [0], [1], [0, 0, 1, 1], [], []>} : vector<5x128xf32>, vector<128x256xf32>, vector<5x256xf32> -> vector<5x256xf32>
    %1012 = vector.broadcast %981 : vector<1x256xf32> to vector<5x256xf32>
    %1013 = arith.addf %1011, %1012 : vector<5x256xf32>
    %1014 = vector.extract_strided_slice %1010 {offsets = [0, 0], sizes = [5, 128], strides = [1, 1]} : vector<5x256xf32> to vector<5x128xf32>
    %1015 = vector.extract_strided_slice %1013 {offsets = [0, 0], sizes = [5, 128], strides = [1, 1]} : vector<5x256xf32> to vector<5x128xf32>
    %1016 = arith.addf %1014, %1015 : vector<5x128xf32>
    %1017 = arith.negf %1016 : vector<5x128xf32>
    %1018 = math.exp %1017 : vector<5x128xf32>
    %cst_237 = arith.constant 1.000000e+00 : f32
    %1019 = vector.broadcast %cst_237 : f32 to vector<5x128xf32>
    %1020 = arith.addf %1019, %1018 : vector<5x128xf32>
    %1021 = arith.divf %1019, %1020 : vector<5x128xf32>
    %1022 = vector.extract_strided_slice %1010 {offsets = [0, 128], sizes = [5, 128], strides = [1, 1]} : vector<5x256xf32> to vector<5x128xf32>
    %1023 = vector.extract_strided_slice %1013 {offsets = [0, 128], sizes = [5, 128], strides = [1, 1]} : vector<5x256xf32> to vector<5x128xf32>
    %1024 = arith.mulf %1021, %1023 : vector<5x128xf32>
    %1025 = arith.addf %1022, %1024 : vector<5x128xf32>
    %1026 = math.tanh %1025 : vector<5x128xf32>
    %1027 = vector.broadcast %947 : vector<5x1xf32> to vector<5x128xf32>
    %1028 = arith.mulf %1027, %1026 : vector<5x128xf32>
    %cst_238 = arith.constant 1.000000e+00 : f32
    %1029 = vector.broadcast %cst_238 : f32 to vector<5x1xf32>
    %1030 = arith.subf %1029, %947 : vector<5x1xf32>
    %1031 = vector.broadcast %1030 : vector<5x1xf32> to vector<5x128xf32>
    %1032 = arith.mulf %1031, %1009 : vector<5x128xf32>
    %1033 = arith.addf %1028, %1032 : vector<5x128xf32>
    %1034 = vector.extract_strided_slice %984 {offsets = [10, 0], sizes = [5, 256], strides = [1, 1]} : vector<15x256xf32> to vector<5x256xf32>
    %cst_239 = arith.constant dense<0.000000e+00> : vector<5x256xf32>
    %1035 = tpu.matmul %1033, %979, %cst_239 {dimension_numbers = #tpu.dot_dimension_numbers<[1], [0], [0], [1], [0, 0, 1, 1], [], []>} : vector<5x128xf32>, vector<128x256xf32>, vector<5x256xf32> -> vector<5x256xf32>
    %1036 = vector.broadcast %981 : vector<1x256xf32> to vector<5x256xf32>
    %1037 = arith.addf %1035, %1036 : vector<5x256xf32>
    %1038 = vector.extract_strided_slice %1034 {offsets = [0, 0], sizes = [5, 128], strides = [1, 1]} : vector<5x256xf32> to vector<5x128xf32>
    %1039 = vector.extract_strided_slice %1037 {offsets = [0, 0], sizes = [5, 128], strides = [1, 1]} : vector<5x256xf32> to vector<5x128xf32>
    %1040 = arith.addf %1038, %1039 : vector<5x128xf32>
    %1041 = arith.negf %1040 : vector<5x128xf32>
    %1042 = math.exp %1041 : vector<5x128xf32>
    %cst_240 = arith.constant 1.000000e+00 : f32
    %1043 = vector.broadcast %cst_240 : f32 to vector<5x128xf32>
    %1044 = arith.addf %1043, %1042 : vector<5x128xf32>
    %1045 = arith.divf %1043, %1044 : vector<5x128xf32>
    %1046 = vector.extract_strided_slice %1034 {offsets = [0, 128], sizes = [5, 128], strides = [1, 1]} : vector<5x256xf32> to vector<5x128xf32>
    %1047 = vector.extract_strided_slice %1037 {offsets = [0, 128], sizes = [5, 128], strides = [1, 1]} : vector<5x256xf32> to vector<5x128xf32>
    %1048 = arith.mulf %1045, %1047 : vector<5x128xf32>
    %1049 = arith.addf %1046, %1048 : vector<5x128xf32>
    %1050 = math.tanh %1049 : vector<5x128xf32>
    %1051 = vector.broadcast %948 : vector<5x1xf32> to vector<5x128xf32>
    %1052 = arith.mulf %1051, %1050 : vector<5x128xf32>
    %cst_241 = arith.constant 1.000000e+00 : f32
    %1053 = vector.broadcast %cst_241 : f32 to vector<5x1xf32>
    %1054 = arith.subf %1053, %948 : vector<5x1xf32>
    %1055 = vector.broadcast %1054 : vector<5x1xf32> to vector<5x128xf32>
    %1056 = arith.mulf %1055, %1033 : vector<5x128xf32>
    %1057 = arith.addf %1052, %1056 : vector<5x128xf32>
    %1058 = arith.addf %914, %1057 : vector<5x128xf32>
    %c1_242 = arith.constant 1 : index
    %c0_243 = arith.constant 0 : index
    %c0_244 = arith.constant 0 : index
    %1059 = vector.load %arg14[%c1_242, %c0_243, %c0_244] : memref<4x128x256xf32, #tpu.memory_space<vmem>>, vector<1x128x256xf32>
    %1060 = vector.shape_cast %1059 : vector<1x128x256xf32> to vector<128x256xf32>
    %c1_245 = arith.constant 1 : index
    %c0_246 = arith.constant 0 : index
    %c0_247 = arith.constant 0 : index
    %1061 = vector.load %arg15[%c1_245, %c0_246, %c0_247] : memref<4x1x256xf32, #tpu.memory_space<vmem>>, vector<1x1x256xf32>
    %1062 = vector.shape_cast %1061 : vector<1x1x256xf32> to vector<1x256xf32>
    %c1_248 = arith.constant 1 : index
    %c0_249 = arith.constant 0 : index
    %c0_250 = arith.constant 0 : index
    %1063 = vector.load %arg16[%c1_248, %c0_249, %c0_250] : memref<4x128x256xf32, #tpu.memory_space<vmem>>, vector<1x128x256xf32>
    %1064 = vector.shape_cast %1063 : vector<1x128x256xf32> to vector<128x256xf32>
    %c1_251 = arith.constant 1 : index
    %c0_252 = arith.constant 0 : index
    %c0_253 = arith.constant 0 : index
    %1065 = vector.load %arg17[%c1_251, %c0_252, %c0_253] : memref<4x1x256xf32, #tpu.memory_space<vmem>>, vector<1x1x256xf32>
    %1066 = vector.shape_cast %1065 : vector<1x1x256xf32> to vector<1x256xf32>
    %cst_254 = arith.constant dense<0.000000e+00> : vector<15x256xf32>
    %1067 = tpu.matmul %911, %1060, %cst_254 {dimension_numbers = #tpu.dot_dimension_numbers<[1], [0], [0], [1], [0, 0, 1, 1], [], []>} : vector<15x128xf32>, vector<128x256xf32>, vector<15x256xf32> -> vector<15x256xf32>
    %1068 = vector.broadcast %1062 : vector<1x256xf32> to vector<15x256xf32>
    %1069 = arith.addf %1067, %1068 : vector<15x256xf32>
    %cst_255 = arith.constant 0.000000e+00 : f32
    %1070 = vector.broadcast %cst_255 : f32 to vector<5x128xf32>
    %1071 = vector.extract_strided_slice %1069 {offsets = [10, 0], sizes = [5, 256], strides = [1, 1]} : vector<15x256xf32> to vector<5x256xf32>
    %cst_256 = arith.constant dense<0.000000e+00> : vector<5x256xf32>
    %1072 = tpu.matmul %1070, %1064, %cst_256 {dimension_numbers = #tpu.dot_dimension_numbers<[1], [0], [0], [1], [0, 0, 1, 1], [], []>} : vector<5x128xf32>, vector<128x256xf32>, vector<5x256xf32> -> vector<5x256xf32>
    %1073 = vector.broadcast %1066 : vector<1x256xf32> to vector<5x256xf32>
    %1074 = arith.addf %1072, %1073 : vector<5x256xf32>
    %1075 = vector.extract_strided_slice %1071 {offsets = [0, 0], sizes = [5, 128], strides = [1, 1]} : vector<5x256xf32> to vector<5x128xf32>
    %1076 = vector.extract_strided_slice %1074 {offsets = [0, 0], sizes = [5, 128], strides = [1, 1]} : vector<5x256xf32> to vector<5x128xf32>
    %1077 = arith.addf %1075, %1076 : vector<5x128xf32>
    %1078 = arith.negf %1077 : vector<5x128xf32>
    %1079 = math.exp %1078 : vector<5x128xf32>
    %cst_257 = arith.constant 1.000000e+00 : f32
    %1080 = vector.broadcast %cst_257 : f32 to vector<5x128xf32>
    %1081 = arith.addf %1080, %1079 : vector<5x128xf32>
    %1082 = arith.divf %1080, %1081 : vector<5x128xf32>
    %1083 = vector.extract_strided_slice %1071 {offsets = [0, 128], sizes = [5, 128], strides = [1, 1]} : vector<5x256xf32> to vector<5x128xf32>
    %1084 = vector.extract_strided_slice %1074 {offsets = [0, 128], sizes = [5, 128], strides = [1, 1]} : vector<5x256xf32> to vector<5x128xf32>
    %1085 = arith.mulf %1082, %1084 : vector<5x128xf32>
    %1086 = arith.addf %1083, %1085 : vector<5x128xf32>
    %1087 = math.tanh %1086 : vector<5x128xf32>
    %1088 = vector.broadcast %948 : vector<5x1xf32> to vector<5x128xf32>
    %1089 = arith.mulf %1088, %1087 : vector<5x128xf32>
    %cst_258 = arith.constant 1.000000e+00 : f32
    %1090 = vector.broadcast %cst_258 : f32 to vector<5x1xf32>
    %1091 = arith.subf %1090, %948 : vector<5x1xf32>
    %1092 = vector.broadcast %1091 : vector<5x1xf32> to vector<5x128xf32>
    %1093 = arith.mulf %1092, %1070 : vector<5x128xf32>
    %1094 = arith.addf %1089, %1093 : vector<5x128xf32>
    %1095 = vector.extract_strided_slice %1069 {offsets = [5, 0], sizes = [5, 256], strides = [1, 1]} : vector<15x256xf32> to vector<5x256xf32>
    %cst_259 = arith.constant dense<0.000000e+00> : vector<5x256xf32>
    %1096 = tpu.matmul %1094, %1064, %cst_259 {dimension_numbers = #tpu.dot_dimension_numbers<[1], [0], [0], [1], [0, 0, 1, 1], [], []>} : vector<5x128xf32>, vector<128x256xf32>, vector<5x256xf32> -> vector<5x256xf32>
    %1097 = vector.broadcast %1066 : vector<1x256xf32> to vector<5x256xf32>
    %1098 = arith.addf %1096, %1097 : vector<5x256xf32>
    %1099 = vector.extract_strided_slice %1095 {offsets = [0, 0], sizes = [5, 128], strides = [1, 1]} : vector<5x256xf32> to vector<5x128xf32>
    %1100 = vector.extract_strided_slice %1098 {offsets = [0, 0], sizes = [5, 128], strides = [1, 1]} : vector<5x256xf32> to vector<5x128xf32>
    %1101 = arith.addf %1099, %1100 : vector<5x128xf32>
    %1102 = arith.negf %1101 : vector<5x128xf32>
    %1103 = math.exp %1102 : vector<5x128xf32>
    %cst_260 = arith.constant 1.000000e+00 : f32
    %1104 = vector.broadcast %cst_260 : f32 to vector<5x128xf32>
    %1105 = arith.addf %1104, %1103 : vector<5x128xf32>
    %1106 = arith.divf %1104, %1105 : vector<5x128xf32>
    %1107 = vector.extract_strided_slice %1095 {offsets = [0, 128], sizes = [5, 128], strides = [1, 1]} : vector<5x256xf32> to vector<5x128xf32>
    %1108 = vector.extract_strided_slice %1098 {offsets = [0, 128], sizes = [5, 128], strides = [1, 1]} : vector<5x256xf32> to vector<5x128xf32>
    %1109 = arith.mulf %1106, %1108 : vector<5x128xf32>
    %1110 = arith.addf %1107, %1109 : vector<5x128xf32>
    %1111 = math.tanh %1110 : vector<5x128xf32>
    %1112 = vector.broadcast %947 : vector<5x1xf32> to vector<5x128xf32>
    %1113 = arith.mulf %1112, %1111 : vector<5x128xf32>
    %cst_261 = arith.constant 1.000000e+00 : f32
    %1114 = vector.broadcast %cst_261 : f32 to vector<5x1xf32>
    %1115 = arith.subf %1114, %947 : vector<5x1xf32>
    %1116 = vector.broadcast %1115 : vector<5x1xf32> to vector<5x128xf32>
    %1117 = arith.mulf %1116, %1094 : vector<5x128xf32>
    %1118 = arith.addf %1113, %1117 : vector<5x128xf32>
    %1119 = vector.extract_strided_slice %1069 {offsets = [0, 0], sizes = [5, 256], strides = [1, 1]} : vector<15x256xf32> to vector<5x256xf32>
    %cst_262 = arith.constant dense<0.000000e+00> : vector<5x256xf32>
    %1120 = tpu.matmul %1118, %1064, %cst_262 {dimension_numbers = #tpu.dot_dimension_numbers<[1], [0], [0], [1], [0, 0, 1, 1], [], []>} : vector<5x128xf32>, vector<128x256xf32>, vector<5x256xf32> -> vector<5x256xf32>
    %1121 = vector.broadcast %1066 : vector<1x256xf32> to vector<5x256xf32>
    %1122 = arith.addf %1120, %1121 : vector<5x256xf32>
    %1123 = vector.extract_strided_slice %1119 {offsets = [0, 0], sizes = [5, 128], strides = [1, 1]} : vector<5x256xf32> to vector<5x128xf32>
    %1124 = vector.extract_strided_slice %1122 {offsets = [0, 0], sizes = [5, 128], strides = [1, 1]} : vector<5x256xf32> to vector<5x128xf32>
    %1125 = arith.addf %1123, %1124 : vector<5x128xf32>
    %1126 = arith.negf %1125 : vector<5x128xf32>
    %1127 = math.exp %1126 : vector<5x128xf32>
    %cst_263 = arith.constant 1.000000e+00 : f32
    %1128 = vector.broadcast %cst_263 : f32 to vector<5x128xf32>
    %1129 = arith.addf %1128, %1127 : vector<5x128xf32>
    %1130 = arith.divf %1128, %1129 : vector<5x128xf32>
    %1131 = vector.extract_strided_slice %1119 {offsets = [0, 128], sizes = [5, 128], strides = [1, 1]} : vector<5x256xf32> to vector<5x128xf32>
    %1132 = vector.extract_strided_slice %1122 {offsets = [0, 128], sizes = [5, 128], strides = [1, 1]} : vector<5x256xf32> to vector<5x128xf32>
    %1133 = arith.mulf %1130, %1132 : vector<5x128xf32>
    %1134 = arith.addf %1131, %1133 : vector<5x128xf32>
    %1135 = math.tanh %1134 : vector<5x128xf32>
    %1136 = vector.broadcast %946 : vector<5x1xf32> to vector<5x128xf32>
    %1137 = arith.mulf %1136, %1135 : vector<5x128xf32>
    %cst_264 = arith.constant 1.000000e+00 : f32
    %1138 = vector.broadcast %cst_264 : f32 to vector<5x1xf32>
    %1139 = arith.subf %1138, %946 : vector<5x1xf32>
    %1140 = vector.broadcast %1139 : vector<5x1xf32> to vector<5x128xf32>
    %1141 = arith.mulf %1140, %1118 : vector<5x128xf32>
    %1142 = arith.addf %1137, %1141 : vector<5x128xf32>
    %1143 = arith.addf %1058, %1142 : vector<5x128xf32>
    %1144 = arith.mulf %901, %1143 : vector<5x128xf32>
    %cst_265 = arith.constant dense<0.000000e+00> : vector<5xf32>
    %1145 = vector.multi_reduction <add>, %1144, %cst_265 [1] : vector<5x128xf32> to vector<5xf32>
    %1146 = vector.shape_cast %1145 : vector<5xf32> to vector<5x1xf32>
    %c2_i32_266 = arith.constant 2 : i32
    %1147 = vector.broadcast %c2_i32_266 : i32 to vector<5x1xi32>
    %1148 = arith.cmpi sge, %912, %1147 : vector<5x1xi32>
    %cst_267 = arith.constant -1.000000e+10 : f32
    %1149 = vector.broadcast %cst_267 : f32 to vector<5x1xf32>
    %1150 = arith.select %1148, %1146, %1149 : vector<5x1xi1>, vector<5x1xf32>
    %1151 = arith.mulf %905, %1143 : vector<5x128xf32>
    %cst_268 = arith.constant dense<0.000000e+00> : vector<5xf32>
    %1152 = vector.multi_reduction <add>, %1151, %cst_268 [1] : vector<5x128xf32> to vector<5xf32>
    %1153 = vector.shape_cast %1152 : vector<5xf32> to vector<5x1xf32>
    %c1_i32_269 = arith.constant 1 : i32
    %1154 = vector.broadcast %c1_i32_269 : i32 to vector<5x1xi32>
    %1155 = arith.cmpi sge, %912, %1154 : vector<5x1xi32>
    %cst_270 = arith.constant -1.000000e+10 : f32
    %1156 = vector.broadcast %cst_270 : f32 to vector<5x1xf32>
    %1157 = arith.select %1155, %1153, %1156 : vector<5x1xi1>, vector<5x1xf32>
    %1158 = arith.mulf %909, %1143 : vector<5x128xf32>
    %cst_271 = arith.constant dense<0.000000e+00> : vector<5xf32>
    %1159 = vector.multi_reduction <add>, %1158, %cst_271 [1] : vector<5x128xf32> to vector<5xf32>
    %1160 = vector.shape_cast %1159 : vector<5xf32> to vector<5x1xf32>
    %c0_i32_272 = arith.constant 0 : i32
    %1161 = vector.broadcast %c0_i32_272 : i32 to vector<5x1xi32>
    %1162 = arith.cmpi sge, %912, %1161 : vector<5x1xi32>
    %cst_273 = arith.constant -1.000000e+10 : f32
    %1163 = vector.broadcast %cst_273 : f32 to vector<5x1xf32>
    %1164 = arith.select %1162, %1160, %1163 : vector<5x1xi1>, vector<5x1xf32>
    %1165 = arith.maximumf %1150, %1157 : vector<5x1xf32>
    %1166 = arith.maximumf %1165, %1164 : vector<5x1xf32>
    %1167 = arith.subf %1150, %1166 : vector<5x1xf32>
    %1168 = math.exp %1167 : vector<5x1xf32>
    %1169 = arith.subf %1157, %1166 : vector<5x1xf32>
    %1170 = math.exp %1169 : vector<5x1xf32>
    %1171 = arith.subf %1164, %1166 : vector<5x1xf32>
    %1172 = math.exp %1171 : vector<5x1xf32>
    %1173 = arith.addf %1168, %1170 : vector<5x1xf32>
    %1174 = arith.addf %1173, %1172 : vector<5x1xf32>
    %1175 = arith.divf %1168, %1174 : vector<5x1xf32>
    %1176 = arith.divf %1170, %1174 : vector<5x1xf32>
    %1177 = arith.divf %1172, %1174 : vector<5x1xf32>
    %cst_274 = arith.constant 0.000000e+00 : f32
    %1178 = vector.broadcast %cst_274 : f32 to vector<5x128xf32>
    %c0_i32_275 = arith.constant 0 : i32
    %1179 = vector.broadcast %c0_i32_275 : i32 to vector<5x128xi32>
    %1180 = arith.cmpi eq, %913, %1179 : vector<5x128xi32>
    %cst_276 = arith.constant 0.000000e+00 : f32
    %1181 = vector.shape_cast %1175 : vector<5x1xf32> to vector<5x1xf32>
    %1182 = vector.broadcast %1181 : vector<5x1xf32> to vector<5x128xf32>
    %1183 = vector.broadcast %cst_276 : f32 to vector<5x128xf32>
    %1184 = arith.select %1180, %1182, %1183 : vector<5x128xi1>, vector<5x128xf32>
    %1185 = arith.addf %1178, %1184 : vector<5x128xf32>
    %c1_i32_277 = arith.constant 1 : i32
    %1186 = vector.broadcast %c1_i32_277 : i32 to vector<5x128xi32>
    %1187 = arith.cmpi eq, %913, %1186 : vector<5x128xi32>
    %cst_278 = arith.constant 0.000000e+00 : f32
    %1188 = vector.shape_cast %1176 : vector<5x1xf32> to vector<5x1xf32>
    %1189 = vector.broadcast %1188 : vector<5x1xf32> to vector<5x128xf32>
    %1190 = vector.broadcast %cst_278 : f32 to vector<5x128xf32>
    %1191 = arith.select %1187, %1189, %1190 : vector<5x128xi1>, vector<5x128xf32>
    %1192 = arith.addf %1185, %1191 : vector<5x128xf32>
    %c2_i32_279 = arith.constant 2 : i32
    %1193 = vector.broadcast %c2_i32_279 : i32 to vector<5x128xi32>
    %1194 = arith.cmpi eq, %913, %1193 : vector<5x128xi32>
    %cst_280 = arith.constant 0.000000e+00 : f32
    %1195 = vector.shape_cast %1177 : vector<5x1xf32> to vector<5x1xf32>
    %1196 = vector.broadcast %1195 : vector<5x1xf32> to vector<5x128xf32>
    %1197 = vector.broadcast %cst_280 : f32 to vector<5x128xf32>
    %1198 = arith.select %1194, %1196, %1197 : vector<5x128xi1>, vector<5x128xf32>
    %1199 = arith.addf %1192, %1198 : vector<5x128xf32>
    %c1_281 = arith.constant 1 : index
    %c0_282 = arith.constant 0 : index
    %c0_283 = arith.constant 0 : index
    %1200 = vector.load %arg21[%c1_281, %c0_282, %c0_283] : memref<2x5x128xf32, #tpu.memory_space<vmem>>, vector<1x5x128xf32>
    %1201 = vector.shape_cast %1200 : vector<1x5x128xf32> to vector<5x128xf32>
    %1202 = vector.shape_cast %1199 : vector<5x128xf32> to vector<1x5x128xf32>
    tpu.vector_store %arg21[%c1_281, %c0_282, %c0_283], %1202 {strides = array<i32>} : memref<2x5x128xf32, #tpu.memory_space<vmem>>, vector<1x5x128xf32>,
    %c2_284 = arith.constant 2 : index
    %c0_285 = arith.constant 0 : index
    %c0_286 = arith.constant 0 : index
    %1203 = vector.load %arg14[%c2_284, %c0_285, %c0_286] : memref<4x128x256xf32, #tpu.memory_space<vmem>>, vector<1x128x256xf32>
    %1204 = vector.shape_cast %1203 : vector<1x128x256xf32> to vector<128x256xf32>
    %c2_287 = arith.constant 2 : index
    %c0_288 = arith.constant 0 : index
    %c0_289 = arith.constant 0 : index
    %1205 = vector.load %arg15[%c2_287, %c0_288, %c0_289] : memref<4x1x256xf32, #tpu.memory_space<vmem>>, vector<1x1x256xf32>
    %1206 = vector.shape_cast %1205 : vector<1x1x256xf32> to vector<1x256xf32>
    %c2_290 = arith.constant 2 : index
    %c0_291 = arith.constant 0 : index
    %c0_292 = arith.constant 0 : index
    %1207 = vector.load %arg16[%c2_290, %c0_291, %c0_292] : memref<4x128x256xf32, #tpu.memory_space<vmem>>, vector<1x128x256xf32>
    %1208 = vector.shape_cast %1207 : vector<1x128x256xf32> to vector<128x256xf32>
    %c2_293 = arith.constant 2 : index
    %c0_294 = arith.constant 0 : index
    %c0_295 = arith.constant 0 : index
    %1209 = vector.load %arg17[%c2_293, %c0_294, %c0_295] : memref<4x1x256xf32, #tpu.memory_space<vmem>>, vector<1x1x256xf32>
    %1210 = vector.shape_cast %1209 : vector<1x1x256xf32> to vector<1x256xf32>
    %cst_296 = arith.constant dense<0.000000e+00> : vector<15x256xf32>
    %1211 = tpu.matmul %911, %1204, %cst_296 {dimension_numbers = #tpu.dot_dimension_numbers<[1], [0], [0], [1], [0, 0, 1, 1], [], []>} : vector<15x128xf32>, vector<128x256xf32>, vector<15x256xf32> -> vector<15x256xf32>
    %1212 = vector.broadcast %1206 : vector<1x256xf32> to vector<15x256xf32>
    %1213 = arith.addf %1211, %1212 : vector<15x256xf32>
    %cst_297 = arith.constant 0.000000e+00 : f32
    %1214 = vector.broadcast %cst_297 : f32 to vector<5x128xf32>
    %1215 = vector.extract_strided_slice %1213 {offsets = [0, 0], sizes = [5, 256], strides = [1, 1]} : vector<15x256xf32> to vector<5x256xf32>
    %cst_298 = arith.constant dense<0.000000e+00> : vector<5x256xf32>
    %1216 = tpu.matmul %1214, %1208, %cst_298 {dimension_numbers = #tpu.dot_dimension_numbers<[1], [0], [0], [1], [0, 0, 1, 1], [], []>} : vector<5x128xf32>, vector<128x256xf32>, vector<5x256xf32> -> vector<5x256xf32>
    %1217 = vector.broadcast %1210 : vector<1x256xf32> to vector<5x256xf32>
    %1218 = arith.addf %1216, %1217 : vector<5x256xf32>
    %1219 = vector.extract_strided_slice %1215 {offsets = [0, 0], sizes = [5, 128], strides = [1, 1]} : vector<5x256xf32> to vector<5x128xf32>
    %1220 = vector.extract_strided_slice %1218 {offsets = [0, 0], sizes = [5, 128], strides = [1, 1]} : vector<5x256xf32> to vector<5x128xf32>
    %1221 = arith.addf %1219, %1220 : vector<5x128xf32>
    %1222 = arith.negf %1221 : vector<5x128xf32>
    %1223 = math.exp %1222 : vector<5x128xf32>
    %cst_299 = arith.constant 1.000000e+00 : f32
    %1224 = vector.broadcast %cst_299 : f32 to vector<5x128xf32>
    %1225 = arith.addf %1224, %1223 : vector<5x128xf32>
    %1226 = arith.divf %1224, %1225 : vector<5x128xf32>
    %1227 = vector.extract_strided_slice %1215 {offsets = [0, 128], sizes = [5, 128], strides = [1, 1]} : vector<5x256xf32> to vector<5x128xf32>
    %1228 = vector.extract_strided_slice %1218 {offsets = [0, 128], sizes = [5, 128], strides = [1, 1]} : vector<5x256xf32> to vector<5x128xf32>
    %1229 = arith.mulf %1226, %1228 : vector<5x128xf32>
    %1230 = arith.addf %1227, %1229 : vector<5x128xf32>
    %1231 = math.tanh %1230 : vector<5x128xf32>
    %1232 = vector.broadcast %1175 : vector<5x1xf32> to vector<5x128xf32>
    %1233 = arith.mulf %1232, %1231 : vector<5x128xf32>
    %cst_300 = arith.constant 1.000000e+00 : f32
    %1234 = vector.broadcast %cst_300 : f32 to vector<5x1xf32>
    %1235 = arith.subf %1234, %1175 : vector<5x1xf32>
    %1236 = vector.broadcast %1235 : vector<5x1xf32> to vector<5x128xf32>
    %1237 = arith.mulf %1236, %1214 : vector<5x128xf32>
    %1238 = arith.addf %1233, %1237 : vector<5x128xf32>
    %1239 = vector.extract_strided_slice %1213 {offsets = [5, 0], sizes = [5, 256], strides = [1, 1]} : vector<15x256xf32> to vector<5x256xf32>
    %cst_301 = arith.constant dense<0.000000e+00> : vector<5x256xf32>
    %1240 = tpu.matmul %1238, %1208, %cst_301 {dimension_numbers = #tpu.dot_dimension_numbers<[1], [0], [0], [1], [0, 0, 1, 1], [], []>} : vector<5x128xf32>, vector<128x256xf32>, vector<5x256xf32> -> vector<5x256xf32>
    %1241 = vector.broadcast %1210 : vector<1x256xf32> to vector<5x256xf32>
    %1242 = arith.addf %1240, %1241 : vector<5x256xf32>
    %1243 = vector.extract_strided_slice %1239 {offsets = [0, 0], sizes = [5, 128], strides = [1, 1]} : vector<5x256xf32> to vector<5x128xf32>
    %1244 = vector.extract_strided_slice %1242 {offsets = [0, 0], sizes = [5, 128], strides = [1, 1]} : vector<5x256xf32> to vector<5x128xf32>
    %1245 = arith.addf %1243, %1244 : vector<5x128xf32>
    %1246 = arith.negf %1245 : vector<5x128xf32>
    %1247 = math.exp %1246 : vector<5x128xf32>
    %cst_302 = arith.constant 1.000000e+00 : f32
    %1248 = vector.broadcast %cst_302 : f32 to vector<5x128xf32>
    %1249 = arith.addf %1248, %1247 : vector<5x128xf32>
    %1250 = arith.divf %1248, %1249 : vector<5x128xf32>
    %1251 = vector.extract_strided_slice %1239 {offsets = [0, 128], sizes = [5, 128], strides = [1, 1]} : vector<5x256xf32> to vector<5x128xf32>
    %1252 = vector.extract_strided_slice %1242 {offsets = [0, 128], sizes = [5, 128], strides = [1, 1]} : vector<5x256xf32> to vector<5x128xf32>
    %1253 = arith.mulf %1250, %1252 : vector<5x128xf32>
    %1254 = arith.addf %1251, %1253 : vector<5x128xf32>
    %1255 = math.tanh %1254 : vector<5x128xf32>
    %1256 = vector.broadcast %1176 : vector<5x1xf32> to vector<5x128xf32>
    %1257 = arith.mulf %1256, %1255 : vector<5x128xf32>
    %cst_303 = arith.constant 1.000000e+00 : f32
    %1258 = vector.broadcast %cst_303 : f32 to vector<5x1xf32>
    %1259 = arith.subf %1258, %1176 : vector<5x1xf32>
    %1260 = vector.broadcast %1259 : vector<5x1xf32> to vector<5x128xf32>
    %1261 = arith.mulf %1260, %1238 : vector<5x128xf32>
    %1262 = arith.addf %1257, %1261 : vector<5x128xf32>
    %1263 = vector.extract_strided_slice %1213 {offsets = [10, 0], sizes = [5, 256], strides = [1, 1]} : vector<15x256xf32> to vector<5x256xf32>
    %cst_304 = arith.constant dense<0.000000e+00> : vector<5x256xf32>
    %1264 = tpu.matmul %1262, %1208, %cst_304 {dimension_numbers = #tpu.dot_dimension_numbers<[1], [0], [0], [1], [0, 0, 1, 1], [], []>} : vector<5x128xf32>, vector<128x256xf32>, vector<5x256xf32> -> vector<5x256xf32>
    %1265 = vector.broadcast %1210 : vector<1x256xf32> to vector<5x256xf32>
    %1266 = arith.addf %1264, %1265 : vector<5x256xf32>
    %1267 = vector.extract_strided_slice %1263 {offsets = [0, 0], sizes = [5, 128], strides = [1, 1]} : vector<5x256xf32> to vector<5x128xf32>
    %1268 = vector.extract_strided_slice %1266 {offsets = [0, 0], sizes = [5, 128], strides = [1, 1]} : vector<5x256xf32> to vector<5x128xf32>
    %1269 = arith.addf %1267, %1268 : vector<5x128xf32>
    %1270 = arith.negf %1269 : vector<5x128xf32>
    %1271 = math.exp %1270 : vector<5x128xf32>
    %cst_305 = arith.constant 1.000000e+00 : f32
    %1272 = vector.broadcast %cst_305 : f32 to vector<5x128xf32>
    %1273 = arith.addf %1272, %1271 : vector<5x128xf32>
    %1274 = arith.divf %1272, %1273 : vector<5x128xf32>
    %1275 = vector.extract_strided_slice %1263 {offsets = [0, 128], sizes = [5, 128], strides = [1, 1]} : vector<5x256xf32> to vector<5x128xf32>
    %1276 = vector.extract_strided_slice %1266 {offsets = [0, 128], sizes = [5, 128], strides = [1, 1]} : vector<5x256xf32> to vector<5x128xf32>
    %1277 = arith.mulf %1274, %1276 : vector<5x128xf32>
    %1278 = arith.addf %1275, %1277 : vector<5x128xf32>
    %1279 = math.tanh %1278 : vector<5x128xf32>
    %1280 = vector.broadcast %1177 : vector<5x1xf32> to vector<5x128xf32>
    %1281 = arith.mulf %1280, %1279 : vector<5x128xf32>
    %cst_306 = arith.constant 1.000000e+00 : f32
    %1282 = vector.broadcast %cst_306 : f32 to vector<5x1xf32>
    %1283 = arith.subf %1282, %1177 : vector<5x1xf32>
    %1284 = vector.broadcast %1283 : vector<5x1xf32> to vector<5x128xf32>
    %1285 = arith.mulf %1284, %1262 : vector<5x128xf32>
    %1286 = arith.addf %1281, %1285 : vector<5x128xf32>
    %1287 = arith.addf %1143, %1286 : vector<5x128xf32>
    %c3 = arith.constant 3 : index
    %c0_307 = arith.constant 0 : index
    %c0_308 = arith.constant 0 : index
    %1288 = vector.load %arg14[%c3, %c0_307, %c0_308] : memref<4x128x256xf32, #tpu.memory_space<vmem>>, vector<1x128x256xf32>
    %1289 = vector.shape_cast %1288 : vector<1x128x256xf32> to vector<128x256xf32>
    %c3_309 = arith.constant 3 : index
    %c0_310 = arith.constant 0 : index
    %c0_311 = arith.constant 0 : index
    %1290 = vector.load %arg15[%c3_309, %c0_310, %c0_311] : memref<4x1x256xf32, #tpu.memory_space<vmem>>, vector<1x1x256xf32>
    %1291 = vector.shape_cast %1290 : vector<1x1x256xf32> to vector<1x256xf32>
    %c3_312 = arith.constant 3 : index
    %c0_313 = arith.constant 0 : index
    %c0_314 = arith.constant 0 : index
    %1292 = vector.load %arg16[%c3_312, %c0_313, %c0_314] : memref<4x128x256xf32, #tpu.memory_space<vmem>>, vector<1x128x256xf32>
    %1293 = vector.shape_cast %1292 : vector<1x128x256xf32> to vector<128x256xf32>
    %c3_315 = arith.constant 3 : index
    %c0_316 = arith.constant 0 : index
    %c0_317 = arith.constant 0 : index
    %1294 = vector.load %arg17[%c3_315, %c0_316, %c0_317] : memref<4x1x256xf32, #tpu.memory_space<vmem>>, vector<1x1x256xf32>
    %1295 = vector.shape_cast %1294 : vector<1x1x256xf32> to vector<1x256xf32>
    %cst_318 = arith.constant dense<0.000000e+00> : vector<15x256xf32>
    %1296 = tpu.matmul %911, %1289, %cst_318 {dimension_numbers = #tpu.dot_dimension_numbers<[1], [0], [0], [1], [0, 0, 1, 1], [], []>} : vector<15x128xf32>, vector<128x256xf32>, vector<15x256xf32> -> vector<15x256xf32>
    %1297 = vector.broadcast %1291 : vector<1x256xf32> to vector<15x256xf32>
    %1298 = arith.addf %1296, %1297 : vector<15x256xf32>
    %cst_319 = arith.constant 0.000000e+00 : f32
    %1299 = vector.broadcast %cst_319 : f32 to vector<5x128xf32>
    %1300 = vector.extract_strided_slice %1298 {offsets = [10, 0], sizes = [5, 256], strides = [1, 1]} : vector<15x256xf32> to vector<5x256xf32>
    %cst_320 = arith.constant dense<0.000000e+00> : vector<5x256xf32>
    %1301 = tpu.matmul %1299, %1293, %cst_320 {dimension_numbers = #tpu.dot_dimension_numbers<[1], [0], [0], [1], [0, 0, 1, 1], [], []>} : vector<5x128xf32>, vector<128x256xf32>, vector<5x256xf32> -> vector<5x256xf32>
    %1302 = vector.broadcast %1295 : vector<1x256xf32> to vector<5x256xf32>
    %1303 = arith.addf %1301, %1302 : vector<5x256xf32>
    %1304 = vector.extract_strided_slice %1300 {offsets = [0, 0], sizes = [5, 128], strides = [1, 1]} : vector<5x256xf32> to vector<5x128xf32>
    %1305 = vector.extract_strided_slice %1303 {offsets = [0, 0], sizes = [5, 128], strides = [1, 1]} : vector<5x256xf32> to vector<5x128xf32>
    %1306 = arith.addf %1304, %1305 : vector<5x128xf32>
    %1307 = arith.negf %1306 : vector<5x128xf32>
    %1308 = math.exp %1307 : vector<5x128xf32>
    %cst_321 = arith.constant 1.000000e+00 : f32
    %1309 = vector.broadcast %cst_321 : f32 to vector<5x128xf32>
    %1310 = arith.addf %1309, %1308 : vector<5x128xf32>
    %1311 = arith.divf %1309, %1310 : vector<5x128xf32>
    %1312 = vector.extract_strided_slice %1300 {offsets = [0, 128], sizes = [5, 128], strides = [1, 1]} : vector<5x256xf32> to vector<5x128xf32>
    %1313 = vector.extract_strided_slice %1303 {offsets = [0, 128], sizes = [5, 128], strides = [1, 1]} : vector<5x256xf32> to vector<5x128xf32>
    %1314 = arith.mulf %1311, %1313 : vector<5x128xf32>
    %1315 = arith.addf %1312, %1314 : vector<5x128xf32>
    %1316 = math.tanh %1315 : vector<5x128xf32>
    %1317 = vector.broadcast %1177 : vector<5x1xf32> to vector<5x128xf32>
    %1318 = arith.mulf %1317, %1316 : vector<5x128xf32>
    %cst_322 = arith.constant 1.000000e+00 : f32
    %1319 = vector.broadcast %cst_322 : f32 to vector<5x1xf32>
    %1320 = arith.subf %1319, %1177 : vector<5x1xf32>
    %1321 = vector.broadcast %1320 : vector<5x1xf32> to vector<5x128xf32>
    %1322 = arith.mulf %1321, %1299 : vector<5x128xf32>
    %1323 = arith.addf %1318, %1322 : vector<5x128xf32>
    %1324 = vector.extract_strided_slice %1298 {offsets = [5, 0], sizes = [5, 256], strides = [1, 1]} : vector<15x256xf32> to vector<5x256xf32>
    %cst_323 = arith.constant dense<0.000000e+00> : vector<5x256xf32>
    %1325 = tpu.matmul %1323, %1293, %cst_323 {dimension_numbers = #tpu.dot_dimension_numbers<[1], [0], [0], [1], [0, 0, 1, 1], [], []>} : vector<5x128xf32>, vector<128x256xf32>, vector<5x256xf32> -> vector<5x256xf32>
    %1326 = vector.broadcast %1295 : vector<1x256xf32> to vector<5x256xf32>
    %1327 = arith.addf %1325, %1326 : vector<5x256xf32>
    %1328 = vector.extract_strided_slice %1324 {offsets = [0, 0], sizes = [5, 128], strides = [1, 1]} : vector<5x256xf32> to vector<5x128xf32>
    %1329 = vector.extract_strided_slice %1327 {offsets = [0, 0], sizes = [5, 128], strides = [1, 1]} : vector<5x256xf32> to vector<5x128xf32>
    %1330 = arith.addf %1328, %1329 : vector<5x128xf32>
    %1331 = arith.negf %1330 : vector<5x128xf32>
    %1332 = math.exp %1331 : vector<5x128xf32>
    %cst_324 = arith.constant 1.000000e+00 : f32
    %1333 = vector.broadcast %cst_324 : f32 to vector<5x128xf32>
    %1334 = arith.addf %1333, %1332 : vector<5x128xf32>
    %1335 = arith.divf %1333, %1334 : vector<5x128xf32>
    %1336 = vector.extract_strided_slice %1324 {offsets = [0, 128], sizes = [5, 128], strides = [1, 1]} : vector<5x256xf32> to vector<5x128xf32>
    %1337 = vector.extract_strided_slice %1327 {offsets = [0, 128], sizes = [5, 128], strides = [1, 1]} : vector<5x256xf32> to vector<5x128xf32>
    %1338 = arith.mulf %1335, %1337 : vector<5x128xf32>
    %1339 = arith.addf %1336, %1338 : vector<5x128xf32>
    %1340 = math.tanh %1339 : vector<5x128xf32>
    %1341 = vector.broadcast %1176 : vector<5x1xf32> to vector<5x128xf32>
    %1342 = arith.mulf %1341, %1340 : vector<5x128xf32>
    %cst_325 = arith.constant 1.000000e+00 : f32
    %1343 = vector.broadcast %cst_325 : f32 to vector<5x1xf32>
    %1344 = arith.subf %1343, %1176 : vector<5x1xf32>
    %1345 = vector.broadcast %1344 : vector<5x1xf32> to vector<5x128xf32>
    %1346 = arith.mulf %1345, %1323 : vector<5x128xf32>
    %1347 = arith.addf %1342, %1346 : vector<5x128xf32>
    %1348 = vector.extract_strided_slice %1298 {offsets = [0, 0], sizes = [5, 256], strides = [1, 1]} : vector<15x256xf32> to vector<5x256xf32>
    %cst_326 = arith.constant dense<0.000000e+00> : vector<5x256xf32>
    %1349 = tpu.matmul %1347, %1293, %cst_326 {dimension_numbers = #tpu.dot_dimension_numbers<[1], [0], [0], [1], [0, 0, 1, 1], [], []>} : vector<5x128xf32>, vector<128x256xf32>, vector<5x256xf32> -> vector<5x256xf32>
    %1350 = vector.broadcast %1295 : vector<1x256xf32> to vector<5x256xf32>
    %1351 = arith.addf %1349, %1350 : vector<5x256xf32>
    %1352 = vector.extract_strided_slice %1348 {offsets = [0, 0], sizes = [5, 128], strides = [1, 1]} : vector<5x256xf32> to vector<5x128xf32>
    %1353 = vector.extract_strided_slice %1351 {offsets = [0, 0], sizes = [5, 128], strides = [1, 1]} : vector<5x256xf32> to vector<5x128xf32>
    %1354 = arith.addf %1352, %1353 : vector<5x128xf32>
    %1355 = arith.negf %1354 : vector<5x128xf32>
    %1356 = math.exp %1355 : vector<5x128xf32>
    %cst_327 = arith.constant 1.000000e+00 : f32
    %1357 = vector.broadcast %cst_327 : f32 to vector<5x128xf32>
    %1358 = arith.addf %1357, %1356 : vector<5x128xf32>
    %1359 = arith.divf %1357, %1358 : vector<5x128xf32>
    %1360 = vector.extract_strided_slice %1348 {offsets = [0, 128], sizes = [5, 128], strides = [1, 1]} : vector<5x256xf32> to vector<5x128xf32>
    %1361 = vector.extract_strided_slice %1351 {offsets = [0, 128], sizes = [5, 128], strides = [1, 1]} : vector<5x256xf32> to vector<5x128xf32>
    %1362 = arith.mulf %1359, %1361 : vector<5x128xf32>
    %1363 = arith.addf %1360, %1362 : vector<5x128xf32>
    %1364 = math.tanh %1363 : vector<5x128xf32>
    %1365 = vector.broadcast %1175 : vector<5x1xf32> to vector<5x128xf32>
    %1366 = arith.mulf %1365, %1364 : vector<5x128xf32>
    %cst_328 = arith.constant 1.000000e+00 : f32
    %1367 = vector.broadcast %cst_328 : f32 to vector<5x1xf32>
    %1368 = arith.subf %1367, %1175 : vector<5x1xf32>
    %1369 = vector.broadcast %1368 : vector<5x1xf32> to vector<5x128xf32>
    %1370 = arith.mulf %1369, %1347 : vector<5x128xf32>
    %1371 = arith.addf %1366, %1370 : vector<5x128xf32>
    %1372 = arith.addf %1287, %1371 : vector<5x128xf32>
    %c0_329 = arith.constant 0 : index
    %c0_330 = arith.constant 0 : index
    %1373 = vector.load %arg18[%c0_329, %c0_330] : memref<128x128xf32, #tpu.memory_space<vmem>>, vector<128x128xf32>
    %c0_331 = arith.constant 0 : index
    %c0_332 = arith.constant 0 : index
    %1374 = vector.load %arg19[%c0_331, %c0_332] : memref<1x128xf32, #tpu.memory_space<vmem>>, vector<1x128xf32>
    %1375 = vector.extract_strided_slice %683 {offsets = [0, 0], sizes = [1, 128], strides = [1, 1]} : vector<6x128xf32> to vector<1x128xf32>
    %cst_333 = arith.constant dense<0.000000e+00> : vector<1x128xf32>
    %1376 = tpu.matmul %1375, %1373, %cst_333 {dimension_numbers = #tpu.dot_dimension_numbers<[1], [0], [0], [1], [0, 0, 1, 1], [], []>} : vector<1x128xf32>, vector<128x128xf32>, vector<1x128xf32> -> vector<1x128xf32>
    %1377 = arith.addf %1376, %1374 : vector<1x128xf32>
    %cst_334 = arith.constant dense<0.000000e+00> : vector<5x128xf32>
    %1378 = tpu.matmul %1372, %1373, %cst_334 {dimension_numbers = #tpu.dot_dimension_numbers<[1], [0], [0], [1], [0, 0, 1, 1], [], []>} : vector<5x128xf32>, vector<128x128xf32>, vector<5x128xf32> -> vector<5x128xf32>
    %1379 = vector.broadcast %1374 : vector<1x128xf32> to vector<5x128xf32>
    %1380 = arith.addf %1378, %1379 : vector<5x128xf32>
    %cst_335 = arith.constant dense<0xFF800000> : vector<1xf32>
    %1381 = vector.multi_reduction <maximumf>, %1377, %cst_335 [1] : vector<1x128xf32> to vector<1xf32>
    %1382 = vector.shape_cast %1381 : vector<1xf32> to vector<1x1xf32>
    %1383 = vector.broadcast %1382 : vector<1x1xf32> to vector<1x128xf32>
    %1384 = arith.subf %1377, %1383 : vector<1x128xf32>
    %1385 = math.exp %1384 : vector<1x128xf32>
    %cst_336 = arith.constant dense<0.000000e+00> : vector<1xf32>
    %1386 = vector.multi_reduction <add>, %1385, %cst_336 [1] : vector<1x128xf32> to vector<1xf32>
    %1387 = vector.shape_cast %1386 : vector<1xf32> to vector<1x1xf32>
    %1388 = math.log %1387 : vector<1x1xf32>
    %1389 = arith.addf %1382, %1388 : vector<1x1xf32>
    %1390 = vector.broadcast %1389 : vector<1x1xf32> to vector<1x128xf32>
    %1391 = arith.subf %1377, %1390 : vector<1x128xf32>
    %c0_337 = arith.constant 0 : index
    %c0_338 = arith.constant 0 : index
    %1392 = vector.load %arg20[%c0_337, %c0_338] : memref<6x128xf32, #tpu.memory_space<vmem>>, vector<1x128xf32>
    tpu.vector_store %arg20[%c0_337, %c0_338], %1391 {strides = array<i32>} : memref<6x128xf32, #tpu.memory_space<vmem>>, vector<1x128xf32>,
    %cst_339 = arith.constant dense<0xFF800000> : vector<5xf32>
    %1393 = vector.multi_reduction <maximumf>, %1380, %cst_339 [1] : vector<5x128xf32> to vector<5xf32>
    %1394 = vector.shape_cast %1393 : vector<5xf32> to vector<5x1xf32>
    %1395 = vector.broadcast %1394 : vector<5x1xf32> to vector<5x128xf32>
    %1396 = arith.subf %1380, %1395 : vector<5x128xf32>
    %1397 = math.exp %1396 : vector<5x128xf32>
    %cst_340 = arith.constant dense<0.000000e+00> : vector<5xf32>
    %1398 = vector.multi_reduction <add>, %1397, %cst_340 [1] : vector<5x128xf32> to vector<5xf32>
    %1399 = vector.shape_cast %1398 : vector<5xf32> to vector<5x1xf32>
    %1400 = math.log %1399 : vector<5x1xf32>
    %1401 = arith.addf %1394, %1400 : vector<5x1xf32>
    %1402 = vector.broadcast %1401 : vector<5x1xf32> to vector<5x128xf32>
    %1403 = arith.subf %1380, %1402 : vector<5x128xf32>
    %c1_341 = arith.constant 1 : index
    %c0_342 = arith.constant 0 : index
    %1404 = vector.load %arg20[%c1_341, %c0_342] : memref<6x128xf32, #tpu.memory_space<vmem>>, vector<5x128xf32>
    tpu.vector_store %arg20[%c1_341, %c0_342], %1403 {strides = array<i32>} : memref<6x128xf32, #tpu.memory_space<vmem>>, vector<5x128xf32>,
    return
  }
}

</mosaic_0001>

<llo_original>
// kernel: bif_biagru_forward.1
$region0: #{bif_biagru_forward.1}
  #allocation0 [shape = 'u32[]', space=smem, size = 0x4, offset = 0x4, fixed_abs, tag = 'smem constant byte address 0x4 - core index']
  #allocation1 [shape = 'u32[72,128]{1,0:T(1,128)}', space=vmem, size = 0x9000, scoped, tag = 'internal scratch']
  #allocation2 [shape = 'f32[15,128]{1,0:T(8,128)}', space=vmem, size = 0x2000, scoped, tag = 'scratch operand']
  #allocation3 [shape = 'f32[15,128]{1,0:T(8,128)}', space=vmem, size = 0x2000, scoped, tag = 'scratch operand']
  %s0 = inlined_call_operand.vmem [shape: s32[48,1], index: 0, kind: input, shape index: {}]
  %s1 = inlined_call_operand.vmem [shape: s32[6,1], index: 1, kind: input, shape index: {}]
  %s2 = inlined_call_operand.vmem [shape: f32[50,32], index: 2, kind: input, shape index: {}]
  %s3 = inlined_call_operand.hbm [shape: f32[2,32,384], index: 3, kind: input, shape index: {}]
  %s4 = inlined_call_operand.vmem [shape: f32[2,1,384], index: 4, kind: input, shape index: {}]
  %s5 = inlined_call_operand.hbm [shape: f32[2,128,384], index: 5, kind: input, shape index: {}]
  %s6 = inlined_call_operand.vmem [shape: f32[2,1,384], index: 6, kind: input, shape index: {}]
  %s7 = inlined_call_operand.hbm [shape: f32[128,128], index: 7, kind: input, shape index: {}]
  %s8 = inlined_call_operand.hbm [shape: f32[128,128], index: 8, kind: input, shape index: {}]
  %s9 = inlined_call_operand.vmem [shape: f32[1,128], index: 9, kind: input, shape index: {}]
  %s10 = inlined_call_operand.hbm [shape: f32[2,128,384], index: 10, kind: input, shape index: {}]
  %s11 = inlined_call_operand.vmem [shape: f32[2,1,384], index: 11, kind: input, shape index: {}]
  %s12 = inlined_call_operand.hbm [shape: f32[2,128,384], index: 12, kind: input, shape index: {}]
  %s13 = inlined_call_operand.vmem [shape: f32[2,1,384], index: 13, kind: input, shape index: {}]
  %s14 = inlined_call_operand.hbm [shape: f32[4,128,256], index: 14, kind: input, shape index: {}]
  %s15 = inlined_call_operand.vmem [shape: f32[4,1,256], index: 15, kind: input, shape index: {}]
  %s16 = inlined_call_operand.hbm [shape: f32[4,128,256], index: 16, kind: input, shape index: {}]
  %s17 = inlined_call_operand.vmem [shape: f32[4,1,256], index: 17, kind: input, shape index: {}]
  %s18 = inlined_call_operand.hbm [shape: f32[128,128], index: 18, kind: input, shape index: {}]
  %s19 = inlined_call_operand.vmem [shape: f32[1,128], index: 19, kind: input, shape index: {}]
  %s20 = inlined_call_operand.hbm [shape: f32[6,128], index: 20, kind: output, shape index: {0}]
  %s21 = inlined_call_operand.vmem [shape: f32[2,5,128], index: 21, kind: output, shape index: {1}]
  %22 = xla_tuple %s20, %s21
  %s23 = sld [smem:[#allocation0]]
  $region134: #{bif_biagru_forward.1} parent=0
    _
  %s25 = ssub.s32 1, %s23
  %s26 = scalar_select 0, %s25, %s23
  $region1: #{bif_biagru_forward.1} parent=0
    #allocation4 [shape = 'u8[98304]{0}', space=vmem, size = 0x18000, scoped, tag = 'input window, operand 3, single buffered']
    #allocation5 [shape = 's32[1]{0}', space=sflag, size = 0x4, scoped, tag = 'scoped memory for bif_biagru_forward.1']
    #allocation6 [shape = 's32[1]{0}', space=sflag, size = 0x4, scoped, tag = 'scoped memory for bif_biagru_forward.1']
    #allocation7 [shape = 'u8[393216]{0}', space=vmem, size = 0x60000, scoped, tag = 'input window, operand 5, single buffered']
    #allocation8 [shape = 's32[1]{0}', space=sflag, size = 0x4, scoped, tag = 'scoped memory for bif_biagru_forward.1']
    #allocation9 [shape = 'u8[65536]{0}', space=vmem, size = 0x10000, scoped, tag = 'input window, operand 7, single buffered']
    #allocation10 [shape = 'u8[65536]{0}', space=vmem, size = 0x10000, scoped, tag = 'input window, operand 8, single buffered']
    #allocation11 [shape = 's32[1]{0}', space=sflag, size = 0x4, scoped, tag = 'scoped memory for bif_biagru_forward.1']
    #allocation12 [shape = 'u8[393216]{0}', space=vmem, size = 0x60000, scoped, tag = 'input window, operand 10, single buffered']
    #allocation13 [shape = 'u8[393216]{0}', space=vmem, size = 0x60000, scoped, tag = 'input window, operand 12, single buffered']
    #allocation14 [shape = 's32[1]{0}', space=sflag, size = 0x4, scoped, tag = 'scoped memory for bif_biagru_forward.1']
    #allocation15 [shape = 'u8[524288]{0}', space=vmem, size = 0x80000, scoped, tag = 'input window, operand 14, single buffered']
    #allocation16 [shape = 'u8[524288]{0}', space=vmem, size = 0x80000, scoped, tag = 'input window, operand 16, single buffered']
    #allocation17 [shape = 's32[1]{0}', space=sflag, size = 0x4, scoped, tag = 'scoped memory for bif_biagru_forward.1']
    #allocation18 [shape = 'u8[65536]{0}', space=vmem, size = 0x10000, scoped, tag = 'input window, operand 18, single buffered']
    #allocation19 [shape = 'u8[4096]{0}', space=vmem, size = 0x1000, scoped, tag = 'output window, operand 0, single buffered']
    %27 = vsyncpa [#allocation5], 0
    %28 = vsyncpa [#allocation8], 0
    %29 = vsyncpa [#allocation11], 0
    %30 = vsyncpa [#allocation14], 0
    %31 = vsyncpa [#allocation17], 0
    %32 = vsyncpa [#allocation6], 0
    // Predicated region
    $region2: #{bif_biagru_forward.1} parent=1 // pred_check
      _
    $region3: #{bif_biagru_forward.1} parent=1 // pred_check_branch
      %34 = sbr.rel (0) target = $region5
    $region4: #{bif_biagru_forward.1} parent=1 // pred_region
      _
    $region5: #{bif_biagru_forward.1} parent=1 // pred_fallthru
      _
    // Predicated region
    $region6: #{bif_biagru_forward.1} parent=1 // pred_check
      _
    $region7: #{bif_biagru_forward.1} parent=1 // pred_check_branch
      %36 = sbr.rel (0) target = $region9
    $region8: #{bif_biagru_forward.1} parent=1 // pred_region
      _
    $region9: #{bif_biagru_forward.1} parent=1 // pred_fallthru
      _
    // Predicated region
    $region10: #{bif_biagru_forward.1} parent=1 // pred_check
      _
    $region11: #{bif_biagru_forward.1} parent=1 // pred_check_branch
      %38 = sbr.rel (0) target = $region13
    $region12: #{bif_biagru_forward.1} parent=1 // pred_region
      _
    $region13: #{bif_biagru_forward.1} parent=1 // pred_fallthru
      _
    // Predicated region
    $region14: #{bif_biagru_forward.1} parent=1 // pred_check
      _
    $region15: #{bif_biagru_forward.1} parent=1 // pred_check_branch
      %40 = sbr.rel (0) target = $region17
    $region16: #{bif_biagru_forward.1} parent=1 // pred_region
      %42 = vsyncadd [#allocation5], 0
      %s43 = sshll.u32 %s3, 4
      %s44 = int_to_ptr.hbm [resolvable:$true] %s43
      %s45 = sshll.u32 [#allocation4], 4
      %s46 = int_to_ptr.vmem [resolvable:$true] %s45
      %51 = dma.hbm_to_vmem [thread:$0]  %s44, 3072, %s46, [#allocation5], 384, 384, 24
    $region17: #{bif_biagru_forward.1} parent=1 // pred_fallthru
      _
    // Predicated region
    $region18: #{bif_biagru_forward.1} parent=1 // pred_check
      _
    $region19: #{bif_biagru_forward.1} parent=1 // pred_check_branch
      %53 = sbr.rel (0) target = $region21
    $region20: #{bif_biagru_forward.1} parent=1 // pred_region
      _
    $region21: #{bif_biagru_forward.1} parent=1 // pred_fallthru
      _
    // Predicated region
    $region22: #{bif_biagru_forward.1} parent=1 // pred_check
      _
    $region23: #{bif_biagru_forward.1} parent=1 // pred_check_branch
      %55 = sbr.rel (0) target = $region25
    $region24: #{bif_biagru_forward.1} parent=1 // pred_region
      %57 = vsyncadd [#allocation8], 0
      %s58 = sshll.u32 %s5, 4
      %s59 = int_to_ptr.hbm [resolvable:$true] %s58
      %s60 = sshll.u32 [#allocation7], 4
      %s61 = int_to_ptr.vmem [resolvable:$true] %s60
      %66 = dma.hbm_to_vmem [thread:$0]  %s59, 12288, %s61, [#allocation8], 384, 384, 24
    $region25: #{bif_biagru_forward.1} parent=1 // pred_fallthru
      _
    // Predicated region
    $region26: #{bif_biagru_forward.1} parent=1 // pred_check
      _
    $region27: #{bif_biagru_forward.1} parent=1 // pred_check_branch
      %68 = sbr.rel (0) target = $region29
    $region28: #{bif_biagru_forward.1} parent=1 // pred_region
      _
    $region29: #{bif_biagru_forward.1} parent=1 // pred_fallthru
      _
    // Predicated region
    $region30: #{bif_biagru_forward.1} parent=1 // pred_check
      _
    $region31: #{bif_biagru_forward.1} parent=1 // pred_check_branch
      %70 = sbr.rel (0) target = $region33
    $region32: #{bif_biagru_forward.1} parent=1 // pred_region
      %72 = vsyncadd [#allocation8], 0
      %s73 = sshll.u32 %s7, 4
      %s74 = int_to_ptr.hbm [resolvable:$true] %s73
      %s75 = sshll.u32 [#allocation9], 4
      %s76 = int_to_ptr.vmem [resolvable:$true] %s75
      %81 = dma.hbm_to_vmem [thread:$0]  %s74, 2048, %s76, [#allocation8], 128, 128, 8
    $region33: #{bif_biagru_forward.1} parent=1 // pred_fallthru
      _
    // Predicated region
    $region34: #{bif_biagru_forward.1} parent=1 // pred_check
      _
    $region35: #{bif_biagru_forward.1} parent=1 // pred_check_branch
      %83 = sbr.rel (0) target = $region37
    $region36: #{bif_biagru_forward.1} parent=1 // pred_region
      %85 = vsyncadd [#allocation11], 0
      %s86 = sshll.u32 %s8, 4
      %s87 = int_to_ptr.hbm [resolvable:$true] %s86
      %s88 = sshll.u32 [#allocation10], 4
      %s89 = int_to_ptr.vmem [resolvable:$true] %s88
      %94 = dma.hbm_to_vmem [thread:$0]  %s87, 2048, %s89, [#allocation11], 128, 128, 8
    $region37: #{bif_biagru_forward.1} parent=1 // pred_fallthru
      _
    // Predicated region
    $region38: #{bif_biagru_forward.1} parent=1 // pred_check
      _
    $region39: #{bif_biagru_forward.1} parent=1 // pred_check_branch
      %96 = sbr.rel (0) target = $region41
    $region40: #{bif_biagru_forward.1} parent=1 // pred_region
      _
    $region41: #{bif_biagru_forward.1} parent=1 // pred_fallthru
      _
    // Predicated region
    $region42: #{bif_biagru_forward.1} parent=1 // pred_check
      _
    $region43: #{bif_biagru_forward.1} parent=1 // pred_check_branch
      %98 = sbr.rel (0) target = $region45
    $region44: #{bif_biagru_forward.1} parent=1 // pred_region
      %100 = vsyncadd [#allocation11], 0
      %s101 = sshll.u32 %s10, 4
      %s102 = int_to_ptr.hbm [resolvable:$true] %s101
      %s103 = sshll.u32 [#allocation12], 4
      %s104 = int_to_ptr.vmem [resolvable:$true] %s103
      %109 = dma.hbm_to_vmem [thread:$0]  %s102, 12288, %s104, [#allocation11], 384, 384, 24
    $region45: #{bif_biagru_forward.1} parent=1 // pred_fallthru
      _
    // Predicated region
    $region46: #{bif_biagru_forward.1} parent=1 // pred_check
      _
    $region47: #{bif_biagru_forward.1} parent=1 // pred_check_branch
      %111 = sbr.rel (0) target = $region49
    $region48: #{bif_biagru_forward.1} parent=1 // pred_region
      _
    $region49: #{bif_biagru_forward.1} parent=1 // pred_fallthru
      _
    // Predicated region
    $region50: #{bif_biagru_forward.1} parent=1 // pred_check
      _
    $region51: #{bif_biagru_forward.1} parent=1 // pred_check_branch
      %113 = sbr.rel (0) target = $region53
    $region52: #{bif_biagru_forward.1} parent=1 // pred_region
      %115 = vsyncadd [#allocation14], 0
      %s116 = sshll.u32 %s12, 4
      %s117 = int_to_ptr.hbm [resolvable:$true] %s116
      %s118 = sshll.u32 [#allocation13], 4
      %s119 = int_to_ptr.vmem [resolvable:$true] %s118
      %124 = dma.hbm_to_vmem [thread:$0]  %s117, 12288, %s119, [#allocation14], 384, 384, 24
    $region53: #{bif_biagru_forward.1} parent=1 // pred_fallthru
      _
    // Predicated region
    $region54: #{bif_biagru_forward.1} parent=1 // pred_check
      _
    $region55: #{bif_biagru_forward.1} parent=1 // pred_check_branch
      %126 = sbr.rel (0) target = $region57
    $region56: #{bif_biagru_forward.1} parent=1 // pred_region
      _
    $region57: #{bif_biagru_forward.1} parent=1 // pred_fallthru
      _
    // Predicated region
    $region58: #{bif_biagru_forward.1} parent=1 // pred_check
      _
    $region59: #{bif_biagru_forward.1} parent=1 // pred_check_branch
      %128 = sbr.rel (0) target = $region61
    $region60: #{bif_biagru_forward.1} parent=1 // pred_region
      %130 = vsyncadd [#allocation14], 0
      %s131 = sshll.u32 %s14, 4
      %s132 = int_to_ptr.hbm [resolvable:$true] %s131
      %s133 = sshll.u32 [#allocation15], 4
      %s134 = int_to_ptr.vmem [resolvable:$true] %s133
      %139 = dma.hbm_to_vmem [thread:$0]  %s132, 16384, %s134, [#allocation14], 256, 256, 16
    $region61: #{bif_biagru_forward.1} parent=1 // pred_fallthru
      _
    // Predicated region
    $region62: #{bif_biagru_forward.1} parent=1 // pred_check
      _
    $region63: #{bif_biagru_forward.1} parent=1 // pred_check_branch
      %141 = sbr.rel (0) target = $region65
    $region64: #{bif_biagru_forward.1} parent=1 // pred_region
      _
    $region65: #{bif_biagru_forward.1} parent=1 // pred_fallthru
      _
    // Predicated region
    $region66: #{bif_biagru_forward.1} parent=1 // pred_check
      _
    $region67: #{bif_biagru_forward.1} parent=1 // pred_check_branch
      %143 = sbr.rel (0) target = $region69
    $region68: #{bif_biagru_forward.1} parent=1 // pred_region
      %145 = vsyncadd [#allocation17], 0
      %s146 = sshll.u32 %s16, 4
      %s147 = int_to_ptr.hbm [resolvable:$true] %s146
      %s148 = sshll.u32 [#allocation16], 4
      %s149 = int_to_ptr.vmem [resolvable:$true] %s148
      %154 = dma.hbm_to_vmem [thread:$0]  %s147, 16384, %s149, [#allocation17], 256, 256, 16
    $region69: #{bif_biagru_forward.1} parent=1 // pred_fallthru
      _
    // Predicated region
    $region70: #{bif_biagru_forward.1} parent=1 // pred_check
      _
    $region71: #{bif_biagru_forward.1} parent=1 // pred_check_branch
      %156 = sbr.rel (0) target = $region73
    $region72: #{bif_biagru_forward.1} parent=1 // pred_region
      _
    $region73: #{bif_biagru_forward.1} parent=1 // pred_fallthru
      _
    // Predicated region
    $region74: #{bif_biagru_forward.1} parent=1 // pred_check
      _
    $region75: #{bif_biagru_forward.1} parent=1 // pred_check_branch
      %158 = sbr.rel (0) target = $region77
    $region76: #{bif_biagru_forward.1} parent=1 // pred_region
      %160 = vsyncadd [#allocation17], 0
      %s161 = sshll.u32 %s18, 4
      %s162 = int_to_ptr.hbm [resolvable:$true] %s161
      %s163 = sshll.u32 [#allocation18], 4
      %s164 = int_to_ptr.vmem [resolvable:$true] %s163
      %169 = dma.hbm_to_vmem [thread:$0]  %s162, 2048, %s164, [#allocation17], 128, 128, 8
    $region77: #{bif_biagru_forward.1} parent=1 // pred_fallthru
      _
    // Predicated region
    $region78: #{bif_biagru_forward.1} parent=1 // pred_check
      _
    $region79: #{bif_biagru_forward.1} parent=1 // pred_check_branch
      %171 = sbr.rel (0) target = $region81
    $region80: #{bif_biagru_forward.1} parent=1 // pred_region
      _
    $region81: #{bif_biagru_forward.1} parent=1 // pred_fallthru
      _
    // Predicated region
    $region82: #{bif_biagru_forward.1} parent=1 // pred_check
      _
    $region83: #{bif_biagru_forward.1} parent=1 // pred_check_branch
      %173 = sbr.rel (0) target = $region85
    $region84: #{bif_biagru_forward.1} parent=1 // pred_region
      %175 = dma.done [#allocation5], 3072
    $region85: #{bif_biagru_forward.1} parent=1 // pred_fallthru
      _
    // Predicated region
    $region86: #{bif_biagru_forward.1} parent=1 // pred_check
      _
    $region87: #{bif_biagru_forward.1} parent=1 // pred_check_branch
      %177 = sbr.rel (0) target = $region89
    $region88: #{bif_biagru_forward.1} parent=1 // pred_region
      %179 = dma.done [#allocation8], 12288
    $region89: #{bif_biagru_forward.1} parent=1 // pred_fallthru
      _
    // Predicated region
    $region90: #{bif_biagru_forward.1} parent=1 // pred_check
      _
    $region91: #{bif_biagru_forward.1} parent=1 // pred_check_branch
      %181 = sbr.rel (0) target = $region93
    $region92: #{bif_biagru_forward.1} parent=1 // pred_region
      %183 = dma.done [#allocation8], 2048
    $region93: #{bif_biagru_forward.1} parent=1 // pred_fallthru
      _
    // Predicated region
    $region94: #{bif_biagru_forward.1} parent=1 // pred_check
      _
    $region95: #{bif_biagru_forward.1} parent=1 // pred_check_branch
      %185 = sbr.rel (0) target = $region97
    $region96: #{bif_biagru_forward.1} parent=1 // pred_region
      %187 = dma.done [#allocation11], 2048
    $region97: #{bif_biagru_forward.1} parent=1 // pred_fallthru
      _
    // Predicated region
    $region98: #{bif_biagru_forward.1} parent=1 // pred_check
      _
    $region99: #{bif_biagru_forward.1} parent=1 // pred_check_branch
      %189 = sbr.rel (0) target = $region101
    $region100: #{bif_biagru_forward.1} parent=1 // pred_region
      %191 = dma.done [#allocation11], 12288
    $region101: #{bif_biagru_forward.1} parent=1 // pred_fallthru
      _
    // Predicated region
    $region102: #{bif_biagru_forward.1} parent=1 // pred_check
      _
    $region103: #{bif_biagru_forward.1} parent=1 // pred_check_branch
      %193 = sbr.rel (0) target = $region105
    $region104: #{bif_biagru_forward.1} parent=1 // pred_region
      %195 = dma.done [#allocation14], 12288
    $region105: #{bif_biagru_forward.1} parent=1 // pred_fallthru
      _
    // Predicated region
    $region106: #{bif_biagru_forward.1} parent=1 // pred_check
      _
    $region107: #{bif_biagru_forward.1} parent=1 // pred_check_branch
      %197 = sbr.rel (0) target = $region109
    $region108: #{bif_biagru_forward.1} parent=1 // pred_region
      %199 = dma.done [#allocation14], 16384
    $region109: #{bif_biagru_forward.1} parent=1 // pred_fallthru
      _
    // Predicated region
    $region110: #{bif_biagru_forward.1} parent=1 // pred_check
      _
    $region111: #{bif_biagru_forward.1} parent=1 // pred_check_branch
      %201 = sbr.rel (0) target = $region113
    $region112: #{bif_biagru_forward.1} parent=1 // pred_region
      %203 = dma.done [#allocation17], 16384
    $region113: #{bif_biagru_forward.1} parent=1 // pred_fallthru
      _
    // Predicated region
    $region114: #{bif_biagru_forward.1} parent=1 // pred_check
      _
    $region115: #{bif_biagru_forward.1} parent=1 // pred_check_branch
      %205 = sbr.rel (0) target = $region117
    $region116: #{bif_biagru_forward.1} parent=1 // pred_region
      %207 = dma.done [#allocation17], 2048
    $region117: #{bif_biagru_forward.1} parent=1 // pred_fallthru
      _
    %v208 = vld [vmem:[%s0] sm:$0xff]
    %v209 = vld [vmem:[%s0 + $0x8] sm:$0xff]
    %v210 = vld [vmem:[%s0 + $0x10] sm:$0xff]
    %v211 = vld [vmem:[%s0 + $0x18] sm:$0xff]
    %v212 = vld [vmem:[%s0 + $0x20] sm:$0xff]
    %v213 = vld [vmem:[%s0 + $0x28] sm:$0xff]
    %v214 = vld [vmem:[%s1] sm:$0x3f]
    %v215 = vlaneseq
    %v216 = vand.u32 %v215, 127
    %217 = vset.pattern.permute.xlu0 0
    %218 = vperm.xlu0 %217, %v208
    %v219 = vpop.permute.xlu0 %218
    %220 = vset.pattern.permute.xlu0 0
    %221 = vperm.xlu0 %220, %v209
    %v222 = vpop.permute.xlu0 %221
    %223 = vset.pattern.permute.xlu0 0
    %224 = vperm.xlu0 %223, %v210
    %v225 = vpop.permute.xlu0 %224
    %226 = vset.pattern.permute.xlu0 0
    %227 = vperm.xlu0 %226, %v211
    %v228 = vpop.permute.xlu0 %227
    %229 = vset.pattern.permute.xlu0 0
    %230 = vperm.xlu0 %229, %v212
    %v231 = vpop.permute.xlu0 %230
    %232 = vset.pattern.permute.xlu0 0
    %233 = vperm.xlu0 %232, %v213
    %v234 = vpop.permute.xlu0 %233
    %vm235 = vcmp.eq.s32.totalorder %v216, %v219
    %vm236 = vcmp.eq.s32.totalorder %v216, %v222
    %vm237 = vcmp.eq.s32.totalorder %v216, %v225
    %vm238 = vcmp.eq.s32.totalorder %v216, %v228
    %vm239 = vcmp.eq.s32.totalorder %v216, %v231
    %vm240 = vcmp.eq.s32.totalorder %v216, %v234
    %v241 = vsel %vm235, 1, 0
    %v242 = vsel %vm236, 1, 0
    %v243 = vsel %vm237, 1, 0
    %v244 = vsel %vm238, 1, 0
    %v245 = vsel %vm239, 1, 0
    %v246 = vsel %vm240, 1, 0
    %v247 = vcvt.s32.f32 %v241
    %v248 = vcvt.s32.f32 %v242
    %v249 = vcvt.s32.f32 %v243
    %v250 = vcvt.s32.f32 %v244
    %v251 = vcvt.s32.f32 %v245
    %v252 = vcvt.s32.f32 %v246
    %v253 = vld [vmem:[%s2] sm:$0xff]
    %v254 = vld [vmem:[%s2 + $0x8] sm:$0xff]
    %v255 = vld [vmem:[%s2 + $0x10] sm:$0xff]
    %v256 = vld [vmem:[%s2 + $0x18] sm:$0xff]
    %v257 = vld [vmem:[%s2 + $0x20] sm:$0xff]
    %v258 = vld [vmem:[%s2 + $0x28] sm:$0xff]
    %v259 = vld [vmem:[%s2 + $0x30] sm:$0x3]
    %vm260 = vcmask 408576
    %v262 = vsel %vm260, %v247, 0
    %v265 = vsel %vm260, %v248, 0
    %v268 = vsel %vm260, %v249, 0
    %v271 = vsel %vm260, %v250, 0
    %v274 = vsel %vm260, %v251, 0
    %v277 = vsel %vm260, %v252, 0
    %vm279 = vcmask 1041408
    %v281 = vsel %vm279, %v259, 0
    %283 = vmatpush.msra.mxu0 0.0
    %284 = vmatpush.msra.mxu0 0.0
    %285 = vmatpush.msra.mxu0 0.0
    %286 = vmatpush.msra.mxu0 0.0
    %287 = vmatpush.msra.mxu0 0.0
    %288 = vmatpush.msra.mxu0 0.0
    %289 = vmatpush.msra.mxu0 0.0
    %290 = vmatpush.msra.mxu0 0.0
    %291 = vmatpush.msra.mxu0 0.0
    %292 = vmatpush.msra.mxu0 %v281
    %293 = vmatpush.msra.mxu0 %v258
    %294 = vmatpush.msra.mxu0 %v257
    %295 = vmatpush.msra.mxu0 %v256
    %296 = vmatpush.msra.mxu0 %v255
    %297 = vmatpush.msra.mxu0 %v254
    %298 = vmatpush.msra.mxu0 %v253
    %299 = vmatmul.f32.gmra.mxu0 %v262
    %v300 = vpop.f32.mrf.mxu0
    %v301 = vadd.f32 0.0, %v300
    %302 = vmatmul.f32.gmra.mxu0 %v265
    %v303 = vpop.f32.mrf.mxu0
    %v304 = vadd.f32 0.0, %v303
    %305 = vmatmul.f32.gmra.mxu0 %v268
    %v306 = vpop.f32.mrf.mxu0
    %v307 = vadd.f32 0.0, %v306
    %308 = vmatmul.f32.gmra.mxu0 %v271
    %v309 = vpop.f32.mrf.mxu0
    %v310 = vadd.f32 0.0, %v309
    %311 = vmatmul.f32.gmra.mxu0 %v274
    %v312 = vpop.f32.mrf.mxu0
    %v313 = vadd.f32 0.0, %v312
    %314 = vmatmul.f32.gmra.mxu0 %v277
    %v315 = vpop.f32.mrf.mxu0
    %v316 = vadd.f32 0.0, %v315
    %317 = vdwg.mxu0
    %v318 = vld [vmem:[#allocation4] sm:$0xff]
    %v319 = vld [vmem:[#allocation4 + $0x8] sm:$0xff]
    %v320 = vld [vmem:[#allocation4 + $0x10] sm:$0xff]
    %v321 = vld [vmem:[#allocation4 + $0x18] sm:$0xff]
    %v322 = vld [vmem:[#allocation4 + $0x20] sm:$0xff]
    %v323 = vld [vmem:[#allocation4 + $0x28] sm:$0xff]
    %v324 = vld [vmem:[#allocation4 + $0x30] sm:$0xff]
    %v325 = vld [vmem:[#allocation4 + $0x38] sm:$0xff]
    %v326 = vld [vmem:[#allocation4 + $0x40] sm:$0xff]
    %v327 = vld [vmem:[#allocation4 + $0x48] sm:$0xff]
    %v328 = vld [vmem:[#allocation4 + $0x50] sm:$0xff]
    %v329 = vld [vmem:[#allocation4 + $0x58] sm:$0xff]
    %v330 = vld [vmem:[%s4] sm:$0x7]
    %v332 = vperm.slane %v330, 0
    %v333 = vperm.slane %v330, 1
    %v334 = vperm.slane %v330, 2
    %vm338 = vcmask 261120
    %v340 = vsel %vm338, %v301, 0
    %v343 = vsel %vm338, %v304, 0
    %v346 = vsel %vm338, %v307, 0
    %v349 = vsel %vm338, %v310, 0
    %v352 = vsel %vm338, %v313, 0
    %v355 = vsel %vm338, %v316, 0
    %357 = vmatpush.msra.mxu0 0.0
    %358 = vmatpush.msra.mxu0 0.0
    %359 = vmatpush.msra.mxu0 0.0
    %360 = vmatpush.msra.mxu0 0.0
    %361 = vmatpush.msra.mxu0 0.0
    %362 = vmatpush.msra.mxu0 0.0
    %363 = vmatpush.msra.mxu0 0.0
    %364 = vmatpush.msra.mxu0 0.0
    %365 = vmatpush.msra.mxu0 0.0
    %366 = vmatpush.msra.mxu0 0.0
    %367 = vmatpush.msra.mxu0 0.0
    %368 = vmatpush.msra.mxu0 0.0
    %369 = vmatpush.msra.mxu0 %v327
    %370 = vmatpush.msra.mxu0 %v324
    %371 = vmatpush.msra.mxu0 %v321
    %372 = vmatpush.msra.mxu0 %v318
    %373 = vmatmul.f32.gmra.mxu0 %v340
    %v374 = vpop.f32.mrf.mxu0
    %v375 = vadd.f32 %v332, %v374
    %376 = vmatmul.f32.gmra.mxu0 %v343
    %v377 = vpop.f32.mrf.mxu0
    %v378 = vadd.f32 %v332, %v377
    %379 = vmatmul.f32.gmra.mxu0 %v346
    %v380 = vpop.f32.mrf.mxu0
    %v381 = vadd.f32 %v332, %v380
    %382 = vmatmul.f32.gmra.mxu0 %v349
    %v383 = vpop.f32.mrf.mxu0
    %v384 = vadd.f32 %v332, %v383
    %385 = vmatmul.f32.gmra.mxu0 %v352
    %v386 = vpop.f32.mrf.mxu0
    %v387 = vadd.f32 %v332, %v386
    %388 = vmatmul.f32.gmra.mxu0 %v355
    %v389 = vpop.f32.mrf.mxu0
    %v390 = vadd.f32 %v332, %v389
    %391 = vdwg.mxu0
    %392 = vmatpush.msra.mxu0 0.0
    %393 = vmatpush.msra.mxu0 0.0
    %394 = vmatpush.msra.mxu0 0.0
    %395 = vmatpush.msra.mxu0 0.0
    %396 = vmatpush.msra.mxu0 0.0
    %397 = vmatpush.msra.mxu0 0.0
    %398 = vmatpush.msra.mxu0 0.0
    %399 = vmatpush.msra.mxu0 0.0
    %400 = vmatpush.msra.mxu0 0.0
    %401 = vmatpush.msra.mxu0 0.0
    %402 = vmatpush.msra.mxu0 0.0
    %403 = vmatpush.msra.mxu0 0.0
    %404 = vmatpush.msra.mxu0 %v328
    %405 = vmatpush.msra.mxu0 %v325
    %406 = vmatpush.msra.mxu0 %v322
    %407 = vmatpush.msra.mxu0 %v319
    %408 = vmatmul.f32.gmra.mxu0 %v340
    %v409 = vpop.f32.mrf.mxu0
    %v410 = vadd.f32 %v333, %v409
    %411 = vmatmul.f32.gmra.mxu0 %v343
    %v412 = vpop.f32.mrf.mxu0
    %v413 = vadd.f32 %v333, %v412
    %414 = vmatmul.f32.gmra.mxu0 %v346
    %v415 = vpop.f32.mrf.mxu0
    %v416 = vadd.f32 %v333, %v415
    %417 = vmatmul.f32.gmra.mxu0 %v349
    %v418 = vpop.f32.mrf.mxu0
    %v419 = vadd.f32 %v333, %v418
    %420 = vmatmul.f32.gmra.mxu0 %v352
    %v421 = vpop.f32.mrf.mxu0
    %v422 = vadd.f32 %v333, %v421
    %423 = vmatmul.f32.gmra.mxu0 %v355
    %v424 = vpop.f32.mrf.mxu0
    %v425 = vadd.f32 %v333, %v424
    %426 = vdwg.mxu0
    %427 = vmatpush.msra.mxu0 0.0
    %428 = vmatpush.msra.mxu0 0.0
    %429 = vmatpush.msra.mxu0 0.0
    %430 = vmatpush.msra.mxu0 0.0
    %431 = vmatpush.msra.mxu0 0.0
    %432 = vmatpush.msra.mxu0 0.0
    %433 = vmatpush.msra.mxu0 0.0
    %434 = vmatpush.msra.mxu0 0.0
    %435 = vmatpush.msra.mxu0 0.0
    %436 = vmatpush.msra.mxu0 0.0
    %437 = vmatpush.msra.mxu0 0.0
    %438 = vmatpush.msra.mxu0 0.0
    %439 = vmatpush.msra.mxu0 %v329
    %440 = vmatpush.msra.mxu0 %v326
    %441 = vmatpush.msra.mxu0 %v323
    %442 = vmatpush.msra.mxu0 %v320
    %443 = vmatmul.f32.gmra.mxu0 %v340
    %v444 = vpop.f32.mrf.mxu0
    %v445 = vadd.f32 %v334, %v444
    %446 = vmatmul.f32.gmra.mxu0 %v343
    %v447 = vpop.f32.mrf.mxu0
    %v448 = vadd.f32 %v334, %v447
    %449 = vmatmul.f32.gmra.mxu0 %v346
    %v450 = vpop.f32.mrf.mxu0
    %v451 = vadd.f32 %v334, %v450
    %452 = vmatmul.f32.gmra.mxu0 %v349
    %v453 = vpop.f32.mrf.mxu0
    %v454 = vadd.f32 %v334, %v453
    %455 = vmatmul.f32.gmra.mxu0 %v352
    %v456 = vpop.f32.mrf.mxu0
    %v457 = vadd.f32 %v334, %v456
    %458 = vmatmul.f32.gmra.mxu0 %v355
    %v459 = vpop.f32.mrf.mxu0
    %v460 = vadd.f32 %v334, %v459
    %461 = vdwg.mxu0
    %s462 = scalar_lea.vmem [#allocation4], 96
    %v463 = vld [vmem:[%s462] sm:$0xff]
    %v464 = vld [vmem:[%s462 + $0x8] sm:$0xff]
    %v465 = vld [vmem:[%s462 + $0x10] sm:$0xff]
    %v466 = vld [vmem:[%s462 + $0x18] sm:$0xff]
    %v467 = vld [vmem:[%s462 + $0x20] sm:$0xff]
    %v468 = vld [vmem:[%s462 + $0x28] sm:$0xff]
    %v469 = vld [vmem:[%s462 + $0x30] sm:$0xff]
    %v470 = vld [vmem:[%s462 + $0x38] sm:$0xff]
    %v471 = vld [vmem:[%s462 + $0x40] sm:$0xff]
    %v472 = vld [vmem:[%s462 + $0x48] sm:$0xff]
    %v473 = vld [vmem:[%s462 + $0x50] sm:$0xff]
    %v474 = vld [vmem:[%s462 + $0x58] sm:$0xff]
    %s475 = scalar_lea.vmem %s4, 3
    %v476 = vld [vmem:[%s475] sm:$0x7]
    %v478 = vperm.slane %v476, 0
    %v479 = vperm.slane %v476, 1
    %v480 = vperm.slane %v476, 2
    %484 = vmatpush.msra.mxu0 0.0
    %485 = vmatpush.msra.mxu0 0.0
    %486 = vmatpush.msra.mxu0 0.0
    %487 = vmatpush.msra.mxu0 0.0
    %488 = vmatpush.msra.mxu0 0.0
    %489 = vmatpush.msra.mxu0 0.0
    %490 = vmatpush.msra.mxu0 0.0
    %491 = vmatpush.msra.mxu0 0.0
    %492 = vmatpush.msra.mxu0 0.0
    %493 = vmatpush.msra.mxu0 0.0
    %494 = vmatpush.msra.mxu0 0.0
    %495 = vmatpush.msra.mxu0 0.0
    %496 = vmatpush.msra.mxu0 %v472
    %497 = vmatpush.msra.mxu0 %v469
    %498 = vmatpush.msra.mxu0 %v466
    %499 = vmatpush.msra.mxu0 %v463
    %500 = vmatmul.f32.gmra.mxu0 %v340
    %v501 = vpop.f32.mrf.mxu0
    %v502 = vadd.f32 %v478, %v501
    %503 = vmatmul.f32.gmra.mxu0 %v343
    %v504 = vpop.f32.mrf.mxu0
    %v505 = vadd.f32 %v478, %v504
    %506 = vmatmul.f32.gmra.mxu0 %v346
    %v507 = vpop.f32.mrf.mxu0
    %v508 = vadd.f32 %v478, %v507
    %509 = vmatmul.f32.gmra.mxu0 %v349
    %v510 = vpop.f32.mrf.mxu0
    %v511 = vadd.f32 %v478, %v510
    %512 = vmatmul.f32.gmra.mxu0 %v352
    %v513 = vpop.f32.mrf.mxu0
    %v514 = vadd.f32 %v478, %v513
    %515 = vmatmul.f32.gmra.mxu0 %v355
    %v516 = vpop.f32.mrf.mxu0
    %v517 = vadd.f32 %v478, %v516
    %518 = vdwg.mxu0
    %519 = vmatpush.msra.mxu0 0.0
    %520 = vmatpush.msra.mxu0 0.0
    %521 = vmatpush.msra.mxu0 0.0
    %522 = vmatpush.msra.mxu0 0.0
    %523 = vmatpush.msra.mxu0 0.0
    %524 = vmatpush.msra.mxu0 0.0
    %525 = vmatpush.msra.mxu0 0.0
    %526 = vmatpush.msra.mxu0 0.0
    %527 = vmatpush.msra.mxu0 0.0
    %528 = vmatpush.msra.mxu0 0.0
    %529 = vmatpush.msra.mxu0 0.0
    %530 = vmatpush.msra.mxu0 0.0
    %531 = vmatpush.msra.mxu0 %v473
    %532 = vmatpush.msra.mxu0 %v470
    %533 = vmatpush.msra.mxu0 %v467
    %534 = vmatpush.msra.mxu0 %v464
    %535 = vmatmul.f32.gmra.mxu0 %v340
    %v536 = vpop.f32.mrf.mxu0
    %v537 = vadd.f32 %v479, %v536
    %538 = vmatmul.f32.gmra.mxu0 %v343
    %v539 = vpop.f32.mrf.mxu0
    %v540 = vadd.f32 %v479, %v539
    %541 = vmatmul.f32.gmra.mxu0 %v346
    %v542 = vpop.f32.mrf.mxu0
    %v543 = vadd.f32 %v479, %v542
    %544 = vmatmul.f32.gmra.mxu0 %v349
    %v545 = vpop.f32.mrf.mxu0
    %v546 = vadd.f32 %v479, %v545
    %547 = vmatmul.f32.gmra.mxu0 %v352
    %v548 = vpop.f32.mrf.mxu0
    %v549 = vadd.f32 %v479, %v548
    %550 = vmatmul.f32.gmra.mxu0 %v355
    %v551 = vpop.f32.mrf.mxu0
    %v552 = vadd.f32 %v479, %v551
    %553 = vdwg.mxu0
    %554 = vmatpush.msra.mxu0 0.0
    %555 = vmatpush.msra.mxu0 0.0
    %556 = vmatpush.msra.mxu0 0.0
    %557 = vmatpush.msra.mxu0 0.0
    %558 = vmatpush.msra.mxu0 0.0
    %559 = vmatpush.msra.mxu0 0.0
    %560 = vmatpush.msra.mxu0 0.0
    %561 = vmatpush.msra.mxu0 0.0
    %562 = vmatpush.msra.mxu0 0.0
    %563 = vmatpush.msra.mxu0 0.0
    %564 = vmatpush.msra.mxu0 0.0
    %565 = vmatpush.msra.mxu0 0.0
    %566 = vmatpush.msra.mxu0 %v474
    %567 = vmatpush.msra.mxu0 %v471
    %568 = vmatpush.msra.mxu0 %v468
    %569 = vmatpush.msra.mxu0 %v465
    %570 = vmatmul.f32.gmra.mxu0 %v340
    %v571 = vpop.f32.mrf.mxu0
    %v572 = vadd.f32 %v480, %v571
    %573 = vmatmul.f32.gmra.mxu0 %v343
    %v574 = vpop.f32.mrf.mxu0
    %v575 = vadd.f32 %v480, %v574
    %576 = vmatmul.f32.gmra.mxu0 %v346
    %v577 = vpop.f32.mrf.mxu0
    %v578 = vadd.f32 %v480, %v577
    %579 = vmatmul.f32.gmra.mxu0 %v349
    %v580 = vpop.f32.mrf.mxu0
    %v581 = vadd.f32 %v480, %v580
    %582 = vmatmul.f32.gmra.mxu0 %v352
    %v583 = vpop.f32.mrf.mxu0
    %v584 = vadd.f32 %v480, %v583
    %585 = vmatmul.f32.gmra.mxu0 %v355
    %v586 = vpop.f32.mrf.mxu0
    %v587 = vadd.f32 %v480, %v586
    %588 = vdwg.mxu0
    %v589 = vld [vmem:[#allocation7] sm:$0xff]
    %v590 = vld [vmem:[#allocation7 + $0x8] sm:$0xff]
    %v591 = vld [vmem:[#allocation7 + $0x10] sm:$0xff]
    %v592 = vld [vmem:[#allocation7 + $0x18] sm:$0xff]
    %v593 = vld [vmem:[#allocation7 + $0x20] sm:$0xff]
    %v594 = vld [vmem:[#allocation7 + $0x28] sm:$0xff]
    %v595 = vld [vmem:[#allocation7 + $0x30] sm:$0xff]
    %v596 = vld [vmem:[#allocation7 + $0x38] sm:$0xff]
    %v597 = vld [vmem:[#allocation7 + $0x40] sm:$0xff]
    %v598 = vld [vmem:[#allocation7 + $0x48] sm:$0xff]
    %v599 = vld [vmem:[#allocation7 + $0x50] sm:$0xff]
    %v600 = vld [vmem:[#allocation7 + $0x58] sm:$0xff]
    %v601 = vld [vmem:[#allocation7 + $0x60] sm:$0xff]
    %v602 = vld [vmem:[#allocation7 + $0x68] sm:$0xff]
    %v603 = vld [vmem:[#allocation7 + $0x70] sm:$0xff]
    %v604 = vld [vmem:[#allocation7 + $0x78] sm:$0xff]
    %v605 = vld [vmem:[#allocation7 + $0x80] sm:$0xff]
    %v606 = vld [vmem:[#allocation7 + $0x88] sm:$0xff]
    %v607 = vld [vmem:[#allocation7 + $0x90] sm:$0xff]
    %v608 = vld [vmem:[#allocation7 + $0x98] sm:$0xff]
    %v609 = vld [vmem:[#allocation7 + $0xa0] sm:$0xff]
    %v610 = vld [vmem:[#allocation7 + $0xa8] sm:$0xff]
    %v611 = vld [vmem:[#allocation7 + $0xb0] sm:$0xff]
    %v612 = vld [vmem:[#allocation7 + $0xb8] sm:$0xff]
    %v613 = vld [vmem:[#allocation7 + $0xc0] sm:$0xff]
    %v614 = vld [vmem:[#allocation7 + $0xc8] sm:$0xff]
    %v615 = vld [vmem:[#allocation7 + $0xd0] sm:$0xff]
    %v616 = vld [vmem:[#allocation7 + $0xd8] sm:$0xff]
    %v617 = vld [vmem:[#allocation7 + $0xe0] sm:$0xff]
    %v618 = vld [vmem:[#allocation7 + $0xe8] sm:$0xff]
    %v619 = vld [vmem:[#allocation7 + $0xf0] sm:$0xff]
    %v620 = vld [vmem:[#allocation7 + $0xf8] sm:$0xff]
    %v621 = vld [vmem:[#allocation7 + $0x100] sm:$0xff]
    %v622 = vld [vmem:[#allocation7 + $0x108] sm:$0xff]
    %v623 = vld [vmem:[#allocation7 + $0x110] sm:$0xff]
    %v624 = vld [vmem:[#allocation7 + $0x118] sm:$0xff]
    %v625 = vld [vmem:[#allocation7 + $0x120] sm:$0xff]
    %v626 = vld [vmem:[#allocation7 + $0x128] sm:$0xff]
    %v627 = vld [vmem:[#allocation7 + $0x130] sm:$0xff]
    %v628 = vld [vmem:[#allocation7 + $0x138] sm:$0xff]
    %v629 = vld [vmem:[#allocation7 + $0x140] sm:$0xff]
    %v630 = vld [vmem:[#allocation7 + $0x148] sm:$0xff]
    %v631 = vld [vmem:[#allocation7 + $0x150] sm:$0xff]
    %v632 = vld [vmem:[#allocation7 + $0x158] sm:$0xff]
    %v633 = vld [vmem:[#allocation7 + $0x160] sm:$0xff]
    %v634 = vld [vmem:[#allocation7 + $0x168] sm:$0xff]
    %v635 = vld [vmem:[#allocation7 + $0x170] sm:$0xff]
    %v636 = vld [vmem:[#allocation7 + $0x178] sm:$0xff]
    %v637 = vld [vmem:[%s6] sm:$0x7]
    %s638 = scalar_lea.vmem [#allocation7], 384
    %v639 = vld [vmem:[%s638] sm:$0xff]
    %v640 = vld [vmem:[%s638 + $0x8] sm:$0xff]
    %v641 = vld [vmem:[%s638 + $0x10] sm:$0xff]
    %v642 = vld [vmem:[%s638 + $0x18] sm:$0xff]
    %v643 = vld [vmem:[%s638 + $0x20] sm:$0xff]
    %v644 = vld [vmem:[%s638 + $0x28] sm:$0xff]
    %v645 = vld [vmem:[%s638 + $0x30] sm:$0xff]
    %v646 = vld [vmem:[%s638 + $0x38] sm:$0xff]
    %v647 = vld [vmem:[%s638 + $0x40] sm:$0xff]
    %v648 = vld [vmem:[%s638 + $0x48] sm:$0xff]
    %v649 = vld [vmem:[%s638 + $0x50] sm:$0xff]
    %v650 = vld [vmem:[%s638 + $0x58] sm:$0xff]
    %v651 = vld [vmem:[%s638 + $0x60] sm:$0xff]
    %v652 = vld [vmem:[%s638 + $0x68] sm:$0xff]
    %v653 = vld [vmem:[%s638 + $0x70] sm:$0xff]
    %v654 = vld [vmem:[%s638 + $0x78] sm:$0xff]
    %v655 = vld [vmem:[%s638 + $0x80] sm:$0xff]
    %v656 = vld [vmem:[%s638 + $0x88] sm:$0xff]
    %v657 = vld [vmem:[%s638 + $0x90] sm:$0xff]
    %v658 = vld [vmem:[%s638 + $0x98] sm:$0xff]
    %v659 = vld [vmem:[%s638 + $0xa0] sm:$0xff]
    %v660 = vld [vmem:[%s638 + $0xa8] sm:$0xff]
    %v661 = vld [vmem:[%s638 + $0xb0] sm:$0xff]
    %v662 = vld [vmem:[%s638 + $0xb8] sm:$0xff]
    %v663 = vld [vmem:[%s638 + $0xc0] sm:$0xff]
    %v664 = vld [vmem:[%s638 + $0xc8] sm:$0xff]
    %v665 = vld [vmem:[%s638 + $0xd0] sm:$0xff]
    %v666 = vld [vmem:[%s638 + $0xd8] sm:$0xff]
    %v667 = vld [vmem:[%s638 + $0xe0] sm:$0xff]
    %v668 = vld [vmem:[%s638 + $0xe8] sm:$0xff]
    %v669 = vld [vmem:[%s638 + $0xf0] sm:$0xff]
    %v670 = vld [vmem:[%s638 + $0xf8] sm:$0xff]
    %v671 = vld [vmem:[%s638 + $0x100] sm:$0xff]
    %v672 = vld [vmem:[%s638 + $0x108] sm:$0xff]
    %v673 = vld [vmem:[%s638 + $0x110] sm:$0xff]
    %v674 = vld [vmem:[%s638 + $0x118] sm:$0xff]
    %v675 = vld [vmem:[%s638 + $0x120] sm:$0xff]
    %v676 = vld [vmem:[%s638 + $0x128] sm:$0xff]
    %v677 = vld [vmem:[%s638 + $0x130] sm:$0xff]
    %v678 = vld [vmem:[%s638 + $0x138] sm:$0xff]
    %v679 = vld [vmem:[%s638 + $0x140] sm:$0xff]
    %v680 = vld [vmem:[%s638 + $0x148] sm:$0xff]
    %v681 = vld [vmem:[%s638 + $0x150] sm:$0xff]
    %v682 = vld [vmem:[%s638 + $0x158] sm:$0xff]
    %v683 = vld [vmem:[%s638 + $0x160] sm:$0xff]
    %v684 = vld [vmem:[%s638 + $0x168] sm:$0xff]
    %v685 = vld [vmem:[%s638 + $0x170] sm:$0xff]
    %v686 = vld [vmem:[%s638 + $0x178] sm:$0xff]
    %s687 = scalar_lea.vmem %s6, 3
    %v688 = vld [vmem:[%s687] sm:$0x7]
    %vm689 = vcmp.gt.s32.totalorder %v214, 0
    %v691 = vperm.slane %v637, 0
    %v692 = vperm.slane %v637, 1
    %v693 = vperm.slane %v637, 2
    %697 = vmatpush.msra.mxu0 %v634
    %698 = vmatpush.msra.mxu0 %v631
    %699 = vmatpush.msra.mxu0 %v628
    %700 = vmatpush.msra.mxu0 %v625
    %701 = vmatpush.msra.mxu0 %v622
    %702 = vmatpush.msra.mxu0 %v619
    %703 = vmatpush.msra.mxu0 %v616
    %704 = vmatpush.msra.mxu0 %v613
    %705 = vmatpush.msra.mxu0 %v610
    %706 = vmatpush.msra.mxu0 %v607
    %707 = vmatpush.msra.mxu0 %v604
    %708 = vmatpush.msra.mxu0 %v601
    %709 = vmatpush.msra.mxu0 %v598
    %710 = vmatpush.msra.mxu0 %v595
    %711 = vmatpush.msra.mxu0 %v592
    %712 = vmatpush.msra.mxu0 %v589
    %713 = vmatmul.f32.gmra.mxu0 0.0
    %v714 = vpop.f32.mrf.mxu0
    %v715 = vadd.f32 %v691, %v714
    %716 = vdwg.mxu0
    %717 = vmatpush.msra.mxu0 %v635
    %718 = vmatpush.msra.mxu0 %v632
    %719 = vmatpush.msra.mxu0 %v629
    %720 = vmatpush.msra.mxu0 %v626
    %721 = vmatpush.msra.mxu0 %v623
    %722 = vmatpush.msra.mxu0 %v620
    %723 = vmatpush.msra.mxu0 %v617
    %724 = vmatpush.msra.mxu0 %v614
    %725 = vmatpush.msra.mxu0 %v611
    %726 = vmatpush.msra.mxu0 %v608
    %727 = vmatpush.msra.mxu0 %v605
    %728 = vmatpush.msra.mxu0 %v602
    %729 = vmatpush.msra.mxu0 %v599
    %730 = vmatpush.msra.mxu0 %v596
    %731 = vmatpush.msra.mxu0 %v593
    %732 = vmatpush.msra.mxu0 %v590
    %733 = vmatmul.f32.gmra.mxu0 0.0
    %v734 = vpop.f32.mrf.mxu0
    %v735 = vadd.f32 %v692, %v734
    %736 = vdwg.mxu0
    %737 = vmatpush.msra.mxu0 %v636
    %738 = vmatpush.msra.mxu0 %v633
    %739 = vmatpush.msra.mxu0 %v630
    %740 = vmatpush.msra.mxu0 %v627
    %741 = vmatpush.msra.mxu0 %v624
    %742 = vmatpush.msra.mxu0 %v621
    %743 = vmatpush.msra.mxu0 %v618
    %744 = vmatpush.msra.mxu0 %v615
    %745 = vmatpush.msra.mxu0 %v612
    %746 = vmatpush.msra.mxu0 %v609
    %747 = vmatpush.msra.mxu0 %v606
    %748 = vmatpush.msra.mxu0 %v603
    %749 = vmatpush.msra.mxu0 %v600
    %750 = vmatpush.msra.mxu0 %v597
    %751 = vmatpush.msra.mxu0 %v594
    %752 = vmatpush.msra.mxu0 %v591
    %753 = vmatmul.f32.gmra.mxu0 0.0
    %v754 = vpop.f32.mrf.mxu0
    %v755 = vadd.f32 %v693, %v754
    %756 = vdwg.mxu0
    %v757 = vadd.f32 %v375, %v715
    %v758 = vxor.u32 %v757, 2147483648
    %v759 = vmul.f32 %v758, 1.442695
    %v760 = vpow.pop %v759
    %v761 = vadd.f32 %v760, 1.0
    %v762 = vrcp.pop %v761
    %v763 = vmul.f32 %v761, %v762
    %v764 = vsub.f32 1.0, %v763
    %v765 = vmul.f32 %v762, %v764
    %v766 = vadd.f32 %v762, %v765
    %vm767 = vweird.f32 %v761
    %vm768 = vweird.f32 %v762
    %vm769 = vmor %vm767, %vm768
    %v770 = vsel %vm769, %v762, %v766
    %v771 = vand.u32 2147483647, %v761
    %vm772 = vcmp.eq.f32.partialorder %v771, 8.507059e+37
    %v773 = vand.u32 %v761, 2147483648
    %v774 = vor.u32 1.1754944e-38, %v773
    %v775 = vsel %vm772, %v774, %v770
    %v776 = vmul.f32 1.0, %v775
    %v777 = vadd.f32 %v410, %v735
    %v778 = vxor.u32 %v777, 2147483648
    %v779 = vmul.f32 %v778, 1.442695
    %v780 = vpow.pop %v779
    %v781 = vadd.f32 %v780, 1.0
    %v782 = vrcp.pop %v781
    %v783 = vmul.f32 %v781, %v782
    %v784 = vsub.f32 1.0, %v783
    %v785 = vmul.f32 %v782, %v784
    %v786 = vadd.f32 %v782, %v785
    %vm787 = vweird.f32 %v781
    %vm788 = vweird.f32 %v782
    %vm789 = vmor %vm787, %vm788
    %v790 = vsel %vm789, %v782, %v786
    %v791 = vand.u32 2147483647, %v781
    %vm792 = vcmp.eq.f32.partialorder %v791, 8.507059e+37
    %v793 = vand.u32 %v781, 2147483648
    %v794 = vor.u32 1.1754944e-38, %v793
    %v795 = vsel %vm792, %v794, %v790
    %v796 = vmul.f32 1.0, %v795
    %v797 = vmul.f32 %v776, %v755
    %v798 = vadd.f32 %v445, %v797
    %v799 = vtanh.pop %v798
    %v800 = vsub.f32 1.0, %v796
    %v801 = vmul.f32 %v800, %v799
    %v802 = vmul.f32 %v796, 0.0
    %v803 = vadd.f32 %v801, %v802
    %v804 = vsel %vm689, 1, 0
    %805 = vset.pattern.permute.xlu0 0
    %806 = vperm.xlu0 %805, %v804
    %v807 = vpop.permute.xlu0 %806
    %vm808 = vcmp.eq.s32.totalorder %v807, 1
    %v809 = vsel %vm808, %v803, 0.0
    %vm810 = vcmp.gt.s32.totalorder %v214, 7
    %v812 = vperm.slane %v688, 0
    %v813 = vperm.slane %v688, 1
    %v814 = vperm.slane %v688, 2
    %818 = vmatpush.msra.mxu0 %v684
    %819 = vmatpush.msra.mxu0 %v681
    %820 = vmatpush.msra.mxu0 %v678
    %821 = vmatpush.msra.mxu0 %v675
    %822 = vmatpush.msra.mxu0 %v672
    %823 = vmatpush.msra.mxu0 %v669
    %824 = vmatpush.msra.mxu0 %v666
    %825 = vmatpush.msra.mxu0 %v663
    %826 = vmatpush.msra.mxu0 %v660
    %827 = vmatpush.msra.mxu0 %v657
    %828 = vmatpush.msra.mxu0 %v654
    %829 = vmatpush.msra.mxu0 %v651
    %830 = vmatpush.msra.mxu0 %v648
    %831 = vmatpush.msra.mxu0 %v645
    %832 = vmatpush.msra.mxu0 %v642
    %833 = vmatpush.msra.mxu0 %v639
    %834 = vmatmul.f32.gmra.mxu0 0.0
    %v835 = vpop.f32.mrf.mxu0
    %v836 = vadd.f32 %v812, %v835
    %837 = vdwg.mxu0
    %838 = vmatpush.msra.mxu0 %v685
    %839 = vmatpush.msra.mxu0 %v682
    %840 = vmatpush.msra.mxu0 %v679
    %841 = vmatpush.msra.mxu0 %v676
    %842 = vmatpush.msra.mxu0 %v673
    %843 = vmatpush.msra.mxu0 %v670
    %844 = vmatpush.msra.mxu0 %v667
    %845 = vmatpush.msra.mxu0 %v664
    %846 = vmatpush.msra.mxu0 %v661
    %847 = vmatpush.msra.mxu0 %v658
    %848 = vmatpush.msra.mxu0 %v655
    %849 = vmatpush.msra.mxu0 %v652
    %850 = vmatpush.msra.mxu0 %v649
    %851 = vmatpush.msra.mxu0 %v646
    %852 = vmatpush.msra.mxu0 %v643
    %853 = vmatpush.msra.mxu0 %v640
    %854 = vmatmul.f32.gmra.mxu0 0.0
    %v855 = vpop.f32.mrf.mxu0
    %v856 = vadd.f32 %v813, %v855
    %857 = vdwg.mxu0
    %858 = vmatpush.msra.mxu0 %v686
    %859 = vmatpush.msra.mxu0 %v683
    %860 = vmatpush.msra.mxu0 %v680
    %861 = vmatpush.msra.mxu0 %v677
    %862 = vmatpush.msra.mxu0 %v674
    %863 = vmatpush.msra.mxu0 %v671
    %864 = vmatpush.msra.mxu0 %v668
    %865 = vmatpush.msra.mxu0 %v665
    %866 = vmatpush.msra.mxu0 %v662
    %867 = vmatpush.msra.mxu0 %v659
    %868 = vmatpush.msra.mxu0 %v656
    %869 = vmatpush.msra.mxu0 %v653
    %870 = vmatpush.msra.mxu0 %v650
    %871 = vmatpush.msra.mxu0 %v647
    %872 = vmatpush.msra.mxu0 %v644
    %873 = vmatpush.msra.mxu0 %v641
    %874 = vmatmul.f32.gmra.mxu0 0.0
    %v875 = vpop.f32.mrf.mxu0
    %v876 = vadd.f32 %v814, %v875
    %877 = vdwg.mxu0
    %v879 = vrot.slane %v836, 6
    %v881 = vadd.f32 %v517, %v879
    %v882 = vxor.u32 %v881, 2147483648
    %v883 = vmul.f32 %v882, 1.442695
    %v884 = vpow.pop %v883
    %v885 = vadd.f32 %v884, 1.0
    %v886 = vrcp.pop %v885
    %v887 = vmul.f32 %v885, %v886
    %v888 = vsub.f32 1.0, %v887
    %v889 = vmul.f32 %v886, %v888
    %v890 = vadd.f32 %v886, %v889
    %vm891 = vweird.f32 %v885
    %vm892 = vweird.f32 %v886
    %vm893 = vmor %vm891, %vm892
    %v894 = vsel %vm893, %v886, %v890
    %v895 = vand.u32 2147483647, %v885
    %vm896 = vcmp.eq.f32.partialorder %v895, 8.507059e+37
    %v897 = vand.u32 %v885, 2147483648
    %v898 = vor.u32 1.1754944e-38, %v897
    %v899 = vsel %vm896, %v898, %v894
    %v900 = vmul.f32 1.0, %v899
    %v902 = vrot.slane %v856, 6
    %v904 = vadd.f32 %v552, %v902
    %v905 = vxor.u32 %v904, 2147483648
    %v906 = vmul.f32 %v905, 1.442695
    %v907 = vpow.pop %v906
    %v908 = vadd.f32 %v907, 1.0
    %v909 = vrcp.pop %v908
    %v910 = vmul.f32 %v908, %v909
    %v911 = vsub.f32 1.0, %v910
    %v912 = vmul.f32 %v909, %v911
    %v913 = vadd.f32 %v909, %v912
    %vm914 = vweird.f32 %v908
    %vm915 = vweird.f32 %v909
    %vm916 = vmor %vm914, %vm915
    %v917 = vsel %vm916, %v909, %v913
    %v918 = vand.u32 2147483647, %v908
    %vm919 = vcmp.eq.f32.partialorder %v918, 8.507059e+37
    %v920 = vand.u32 %v908, 2147483648
    %v921 = vor.u32 1.1754944e-38, %v920
    %v922 = vsel %vm919, %v921, %v917
    %v923 = vmul.f32 1.0, %v922
    %v925 = vrot.slane %v876, 6
    %v927 = vmul.f32 %v900, %v925
    %v928 = vadd.f32 %v587, %v927
    %v929 = vtanh.pop %v928
    %v930 = vsub.f32 1.0, %v923
    %v931 = vmul.f32 %v930, %v929
    %v932 = vmul.f32 %v923, 0.0
    %v933 = vadd.f32 %v931, %v932
    %v934 = vsel %vm810, 1, 0
    %935 = vset.pattern.permute.xlu0 0
    %936 = vperm.xlu0 %935, %v934
    %v937 = vpop.permute.xlu0 %936
    %vm938 = vcmp.eq.s32.totalorder %v937, 1
    %v940 = vrot.slane %v933, 2
    %v942 = vsel %vm938, %v940, 0.0
    %vm943 = vcmp.gt.s32.totalorder %v214, 1
    %944 = vmatpush.msra.mxu0 %v634
    %945 = vmatpush.msra.mxu0 %v631
    %946 = vmatpush.msra.mxu0 %v628
    %947 = vmatpush.msra.mxu0 %v625
    %948 = vmatpush.msra.mxu0 %v622
    %949 = vmatpush.msra.mxu0 %v619
    %950 = vmatpush.msra.mxu0 %v616
    %951 = vmatpush.msra.mxu0 %v613
    %952 = vmatpush.msra.mxu0 %v610
    %953 = vmatpush.msra.mxu0 %v607
    %954 = vmatpush.msra.mxu0 %v604
    %955 = vmatpush.msra.mxu0 %v601
    %956 = vmatpush.msra.mxu0 %v598
    %957 = vmatpush.msra.mxu0 %v595
    %958 = vmatpush.msra.mxu0 %v592
    %959 = vmatpush.msra.mxu0 %v589
    %960 = vmatmul.f32.gmra.mxu0 %v809
    %v961 = vpop.f32.mrf.mxu0
    %v962 = vadd.f32 %v691, %v961
    %963 = vdwg.mxu0
    %964 = vmatpush.msra.mxu0 %v635
    %965 = vmatpush.msra.mxu0 %v632
    %966 = vmatpush.msra.mxu0 %v629
    %967 = vmatpush.msra.mxu0 %v626
    %968 = vmatpush.msra.mxu0 %v623
    %969 = vmatpush.msra.mxu0 %v620
    %970 = vmatpush.msra.mxu0 %v617
    %971 = vmatpush.msra.mxu0 %v614
    %972 = vmatpush.msra.mxu0 %v611
    %973 = vmatpush.msra.mxu0 %v608
    %974 = vmatpush.msra.mxu0 %v605
    %975 = vmatpush.msra.mxu0 %v602
    %976 = vmatpush.msra.mxu0 %v599
    %977 = vmatpush.msra.mxu0 %v596
    %978 = vmatpush.msra.mxu0 %v593
    %979 = vmatpush.msra.mxu0 %v590
    %980 = vmatmul.f32.gmra.mxu0 %v809
    %v981 = vpop.f32.mrf.mxu0
    %v982 = vadd.f32 %v692, %v981
    %983 = vdwg.mxu0
    %984 = vmatpush.msra.mxu0 %v636
    %985 = vmatpush.msra.mxu0 %v633
    %986 = vmatpush.msra.mxu0 %v630
    %987 = vmatpush.msra.mxu0 %v627
    %988 = vmatpush.msra.mxu0 %v624
    %989 = vmatpush.msra.mxu0 %v621
    %990 = vmatpush.msra.mxu0 %v618
    %991 = vmatpush.msra.mxu0 %v615
    %992 = vmatpush.msra.mxu0 %v612
    %993 = vmatpush.msra.mxu0 %v609
    %994 = vmatpush.msra.mxu0 %v606
    %995 = vmatpush.msra.mxu0 %v603
    %996 = vmatpush.msra.mxu0 %v600
    %997 = vmatpush.msra.mxu0 %v597
    %998 = vmatpush.msra.mxu0 %v594
    %999 = vmatpush.msra.mxu0 %v591
    %1000 = vmatmul.f32.gmra.mxu0 %v809
    %v1001 = vpop.f32.mrf.mxu0
    %v1002 = vadd.f32 %v693, %v1001
    %1003 = vdwg.mxu0
    %v1005 = vrot.slane %v962, 2
    %v1007 = vadd.f32 %v375, %v1005
    %v1008 = vadd.f32 %v378, %v1005
    %v1009 = vxor.u32 %v1007, 2147483648
    %v1010 = vxor.u32 %v1008, 2147483648
    %v1011 = vmul.f32 %v1009, 1.442695
    %v1012 = vpow.pop %v1011
    %v1013 = vmul.f32 %v1010, 1.442695
    %v1014 = vpow.pop %v1013
    %v1015 = vadd.f32 %v1012, 1.0
    %v1016 = vadd.f32 %v1014, 1.0
    %v1017 = vrcp.pop %v1015
    %v1018 = vmul.f32 %v1015, %v1017
    %v1019 = vsub.f32 1.0, %v1018
    %v1020 = vmul.f32 %v1017, %v1019
    %v1021 = vadd.f32 %v1017, %v1020
    %vm1022 = vweird.f32 %v1015
    %vm1023 = vweird.f32 %v1017
    %vm1024 = vmor %vm1022, %vm1023
    %v1025 = vsel %vm1024, %v1017, %v1021
    %v1026 = vand.u32 2147483647, %v1015
    %vm1027 = vcmp.eq.f32.partialorder %v1026, 8.507059e+37
    %v1028 = vand.u32 %v1015, 2147483648
    %v1029 = vor.u32 1.1754944e-38, %v1028
    %v1030 = vsel %vm1027, %v1029, %v1025
    %v1031 = vmul.f32 1.0, %v1030
    %v1032 = vrcp.pop %v1016
    %v1033 = vmul.f32 %v1016, %v1032
    %v1034 = vsub.f32 1.0, %v1033
    %v1035 = vmul.f32 %v1032, %v1034
    %v1036 = vadd.f32 %v1032, %v1035
    %vm1037 = vweird.f32 %v1016
    %vm1038 = vweird.f32 %v1032
    %vm1039 = vmor %vm1037, %vm1038
    %v1040 = vsel %vm1039, %v1032, %v1036
    %v1041 = vand.u32 2147483647, %v1016
    %vm1042 = vcmp.eq.f32.partialorder %v1041, 8.507059e+37
    %v1043 = vand.u32 %v1016, 2147483648
    %v1044 = vor.u32 1.1754944e-38, %v1043
    %v1045 = vsel %vm1042, %v1044, %v1040
    %v1046 = vmul.f32 1.0, %v1045
    %v1048 = vrot.slane %v982, 2
    %v1050 = vadd.f32 %v410, %v1048
    %v1051 = vadd.f32 %v413, %v1048
    %v1052 = vxor.u32 %v1050, 2147483648
    %v1053 = vxor.u32 %v1051, 2147483648
    %v1054 = vmul.f32 %v1052, 1.442695
    %v1055 = vpow.pop %v1054
    %v1056 = vmul.f32 %v1053, 1.442695
    %v1057 = vpow.pop %v1056
    %v1058 = vadd.f32 %v1055, 1.0
    %v1059 = vadd.f32 %v1057, 1.0
    %v1060 = vrcp.pop %v1058
    %v1061 = vmul.f32 %v1058, %v1060
    %v1062 = vsub.f32 1.0, %v1061
    %v1063 = vmul.f32 %v1060, %v1062
    %v1064 = vadd.f32 %v1060, %v1063
    %vm1065 = vweird.f32 %v1058
    %vm1066 = vweird.f32 %v1060
    %vm1067 = vmor %vm1065, %vm1066
    %v1068 = vsel %vm1067, %v1060, %v1064
    %v1069 = vand.u32 2147483647, %v1058
    %vm1070 = vcmp.eq.f32.partialorder %v1069, 8.507059e+37
    %v1071 = vand.u32 %v1058, 2147483648
    %v1072 = vor.u32 1.1754944e-38, %v1071
    %v1073 = vsel %vm1070, %v1072, %v1068
    %v1074 = vmul.f32 1.0, %v1073
    %v1075 = vrcp.pop %v1059
    %v1076 = vmul.f32 %v1059, %v1075
    %v1077 = vsub.f32 1.0, %v1076
    %v1078 = vmul.f32 %v1075, %v1077
    %v1079 = vadd.f32 %v1075, %v1078
    %vm1080 = vweird.f32 %v1059
    %vm1081 = vweird.f32 %v1075
    %vm1082 = vmor %vm1080, %vm1081
    %v1083 = vsel %vm1082, %v1075, %v1079
    %v1084 = vand.u32 2147483647, %v1059
    %vm1085 = vcmp.eq.f32.partialorder %v1084, 8.507059e+37
    %v1086 = vand.u32 %v1059, 2147483648
    %v1087 = vor.u32 1.1754944e-38, %v1086
    %v1088 = vsel %vm1085, %v1087, %v1083
    %v1089 = vmul.f32 1.0, %v1088
    %v1091 = vrot.slane %v1002, 2
    %v1093 = vmul.f32 %v1031, %v1091
    %v1094 = vmul.f32 %v1046, %v1091
    %v1095 = vadd.f32 %v445, %v1093
    %v1096 = vadd.f32 %v448, %v1094
    %v1097 = vtanh.pop %v1095
    %v1098 = vtanh.pop %v1096
    %v1099 = vsub.f32 1.0, %v1074
    %v1100 = vsub.f32 1.0, %v1089
    %v1101 = vmul.f32 %v1099, %v1097
    %v1102 = vmul.f32 %v1100, %v1098
    %v1104 = vrot.slane %v809, 2
    %v1106 = vmul.f32 %v1074, %v1104
    %v1107 = vmul.f32 %v1089, %v1104
    %v1108 = vadd.f32 %v1101, %v1106
    %v1109 = vadd.f32 %v1102, %v1107
    %v1110 = vsel %vm943, 1, 0
    %1111 = vset.pattern.permute.xlu0 0
    %1112 = vperm.xlu0 %1111, %v1110
    %v1113 = vpop.permute.xlu0 %1112
    %vm1114 = vcmp.eq.s32.totalorder %v1113, 1
    %v1117 = vrot.slane %v1108, 6
    %v1118 = vrot.slane %v1109, 6
    %v1119 = vsel %vm279, %v1117, %v1118
    %v1121 = vsel %vm1114, %v1119, %v809
    %v1122 = vsel %vm1114, %v1119, 0.0
    %v1123 = vmax.f32 %v809, %v1122
    %vm1124 = vcmp.gt.s32.totalorder %v214, 6
    %1125 = vmatpush.msra.mxu0 %v684
    %1126 = vmatpush.msra.mxu0 %v681
    %1127 = vmatpush.msra.mxu0 %v678
    %1128 = vmatpush.msra.mxu0 %v675
    %1129 = vmatpush.msra.mxu0 %v672
    %1130 = vmatpush.msra.mxu0 %v669
    %1131 = vmatpush.msra.mxu0 %v666
    %1132 = vmatpush.msra.mxu0 %v663
    %1133 = vmatpush.msra.mxu0 %v660
    %1134 = vmatpush.msra.mxu0 %v657
    %1135 = vmatpush.msra.mxu0 %v654
    %1136 = vmatpush.msra.mxu0 %v651
    %1137 = vmatpush.msra.mxu0 %v648
    %1138 = vmatpush.msra.mxu0 %v645
    %1139 = vmatpush.msra.mxu0 %v642
    %1140 = vmatpush.msra.mxu0 %v639
    %1141 = vmatmul.f32.gmra.mxu0 %v942
    %v1142 = vpop.f32.mrf.mxu0
    %v1143 = vadd.f32 %v812, %v1142
    %1144 = vdwg.mxu0
    %1145 = vmatpush.msra.mxu0 %v685
    %1146 = vmatpush.msra.mxu0 %v682
    %1147 = vmatpush.msra.mxu0 %v679
    %1148 = vmatpush.msra.mxu0 %v676
    %1149 = vmatpush.msra.mxu0 %v673
    %1150 = vmatpush.msra.mxu0 %v670
    %1151 = vmatpush.msra.mxu0 %v667
    %1152 = vmatpush.msra.mxu0 %v664
    %1153 = vmatpush.msra.mxu0 %v661
    %1154 = vmatpush.msra.mxu0 %v658
    %1155 = vmatpush.msra.mxu0 %v655
    %1156 = vmatpush.msra.mxu0 %v652
    %1157 = vmatpush.msra.mxu0 %v649
    %1158 = vmatpush.msra.mxu0 %v646
    %1159 = vmatpush.msra.mxu0 %v643
    %1160 = vmatpush.msra.mxu0 %v640
    %1161 = vmatmul.f32.gmra.mxu0 %v942
    %v1162 = vpop.f32.mrf.mxu0
    %v1163 = vadd.f32 %v813, %v1162
    %1164 = vdwg.mxu0
    %1165 = vmatpush.msra.mxu0 %v686
    %1166 = vmatpush.msra.mxu0 %v683
    %1167 = vmatpush.msra.mxu0 %v680
    %1168 = vmatpush.msra.mxu0 %v677
    %1169 = vmatpush.msra.mxu0 %v674
    %1170 = vmatpush.msra.mxu0 %v671
    %1171 = vmatpush.msra.mxu0 %v668
    %1172 = vmatpush.msra.mxu0 %v665
    %1173 = vmatpush.msra.mxu0 %v662
    %1174 = vmatpush.msra.mxu0 %v659
    %1175 = vmatpush.msra.mxu0 %v656
    %1176 = vmatpush.msra.mxu0 %v653
    %1177 = vmatpush.msra.mxu0 %v650
    %1178 = vmatpush.msra.mxu0 %v647
    %1179 = vmatpush.msra.mxu0 %v644
    %1180 = vmatpush.msra.mxu0 %v641
    %1181 = vmatmul.f32.gmra.mxu0 %v942
    %v1182 = vpop.f32.mrf.mxu0
    %v1183 = vadd.f32 %v814, %v1182
    %1184 = vdwg.mxu0
    %v1186 = vrot.slane %v1143, 4
    %v1188 = vadd.f32 %v514, %v1186
    %v1189 = vadd.f32 %v517, %v1186
    %v1190 = vxor.u32 %v1188, 2147483648
    %v1191 = vxor.u32 %v1189, 2147483648
    %v1192 = vmul.f32 %v1190, 1.442695
    %v1193 = vpow.pop %v1192
    %v1194 = vmul.f32 %v1191, 1.442695
    %v1195 = vpow.pop %v1194
    %v1196 = vadd.f32 %v1193, 1.0
    %v1197 = vadd.f32 %v1195, 1.0
    %v1198 = vrcp.pop %v1196
    %v1199 = vmul.f32 %v1196, %v1198
    %v1200 = vsub.f32 1.0, %v1199
    %v1201 = vmul.f32 %v1198, %v1200
    %v1202 = vadd.f32 %v1198, %v1201
    %vm1203 = vweird.f32 %v1196
    %vm1204 = vweird.f32 %v1198
    %vm1205 = vmor %vm1203, %vm1204
    %v1206 = vsel %vm1205, %v1198, %v1202
    %v1207 = vand.u32 2147483647, %v1196
    %vm1208 = vcmp.eq.f32.partialorder %v1207, 8.507059e+37
    %v1209 = vand.u32 %v1196, 2147483648
    %v1210 = vor.u32 1.1754944e-38, %v1209
    %v1211 = vsel %vm1208, %v1210, %v1206
    %v1212 = vmul.f32 1.0, %v1211
    %v1213 = vrcp.pop %v1197
    %v1214 = vmul.f32 %v1197, %v1213
    %v1215 = vsub.f32 1.0, %v1214
    %v1216 = vmul.f32 %v1213, %v1215
    %v1217 = vadd.f32 %v1213, %v1216
    %vm1218 = vweird.f32 %v1197
    %vm1219 = vweird.f32 %v1213
    %vm1220 = vmor %vm1218, %vm1219
    %v1221 = vsel %vm1220, %v1213, %v1217
    %v1222 = vand.u32 2147483647, %v1197
    %vm1223 = vcmp.eq.f32.partialorder %v1222, 8.507059e+37
    %v1224 = vand.u32 %v1197, 2147483648
    %v1225 = vor.u32 1.1754944e-38, %v1224
    %v1226 = vsel %vm1223, %v1225, %v1221
    %v1227 = vmul.f32 1.0, %v1226
    %v1229 = vrot.slane %v1163, 4
    %v1231 = vadd.f32 %v549, %v1229
    %v1232 = vadd.f32 %v552, %v1229
    %v1233 = vxor.u32 %v1231, 2147483648
    %v1234 = vxor.u32 %v1232, 2147483648
    %v1235 = vmul.f32 %v1233, 1.442695
    %v1236 = vpow.pop %v1235
    %v1237 = vmul.f32 %v1234, 1.442695
    %v1238 = vpow.pop %v1237
    %v1239 = vadd.f32 %v1236, 1.0
    %v1240 = vadd.f32 %v1238, 1.0
    %v1241 = vrcp.pop %v1239
    %v1242 = vmul.f32 %v1239, %v1241
    %v1243 = vsub.f32 1.0, %v1242
    %v1244 = vmul.f32 %v1241, %v1243
    %v1245 = vadd.f32 %v1241, %v1244
    %vm1246 = vweird.f32 %v1239
    %vm1247 = vweird.f32 %v1241
    %vm1248 = vmor %vm1246, %vm1247
    %v1249 = vsel %vm1248, %v1241, %v1245
    %v1250 = vand.u32 2147483647, %v1239
    %vm1251 = vcmp.eq.f32.partialorder %v1250, 8.507059e+37
    %v1252 = vand.u32 %v1239, 2147483648
    %v1253 = vor.u32 1.1754944e-38, %v1252
    %v1254 = vsel %vm1251, %v1253, %v1249
    %v1255 = vmul.f32 1.0, %v1254
    %v1256 = vrcp.pop %v1240
    %v1257 = vmul.f32 %v1240, %v1256
    %v1258 = vsub.f32 1.0, %v1257
    %v1259 = vmul.f32 %v1256, %v1258
    %v1260 = vadd.f32 %v1256, %v1259
    %vm1261 = vweird.f32 %v1240
    %vm1262 = vweird.f32 %v1256
    %vm1263 = vmor %vm1261, %vm1262
    %v1264 = vsel %vm1263, %v1256, %v1260
    %v1265 = vand.u32 2147483647, %v1240
    %vm1266 = vcmp.eq.f32.partialorder %v1265, 8.507059e+37
    %v1267 = vand.u32 %v1240, 2147483648
    %v1268 = vor.u32 1.1754944e-38, %v1267
    %v1269 = vsel %vm1266, %v1268, %v1264
    %v1270 = vmul.f32 1.0, %v1269
    %v1272 = vrot.slane %v1183, 4
    %v1274 = vmul.f32 %v1212, %v1272
    %v1275 = vmul.f32 %v1227, %v1272
    %v1276 = vadd.f32 %v584, %v1274
    %v1277 = vadd.f32 %v587, %v1275
    %v1278 = vtanh.pop %v1276
    %v1279 = vtanh.pop %v1277
    %v1280 = vsub.f32 1.0, %v1255
    %v1281 = vsub.f32 1.0, %v1270
    %v1282 = vmul.f32 %v1280, %v1278
    %v1283 = vmul.f32 %v1281, %v1279
    %v1285 = vrot.slane %v942, 4
    %v1287 = vmul.f32 %v1255, %v1285
    %v1288 = vmul.f32 %v1270, %v1285
    %v1289 = vadd.f32 %v1282, %v1287
    %v1290 = vadd.f32 %v1283, %v1288
    %v1291 = vsel %vm1124, 1, 0
    %1292 = vset.pattern.permute.xlu0 0
    %1293 = vperm.xlu0 %1292, %v1291
    %v1294 = vpop.permute.xlu0 %1293
    %vm1295 = vcmp.eq.s32.totalorder %v1294, 1
    %vm1298 = vcmask 1043456
    %v1299 = vrot.slane %v1289, 4
    %v1300 = vrot.slane %v1290, 4
    %v1301 = vsel %vm1298, %v1299, %v1300
    %v1303 = vsel %vm1295, %v1301, %v942
    %v1304 = vsel %vm1295, %v1301, 0.0
    %v1305 = vmax.f32 %v942, %v1304
    %vm1306 = vcmp.gt.s32.totalorder %v214, 2
    %1307 = vmatpush.msra.mxu0 %v634
    %1308 = vmatpush.msra.mxu0 %v631
    %1309 = vmatpush.msra.mxu0 %v628
    %1310 = vmatpush.msra.mxu0 %v625
    %1311 = vmatpush.msra.mxu0 %v622
    %1312 = vmatpush.msra.mxu0 %v619
    %1313 = vmatpush.msra.mxu0 %v616
    %1314 = vmatpush.msra.mxu0 %v613
    %1315 = vmatpush.msra.mxu0 %v610
    %1316 = vmatpush.msra.mxu0 %v607
    %1317 = vmatpush.msra.mxu0 %v604
    %1318 = vmatpush.msra.mxu0 %v601
    %1319 = vmatpush.msra.mxu0 %v598
    %1320 = vmatpush.msra.mxu0 %v595
    %1321 = vmatpush.msra.mxu0 %v592
    %1322 = vmatpush.msra.mxu0 %v589
    %1323 = vmatmul.f32.gmra.mxu0 %v1121
    %v1324 = vpop.f32.mrf.mxu0
    %v1325 = vadd.f32 %v691, %v1324
    %1326 = vdwg.mxu0
    %1327 = vmatpush.msra.mxu0 %v635
    %1328 = vmatpush.msra.mxu0 %v632
    %1329 = vmatpush.msra.mxu0 %v629
    %1330 = vmatpush.msra.mxu0 %v626
    %1331 = vmatpush.msra.mxu0 %v623
    %1332 = vmatpush.msra.mxu0 %v620
    %1333 = vmatpush.msra.mxu0 %v617
    %1334 = vmatpush.msra.mxu0 %v614
    %1335 = vmatpush.msra.mxu0 %v611
    %1336 = vmatpush.msra.mxu0 %v608
    %1337 = vmatpush.msra.mxu0 %v605
    %1338 = vmatpush.msra.mxu0 %v602
    %1339 = vmatpush.msra.mxu0 %v599
    %1340 = vmatpush.msra.mxu0 %v596
    %1341 = vmatpush.msra.mxu0 %v593
    %1342 = vmatpush.msra.mxu0 %v590
    %1343 = vmatmul.f32.gmra.mxu0 %v1121
    %v1344 = vpop.f32.mrf.mxu0
    %v1345 = vadd.f32 %v692, %v1344
    %1346 = vdwg.mxu0
    %1347 = vmatpush.msra.mxu0 %v636
    %1348 = vmatpush.msra.mxu0 %v633
    %1349 = vmatpush.msra.mxu0 %v630
    %1350 = vmatpush.msra.mxu0 %v627
    %1351 = vmatpush.msra.mxu0 %v624
    %1352 = vmatpush.msra.mxu0 %v621
    %1353 = vmatpush.msra.mxu0 %v618
    %1354 = vmatpush.msra.mxu0 %v615
    %1355 = vmatpush.msra.mxu0 %v612
    %1356 = vmatpush.msra.mxu0 %v609
    %1357 = vmatpush.msra.mxu0 %v606
    %1358 = vmatpush.msra.mxu0 %v603
    %1359 = vmatpush.msra.mxu0 %v600
    %1360 = vmatpush.msra.mxu0 %v597
    %1361 = vmatpush.msra.mxu0 %v594
    %1362 = vmatpush.msra.mxu0 %v591
    %1363 = vmatmul.f32.gmra.mxu0 %v1121
    %v1364 = vpop.f32.mrf.mxu0
    %v1365 = vadd.f32 %v693, %v1364
    %1366 = vdwg.mxu0
    %v1368 = vrot.slane %v1325, 4
    %v1370 = vadd.f32 %v378, %v1368
    %v1371 = vadd.f32 %v381, %v1368
    %v1372 = vxor.u32 %v1370, 2147483648
    %v1373 = vxor.u32 %v1371, 2147483648
    %v1374 = vmul.f32 %v1372, 1.442695
    %v1375 = vpow.pop %v1374
    %v1376 = vmul.f32 %v1373, 1.442695
    %v1377 = vpow.pop %v1376
    %v1378 = vadd.f32 %v1375, 1.0
    %v1379 = vadd.f32 %v1377, 1.0
    %v1380 = vrcp.pop %v1378
    %v1381 = vmul.f32 %v1378, %v1380
    %v1382 = vsub.f32 1.0, %v1381
    %v1383 = vmul.f32 %v1380, %v1382
    %v1384 = vadd.f32 %v1380, %v1383
    %vm1385 = vweird.f32 %v1378
    %vm1386 = vweird.f32 %v1380
    %vm1387 = vmor %vm1385, %vm1386
    %v1388 = vsel %vm1387, %v1380, %v1384
    %v1389 = vand.u32 2147483647, %v1378
    %vm1390 = vcmp.eq.f32.partialorder %v1389, 8.507059e+37
    %v1391 = vand.u32 %v1378, 2147483648
    %v1392 = vor.u32 1.1754944e-38, %v1391
    %v1393 = vsel %vm1390, %v1392, %v1388
    %v1394 = vmul.f32 1.0, %v1393
    %v1395 = vrcp.pop %v1379
    %v1396 = vmul.f32 %v1379, %v1395
    %v1397 = vsub.f32 1.0, %v1396
    %v1398 = vmul.f32 %v1395, %v1397
    %v1399 = vadd.f32 %v1395, %v1398
    %vm1400 = vweird.f32 %v1379
    %vm1401 = vweird.f32 %v1395
    %vm1402 = vmor %vm1400, %vm1401
    %v1403 = vsel %vm1402, %v1395, %v1399
    %v1404 = vand.u32 2147483647, %v1379
    %vm1405 = vcmp.eq.f32.partialorder %v1404, 8.507059e+37
    %v1406 = vand.u32 %v1379, 2147483648
    %v1407 = vor.u32 1.1754944e-38, %v1406
    %v1408 = vsel %vm1405, %v1407, %v1403
    %v1409 = vmul.f32 1.0, %v1408
    %v1411 = vrot.slane %v1345, 4
    %v1413 = vadd.f32 %v413, %v1411
    %v1414 = vadd.f32 %v416, %v1411
    %v1415 = vxor.u32 %v1413, 2147483648
    %v1416 = vxor.u32 %v1414, 2147483648
    %v1417 = vmul.f32 %v1415, 1.442695
    %v1418 = vpow.pop %v1417
    %v1419 = vmul.f32 %v1416, 1.442695
    %v1420 = vpow.pop %v1419
    %v1421 = vadd.f32 %v1418, 1.0
    %v1422 = vadd.f32 %v1420, 1.0
    %v1423 = vrcp.pop %v1421
    %v1424 = vmul.f32 %v1421, %v1423
    %v1425 = vsub.f32 1.0, %v1424
    %v1426 = vmul.f32 %v1423, %v1425
    %v1427 = vadd.f32 %v1423, %v1426
    %vm1428 = vweird.f32 %v1421
    %vm1429 = vweird.f32 %v1423
    %vm1430 = vmor %vm1428, %vm1429
    %v1431 = vsel %vm1430, %v1423, %v1427
    %v1432 = vand.u32 2147483647, %v1421
    %vm1433 = vcmp.eq.f32.partialorder %v1432, 8.507059e+37
    %v1434 = vand.u32 %v1421, 2147483648
    %v1435 = vor.u32 1.1754944e-38, %v1434
    %v1436 = vsel %vm1433, %v1435, %v1431
    %v1437 = vmul.f32 1.0, %v1436
    %v1438 = vrcp.pop %v1422
    %v1439 = vmul.f32 %v1422, %v1438
    %v1440 = vsub.f32 1.0, %v1439
    %v1441 = vmul.f32 %v1438, %v1440
    %v1442 = vadd.f32 %v1438, %v1441
    %vm1443 = vweird.f32 %v1422
    %vm1444 = vweird.f32 %v1438
    %vm1445 = vmor %vm1443, %vm1444
    %v1446 = vsel %vm1445, %v1438, %v1442
    %v1447 = vand.u32 2147483647, %v1422
    %vm1448 = vcmp.eq.f32.partialorder %v1447, 8.507059e+37
    %v1449 = vand.u32 %v1422, 2147483648
    %v1450 = vor.u32 1.1754944e-38, %v1449
    %v1451 = vsel %vm1448, %v1450, %v1446
    %v1452 = vmul.f32 1.0, %v1451
    %v1454 = vrot.slane %v1365, 4
    %v1456 = vmul.f32 %v1394, %v1454
    %v1457 = vmul.f32 %v1409, %v1454
    %v1458 = vadd.f32 %v448, %v1456
    %v1459 = vadd.f32 %v451, %v1457
    %v1460 = vtanh.pop %v1458
    %v1461 = vtanh.pop %v1459
    %v1462 = vsub.f32 1.0, %v1437
    %v1463 = vsub.f32 1.0, %v1452
    %v1464 = vmul.f32 %v1462, %v1460
    %v1465 = vmul.f32 %v1463, %v1461
    %v1467 = vrot.slane %v1121, 4
    %v1469 = vmul.f32 %v1437, %v1467
    %v1470 = vmul.f32 %v1452, %v1467
    %v1471 = vadd.f32 %v1464, %v1469
    %v1472 = vadd.f32 %v1465, %v1470
    %v1473 = vsel %vm1306, 1, 0
    %1474 = vset.pattern.permute.xlu0 0
    %1475 = vperm.xlu0 %1474, %v1473
    %v1476 = vpop.permute.xlu0 %1475
    %vm1477 = vcmp.eq.s32.totalorder %v1476, 1
    %v1480 = vrot.slane %v1471, 4
    %v1481 = vrot.slane %v1472, 4
    %v1482 = vsel %vm1298, %v1480, %v1481
    %v1484 = vsel %vm1477, %v1482, %v1121
    %v1485 = vsel %vm1477, %v1482, 0.0
    %v1486 = vmax.f32 %v1123, %v1485
    %vm1487 = vcmp.gt.s32.totalorder %v214, 5
    %1488 = vmatpush.msra.mxu0 %v684
    %1489 = vmatpush.msra.mxu0 %v681
    %1490 = vmatpush.msra.mxu0 %v678
    %1491 = vmatpush.msra.mxu0 %v675
    %1492 = vmatpush.msra.mxu0 %v672
    %1493 = vmatpush.msra.mxu0 %v669
    %1494 = vmatpush.msra.mxu0 %v666
    %1495 = vmatpush.msra.mxu0 %v663
    %1496 = vmatpush.msra.mxu0 %v660
    %1497 = vmatpush.msra.mxu0 %v657
    %1498 = vmatpush.msra.mxu0 %v654
    %1499 = vmatpush.msra.mxu0 %v651
    %1500 = vmatpush.msra.mxu0 %v648
    %1501 = vmatpush.msra.mxu0 %v645
    %1502 = vmatpush.msra.mxu0 %v642
    %1503 = vmatpush.msra.mxu0 %v639
    %1504 = vmatmul.f32.gmra.mxu0 %v1303
    %v1505 = vpop.f32.mrf.mxu0
    %v1506 = vadd.f32 %v812, %v1505
    %1507 = vdwg.mxu0
    %1508 = vmatpush.msra.mxu0 %v685
    %1509 = vmatpush.msra.mxu0 %v682
    %1510 = vmatpush.msra.mxu0 %v679
    %1511 = vmatpush.msra.mxu0 %v676
    %1512 = vmatpush.msra.mxu0 %v673
    %1513 = vmatpush.msra.mxu0 %v670
    %1514 = vmatpush.msra.mxu0 %v667
    %1515 = vmatpush.msra.mxu0 %v664
    %1516 = vmatpush.msra.mxu0 %v661
    %1517 = vmatpush.msra.mxu0 %v658
    %1518 = vmatpush.msra.mxu0 %v655
    %1519 = vmatpush.msra.mxu0 %v652
    %1520 = vmatpush.msra.mxu0 %v649
    %1521 = vmatpush.msra.mxu0 %v646
    %1522 = vmatpush.msra.mxu0 %v643
    %1523 = vmatpush.msra.mxu0 %v640
    %1524 = vmatmul.f32.gmra.mxu0 %v1303
    %v1525 = vpop.f32.mrf.mxu0
    %v1526 = vadd.f32 %v813, %v1525
    %1527 = vdwg.mxu0
    %1528 = vmatpush.msra.mxu0 %v686
    %1529 = vmatpush.msra.mxu0 %v683
    %1530 = vmatpush.msra.mxu0 %v680
    %1531 = vmatpush.msra.mxu0 %v677
    %1532 = vmatpush.msra.mxu0 %v674
    %1533 = vmatpush.msra.mxu0 %v671
    %1534 = vmatpush.msra.mxu0 %v668
    %1535 = vmatpush.msra.mxu0 %v665
    %1536 = vmatpush.msra.mxu0 %v662
    %1537 = vmatpush.msra.mxu0 %v659
    %1538 = vmatpush.msra.mxu0 %v656
    %1539 = vmatpush.msra.mxu0 %v653
    %1540 = vmatpush.msra.mxu0 %v650
    %1541 = vmatpush.msra.mxu0 %v647
    %1542 = vmatpush.msra.mxu0 %v644
    %1543 = vmatpush.msra.mxu0 %v641
    %1544 = vmatmul.f32.gmra.mxu0 %v1303
    %v1545 = vpop.f32.mrf.mxu0
    %v1546 = vadd.f32 %v814, %v1545
    %1547 = vdwg.mxu0
    %v1549 = vrot.slane %v1506, 2
    %v1551 = vadd.f32 %v511, %v1549
    %v1552 = vadd.f32 %v514, %v1549
    %v1553 = vxor.u32 %v1551, 2147483648
    %v1554 = vxor.u32 %v1552, 2147483648
    %v1555 = vmul.f32 %v1553, 1.442695
    %v1556 = vpow.pop %v1555
    %v1557 = vmul.f32 %v1554, 1.442695
    %v1558 = vpow.pop %v1557
    %v1559 = vadd.f32 %v1556, 1.0
    %v1560 = vadd.f32 %v1558, 1.0
    %v1561 = vrcp.pop %v1559
    %v1562 = vmul.f32 %v1559, %v1561
    %v1563 = vsub.f32 1.0, %v1562
    %v1564 = vmul.f32 %v1561, %v1563
    %v1565 = vadd.f32 %v1561, %v1564
    %vm1566 = vweird.f32 %v1559
    %vm1567 = vweird.f32 %v1561
    %vm1568 = vmor %vm1566, %vm1567
    %v1569 = vsel %vm1568, %v1561, %v1565
    %v1570 = vand.u32 2147483647, %v1559
    %vm1571 = vcmp.eq.f32.partialorder %v1570, 8.507059e+37
    %v1572 = vand.u32 %v1559, 2147483648
    %v1573 = vor.u32 1.1754944e-38, %v1572
    %v1574 = vsel %vm1571, %v1573, %v1569
    %v1575 = vmul.f32 1.0, %v1574
    %v1576 = vrcp.pop %v1560
    %v1577 = vmul.f32 %v1560, %v1576
    %v1578 = vsub.f32 1.0, %v1577
    %v1579 = vmul.f32 %v1576, %v1578
    %v1580 = vadd.f32 %v1576, %v1579
    %vm1581 = vweird.f32 %v1560
    %vm1582 = vweird.f32 %v1576
    %vm1583 = vmor %vm1581, %vm1582
    %v1584 = vsel %vm1583, %v1576, %v1580
    %v1585 = vand.u32 2147483647, %v1560
    %vm1586 = vcmp.eq.f32.partialorder %v1585, 8.507059e+37
    %v1587 = vand.u32 %v1560, 2147483648
    %v1588 = vor.u32 1.1754944e-38, %v1587
    %v1589 = vsel %vm1586, %v1588, %v1584
    %v1590 = vmul.f32 1.0, %v1589
    %v1592 = vrot.slane %v1526, 2
    %v1594 = vadd.f32 %v546, %v1592
    %v1595 = vadd.f32 %v549, %v1592
    %v1596 = vxor.u32 %v1594, 2147483648
    %v1597 = vxor.u32 %v1595, 2147483648
    %v1598 = vmul.f32 %v1596, 1.442695
    %v1599 = vpow.pop %v1598
    %v1600 = vmul.f32 %v1597, 1.442695
    %v1601 = vpow.pop %v1600
    %v1602 = vadd.f32 %v1599, 1.0
    %v1603 = vadd.f32 %v1601, 1.0
    %v1604 = vrcp.pop %v1602
    %v1605 = vmul.f32 %v1602, %v1604
    %v1606 = vsub.f32 1.0, %v1605
    %v1607 = vmul.f32 %v1604, %v1606
    %v1608 = vadd.f32 %v1604, %v1607
    %vm1609 = vweird.f32 %v1602
    %vm1610 = vweird.f32 %v1604
    %vm1611 = vmor %vm1609, %vm1610
    %v1612 = vsel %vm1611, %v1604, %v1608
    %v1613 = vand.u32 2147483647, %v1602
    %vm1614 = vcmp.eq.f32.partialorder %v1613, 8.507059e+37
    %v1615 = vand.u32 %v1602, 2147483648
    %v1616 = vor.u32 1.1754944e-38, %v1615
    %v1617 = vsel %vm1614, %v1616, %v1612
    %v1618 = vmul.f32 1.0, %v1617
    %v1619 = vrcp.pop %v1603
    %v1620 = vmul.f32 %v1603, %v1619
    %v1621 = vsub.f32 1.0, %v1620
    %v1622 = vmul.f32 %v1619, %v1621
    %v1623 = vadd.f32 %v1619, %v1622
    %vm1624 = vweird.f32 %v1603
    %vm1625 = vweird.f32 %v1619
    %vm1626 = vmor %vm1624, %vm1625
    %v1627 = vsel %vm1626, %v1619, %v1623
    %v1628 = vand.u32 2147483647, %v1603
    %vm1629 = vcmp.eq.f32.partialorder %v1628, 8.507059e+37
    %v1630 = vand.u32 %v1603, 2147483648
    %v1631 = vor.u32 1.1754944e-38, %v1630
    %v1632 = vsel %vm1629, %v1631, %v1627
    %v1633 = vmul.f32 1.0, %v1632
    %v1635 = vrot.slane %v1546, 2
    %v1637 = vmul.f32 %v1575, %v1635
    %v1638 = vmul.f32 %v1590, %v1635
    %v1639 = vadd.f32 %v581, %v1637
    %v1640 = vadd.f32 %v584, %v1638
    %v1641 = vtanh.pop %v1639
    %v1642 = vtanh.pop %v1640
    %v1643 = vsub.f32 1.0, %v1618
    %v1644 = vsub.f32 1.0, %v1633
    %v1645 = vmul.f32 %v1643, %v1641
    %v1646 = vmul.f32 %v1644, %v1642
    %v1648 = vrot.slane %v1303, 2
    %v1650 = vmul.f32 %v1618, %v1648
    %v1651 = vmul.f32 %v1633, %v1648
    %v1652 = vadd.f32 %v1645, %v1650
    %v1653 = vadd.f32 %v1646, %v1651
    %v1654 = vsel %vm1487, 1, 0
    %1655 = vset.pattern.permute.xlu0 0
    %1656 = vperm.xlu0 %1655, %v1654
    %v1657 = vpop.permute.xlu0 %1656
    %vm1658 = vcmp.eq.s32.totalorder %v1657, 1
    %v1661 = vrot.slane %v1652, 6
    %v1662 = vrot.slane %v1653, 6
    %v1663 = vsel %vm279, %v1661, %v1662
    %v1665 = vsel %vm1658, %v1663, %v1303
    %v1666 = vsel %vm1658, %v1663, 0.0
    %v1667 = vmax.f32 %v1305, %v1666
    %vm1668 = vcmp.gt.s32.totalorder %v214, 3
    %1669 = vmatpush.msra.mxu0 %v634
    %1670 = vmatpush.msra.mxu0 %v631
    %1671 = vmatpush.msra.mxu0 %v628
    %1672 = vmatpush.msra.mxu0 %v625
    %1673 = vmatpush.msra.mxu0 %v622
    %1674 = vmatpush.msra.mxu0 %v619
    %1675 = vmatpush.msra.mxu0 %v616
    %1676 = vmatpush.msra.mxu0 %v613
    %1677 = vmatpush.msra.mxu0 %v610
    %1678 = vmatpush.msra.mxu0 %v607
    %1679 = vmatpush.msra.mxu0 %v604
    %1680 = vmatpush.msra.mxu0 %v601
    %1681 = vmatpush.msra.mxu0 %v598
    %1682 = vmatpush.msra.mxu0 %v595
    %1683 = vmatpush.msra.mxu0 %v592
    %1684 = vmatpush.msra.mxu0 %v589
    %1685 = vmatmul.f32.gmra.mxu0 %v1484
    %v1686 = vpop.f32.mrf.mxu0
    %v1687 = vadd.f32 %v691, %v1686
    %1688 = vdwg.mxu0
    %1689 = vmatpush.msra.mxu0 %v635
    %1690 = vmatpush.msra.mxu0 %v632
    %1691 = vmatpush.msra.mxu0 %v629
    %1692 = vmatpush.msra.mxu0 %v626
    %1693 = vmatpush.msra.mxu0 %v623
    %1694 = vmatpush.msra.mxu0 %v620
    %1695 = vmatpush.msra.mxu0 %v617
    %1696 = vmatpush.msra.mxu0 %v614
    %1697 = vmatpush.msra.mxu0 %v611
    %1698 = vmatpush.msra.mxu0 %v608
    %1699 = vmatpush.msra.mxu0 %v605
    %1700 = vmatpush.msra.mxu0 %v602
    %1701 = vmatpush.msra.mxu0 %v599
    %1702 = vmatpush.msra.mxu0 %v596
    %1703 = vmatpush.msra.mxu0 %v593
    %1704 = vmatpush.msra.mxu0 %v590
    %1705 = vmatmul.f32.gmra.mxu0 %v1484
    %v1706 = vpop.f32.mrf.mxu0
    %v1707 = vadd.f32 %v692, %v1706
    %1708 = vdwg.mxu0
    %1709 = vmatpush.msra.mxu0 %v636
    %1710 = vmatpush.msra.mxu0 %v633
    %1711 = vmatpush.msra.mxu0 %v630
    %1712 = vmatpush.msra.mxu0 %v627
    %1713 = vmatpush.msra.mxu0 %v624
    %1714 = vmatpush.msra.mxu0 %v621
    %1715 = vmatpush.msra.mxu0 %v618
    %1716 = vmatpush.msra.mxu0 %v615
    %1717 = vmatpush.msra.mxu0 %v612
    %1718 = vmatpush.msra.mxu0 %v609
    %1719 = vmatpush.msra.mxu0 %v606
    %1720 = vmatpush.msra.mxu0 %v603
    %1721 = vmatpush.msra.mxu0 %v600
    %1722 = vmatpush.msra.mxu0 %v597
    %1723 = vmatpush.msra.mxu0 %v594
    %1724 = vmatpush.msra.mxu0 %v591
    %1725 = vmatmul.f32.gmra.mxu0 %v1484
    %v1726 = vpop.f32.mrf.mxu0
    %v1727 = vadd.f32 %v693, %v1726
    %1728 = vdwg.mxu0
    %v1730 = vrot.slane %v1687, 6
    %v1732 = vadd.f32 %v381, %v1730
    %v1733 = vxor.u32 %v1732, 2147483648
    %v1734 = vmul.f32 %v1733, 1.442695
    %v1735 = vpow.pop %v1734
    %v1736 = vadd.f32 %v1735, 1.0
    %v1737 = vrcp.pop %v1736
    %v1738 = vmul.f32 %v1736, %v1737
    %v1739 = vsub.f32 1.0, %v1738
    %v1740 = vmul.f32 %v1737, %v1739
    %v1741 = vadd.f32 %v1737, %v1740
    %vm1742 = vweird.f32 %v1736
    %vm1743 = vweird.f32 %v1737
    %vm1744 = vmor %vm1742, %vm1743
    %v1745 = vsel %vm1744, %v1737, %v1741
    %v1746 = vand.u32 2147483647, %v1736
    %vm1747 = vcmp.eq.f32.partialorder %v1746, 8.507059e+37
    %v1748 = vand.u32 %v1736, 2147483648
    %v1749 = vor.u32 1.1754944e-38, %v1748
    %v1750 = vsel %vm1747, %v1749, %v1745
    %v1751 = vmul.f32 1.0, %v1750
    %v1753 = vrot.slane %v1707, 6
    %v1755 = vadd.f32 %v416, %v1753
    %v1756 = vxor.u32 %v1755, 2147483648
    %v1757 = vmul.f32 %v1756, 1.442695
    %v1758 = vpow.pop %v1757
    %v1759 = vadd.f32 %v1758, 1.0
    %v1760 = vrcp.pop %v1759
    %v1761 = vmul.f32 %v1759, %v1760
    %v1762 = vsub.f32 1.0, %v1761
    %v1763 = vmul.f32 %v1760, %v1762
    %v1764 = vadd.f32 %v1760, %v1763
    %vm1765 = vweird.f32 %v1759
    %vm1766 = vweird.f32 %v1760
    %vm1767 = vmor %vm1765, %vm1766
    %v1768 = vsel %vm1767, %v1760, %v1764
    %v1769 = vand.u32 2147483647, %v1759
    %vm1770 = vcmp.eq.f32.partialorder %v1769, 8.507059e+37
    %v1771 = vand.u32 %v1759, 2147483648
    %v1772 = vor.u32 1.1754944e-38, %v1771
    %v1773 = vsel %vm1770, %v1772, %v1768
    %v1774 = vmul.f32 1.0, %v1773
    %v1776 = vrot.slane %v1727, 6
    %v1778 = vmul.f32 %v1751, %v1776
    %v1779 = vadd.f32 %v451, %v1778
    %v1780 = vtanh.pop %v1779
    %v1781 = vsub.f32 1.0, %v1774
    %v1782 = vmul.f32 %v1781, %v1780
    %v1784 = vrot.slane %v1484, 6
    %v1786 = vmul.f32 %v1774, %v1784
    %v1787 = vadd.f32 %v1782, %v1786
    %v1788 = vsel %vm1668, 1, 0
    %1789 = vset.pattern.permute.xlu0 0
    %1790 = vperm.xlu0 %1789, %v1788
    %v1791 = vpop.permute.xlu0 %1790
    %vm1792 = vcmp.eq.s32.totalorder %v1791, 1
    %v1794 = vrot.slane %v1787, 2
    %v1796 = vsel %vm1792, %v1794, %v1484
    %v1797 = vsel %vm1792, %v1794, 0.0
    %v1798 = vmax.f32 %v1486, %v1797
    %vm1799 = vcmp.gt.s32.totalorder %v214, 4
    %1800 = vmatpush.msra.mxu0 %v684
    %1801 = vmatpush.msra.mxu0 %v681
    %1802 = vmatpush.msra.mxu0 %v678
    %1803 = vmatpush.msra.mxu0 %v675
    %1804 = vmatpush.msra.mxu0 %v672
    %1805 = vmatpush.msra.mxu0 %v669
    %1806 = vmatpush.msra.mxu0 %v666
    %1807 = vmatpush.msra.mxu0 %v663
    %1808 = vmatpush.msra.mxu0 %v660
    %1809 = vmatpush.msra.mxu0 %v657
    %1810 = vmatpush.msra.mxu0 %v654
    %1811 = vmatpush.msra.mxu0 %v651
    %1812 = vmatpush.msra.mxu0 %v648
    %1813 = vmatpush.msra.mxu0 %v645
    %1814 = vmatpush.msra.mxu0 %v642
    %1815 = vmatpush.msra.mxu0 %v639
    %1816 = vmatmul.f32.gmra.mxu0 %v1665
    %v1817 = vpop.f32.mrf.mxu0
    %v1818 = vadd.f32 %v812, %v1817
    %1819 = vdwg.mxu0
    %1820 = vmatpush.msra.mxu0 %v685
    %1821 = vmatpush.msra.mxu0 %v682
    %1822 = vmatpush.msra.mxu0 %v679
    %1823 = vmatpush.msra.mxu0 %v676
    %1824 = vmatpush.msra.mxu0 %v673
    %1825 = vmatpush.msra.mxu0 %v670
    %1826 = vmatpush.msra.mxu0 %v667
    %1827 = vmatpush.msra.mxu0 %v664
    %1828 = vmatpush.msra.mxu0 %v661
    %1829 = vmatpush.msra.mxu0 %v658
    %1830 = vmatpush.msra.mxu0 %v655
    %1831 = vmatpush.msra.mxu0 %v652
    %1832 = vmatpush.msra.mxu0 %v649
    %1833 = vmatpush.msra.mxu0 %v646
    %1834 = vmatpush.msra.mxu0 %v643
    %1835 = vmatpush.msra.mxu0 %v640
    %1836 = vmatmul.f32.gmra.mxu0 %v1665
    %v1837 = vpop.f32.mrf.mxu0
    %v1838 = vadd.f32 %v813, %v1837
    %1839 = vdwg.mxu0
    %1840 = vmatpush.msra.mxu0 %v686
    %1841 = vmatpush.msra.mxu0 %v683
    %1842 = vmatpush.msra.mxu0 %v680
    %1843 = vmatpush.msra.mxu0 %v677
    %1844 = vmatpush.msra.mxu0 %v674
    %1845 = vmatpush.msra.mxu0 %v671
    %1846 = vmatpush.msra.mxu0 %v668
    %1847 = vmatpush.msra.mxu0 %v665
    %1848 = vmatpush.msra.mxu0 %v662
    %1849 = vmatpush.msra.mxu0 %v659
    %1850 = vmatpush.msra.mxu0 %v656
    %1851 = vmatpush.msra.mxu0 %v653
    %1852 = vmatpush.msra.mxu0 %v650
    %1853 = vmatpush.msra.mxu0 %v647
    %1854 = vmatpush.msra.mxu0 %v644
    %1855 = vmatpush.msra.mxu0 %v641
    %1856 = vmatmul.f32.gmra.mxu0 %v1665
    %v1857 = vpop.f32.mrf.mxu0
    %v1858 = vadd.f32 %v814, %v1857
    %1859 = vdwg.mxu0
    %v1860 = vadd.f32 %v511, %v1818
    %v1861 = vxor.u32 %v1860, 2147483648
    %v1862 = vmul.f32 %v1861, 1.442695
    %v1863 = vpow.pop %v1862
    %v1864 = vadd.f32 %v1863, 1.0
    %v1865 = vrcp.pop %v1864
    %v1866 = vmul.f32 %v1864, %v1865
    %v1867 = vsub.f32 1.0, %v1866
    %v1868 = vmul.f32 %v1865, %v1867
    %v1869 = vadd.f32 %v1865, %v1868
    %vm1870 = vweird.f32 %v1864
    %vm1871 = vweird.f32 %v1865
    %vm1872 = vmor %vm1870, %vm1871
    %v1873 = vsel %vm1872, %v1865, %v1869
    %v1874 = vand.u32 2147483647, %v1864
    %vm1875 = vcmp.eq.f32.partialorder %v1874, 8.507059e+37
    %v1876 = vand.u32 %v1864, 2147483648
    %v1877 = vor.u32 1.1754944e-38, %v1876
    %v1878 = vsel %vm1875, %v1877, %v1873
    %v1879 = vmul.f32 1.0, %v1878
    %v1880 = vadd.f32 %v546, %v1838
    %v1881 = vxor.u32 %v1880, 2147483648
    %v1882 = vmul.f32 %v1881, 1.442695
    %v1883 = vpow.pop %v1882
    %v1884 = vadd.f32 %v1883, 1.0
    %v1885 = vrcp.pop %v1884
    %v1886 = vmul.f32 %v1884, %v1885
    %v1887 = vsub.f32 1.0, %v1886
    %v1888 = vmul.f32 %v1885, %v1887
    %v1889 = vadd.f32 %v1885, %v1888
    %vm1890 = vweird.f32 %v1884
    %vm1891 = vweird.f32 %v1885
    %vm1892 = vmor %vm1890, %vm1891
    %v1893 = vsel %vm1892, %v1885, %v1889
    %v1894 = vand.u32 2147483647, %v1884
    %vm1895 = vcmp.eq.f32.partialorder %v1894, 8.507059e+37
    %v1896 = vand.u32 %v1884, 2147483648
    %v1897 = vor.u32 1.1754944e-38, %v1896
    %v1898 = vsel %vm1895, %v1897, %v1893
    %v1899 = vmul.f32 1.0, %v1898
    %v1900 = vmul.f32 %v1879, %v1858
    %v1901 = vadd.f32 %v581, %v1900
    %v1902 = vtanh.pop %v1901
    %v1903 = vsub.f32 1.0, %v1899
    %v1904 = vmul.f32 %v1903, %v1902
    %v1905 = vmul.f32 %v1899, %v1665
    %v1906 = vadd.f32 %v1904, %v1905
    %v1907 = vsel %vm1799, 1, 0
    %1908 = vset.pattern.permute.xlu0 0
    %1909 = vperm.xlu0 %1908, %v1907
    %v1910 = vpop.permute.xlu0 %1909
    %vm1911 = vcmp.eq.s32.totalorder %v1910, 1
    %v1912 = vsel %vm1911, %v1906, %v1665
    %v1913 = vsel %vm1911, %v1906, 0.0
    %v1914 = vmax.f32 %v1667, %v1913
    %1915 = vmatpush.msra.mxu0 %v634
    %1916 = vmatpush.msra.mxu0 %v631
    %1917 = vmatpush.msra.mxu0 %v628
    %1918 = vmatpush.msra.mxu0 %v625
    %1919 = vmatpush.msra.mxu0 %v622
    %1920 = vmatpush.msra.mxu0 %v619
    %1921 = vmatpush.msra.mxu0 %v616
    %1922 = vmatpush.msra.mxu0 %v613
    %1923 = vmatpush.msra.mxu0 %v610
    %1924 = vmatpush.msra.mxu0 %v607
    %1925 = vmatpush.msra.mxu0 %v604
    %1926 = vmatpush.msra.mxu0 %v601
    %1927 = vmatpush.msra.mxu0 %v598
    %1928 = vmatpush.msra.mxu0 %v595
    %1929 = vmatpush.msra.mxu0 %v592
    %1930 = vmatpush.msra.mxu0 %v589
    %1931 = vmatmul.f32.gmra.mxu0 %v1796
    %v1932 = vpop.f32.mrf.mxu0
    %v1933 = vadd.f32 %v691, %v1932
    %1934 = vdwg.mxu0
    %1935 = vmatpush.msra.mxu0 %v635
    %1936 = vmatpush.msra.mxu0 %v632
    %1937 = vmatpush.msra.mxu0 %v629
    %1938 = vmatpush.msra.mxu0 %v626
    %1939 = vmatpush.msra.mxu0 %v623
    %1940 = vmatpush.msra.mxu0 %v620
    %1941 = vmatpush.msra.mxu0 %v617
    %1942 = vmatpush.msra.mxu0 %v614
    %1943 = vmatpush.msra.mxu0 %v611
    %1944 = vmatpush.msra.mxu0 %v608
    %1945 = vmatpush.msra.mxu0 %v605
    %1946 = vmatpush.msra.mxu0 %v602
    %1947 = vmatpush.msra.mxu0 %v599
    %1948 = vmatpush.msra.mxu0 %v596
    %1949 = vmatpush.msra.mxu0 %v593
    %1950 = vmatpush.msra.mxu0 %v590
    %1951 = vmatmul.f32.gmra.mxu0 %v1796
    %v1952 = vpop.f32.mrf.mxu0
    %v1953 = vadd.f32 %v692, %v1952
    %1954 = vdwg.mxu0
    %1955 = vmatpush.msra.mxu0 %v636
    %1956 = vmatpush.msra.mxu0 %v633
    %1957 = vmatpush.msra.mxu0 %v630
    %1958 = vmatpush.msra.mxu0 %v627
    %1959 = vmatpush.msra.mxu0 %v624
    %1960 = vmatpush.msra.mxu0 %v621
    %1961 = vmatpush.msra.mxu0 %v618
    %1962 = vmatpush.msra.mxu0 %v615
    %1963 = vmatpush.msra.mxu0 %v612
    %1964 = vmatpush.msra.mxu0 %v609
    %1965 = vmatpush.msra.mxu0 %v606
    %1966 = vmatpush.msra.mxu0 %v603
    %1967 = vmatpush.msra.mxu0 %v600
    %1968 = vmatpush.msra.mxu0 %v597
    %1969 = vmatpush.msra.mxu0 %v594
    %1970 = vmatpush.msra.mxu0 %v591
    %1971 = vmatmul.f32.gmra.mxu0 %v1796
    %v1972 = vpop.f32.mrf.mxu0
    %v1973 = vadd.f32 %v693, %v1972
    %1974 = vdwg.mxu0
    %v1975 = vadd.f32 %v384, %v1933
    %v1976 = vxor.u32 %v1975, 2147483648
    %v1977 = vmul.f32 %v1976, 1.442695
    %v1978 = vpow.pop %v1977
    %v1979 = vadd.f32 %v1978, 1.0
    %v1980 = vrcp.pop %v1979
    %v1981 = vmul.f32 %v1979, %v1980
    %v1982 = vsub.f32 1.0, %v1981
    %v1983 = vmul.f32 %v1980, %v1982
    %v1984 = vadd.f32 %v1980, %v1983
    %vm1985 = vweird.f32 %v1979
    %vm1986 = vweird.f32 %v1980
    %vm1987 = vmor %vm1985, %vm1986
    %v1988 = vsel %vm1987, %v1980, %v1984
    %v1989 = vand.u32 2147483647, %v1979
    %vm1990 = vcmp.eq.f32.partialorder %v1989, 8.507059e+37
    %v1991 = vand.u32 %v1979, 2147483648
    %v1992 = vor.u32 1.1754944e-38, %v1991
    %v1993 = vsel %vm1990, %v1992, %v1988
    %v1994 = vmul.f32 1.0, %v1993
    %v1995 = vadd.f32 %v419, %v1953
    %v1996 = vxor.u32 %v1995, 2147483648
    %v1997 = vmul.f32 %v1996, 1.442695
    %v1998 = vpow.pop %v1997
    %v1999 = vadd.f32 %v1998, 1.0
    %v2000 = vrcp.pop %v1999
    %v2001 = vmul.f32 %v1999, %v2000
    %v2002 = vsub.f32 1.0, %v2001
    %v2003 = vmul.f32 %v2000, %v2002
    %v2004 = vadd.f32 %v2000, %v2003
    %vm2005 = vweird.f32 %v1999
    %vm2006 = vweird.f32 %v2000
    %vm2007 = vmor %vm2005, %vm2006
    %v2008 = vsel %vm2007, %v2000, %v2004
    %v2009 = vand.u32 2147483647, %v1999
    %vm2010 = vcmp.eq.f32.partialorder %v2009, 8.507059e+37
    %v2011 = vand.u32 %v1999, 2147483648
    %v2012 = vor.u32 1.1754944e-38, %v2011
    %v2013 = vsel %vm2010, %v2012, %v2008
    %v2014 = vmul.f32 1.0, %v2013
    %v2015 = vmul.f32 %v1994, %v1973
    %v2016 = vadd.f32 %v454, %v2015
    %v2017 = vtanh.pop %v2016
    %v2018 = vsub.f32 1.0, %v2014
    %v2019 = vmul.f32 %v2018, %v2017
    %v2020 = vmul.f32 %v2014, %v1796
    %v2021 = vadd.f32 %v2019, %v2020
    %v2022 = vsel %vm1911, %v2021, %v1796
    %v2023 = vsel %vm1911, %v2021, 0.0
    %v2024 = vmax.f32 %v1798, %v2023
    %2025 = vmatpush.msra.mxu0 %v684
    %2026 = vmatpush.msra.mxu0 %v681
    %2027 = vmatpush.msra.mxu0 %v678
    %2028 = vmatpush.msra.mxu0 %v675
    %2029 = vmatpush.msra.mxu0 %v672
    %2030 = vmatpush.msra.mxu0 %v669
    %2031 = vmatpush.msra.mxu0 %v666
    %2032 = vmatpush.msra.mxu0 %v663
    %2033 = vmatpush.msra.mxu0 %v660
    %2034 = vmatpush.msra.mxu0 %v657
    %2035 = vmatpush.msra.mxu0 %v654
    %2036 = vmatpush.msra.mxu0 %v651
    %2037 = vmatpush.msra.mxu0 %v648
    %2038 = vmatpush.msra.mxu0 %v645
    %2039 = vmatpush.msra.mxu0 %v642
    %2040 = vmatpush.msra.mxu0 %v639
    %2041 = vmatmul.f32.gmra.mxu0 %v1912
    %v2042 = vpop.f32.mrf.mxu0
    %v2043 = vadd.f32 %v812, %v2042
    %2044 = vdwg.mxu0
    %2045 = vmatpush.msra.mxu0 %v685
    %2046 = vmatpush.msra.mxu0 %v682
    %2047 = vmatpush.msra.mxu0 %v679
    %2048 = vmatpush.msra.mxu0 %v676
    %2049 = vmatpush.msra.mxu0 %v673
    %2050 = vmatpush.msra.mxu0 %v670
    %2051 = vmatpush.msra.mxu0 %v667
    %2052 = vmatpush.msra.mxu0 %v664
    %2053 = vmatpush.msra.mxu0 %v661
    %2054 = vmatpush.msra.mxu0 %v658
    %2055 = vmatpush.msra.mxu0 %v655
    %2056 = vmatpush.msra.mxu0 %v652
    %2057 = vmatpush.msra.mxu0 %v649
    %2058 = vmatpush.msra.mxu0 %v646
    %2059 = vmatpush.msra.mxu0 %v643
    %2060 = vmatpush.msra.mxu0 %v640
    %2061 = vmatmul.f32.gmra.mxu0 %v1912
    %v2062 = vpop.f32.mrf.mxu0
    %v2063 = vadd.f32 %v813, %v2062
    %2064 = vdwg.mxu0
    %2065 = vmatpush.msra.mxu0 %v686
    %2066 = vmatpush.msra.mxu0 %v683
    %2067 = vmatpush.msra.mxu0 %v680
    %2068 = vmatpush.msra.mxu0 %v677
    %2069 = vmatpush.msra.mxu0 %v674
    %2070 = vmatpush.msra.mxu0 %v671
    %2071 = vmatpush.msra.mxu0 %v668
    %2072 = vmatpush.msra.mxu0 %v665
    %2073 = vmatpush.msra.mxu0 %v662
    %2074 = vmatpush.msra.mxu0 %v659
    %2075 = vmatpush.msra.mxu0 %v656
    %2076 = vmatpush.msra.mxu0 %v653
    %2077 = vmatpush.msra.mxu0 %v650
    %2078 = vmatpush.msra.mxu0 %v647
    %2079 = vmatpush.msra.mxu0 %v644
    %2080 = vmatpush.msra.mxu0 %v641
    %2081 = vmatmul.f32.gmra.mxu0 %v1912
    %v2082 = vpop.f32.mrf.mxu0
    %v2083 = vadd.f32 %v814, %v2082
    %2084 = vdwg.mxu0
    %v2086 = vrot.slane %v2043, 6
    %v2088 = vadd.f32 %v508, %v2086
    %v2089 = vxor.u32 %v2088, 2147483648
    %v2090 = vmul.f32 %v2089, 1.442695
    %v2091 = vpow.pop %v2090
    %v2092 = vadd.f32 %v2091, 1.0
    %v2093 = vrcp.pop %v2092
    %v2094 = vmul.f32 %v2092, %v2093
    %v2095 = vsub.f32 1.0, %v2094
    %v2096 = vmul.f32 %v2093, %v2095
    %v2097 = vadd.f32 %v2093, %v2096
    %vm2098 = vweird.f32 %v2092
    %vm2099 = vweird.f32 %v2093
    %vm2100 = vmor %vm2098, %vm2099
    %v2101 = vsel %vm2100, %v2093, %v2097
    %v2102 = vand.u32 2147483647, %v2092
    %vm2103 = vcmp.eq.f32.partialorder %v2102, 8.507059e+37
    %v2104 = vand.u32 %v2092, 2147483648
    %v2105 = vor.u32 1.1754944e-38, %v2104
    %v2106 = vsel %vm2103, %v2105, %v2101
    %v2107 = vmul.f32 1.0, %v2106
    %v2109 = vrot.slane %v2063, 6
    %v2111 = vadd.f32 %v543, %v2109
    %v2112 = vxor.u32 %v2111, 2147483648
    %v2113 = vmul.f32 %v2112, 1.442695
    %v2114 = vpow.pop %v2113
    %v2115 = vadd.f32 %v2114, 1.0
    %v2116 = vrcp.pop %v2115
    %v2117 = vmul.f32 %v2115, %v2116
    %v2118 = vsub.f32 1.0, %v2117
    %v2119 = vmul.f32 %v2116, %v2118
    %v2120 = vadd.f32 %v2116, %v2119
    %vm2121 = vweird.f32 %v2115
    %vm2122 = vweird.f32 %v2116
    %vm2123 = vmor %vm2121, %vm2122
    %v2124 = vsel %vm2123, %v2116, %v2120
    %v2125 = vand.u32 2147483647, %v2115
    %vm2126 = vcmp.eq.f32.partialorder %v2125, 8.507059e+37
    %v2127 = vand.u32 %v2115, 2147483648
    %v2128 = vor.u32 1.1754944e-38, %v2127
    %v2129 = vsel %vm2126, %v2128, %v2124
    %v2130 = vmul.f32 1.0, %v2129
    %v2132 = vrot.slane %v2083, 6
    %v2134 = vmul.f32 %v2107, %v2132
    %v2135 = vadd.f32 %v578, %v2134
    %v2136 = vtanh.pop %v2135
    %v2137 = vsub.f32 1.0, %v2130
    %v2138 = vmul.f32 %v2137, %v2136
    %v2140 = vrot.slane %v1912, 6
    %v2142 = vmul.f32 %v2130, %v2140
    %v2143 = vadd.f32 %v2138, %v2142
    %v2145 = vrot.slane %v2143, 2
    %v2147 = vsel %vm1792, %v2145, %v1912
    %v2148 = vsel %vm1792, %v2145, 0.0
    %v2149 = vmax.f32 %v1914, %v2148
    %2150 = vmatpush.msra.mxu0 %v634
    %2151 = vmatpush.msra.mxu0 %v631
    %2152 = vmatpush.msra.mxu0 %v628
    %2153 = vmatpush.msra.mxu0 %v625
    %2154 = vmatpush.msra.mxu0 %v622
    %2155 = vmatpush.msra.mxu0 %v619
    %2156 = vmatpush.msra.mxu0 %v616
    %2157 = vmatpush.msra.mxu0 %v613
    %2158 = vmatpush.msra.mxu0 %v610
    %2159 = vmatpush.msra.mxu0 %v607
    %2160 = vmatpush.msra.mxu0 %v604
    %2161 = vmatpush.msra.mxu0 %v601
    %2162 = vmatpush.msra.mxu0 %v598
    %2163 = vmatpush.msra.mxu0 %v595
    %2164 = vmatpush.msra.mxu0 %v592
    %2165 = vmatpush.msra.mxu0 %v589
    %2166 = vmatmul.f32.gmra.mxu0 %v2022
    %v2167 = vpop.f32.mrf.mxu0
    %v2168 = vadd.f32 %v691, %v2167
    %2169 = vdwg.mxu0
    %2170 = vmatpush.msra.mxu0 %v635
    %2171 = vmatpush.msra.mxu0 %v632
    %2172 = vmatpush.msra.mxu0 %v629
    %2173 = vmatpush.msra.mxu0 %v626
    %2174 = vmatpush.msra.mxu0 %v623
    %2175 = vmatpush.msra.mxu0 %v620
    %2176 = vmatpush.msra.mxu0 %v617
    %2177 = vmatpush.msra.mxu0 %v614
    %2178 = vmatpush.msra.mxu0 %v611
    %2179 = vmatpush.msra.mxu0 %v608
    %2180 = vmatpush.msra.mxu0 %v605
    %2181 = vmatpush.msra.mxu0 %v602
    %2182 = vmatpush.msra.mxu0 %v599
    %2183 = vmatpush.msra.mxu0 %v596
    %2184 = vmatpush.msra.mxu0 %v593
    %2185 = vmatpush.msra.mxu0 %v590
    %2186 = vmatmul.f32.gmra.mxu0 %v2022
    %v2187 = vpop.f32.mrf.mxu0
    %v2188 = vadd.f32 %v692, %v2187
    %2189 = vdwg.mxu0
    %2190 = vmatpush.msra.mxu0 %v636
    %2191 = vmatpush.msra.mxu0 %v633
    %2192 = vmatpush.msra.mxu0 %v630
    %2193 = vmatpush.msra.mxu0 %v627
    %2194 = vmatpush.msra.mxu0 %v624
    %2195 = vmatpush.msra.mxu0 %v621
    %2196 = vmatpush.msra.mxu0 %v618
    %2197 = vmatpush.msra.mxu0 %v615
    %2198 = vmatpush.msra.mxu0 %v612
    %2199 = vmatpush.msra.mxu0 %v609
    %2200 = vmatpush.msra.mxu0 %v606
    %2201 = vmatpush.msra.mxu0 %v603
    %2202 = vmatpush.msra.mxu0 %v600
    %2203 = vmatpush.msra.mxu0 %v597
    %2204 = vmatpush.msra.mxu0 %v594
    %2205 = vmatpush.msra.mxu0 %v591
    %2206 = vmatmul.f32.gmra.mxu0 %v2022
    %v2207 = vpop.f32.mrf.mxu0
    %v2208 = vadd.f32 %v693, %v2207
    %2209 = vdwg.mxu0
    %v2211 = vrot.slane %v2168, 2
    %v2213 = vadd.f32 %v384, %v2211
    %v2214 = vadd.f32 %v387, %v2211
    %v2215 = vxor.u32 %v2213, 2147483648
    %v2216 = vxor.u32 %v2214, 2147483648
    %v2217 = vmul.f32 %v2215, 1.442695
    %v2218 = vpow.pop %v2217
    %v2219 = vmul.f32 %v2216, 1.442695
    %v2220 = vpow.pop %v2219
    %v2221 = vadd.f32 %v2218, 1.0
    %v2222 = vadd.f32 %v2220, 1.0
    %v2223 = vrcp.pop %v2221
    %v2224 = vmul.f32 %v2221, %v2223
    %v2225 = vsub.f32 1.0, %v2224
    %v2226 = vmul.f32 %v2223, %v2225
    %v2227 = vadd.f32 %v2223, %v2226
    %vm2228 = vweird.f32 %v2221
    %vm2229 = vweird.f32 %v2223
    %vm2230 = vmor %vm2228, %vm2229
    %v2231 = vsel %vm2230, %v2223, %v2227
    %v2232 = vand.u32 2147483647, %v2221
    %vm2233 = vcmp.eq.f32.partialorder %v2232, 8.507059e+37
    %v2234 = vand.u32 %v2221, 2147483648
    %v2235 = vor.u32 1.1754944e-38, %v2234
    %v2236 = vsel %vm2233, %v2235, %v2231
    %v2237 = vmul.f32 1.0, %v2236
    %v2238 = vrcp.pop %v2222
    %v2239 = vmul.f32 %v2222, %v2238
    %v2240 = vsub.f32 1.0, %v2239
    %v2241 = vmul.f32 %v2238, %v2240
    %v2242 = vadd.f32 %v2238, %v2241
    %vm2243 = vweird.f32 %v2222
    %vm2244 = vweird.f32 %v2238
    %vm2245 = vmor %vm2243, %vm2244
    %v2246 = vsel %vm2245, %v2238, %v2242
    %v2247 = vand.u32 2147483647, %v2222
    %vm2248 = vcmp.eq.f32.partialorder %v2247, 8.507059e+37
    %v2249 = vand.u32 %v2222, 2147483648
    %v2250 = vor.u32 1.1754944e-38, %v2249
    %v2251 = vsel %vm2248, %v2250, %v2246
    %v2252 = vmul.f32 1.0, %v2251
    %v2254 = vrot.slane %v2188, 2
    %v2256 = vadd.f32 %v419, %v2254
    %v2257 = vadd.f32 %v422, %v2254
    %v2258 = vxor.u32 %v2256, 2147483648
    %v2259 = vxor.u32 %v2257, 2147483648
    %v2260 = vmul.f32 %v2258, 1.442695
    %v2261 = vpow.pop %v2260
    %v2262 = vmul.f32 %v2259, 1.442695
    %v2263 = vpow.pop %v2262
    %v2264 = vadd.f32 %v2261, 1.0
    %v2265 = vadd.f32 %v2263, 1.0
    %v2266 = vrcp.pop %v2264
    %v2267 = vmul.f32 %v2264, %v2266
    %v2268 = vsub.f32 1.0, %v2267
    %v2269 = vmul.f32 %v2266, %v2268
    %v2270 = vadd.f32 %v2266, %v2269
    %vm2271 = vweird.f32 %v2264
    %vm2272 = vweird.f32 %v2266
    %vm2273 = vmor %vm2271, %vm2272
    %v2274 = vsel %vm2273, %v2266, %v2270
    %v2275 = vand.u32 2147483647, %v2264
    %vm2276 = vcmp.eq.f32.partialorder %v2275, 8.507059e+37
    %v2277 = vand.u32 %v2264, 2147483648
    %v2278 = vor.u32 1.1754944e-38, %v2277
    %v2279 = vsel %vm2276, %v2278, %v2274
    %v2280 = vmul.f32 1.0, %v2279
    %v2281 = vrcp.pop %v2265
    %v2282 = vmul.f32 %v2265, %v2281
    %v2283 = vsub.f32 1.0, %v2282
    %v2284 = vmul.f32 %v2281, %v2283
    %v2285 = vadd.f32 %v2281, %v2284
    %vm2286 = vweird.f32 %v2265
    %vm2287 = vweird.f32 %v2281
    %vm2288 = vmor %vm2286, %vm2287
    %v2289 = vsel %vm2288, %v2281, %v2285
    %v2290 = vand.u32 2147483647, %v2265
    %vm2291 = vcmp.eq.f32.partialorder %v2290, 8.507059e+37
    %v2292 = vand.u32 %v2265, 2147483648
    %v2293 = vor.u32 1.1754944e-38, %v2292
    %v2294 = vsel %vm2291, %v2293, %v2289
    %v2295 = vmul.f32 1.0, %v2294
    %v2297 = vrot.slane %v2208, 2
    %v2299 = vmul.f32 %v2237, %v2297
    %v2300 = vmul.f32 %v2252, %v2297
    %v2301 = vadd.f32 %v454, %v2299
    %v2302 = vadd.f32 %v457, %v2300
    %v2303 = vtanh.pop %v2301
    %v2304 = vtanh.pop %v2302
    %v2305 = vsub.f32 1.0, %v2280
    %v2306 = vsub.f32 1.0, %v2295
    %v2307 = vmul.f32 %v2305, %v2303
    %v2308 = vmul.f32 %v2306, %v2304
    %v2310 = vrot.slane %v2022, 2
    %v2312 = vmul.f32 %v2280, %v2310
    %v2313 = vmul.f32 %v2295, %v2310
    %v2314 = vadd.f32 %v2307, %v2312
    %v2315 = vadd.f32 %v2308, %v2313
    %v2318 = vrot.slane %v2314, 6
    %v2319 = vrot.slane %v2315, 6
    %v2320 = vsel %vm279, %v2318, %v2319
    %v2322 = vsel %vm1658, %v2320, %v2022
    %v2323 = vsel %vm1658, %v2320, 0.0
    %v2324 = vmax.f32 %v2024, %v2323
    %2325 = vmatpush.msra.mxu0 %v684
    %2326 = vmatpush.msra.mxu0 %v681
    %2327 = vmatpush.msra.mxu0 %v678
    %2328 = vmatpush.msra.mxu0 %v675
    %2329 = vmatpush.msra.mxu0 %v672
    %2330 = vmatpush.msra.mxu0 %v669
    %2331 = vmatpush.msra.mxu0 %v666
    %2332 = vmatpush.msra.mxu0 %v663
    %2333 = vmatpush.msra.mxu0 %v660
    %2334 = vmatpush.msra.mxu0 %v657
    %2335 = vmatpush.msra.mxu0 %v654
    %2336 = vmatpush.msra.mxu0 %v651
    %2337 = vmatpush.msra.mxu0 %v648
    %2338 = vmatpush.msra.mxu0 %v645
    %2339 = vmatpush.msra.mxu0 %v642
    %2340 = vmatpush.msra.mxu0 %v639
    %2341 = vmatmul.f32.gmra.mxu0 %v2147
    %v2342 = vpop.f32.mrf.mxu0
    %v2343 = vadd.f32 %v812, %v2342
    %2344 = vdwg.mxu0
    %2345 = vmatpush.msra.mxu0 %v685
    %2346 = vmatpush.msra.mxu0 %v682
    %2347 = vmatpush.msra.mxu0 %v679
    %2348 = vmatpush.msra.mxu0 %v676
    %2349 = vmatpush.msra.mxu0 %v673
    %2350 = vmatpush.msra.mxu0 %v670
    %2351 = vmatpush.msra.mxu0 %v667
    %2352 = vmatpush.msra.mxu0 %v664
    %2353 = vmatpush.msra.mxu0 %v661
    %2354 = vmatpush.msra.mxu0 %v658
    %2355 = vmatpush.msra.mxu0 %v655
    %2356 = vmatpush.msra.mxu0 %v652
    %2357 = vmatpush.msra.mxu0 %v649
    %2358 = vmatpush.msra.mxu0 %v646
    %2359 = vmatpush.msra.mxu0 %v643
    %2360 = vmatpush.msra.mxu0 %v640
    %2361 = vmatmul.f32.gmra.mxu0 %v2147
    %v2362 = vpop.f32.mrf.mxu0
    %v2363 = vadd.f32 %v813, %v2362
    %2364 = vdwg.mxu0
    %2365 = vmatpush.msra.mxu0 %v686
    %2366 = vmatpush.msra.mxu0 %v683
    %2367 = vmatpush.msra.mxu0 %v680
    %2368 = vmatpush.msra.mxu0 %v677
    %2369 = vmatpush.msra.mxu0 %v674
    %2370 = vmatpush.msra.mxu0 %v671
    %2371 = vmatpush.msra.mxu0 %v668
    %2372 = vmatpush.msra.mxu0 %v665
    %2373 = vmatpush.msra.mxu0 %v662
    %2374 = vmatpush.msra.mxu0 %v659
    %2375 = vmatpush.msra.mxu0 %v656
    %2376 = vmatpush.msra.mxu0 %v653
    %2377 = vmatpush.msra.mxu0 %v650
    %2378 = vmatpush.msra.mxu0 %v647
    %2379 = vmatpush.msra.mxu0 %v644
    %2380 = vmatpush.msra.mxu0 %v641
    %2381 = vmatmul.f32.gmra.mxu0 %v2147
    %v2382 = vpop.f32.mrf.mxu0
    %v2383 = vadd.f32 %v814, %v2382
    %2384 = vdwg.mxu0
    %v2386 = vrot.slane %v2343, 4
    %v2388 = vadd.f32 %v505, %v2386
    %v2389 = vadd.f32 %v508, %v2386
    %v2390 = vxor.u32 %v2388, 2147483648
    %v2391 = vxor.u32 %v2389, 2147483648
    %v2392 = vmul.f32 %v2390, 1.442695
    %v2393 = vpow.pop %v2392
    %v2394 = vmul.f32 %v2391, 1.442695
    %v2395 = vpow.pop %v2394
    %v2396 = vadd.f32 %v2393, 1.0
    %v2397 = vadd.f32 %v2395, 1.0
    %v2398 = vrcp.pop %v2396
    %v2399 = vmul.f32 %v2396, %v2398
    %v2400 = vsub.f32 1.0, %v2399
    %v2401 = vmul.f32 %v2398, %v2400
    %v2402 = vadd.f32 %v2398, %v2401
    %vm2403 = vweird.f32 %v2396
    %vm2404 = vweird.f32 %v2398
    %vm2405 = vmor %vm2403, %vm2404
    %v2406 = vsel %vm2405, %v2398, %v2402
    %v2407 = vand.u32 2147483647, %v2396
    %vm2408 = vcmp.eq.f32.partialorder %v2407, 8.507059e+37
    %v2409 = vand.u32 %v2396, 2147483648
    %v2410 = vor.u32 1.1754944e-38, %v2409
    %v2411 = vsel %vm2408, %v2410, %v2406
    %v2412 = vmul.f32 1.0, %v2411
    %v2413 = vrcp.pop %v2397
    %v2414 = vmul.f32 %v2397, %v2413
    %v2415 = vsub.f32 1.0, %v2414
    %v2416 = vmul.f32 %v2413, %v2415
    %v2417 = vadd.f32 %v2413, %v2416
    %vm2418 = vweird.f32 %v2397
    %vm2419 = vweird.f32 %v2413
    %vm2420 = vmor %vm2418, %vm2419
    %v2421 = vsel %vm2420, %v2413, %v2417
    %v2422 = vand.u32 2147483647, %v2397
    %vm2423 = vcmp.eq.f32.partialorder %v2422, 8.507059e+37
    %v2424 = vand.u32 %v2397, 2147483648
    %v2425 = vor.u32 1.1754944e-38, %v2424
    %v2426 = vsel %vm2423, %v2425, %v2421
    %v2427 = vmul.f32 1.0, %v2426
    %v2429 = vrot.slane %v2363, 4
    %v2431 = vadd.f32 %v540, %v2429
    %v2432 = vadd.f32 %v543, %v2429
    %v2433 = vxor.u32 %v2431, 2147483648
    %v2434 = vxor.u32 %v2432, 2147483648
    %v2435 = vmul.f32 %v2433, 1.442695
    %v2436 = vpow.pop %v2435
    %v2437 = vmul.f32 %v2434, 1.442695
    %v2438 = vpow.pop %v2437
    %v2439 = vadd.f32 %v2436, 1.0
    %v2440 = vadd.f32 %v2438, 1.0
    %v2441 = vrcp.pop %v2439
    %v2442 = vmul.f32 %v2439, %v2441
    %v2443 = vsub.f32 1.0, %v2442
    %v2444 = vmul.f32 %v2441, %v2443
    %v2445 = vadd.f32 %v2441, %v2444
    %vm2446 = vweird.f32 %v2439
    %vm2447 = vweird.f32 %v2441
    %vm2448 = vmor %vm2446, %vm2447
    %v2449 = vsel %vm2448, %v2441, %v2445
    %v2450 = vand.u32 2147483647, %v2439
    %vm2451 = vcmp.eq.f32.partialorder %v2450, 8.507059e+37
    %v2452 = vand.u32 %v2439, 2147483648
    %v2453 = vor.u32 1.1754944e-38, %v2452
    %v2454 = vsel %vm2451, %v2453, %v2449
    %v2455 = vmul.f32 1.0, %v2454
    %v2456 = vrcp.pop %v2440
    %v2457 = vmul.f32 %v2440, %v2456
    %v2458 = vsub.f32 1.0, %v2457
    %v2459 = vmul.f32 %v2456, %v2458
    %v2460 = vadd.f32 %v2456, %v2459
    %vm2461 = vweird.f32 %v2440
    %vm2462 = vweird.f32 %v2456
    %vm2463 = vmor %vm2461, %vm2462
    %v2464 = vsel %vm2463, %v2456, %v2460
    %v2465 = vand.u32 2147483647, %v2440
    %vm2466 = vcmp.eq.f32.partialorder %v2465, 8.507059e+37
    %v2467 = vand.u32 %v2440, 2147483648
    %v2468 = vor.u32 1.1754944e-38, %v2467
    %v2469 = vsel %vm2466, %v2468, %v2464
    %v2470 = vmul.f32 1.0, %v2469
    %v2472 = vrot.slane %v2383, 4
    %v2474 = vmul.f32 %v2412, %v2472
    %v2475 = vmul.f32 %v2427, %v2472
    %v2476 = vadd.f32 %v575, %v2474
    %v2477 = vadd.f32 %v578, %v2475
    %v2478 = vtanh.pop %v2476
    %v2479 = vtanh.pop %v2477
    %v2480 = vsub.f32 1.0, %v2455
    %v2481 = vsub.f32 1.0, %v2470
    %v2482 = vmul.f32 %v2480, %v2478
    %v2483 = vmul.f32 %v2481, %v2479
    %v2485 = vrot.slane %v2147, 4
    %v2487 = vmul.f32 %v2455, %v2485
    %v2488 = vmul.f32 %v2470, %v2485
    %v2489 = vadd.f32 %v2482, %v2487
    %v2490 = vadd.f32 %v2483, %v2488
    %v2493 = vrot.slane %v2489, 4
    %v2494 = vrot.slane %v2490, 4
    %v2495 = vsel %vm1298, %v2493, %v2494
    %v2497 = vsel %vm1477, %v2495, %v2147
    %v2498 = vsel %vm1477, %v2495, 0.0
    %v2499 = vmax.f32 %v2149, %v2498
    %2500 = vmatpush.msra.mxu0 %v634
    %2501 = vmatpush.msra.mxu0 %v631
    %2502 = vmatpush.msra.mxu0 %v628
    %2503 = vmatpush.msra.mxu0 %v625
    %2504 = vmatpush.msra.mxu0 %v622
    %2505 = vmatpush.msra.mxu0 %v619
    %2506 = vmatpush.msra.mxu0 %v616
    %2507 = vmatpush.msra.mxu0 %v613
    %2508 = vmatpush.msra.mxu0 %v610
    %2509 = vmatpush.msra.mxu0 %v607
    %2510 = vmatpush.msra.mxu0 %v604
    %2511 = vmatpush.msra.mxu0 %v601
    %2512 = vmatpush.msra.mxu0 %v598
    %2513 = vmatpush.msra.mxu0 %v595
    %2514 = vmatpush.msra.mxu0 %v592
    %2515 = vmatpush.msra.mxu0 %v589
    %2516 = vmatmul.f32.gmra.mxu0 %v2322
    %v2517 = vpop.f32.mrf.mxu0
    %v2518 = vadd.f32 %v691, %v2517
    %2519 = vdwg.mxu0
    %2520 = vmatpush.msra.mxu0 %v635
    %2521 = vmatpush.msra.mxu0 %v632
    %2522 = vmatpush.msra.mxu0 %v629
    %2523 = vmatpush.msra.mxu0 %v626
    %2524 = vmatpush.msra.mxu0 %v623
    %2525 = vmatpush.msra.mxu0 %v620
    %2526 = vmatpush.msra.mxu0 %v617
    %2527 = vmatpush.msra.mxu0 %v614
    %2528 = vmatpush.msra.mxu0 %v611
    %2529 = vmatpush.msra.mxu0 %v608
    %2530 = vmatpush.msra.mxu0 %v605
    %2531 = vmatpush.msra.mxu0 %v602
    %2532 = vmatpush.msra.mxu0 %v599
    %2533 = vmatpush.msra.mxu0 %v596
    %2534 = vmatpush.msra.mxu0 %v593
    %2535 = vmatpush.msra.mxu0 %v590
    %2536 = vmatmul.f32.gmra.mxu0 %v2322
    %v2537 = vpop.f32.mrf.mxu0
    %v2538 = vadd.f32 %v692, %v2537
    %2539 = vdwg.mxu0
    %2540 = vmatpush.msra.mxu0 %v636
    %2541 = vmatpush.msra.mxu0 %v633
    %2542 = vmatpush.msra.mxu0 %v630
    %2543 = vmatpush.msra.mxu0 %v627
    %2544 = vmatpush.msra.mxu0 %v624
    %2545 = vmatpush.msra.mxu0 %v621
    %2546 = vmatpush.msra.mxu0 %v618
    %2547 = vmatpush.msra.mxu0 %v615
    %2548 = vmatpush.msra.mxu0 %v612
    %2549 = vmatpush.msra.mxu0 %v609
    %2550 = vmatpush.msra.mxu0 %v606
    %2551 = vmatpush.msra.mxu0 %v603
    %2552 = vmatpush.msra.mxu0 %v600
    %2553 = vmatpush.msra.mxu0 %v597
    %2554 = vmatpush.msra.mxu0 %v594
    %2555 = vmatpush.msra.mxu0 %v591
    %2556 = vmatmul.f32.gmra.mxu0 %v2322
    %v2557 = vpop.f32.mrf.mxu0
    %v2558 = vadd.f32 %v693, %v2557
    %2559 = vdwg.mxu0
    %v2561 = vrot.slane %v2518, 4
    %v2563 = vadd.f32 %v387, %v2561
    %v2564 = vadd.f32 %v390, %v2561
    %v2565 = vxor.u32 %v2563, 2147483648
    %v2566 = vxor.u32 %v2564, 2147483648
    %v2567 = vmul.f32 %v2565, 1.442695
    %v2568 = vpow.pop %v2567
    %v2569 = vmul.f32 %v2566, 1.442695
    %v2570 = vpow.pop %v2569
    %v2571 = vadd.f32 %v2568, 1.0
    %v2572 = vadd.f32 %v2570, 1.0
    %v2573 = vrcp.pop %v2571
    %v2574 = vmul.f32 %v2571, %v2573
    %v2575 = vsub.f32 1.0, %v2574
    %v2576 = vmul.f32 %v2573, %v2575
    %v2577 = vadd.f32 %v2573, %v2576
    %vm2578 = vweird.f32 %v2571
    %vm2579 = vweird.f32 %v2573
    %vm2580 = vmor %vm2578, %vm2579
    %v2581 = vsel %vm2580, %v2573, %v2577
    %v2582 = vand.u32 2147483647, %v2571
    %vm2583 = vcmp.eq.f32.partialorder %v2582, 8.507059e+37
    %v2584 = vand.u32 %v2571, 2147483648
    %v2585 = vor.u32 1.1754944e-38, %v2584
    %v2586 = vsel %vm2583, %v2585, %v2581
    %v2587 = vmul.f32 1.0, %v2586
    %v2588 = vrcp.pop %v2572
    %v2589 = vmul.f32 %v2572, %v2588
    %v2590 = vsub.f32 1.0, %v2589
    %v2591 = vmul.f32 %v2588, %v2590
    %v2592 = vadd.f32 %v2588, %v2591
    %vm2593 = vweird.f32 %v2572
    %vm2594 = vweird.f32 %v2588
    %vm2595 = vmor %vm2593, %vm2594
    %v2596 = vsel %vm2595, %v2588, %v2592
    %v2597 = vand.u32 2147483647, %v2572
    %vm2598 = vcmp.eq.f32.partialorder %v2597, 8.507059e+37
    %v2599 = vand.u32 %v2572, 2147483648
    %v2600 = vor.u32 1.1754944e-38, %v2599
    %v2601 = vsel %vm2598, %v2600, %v2596
    %v2602 = vmul.f32 1.0, %v2601
    %v2604 = vrot.slane %v2538, 4
    %v2606 = vadd.f32 %v422, %v2604
    %v2607 = vadd.f32 %v425, %v2604
    %v2608 = vxor.u32 %v2606, 2147483648
    %v2609 = vxor.u32 %v2607, 2147483648
    %v2610 = vmul.f32 %v2608, 1.442695
    %v2611 = vpow.pop %v2610
    %v2612 = vmul.f32 %v2609, 1.442695
    %v2613 = vpow.pop %v2612
    %v2614 = vadd.f32 %v2611, 1.0
    %v2615 = vadd.f32 %v2613, 1.0
    %v2616 = vrcp.pop %v2614
    %v2617 = vmul.f32 %v2614, %v2616
    %v2618 = vsub.f32 1.0, %v2617
    %v2619 = vmul.f32 %v2616, %v2618
    %v2620 = vadd.f32 %v2616, %v2619
    %vm2621 = vweird.f32 %v2614
    %vm2622 = vweird.f32 %v2616
    %vm2623 = vmor %vm2621, %vm2622
    %v2624 = vsel %vm2623, %v2616, %v2620
    %v2625 = vand.u32 2147483647, %v2614
    %vm2626 = vcmp.eq.f32.partialorder %v2625, 8.507059e+37
    %v2627 = vand.u32 %v2614, 2147483648
    %v2628 = vor.u32 1.1754944e-38, %v2627
    %v2629 = vsel %vm2626, %v2628, %v2624
    %v2630 = vmul.f32 1.0, %v2629
    %v2631 = vrcp.pop %v2615
    %v2632 = vmul.f32 %v2615, %v2631
    %v2633 = vsub.f32 1.0, %v2632
    %v2634 = vmul.f32 %v2631, %v2633
    %v2635 = vadd.f32 %v2631, %v2634
    %vm2636 = vweird.f32 %v2615
    %vm2637 = vweird.f32 %v2631
    %vm2638 = vmor %vm2636, %vm2637
    %v2639 = vsel %vm2638, %v2631, %v2635
    %v2640 = vand.u32 2147483647, %v2615
    %vm2641 = vcmp.eq.f32.partialorder %v2640, 8.507059e+37
    %v2642 = vand.u32 %v2615, 2147483648
    %v2643 = vor.u32 1.1754944e-38, %v2642
    %v2644 = vsel %vm2641, %v2643, %v2639
    %v2645 = vmul.f32 1.0, %v2644
    %v2647 = vrot.slane %v2558, 4
    %v2649 = vmul.f32 %v2587, %v2647
    %v2650 = vmul.f32 %v2602, %v2647
    %v2651 = vadd.f32 %v457, %v2649
    %v2652 = vadd.f32 %v460, %v2650
    %v2653 = vtanh.pop %v2651
    %v2654 = vtanh.pop %v2652
    %v2655 = vsub.f32 1.0, %v2630
    %v2656 = vsub.f32 1.0, %v2645
    %v2657 = vmul.f32 %v2655, %v2653
    %v2658 = vmul.f32 %v2656, %v2654
    %v2660 = vrot.slane %v2322, 4
    %v2662 = vmul.f32 %v2630, %v2660
    %v2663 = vmul.f32 %v2645, %v2660
    %v2664 = vadd.f32 %v2657, %v2662
    %v2665 = vadd.f32 %v2658, %v2663
    %v2668 = vrot.slane %v2664, 4
    %v2669 = vrot.slane %v2665, 4
    %v2670 = vsel %vm1298, %v2668, %v2669
    %v2672 = vsel %vm1295, %v2670, %v2322
    %v2673 = vsel %vm1295, %v2670, 0.0
    %v2674 = vmax.f32 %v2324, %v2673
    %2675 = vmatpush.msra.mxu0 %v684
    %2676 = vmatpush.msra.mxu0 %v681
    %2677 = vmatpush.msra.mxu0 %v678
    %2678 = vmatpush.msra.mxu0 %v675
    %2679 = vmatpush.msra.mxu0 %v672
    %2680 = vmatpush.msra.mxu0 %v669
    %2681 = vmatpush.msra.mxu0 %v666
    %2682 = vmatpush.msra.mxu0 %v663
    %2683 = vmatpush.msra.mxu0 %v660
    %2684 = vmatpush.msra.mxu0 %v657
    %2685 = vmatpush.msra.mxu0 %v654
    %2686 = vmatpush.msra.mxu0 %v651
    %2687 = vmatpush.msra.mxu0 %v648
    %2688 = vmatpush.msra.mxu0 %v645
    %2689 = vmatpush.msra.mxu0 %v642
    %2690 = vmatpush.msra.mxu0 %v639
    %2691 = vmatmul.f32.gmra.mxu0 %v2497
    %v2692 = vpop.f32.mrf.mxu0
    %v2693 = vadd.f32 %v812, %v2692
    %2694 = vdwg.mxu0
    %2695 = vmatpush.msra.mxu0 %v685
    %2696 = vmatpush.msra.mxu0 %v682
    %2697 = vmatpush.msra.mxu0 %v679
    %2698 = vmatpush.msra.mxu0 %v676
    %2699 = vmatpush.msra.mxu0 %v673
    %2700 = vmatpush.msra.mxu0 %v670
    %2701 = vmatpush.msra.mxu0 %v667
    %2702 = vmatpush.msra.mxu0 %v664
    %2703 = vmatpush.msra.mxu0 %v661
    %2704 = vmatpush.msra.mxu0 %v658
    %2705 = vmatpush.msra.mxu0 %v655
    %2706 = vmatpush.msra.mxu0 %v652
    %2707 = vmatpush.msra.mxu0 %v649
    %2708 = vmatpush.msra.mxu0 %v646
    %2709 = vmatpush.msra.mxu0 %v643
    %2710 = vmatpush.msra.mxu0 %v640
    %2711 = vmatmul.f32.gmra.mxu0 %v2497
    %v2712 = vpop.f32.mrf.mxu0
    %v2713 = vadd.f32 %v813, %v2712
    %2714 = vdwg.mxu0
    %2715 = vmatpush.msra.mxu0 %v686
    %2716 = vmatpush.msra.mxu0 %v683
    %2717 = vmatpush.msra.mxu0 %v680
    %2718 = vmatpush.msra.mxu0 %v677
    %2719 = vmatpush.msra.mxu0 %v674
    %2720 = vmatpush.msra.mxu0 %v671
    %2721 = vmatpush.msra.mxu0 %v668
    %2722 = vmatpush.msra.mxu0 %v665
    %2723 = vmatpush.msra.mxu0 %v662
    %2724 = vmatpush.msra.mxu0 %v659
    %2725 = vmatpush.msra.mxu0 %v656
    %2726 = vmatpush.msra.mxu0 %v653
    %2727 = vmatpush.msra.mxu0 %v650
    %2728 = vmatpush.msra.mxu0 %v647
    %2729 = vmatpush.msra.mxu0 %v644
    %2730 = vmatpush.msra.mxu0 %v641
    %2731 = vmatmul.f32.gmra.mxu0 %v2497
    %v2732 = vpop.f32.mrf.mxu0
    %v2733 = vadd.f32 %v814, %v2732
    %2734 = vdwg.mxu0
    %v2736 = vrot.slane %v2693, 2
    %v2738 = vadd.f32 %v502, %v2736
    %v2739 = vadd.f32 %v505, %v2736
    %v2740 = vxor.u32 %v2738, 2147483648
    %v2741 = vxor.u32 %v2739, 2147483648
    %v2742 = vmul.f32 %v2740, 1.442695
    %v2743 = vpow.pop %v2742
    %v2744 = vmul.f32 %v2741, 1.442695
    %v2745 = vpow.pop %v2744
    %v2746 = vadd.f32 %v2743, 1.0
    %v2747 = vadd.f32 %v2745, 1.0
    %v2748 = vrcp.pop %v2746
    %v2749 = vmul.f32 %v2746, %v2748
    %v2750 = vsub.f32 1.0, %v2749
    %v2751 = vmul.f32 %v2748, %v2750
    %v2752 = vadd.f32 %v2748, %v2751
    %vm2753 = vweird.f32 %v2746
    %vm2754 = vweird.f32 %v2748
    %vm2755 = vmor %vm2753, %vm2754
    %v2756 = vsel %vm2755, %v2748, %v2752
    %v2757 = vand.u32 2147483647, %v2746
    %vm2758 = vcmp.eq.f32.partialorder %v2757, 8.507059e+37
    %v2759 = vand.u32 %v2746, 2147483648
    %v2760 = vor.u32 1.1754944e-38, %v2759
    %v2761 = vsel %vm2758, %v2760, %v2756
    %v2762 = vmul.f32 1.0, %v2761
    %v2763 = vrcp.pop %v2747
    %v2764 = vmul.f32 %v2747, %v2763
    %v2765 = vsub.f32 1.0, %v2764
    %v2766 = vmul.f32 %v2763, %v2765
    %v2767 = vadd.f32 %v2763, %v2766
    %vm2768 = vweird.f32 %v2747
    %vm2769 = vweird.f32 %v2763
    %vm2770 = vmor %vm2768, %vm2769
    %v2771 = vsel %vm2770, %v2763, %v2767
    %v2772 = vand.u32 2147483647, %v2747
    %vm2773 = vcmp.eq.f32.partialorder %v2772, 8.507059e+37
    %v2774 = vand.u32 %v2747, 2147483648
    %v2775 = vor.u32 1.1754944e-38, %v2774
    %v2776 = vsel %vm2773, %v2775, %v2771
    %v2777 = vmul.f32 1.0, %v2776
    %v2779 = vrot.slane %v2713, 2
    %v2781 = vadd.f32 %v537, %v2779
    %v2782 = vadd.f32 %v540, %v2779
    %v2783 = vxor.u32 %v2781, 2147483648
    %v2784 = vxor.u32 %v2782, 2147483648
    %v2785 = vmul.f32 %v2783, 1.442695
    %v2786 = vpow.pop %v2785
    %v2787 = vmul.f32 %v2784, 1.442695
    %v2788 = vpow.pop %v2787
    %v2789 = vadd.f32 %v2786, 1.0
    %v2790 = vadd.f32 %v2788, 1.0
    %v2791 = vrcp.pop %v2789
    %v2792 = vmul.f32 %v2789, %v2791
    %v2793 = vsub.f32 1.0, %v2792
    %v2794 = vmul.f32 %v2791, %v2793
    %v2795 = vadd.f32 %v2791, %v2794
    %vm2796 = vweird.f32 %v2789
    %vm2797 = vweird.f32 %v2791
    %vm2798 = vmor %vm2796, %vm2797
    %v2799 = vsel %vm2798, %v2791, %v2795
    %v2800 = vand.u32 2147483647, %v2789
    %vm2801 = vcmp.eq.f32.partialorder %v2800, 8.507059e+37
    %v2802 = vand.u32 %v2789, 2147483648
    %v2803 = vor.u32 1.1754944e-38, %v2802
    %v2804 = vsel %vm2801, %v2803, %v2799
    %v2805 = vmul.f32 1.0, %v2804
    %v2806 = vrcp.pop %v2790
    %v2807 = vmul.f32 %v2790, %v2806
    %v2808 = vsub.f32 1.0, %v2807
    %v2809 = vmul.f32 %v2806, %v2808
    %v2810 = vadd.f32 %v2806, %v2809
    %vm2811 = vweird.f32 %v2790
    %vm2812 = vweird.f32 %v2806
    %vm2813 = vmor %vm2811, %vm2812
    %v2814 = vsel %vm2813, %v2806, %v2810
    %v2815 = vand.u32 2147483647, %v2790
    %vm2816 = vcmp.eq.f32.partialorder %v2815, 8.507059e+37
    %v2817 = vand.u32 %v2790, 2147483648
    %v2818 = vor.u32 1.1754944e-38, %v2817
    %v2819 = vsel %vm2816, %v2818, %v2814
    %v2820 = vmul.f32 1.0, %v2819
    %v2822 = vrot.slane %v2733, 2
    %v2824 = vmul.f32 %v2762, %v2822
    %v2825 = vmul.f32 %v2777, %v2822
    %v2826 = vadd.f32 %v572, %v2824
    %v2827 = vadd.f32 %v575, %v2825
    %v2828 = vtanh.pop %v2826
    %v2829 = vtanh.pop %v2827
    %v2830 = vsub.f32 1.0, %v2805
    %v2831 = vsub.f32 1.0, %v2820
    %v2832 = vmul.f32 %v2830, %v2828
    %v2833 = vmul.f32 %v2831, %v2829
    %v2835 = vrot.slane %v2497, 2
    %v2837 = vmul.f32 %v2805, %v2835
    %v2838 = vmul.f32 %v2820, %v2835
    %v2839 = vadd.f32 %v2832, %v2837
    %v2840 = vadd.f32 %v2833, %v2838
    %v2843 = vrot.slane %v2839, 6
    %v2844 = vrot.slane %v2840, 6
    %v2845 = vsel %vm279, %v2843, %v2844
    %v2847 = vsel %vm1114, %v2845, %v2497
    %v2848 = vsel %vm1114, %v2845, 0.0
    %v2849 = vmax.f32 %v2499, %v2848
    %2850 = vmatpush.msra.mxu0 %v634
    %2851 = vmatpush.msra.mxu0 %v631
    %2852 = vmatpush.msra.mxu0 %v628
    %2853 = vmatpush.msra.mxu0 %v625
    %2854 = vmatpush.msra.mxu0 %v622
    %2855 = vmatpush.msra.mxu0 %v619
    %2856 = vmatpush.msra.mxu0 %v616
    %2857 = vmatpush.msra.mxu0 %v613
    %2858 = vmatpush.msra.mxu0 %v610
    %2859 = vmatpush.msra.mxu0 %v607
    %2860 = vmatpush.msra.mxu0 %v604
    %2861 = vmatpush.msra.mxu0 %v601
    %2862 = vmatpush.msra.mxu0 %v598
    %2863 = vmatpush.msra.mxu0 %v595
    %2864 = vmatpush.msra.mxu0 %v592
    %2865 = vmatpush.msra.mxu0 %v589
    %2866 = vmatmul.f32.gmra.mxu0 %v2672
    %v2867 = vpop.f32.mrf.mxu0
    %v2868 = vadd.f32 %v691, %v2867
    %2869 = vdwg.mxu0
    %2870 = vmatpush.msra.mxu0 %v635
    %2871 = vmatpush.msra.mxu0 %v632
    %2872 = vmatpush.msra.mxu0 %v629
    %2873 = vmatpush.msra.mxu0 %v626
    %2874 = vmatpush.msra.mxu0 %v623
    %2875 = vmatpush.msra.mxu0 %v620
    %2876 = vmatpush.msra.mxu0 %v617
    %2877 = vmatpush.msra.mxu0 %v614
    %2878 = vmatpush.msra.mxu0 %v611
    %2879 = vmatpush.msra.mxu0 %v608
    %2880 = vmatpush.msra.mxu0 %v605
    %2881 = vmatpush.msra.mxu0 %v602
    %2882 = vmatpush.msra.mxu0 %v599
    %2883 = vmatpush.msra.mxu0 %v596
    %2884 = vmatpush.msra.mxu0 %v593
    %2885 = vmatpush.msra.mxu0 %v590
    %2886 = vmatmul.f32.gmra.mxu0 %v2672
    %v2887 = vpop.f32.mrf.mxu0
    %v2888 = vadd.f32 %v692, %v2887
    %2889 = vdwg.mxu0
    %2890 = vmatpush.msra.mxu0 %v636
    %2891 = vmatpush.msra.mxu0 %v633
    %2892 = vmatpush.msra.mxu0 %v630
    %2893 = vmatpush.msra.mxu0 %v627
    %2894 = vmatpush.msra.mxu0 %v624
    %2895 = vmatpush.msra.mxu0 %v621
    %2896 = vmatpush.msra.mxu0 %v618
    %2897 = vmatpush.msra.mxu0 %v615
    %2898 = vmatpush.msra.mxu0 %v612
    %2899 = vmatpush.msra.mxu0 %v609
    %2900 = vmatpush.msra.mxu0 %v606
    %2901 = vmatpush.msra.mxu0 %v603
    %2902 = vmatpush.msra.mxu0 %v600
    %2903 = vmatpush.msra.mxu0 %v597
    %2904 = vmatpush.msra.mxu0 %v594
    %2905 = vmatpush.msra.mxu0 %v591
    %2906 = vmatmul.f32.gmra.mxu0 %v2672
    %v2907 = vpop.f32.mrf.mxu0
    %v2908 = vadd.f32 %v693, %v2907
    %2909 = vdwg.mxu0
    %v2911 = vrot.slane %v2868, 6
    %v2913 = vadd.f32 %v390, %v2911
    %v2914 = vxor.u32 %v2913, 2147483648
    %v2915 = vmul.f32 %v2914, 1.442695
    %v2916 = vpow.pop %v2915
    %v2917 = vadd.f32 %v2916, 1.0
    %v2918 = vrcp.pop %v2917
    %v2919 = vmul.f32 %v2917, %v2918
    %v2920 = vsub.f32 1.0, %v2919
    %v2921 = vmul.f32 %v2918, %v2920
    %v2922 = vadd.f32 %v2918, %v2921
    %vm2923 = vweird.f32 %v2917
    %vm2924 = vweird.f32 %v2918
    %vm2925 = vmor %vm2923, %vm2924
    %v2926 = vsel %vm2925, %v2918, %v2922
    %v2927 = vand.u32 2147483647, %v2917
    %vm2928 = vcmp.eq.f32.partialorder %v2927, 8.507059e+37
    %v2929 = vand.u32 %v2917, 2147483648
    %v2930 = vor.u32 1.1754944e-38, %v2929
    %v2931 = vsel %vm2928, %v2930, %v2926
    %v2932 = vmul.f32 1.0, %v2931
    %v2934 = vrot.slane %v2888, 6
    %v2936 = vadd.f32 %v425, %v2934
    %v2937 = vxor.u32 %v2936, 2147483648
    %v2938 = vmul.f32 %v2937, 1.442695
    %v2939 = vpow.pop %v2938
    %v2940 = vadd.f32 %v2939, 1.0
    %v2941 = vrcp.pop %v2940
    %v2942 = vmul.f32 %v2940, %v2941
    %v2943 = vsub.f32 1.0, %v2942
    %v2944 = vmul.f32 %v2941, %v2943
    %v2945 = vadd.f32 %v2941, %v2944
    %vm2946 = vweird.f32 %v2940
    %vm2947 = vweird.f32 %v2941
    %vm2948 = vmor %vm2946, %vm2947
    %v2949 = vsel %vm2948, %v2941, %v2945
    %v2950 = vand.u32 2147483647, %v2940
    %vm2951 = vcmp.eq.f32.partialorder %v2950, 8.507059e+37
    %v2952 = vand.u32 %v2940, 2147483648
    %v2953 = vor.u32 1.1754944e-38, %v2952
    %v2954 = vsel %vm2951, %v2953, %v2949
    %v2955 = vmul.f32 1.0, %v2954
    %v2957 = vrot.slane %v2908, 6
    %v2959 = vmul.f32 %v2932, %v2957
    %v2960 = vadd.f32 %v460, %v2959
    %v2961 = vtanh.pop %v2960
    %v2962 = vsub.f32 1.0, %v2955
    %v2963 = vmul.f32 %v2962, %v2961
    %v2965 = vrot.slane %v2672, 6
    %v2967 = vmul.f32 %v2955, %v2965
    %v2968 = vadd.f32 %v2963, %v2967
    %v2970 = vrot.slane %v2968, 2
    %v2972 = vsel %vm938, %v2970, 0.0
    %v2973 = vmax.f32 %v2674, %v2972
    %2974 = vmatpush.msra.mxu0 %v684
    %2975 = vmatpush.msra.mxu0 %v681
    %2976 = vmatpush.msra.mxu0 %v678
    %2977 = vmatpush.msra.mxu0 %v675
    %2978 = vmatpush.msra.mxu0 %v672
    %2979 = vmatpush.msra.mxu0 %v669
    %2980 = vmatpush.msra.mxu0 %v666
    %2981 = vmatpush.msra.mxu0 %v663
    %2982 = vmatpush.msra.mxu0 %v660
    %2983 = vmatpush.msra.mxu0 %v657
    %2984 = vmatpush.msra.mxu0 %v654
    %2985 = vmatpush.msra.mxu0 %v651
    %2986 = vmatpush.msra.mxu0 %v648
    %2987 = vmatpush.msra.mxu0 %v645
    %2988 = vmatpush.msra.mxu0 %v642
    %2989 = vmatpush.msra.mxu0 %v639
    %2990 = vmatmul.f32.gmra.mxu0 %v2847
    %v2991 = vpop.f32.mrf.mxu0
    %v2992 = vadd.f32 %v812, %v2991
    %2993 = vdwg.mxu0
    %2994 = vmatpush.msra.mxu0 %v685
    %2995 = vmatpush.msra.mxu0 %v682
    %2996 = vmatpush.msra.mxu0 %v679
    %2997 = vmatpush.msra.mxu0 %v676
    %2998 = vmatpush.msra.mxu0 %v673
    %2999 = vmatpush.msra.mxu0 %v670
    %3000 = vmatpush.msra.mxu0 %v667
    %3001 = vmatpush.msra.mxu0 %v664
    %3002 = vmatpush.msra.mxu0 %v661
    %3003 = vmatpush.msra.mxu0 %v658
    %3004 = vmatpush.msra.mxu0 %v655
    %3005 = vmatpush.msra.mxu0 %v652
    %3006 = vmatpush.msra.mxu0 %v649
    %3007 = vmatpush.msra.mxu0 %v646
    %3008 = vmatpush.msra.mxu0 %v643
    %3009 = vmatpush.msra.mxu0 %v640
    %3010 = vmatmul.f32.gmra.mxu0 %v2847
    %v3011 = vpop.f32.mrf.mxu0
    %v3012 = vadd.f32 %v813, %v3011
    %3013 = vdwg.mxu0
    %3014 = vmatpush.msra.mxu0 %v686
    %3015 = vmatpush.msra.mxu0 %v683
    %3016 = vmatpush.msra.mxu0 %v680
    %3017 = vmatpush.msra.mxu0 %v677
    %3018 = vmatpush.msra.mxu0 %v674
    %3019 = vmatpush.msra.mxu0 %v671
    %3020 = vmatpush.msra.mxu0 %v668
    %3021 = vmatpush.msra.mxu0 %v665
    %3022 = vmatpush.msra.mxu0 %v662
    %3023 = vmatpush.msra.mxu0 %v659
    %3024 = vmatpush.msra.mxu0 %v656
    %3025 = vmatpush.msra.mxu0 %v653
    %3026 = vmatpush.msra.mxu0 %v650
    %3027 = vmatpush.msra.mxu0 %v647
    %3028 = vmatpush.msra.mxu0 %v644
    %3029 = vmatpush.msra.mxu0 %v641
    %3030 = vmatmul.f32.gmra.mxu0 %v2847
    %v3031 = vpop.f32.mrf.mxu0
    %v3032 = vadd.f32 %v814, %v3031
    %3033 = vdwg.mxu0
    %v3034 = vadd.f32 %v502, %v2992
    %v3035 = vxor.u32 %v3034, 2147483648
    %v3036 = vmul.f32 %v3035, 1.442695
    %v3037 = vpow.pop %v3036
    %v3038 = vadd.f32 %v3037, 1.0
    %v3039 = vrcp.pop %v3038
    %v3040 = vmul.f32 %v3038, %v3039
    %v3041 = vsub.f32 1.0, %v3040
    %v3042 = vmul.f32 %v3039, %v3041
    %v3043 = vadd.f32 %v3039, %v3042
    %vm3044 = vweird.f32 %v3038
    %vm3045 = vweird.f32 %v3039
    %vm3046 = vmor %vm3044, %vm3045
    %v3047 = vsel %vm3046, %v3039, %v3043
    %v3048 = vand.u32 2147483647, %v3038
    %vm3049 = vcmp.eq.f32.partialorder %v3048, 8.507059e+37
    %v3050 = vand.u32 %v3038, 2147483648
    %v3051 = vor.u32 1.1754944e-38, %v3050
    %v3052 = vsel %vm3049, %v3051, %v3047
    %v3053 = vmul.f32 1.0, %v3052
    %v3054 = vadd.f32 %v537, %v3012
    %v3055 = vxor.u32 %v3054, 2147483648
    %v3056 = vmul.f32 %v3055, 1.442695
    %v3057 = vpow.pop %v3056
    %v3058 = vadd.f32 %v3057, 1.0
    %v3059 = vrcp.pop %v3058
    %v3060 = vmul.f32 %v3058, %v3059
    %v3061 = vsub.f32 1.0, %v3060
    %v3062 = vmul.f32 %v3059, %v3061
    %v3063 = vadd.f32 %v3059, %v3062
    %vm3064 = vweird.f32 %v3058
    %vm3065 = vweird.f32 %v3059
    %vm3066 = vmor %vm3064, %vm3065
    %v3067 = vsel %vm3066, %v3059, %v3063
    %v3068 = vand.u32 2147483647, %v3058
    %vm3069 = vcmp.eq.f32.partialorder %v3068, 8.507059e+37
    %v3070 = vand.u32 %v3058, 2147483648
    %v3071 = vor.u32 1.1754944e-38, %v3070
    %v3072 = vsel %vm3069, %v3071, %v3067
    %v3073 = vmul.f32 1.0, %v3072
    %v3074 = vmul.f32 %v3053, %v3032
    %v3075 = vadd.f32 %v572, %v3074
    %v3076 = vtanh.pop %v3075
    %v3077 = vsub.f32 1.0, %v3073
    %v3078 = vmul.f32 %v3077, %v3076
    %v3079 = vmul.f32 %v3073, %v2847
    %v3080 = vadd.f32 %v3078, %v3079
    %v3081 = vsel %vm808, %v3080, 0.0
    %v3082 = vmax.f32 %v2849, %v3081
    %v3083 = vld [vmem:[#allocation9] sm:$0xff]
    %v3084 = vld [vmem:[#allocation9 + $0x8] sm:$0xff]
    %v3085 = vld [vmem:[#allocation9 + $0x10] sm:$0xff]
    %v3086 = vld [vmem:[#allocation9 + $0x18] sm:$0xff]
    %v3087 = vld [vmem:[#allocation9 + $0x20] sm:$0xff]
    %v3088 = vld [vmem:[#allocation9 + $0x28] sm:$0xff]
    %v3089 = vld [vmem:[#allocation9 + $0x30] sm:$0xff]
    %v3090 = vld [vmem:[#allocation9 + $0x38] sm:$0xff]
    %v3091 = vld [vmem:[#allocation9 + $0x40] sm:$0xff]
    %v3092 = vld [vmem:[#allocation9 + $0x48] sm:$0xff]
    %v3093 = vld [vmem:[#allocation9 + $0x50] sm:$0xff]
    %v3094 = vld [vmem:[#allocation9 + $0x58] sm:$0xff]
    %v3095 = vld [vmem:[#allocation9 + $0x60] sm:$0xff]
    %v3096 = vld [vmem:[#allocation9 + $0x68] sm:$0xff]
    %v3097 = vld [vmem:[#allocation9 + $0x70] sm:$0xff]
    %v3098 = vld [vmem:[#allocation9 + $0x78] sm:$0xff]
    %v3099 = vld [vmem:[#allocation10] sm:$0xff]
    %v3100 = vld [vmem:[#allocation10 + $0x8] sm:$0xff]
    %v3101 = vld [vmem:[#allocation10 + $0x10] sm:$0xff]
    %v3102 = vld [vmem:[#allocation10 + $0x18] sm:$0xff]
    %v3103 = vld [vmem:[#allocation10 + $0x20] sm:$0xff]
    %v3104 = vld [vmem:[#allocation10 + $0x28] sm:$0xff]
    %v3105 = vld [vmem:[#allocation10 + $0x30] sm:$0xff]
    %v3106 = vld [vmem:[#allocation10 + $0x38] sm:$0xff]
    %v3107 = vld [vmem:[#allocation10 + $0x40] sm:$0xff]
    %v3108 = vld [vmem:[#allocation10 + $0x48] sm:$0xff]
    %v3109 = vld [vmem:[#allocation10 + $0x50] sm:$0xff]
    %v3110 = vld [vmem:[#allocation10 + $0x58] sm:$0xff]
    %v3111 = vld [vmem:[#allocation10 + $0x60] sm:$0xff]
    %v3112 = vld [vmem:[#allocation10 + $0x68] sm:$0xff]
    %v3113 = vld [vmem:[#allocation10 + $0x70] sm:$0xff]
    %v3114 = vld [vmem:[#allocation10 + $0x78] sm:$0xff]
    %3115 = vmatpush.msra.mxu0 %v3114
    %3116 = vmatpush.msra.mxu0 %v3113
    %3117 = vmatpush.msra.mxu0 %v3112
    %3118 = vmatpush.msra.mxu0 %v3111
    %3119 = vmatpush.msra.mxu0 %v3110
    %3120 = vmatpush.msra.mxu0 %v3109
    %3121 = vmatpush.msra.mxu0 %v3108
    %3122 = vmatpush.msra.mxu0 %v3107
    %3123 = vmatpush.msra.mxu0 %v3106
    %3124 = vmatpush.msra.mxu0 %v3105
    %3125 = vmatpush.msra.mxu0 %v3104
    %3126 = vmatpush.msra.mxu0 %v3103
    %3127 = vmatpush.msra.mxu0 %v3102
    %3128 = vmatpush.msra.mxu0 %v3101
    %3129 = vmatpush.msra.mxu0 %v3100
    %3130 = vmatpush.msra.mxu0 %v3099
    %3131 = vmatmul.f32.gmra.mxu0 %v3082
    %v3132 = vpop.f32.mrf.mxu0
    %v3133 = vadd.f32 0.0, %v3132
    %3134 = vdwg.mxu0
    %3135 = vmatpush.msra.mxu0 %v3098
    %3136 = vmatpush.msra.mxu0 %v3097
    %3137 = vmatpush.msra.mxu0 %v3096
    %3138 = vmatpush.msra.mxu0 %v3095
    %3139 = vmatpush.msra.mxu0 %v3094
    %3140 = vmatpush.msra.mxu0 %v3093
    %3141 = vmatpush.msra.mxu0 %v3092
    %3142 = vmatpush.msra.mxu0 %v3091
    %3143 = vmatpush.msra.mxu0 %v3090
    %3144 = vmatpush.msra.mxu0 %v3089
    %3145 = vmatpush.msra.mxu0 %v3088
    %3146 = vmatpush.msra.mxu0 %v3087
    %3147 = vmatpush.msra.mxu0 %v3086
    %3148 = vmatpush.msra.mxu0 %v3085
    %3149 = vmatpush.msra.mxu0 %v3084
    %3150 = vmatpush.msra.mxu0 %v3083
    %3151 = vmatmul.f32.gmra.mxu0 %v2973
    %v3152 = vpop.f32.mrf.mxu0
    %v3153 = vadd.f32 %v3133, %v3152
    %3154 = vdwg.mxu0
    %v3155 = vld [vmem:[%s9] sm:$0x1]
    %v3157 = vperm.slane %v3155, 0
    %v3159 = vadd.f32 %v3153, %v3157
    %v3160 = vtanh.pop %v3159
    %3161 = vst [vmem:[#allocation2] sm:$0x3] 0.0
    %3162 = vst [vmem:[#allocation2 + $0x2] sm:$0x7] %v3160
    %3163 = vst [vmem:[#allocation2 + $0x5] sm:$0x1] 0.0
    %3164 = vst [vmem:[#allocation2 + $0x6] sm:$0xf] %v3160
    %3165 = vst [vmem:[#allocation2 + $0xa] sm:$0x1f] %v3160
    %v3166 = vld [vmem:[#allocation2] sm:$0xff]
    %v3167 = vld [vmem:[#allocation2 + $0x8] sm:$0x7f]
    %v3168 = vld [vmem:[#allocation12] sm:$0xff]
    %v3169 = vld [vmem:[#allocation12 + $0x8] sm:$0xff]
    %v3170 = vld [vmem:[#allocation12 + $0x10] sm:$0xff]
    %v3171 = vld [vmem:[#allocation12 + $0x18] sm:$0xff]
    %v3172 = vld [vmem:[#allocation12 + $0x20] sm:$0xff]
    %v3173 = vld [vmem:[#allocation12 + $0x28] sm:$0xff]
    %v3174 = vld [vmem:[#allocation12 + $0x30] sm:$0xff]
    %v3175 = vld [vmem:[#allocation12 + $0x38] sm:$0xff]
    %v3176 = vld [vmem:[#allocation12 + $0x40] sm:$0xff]
    %v3177 = vld [vmem:[#allocation12 + $0x48] sm:$0xff]
    %v3178 = vld [vmem:[#allocation12 + $0x50] sm:$0xff]
    %v3179 = vld [vmem:[#allocation12 + $0x58] sm:$0xff]
    %v3180 = vld [vmem:[#allocation12 + $0x60] sm:$0xff]
    %v3181 = vld [vmem:[#allocation12 + $0x68] sm:$0xff]
    %v3182 = vld [vmem:[#allocation12 + $0x70] sm:$0xff]
    %v3183 = vld [vmem:[#allocation12 + $0x78] sm:$0xff]
    %v3184 = vld [vmem:[#allocation12 + $0x80] sm:$0xff]
    %v3185 = vld [vmem:[#allocation12 + $0x88] sm:$0xff]
    %v3186 = vld [vmem:[#allocation12 + $0x90] sm:$0xff]
    %v3187 = vld [vmem:[#allocation12 + $0x98] sm:$0xff]
    %v3188 = vld [vmem:[#allocation12 + $0xa0] sm:$0xff]
    %v3189 = vld [vmem:[#allocation12 + $0xa8] sm:$0xff]
    %v3190 = vld [vmem:[#allocation12 + $0xb0] sm:$0xff]
    %v3191 = vld [vmem:[#allocation12 + $0xb8] sm:$0xff]
    %v3192 = vld [vmem:[#allocation12 + $0xc0] sm:$0xff]
    %v3193 = vld [vmem:[#allocation12 + $0xc8] sm:$0xff]
    %v3194 = vld [vmem:[#allocation12 + $0xd0] sm:$0xff]
    %v3195 = vld [vmem:[#allocation12 + $0xd8] sm:$0xff]
    %v3196 = vld [vmem:[#allocation12 + $0xe0] sm:$0xff]
    %v3197 = vld [vmem:[#allocation12 + $0xe8] sm:$0xff]
    %v3198 = vld [vmem:[#allocation12 + $0xf0] sm:$0xff]
    %v3199 = vld [vmem:[#allocation12 + $0xf8] sm:$0xff]
    %v3200 = vld [vmem:[#allocation12 + $0x100] sm:$0xff]
    %v3201 = vld [vmem:[#allocation12 + $0x108] sm:$0xff]
    %v3202 = vld [vmem:[#allocation12 + $0x110] sm:$0xff]
    %v3203 = vld [vmem:[#allocation12 + $0x118] sm:$0xff]
    %v3204 = vld [vmem:[#allocation12 + $0x120] sm:$0xff]
    %v3205 = vld [vmem:[#allocation12 + $0x128] sm:$0xff]
    %v3206 = vld [vmem:[#allocation12 + $0x130] sm:$0xff]
    %v3207 = vld [vmem:[#allocation12 + $0x138] sm:$0xff]
    %v3208 = vld [vmem:[#allocation12 + $0x140] sm:$0xff]
    %v3209 = vld [vmem:[#allocation12 + $0x148] sm:$0xff]
    %v3210 = vld [vmem:[#allocation12 + $0x150] sm:$0xff]
    %v3211 = vld [vmem:[#allocation12 + $0x158] sm:$0xff]
    %v3212 = vld [vmem:[#allocation12 + $0x160] sm:$0xff]
    %v3213 = vld [vmem:[#allocation12 + $0x168] sm:$0xff]
    %v3214 = vld [vmem:[#allocation12 + $0x170] sm:$0xff]
    %v3215 = vld [vmem:[#allocation12 + $0x178] sm:$0xff]
    %v3216 = vld [vmem:[%s11] sm:$0x7]
    %v3218 = vperm.slane %v3216, 0
    %v3219 = vperm.slane %v3216, 1
    %v3220 = vperm.slane %v3216, 2
    %3224 = vmatpush.msra.mxu0 %v3213
    %3225 = vmatpush.msra.mxu0 %v3210
    %3226 = vmatpush.msra.mxu0 %v3207
    %3227 = vmatpush.msra.mxu0 %v3204
    %3228 = vmatpush.msra.mxu0 %v3201
    %3229 = vmatpush.msra.mxu0 %v3198
    %3230 = vmatpush.msra.mxu0 %v3195
    %3231 = vmatpush.msra.mxu0 %v3192
    %3232 = vmatpush.msra.mxu0 %v3189
    %3233 = vmatpush.msra.mxu0 %v3186
    %3234 = vmatpush.msra.mxu0 %v3183
    %3235 = vmatpush.msra.mxu0 %v3180
    %3236 = vmatpush.msra.mxu0 %v3177
    %3237 = vmatpush.msra.mxu0 %v3174
    %3238 = vmatpush.msra.mxu0 %v3171
    %3239 = vmatpush.msra.mxu0 %v3168
    %3240 = vmatmul.f32.gmra.mxu0 %v3166
    %v3241 = vpop.f32.mrf.mxu0
    %v3242 = vadd.f32 %v3218, %v3241
    %3243 = vmatmul.f32.gmra.mxu0 %v3167
    %v3244 = vpop.f32.mrf.mxu0
    %v3245 = vadd.f32 %v3218, %v3244
    %3246 = vdwg.mxu0
    %3247 = vmatpush.msra.mxu0 %v3214
    %3248 = vmatpush.msra.mxu0 %v3211
    %3249 = vmatpush.msra.mxu0 %v3208
    %3250 = vmatpush.msra.mxu0 %v3205
    %3251 = vmatpush.msra.mxu0 %v3202
    %3252 = vmatpush.msra.mxu0 %v3199
    %3253 = vmatpush.msra.mxu0 %v3196
    %3254 = vmatpush.msra.mxu0 %v3193
    %3255 = vmatpush.msra.mxu0 %v3190
    %3256 = vmatpush.msra.mxu0 %v3187
    %3257 = vmatpush.msra.mxu0 %v3184
    %3258 = vmatpush.msra.mxu0 %v3181
    %3259 = vmatpush.msra.mxu0 %v3178
    %3260 = vmatpush.msra.mxu0 %v3175
    %3261 = vmatpush.msra.mxu0 %v3172
    %3262 = vmatpush.msra.mxu0 %v3169
    %3263 = vmatmul.f32.gmra.mxu0 %v3166
    %v3264 = vpop.f32.mrf.mxu0
    %v3265 = vadd.f32 %v3219, %v3264
    %3266 = vmatmul.f32.gmra.mxu0 %v3167
    %v3267 = vpop.f32.mrf.mxu0
    %v3268 = vadd.f32 %v3219, %v3267
    %3269 = vdwg.mxu0
    %3270 = vmatpush.msra.mxu0 %v3215
    %3271 = vmatpush.msra.mxu0 %v3212
    %3272 = vmatpush.msra.mxu0 %v3209
    %3273 = vmatpush.msra.mxu0 %v3206
    %3274 = vmatpush.msra.mxu0 %v3203
    %3275 = vmatpush.msra.mxu0 %v3200
    %3276 = vmatpush.msra.mxu0 %v3197
    %3277 = vmatpush.msra.mxu0 %v3194
    %3278 = vmatpush.msra.mxu0 %v3191
    %3279 = vmatpush.msra.mxu0 %v3188
    %3280 = vmatpush.msra.mxu0 %v3185
    %3281 = vmatpush.msra.mxu0 %v3182
    %3282 = vmatpush.msra.mxu0 %v3179
    %3283 = vmatpush.msra.mxu0 %v3176
    %3284 = vmatpush.msra.mxu0 %v3173
    %3285 = vmatpush.msra.mxu0 %v3170
    %3286 = vmatmul.f32.gmra.mxu0 %v3166
    %v3287 = vpop.f32.mrf.mxu0
    %v3288 = vadd.f32 %v3220, %v3287
    %3289 = vmatmul.f32.gmra.mxu0 %v3167
    %v3290 = vpop.f32.mrf.mxu0
    %v3291 = vadd.f32 %v3220, %v3290
    %3292 = vdwg.mxu0
    %s3293 = scalar_lea.vmem [#allocation12], 384
    %v3294 = vld [vmem:[%s3293] sm:$0xff]
    %v3295 = vld [vmem:[%s3293 + $0x8] sm:$0xff]
    %v3296 = vld [vmem:[%s3293 + $0x10] sm:$0xff]
    %v3297 = vld [vmem:[%s3293 + $0x18] sm:$0xff]
    %v3298 = vld [vmem:[%s3293 + $0x20] sm:$0xff]
    %v3299 = vld [vmem:[%s3293 + $0x28] sm:$0xff]
    %v3300 = vld [vmem:[%s3293 + $0x30] sm:$0xff]
    %v3301 = vld [vmem:[%s3293 + $0x38] sm:$0xff]
    %v3302 = vld [vmem:[%s3293 + $0x40] sm:$0xff]
    %v3303 = vld [vmem:[%s3293 + $0x48] sm:$0xff]
    %v3304 = vld [vmem:[%s3293 + $0x50] sm:$0xff]
    %v3305 = vld [vmem:[%s3293 + $0x58] sm:$0xff]
    %v3306 = vld [vmem:[%s3293 + $0x60] sm:$0xff]
    %v3307 = vld [vmem:[%s3293 + $0x68] sm:$0xff]
    %v3308 = vld [vmem:[%s3293 + $0x70] sm:$0xff]
    %v3309 = vld [vmem:[%s3293 + $0x78] sm:$0xff]
    %v3310 = vld [vmem:[%s3293 + $0x80] sm:$0xff]
    %v3311 = vld [vmem:[%s3293 + $0x88] sm:$0xff]
    %v3312 = vld [vmem:[%s3293 + $0x90] sm:$0xff]
    %v3313 = vld [vmem:[%s3293 + $0x98] sm:$0xff]
    %v3314 = vld [vmem:[%s3293 + $0xa0] sm:$0xff]
    %v3315 = vld [vmem:[%s3293 + $0xa8] sm:$0xff]
    %v3316 = vld [vmem:[%s3293 + $0xb0] sm:$0xff]
    %v3317 = vld [vmem:[%s3293 + $0xb8] sm:$0xff]
    %v3318 = vld [vmem:[%s3293 + $0xc0] sm:$0xff]
    %v3319 = vld [vmem:[%s3293 + $0xc8] sm:$0xff]
    %v3320 = vld [vmem:[%s3293 + $0xd0] sm:$0xff]
    %v3321 = vld [vmem:[%s3293 + $0xd8] sm:$0xff]
    %v3322 = vld [vmem:[%s3293 + $0xe0] sm:$0xff]
    %v3323 = vld [vmem:[%s3293 + $0xe8] sm:$0xff]
    %v3324 = vld [vmem:[%s3293 + $0xf0] sm:$0xff]
    %v3325 = vld [vmem:[%s3293 + $0xf8] sm:$0xff]
    %v3326 = vld [vmem:[%s3293 + $0x100] sm:$0xff]
    %v3327 = vld [vmem:[%s3293 + $0x108] sm:$0xff]
    %v3328 = vld [vmem:[%s3293 + $0x110] sm:$0xff]
    %v3329 = vld [vmem:[%s3293 + $0x118] sm:$0xff]
    %v3330 = vld [vmem:[%s3293 + $0x120] sm:$0xff]
    %v3331 = vld [vmem:[%s3293 + $0x128] sm:$0xff]
    %v3332 = vld [vmem:[%s3293 + $0x130] sm:$0xff]
    %v3333 = vld [vmem:[%s3293 + $0x138] sm:$0xff]
    %v3334 = vld [vmem:[%s3293 + $0x140] sm:$0xff]
    %v3335 = vld [vmem:[%s3293 + $0x148] sm:$0xff]
    %v3336 = vld [vmem:[%s3293 + $0x150] sm:$0xff]
    %v3337 = vld [vmem:[%s3293 + $0x158] sm:$0xff]
    %v3338 = vld [vmem:[%s3293 + $0x160] sm:$0xff]
    %v3339 = vld [vmem:[%s3293 + $0x168] sm:$0xff]
    %v3340 = vld [vmem:[%s3293 + $0x170] sm:$0xff]
    %v3341 = vld [vmem:[%s3293 + $0x178] sm:$0xff]
    %s3342 = scalar_lea.vmem %s11, 3
    %v3343 = vld [vmem:[%s3342] sm:$0x7]
    %v3345 = vperm.slane %v3343, 0
    %v3346 = vperm.slane %v3343, 1
    %v3347 = vperm.slane %v3343, 2
    %3351 = vmatpush.msra.mxu0 %v3339
    %3352 = vmatpush.msra.mxu0 %v3336
    %3353 = vmatpush.msra.mxu0 %v3333
    %3354 = vmatpush.msra.mxu0 %v3330
    %3355 = vmatpush.msra.mxu0 %v3327
    %3356 = vmatpush.msra.mxu0 %v3324
    %3357 = vmatpush.msra.mxu0 %v3321
    %3358 = vmatpush.msra.mxu0 %v3318
    %3359 = vmatpush.msra.mxu0 %v3315
    %3360 = vmatpush.msra.mxu0 %v3312
    %3361 = vmatpush.msra.mxu0 %v3309
    %3362 = vmatpush.msra.mxu0 %v3306
    %3363 = vmatpush.msra.mxu0 %v3303
    %3364 = vmatpush.msra.mxu0 %v3300
    %3365 = vmatpush.msra.mxu0 %v3297
    %3366 = vmatpush.msra.mxu0 %v3294
    %3367 = vmatmul.f32.gmra.mxu0 %v3166
    %v3368 = vpop.f32.mrf.mxu0
    %v3369 = vadd.f32 %v3345, %v3368
    %3370 = vmatmul.f32.gmra.mxu0 %v3167
    %v3371 = vpop.f32.mrf.mxu0
    %v3372 = vadd.f32 %v3345, %v3371
    %3373 = vdwg.mxu0
    %3374 = vmatpush.msra.mxu0 %v3340
    %3375 = vmatpush.msra.mxu0 %v3337
    %3376 = vmatpush.msra.mxu0 %v3334
    %3377 = vmatpush.msra.mxu0 %v3331
    %3378 = vmatpush.msra.mxu0 %v3328
    %3379 = vmatpush.msra.mxu0 %v3325
    %3380 = vmatpush.msra.mxu0 %v3322
    %3381 = vmatpush.msra.mxu0 %v3319
    %3382 = vmatpush.msra.mxu0 %v3316
    %3383 = vmatpush.msra.mxu0 %v3313
    %3384 = vmatpush.msra.mxu0 %v3310
    %3385 = vmatpush.msra.mxu0 %v3307
    %3386 = vmatpush.msra.mxu0 %v3304
    %3387 = vmatpush.msra.mxu0 %v3301
    %3388 = vmatpush.msra.mxu0 %v3298
    %3389 = vmatpush.msra.mxu0 %v3295
    %3390 = vmatmul.f32.gmra.mxu0 %v3166
    %v3391 = vpop.f32.mrf.mxu0
    %v3392 = vadd.f32 %v3346, %v3391
    %3393 = vmatmul.f32.gmra.mxu0 %v3167
    %v3394 = vpop.f32.mrf.mxu0
    %v3395 = vadd.f32 %v3346, %v3394
    %3396 = vdwg.mxu0
    %3397 = vmatpush.msra.mxu0 %v3341
    %3398 = vmatpush.msra.mxu0 %v3338
    %3399 = vmatpush.msra.mxu0 %v3335
    %3400 = vmatpush.msra.mxu0 %v3332
    %3401 = vmatpush.msra.mxu0 %v3329
    %3402 = vmatpush.msra.mxu0 %v3326
    %3403 = vmatpush.msra.mxu0 %v3323
    %3404 = vmatpush.msra.mxu0 %v3320
    %3405 = vmatpush.msra.mxu0 %v3317
    %3406 = vmatpush.msra.mxu0 %v3314
    %3407 = vmatpush.msra.mxu0 %v3311
    %3408 = vmatpush.msra.mxu0 %v3308
    %3409 = vmatpush.msra.mxu0 %v3305
    %3410 = vmatpush.msra.mxu0 %v3302
    %3411 = vmatpush.msra.mxu0 %v3299
    %3412 = vmatpush.msra.mxu0 %v3296
    %3413 = vmatmul.f32.gmra.mxu0 %v3166
    %v3414 = vpop.f32.mrf.mxu0
    %v3415 = vadd.f32 %v3347, %v3414
    %3416 = vmatmul.f32.gmra.mxu0 %v3167
    %v3417 = vpop.f32.mrf.mxu0
    %v3418 = vadd.f32 %v3347, %v3417
    %3419 = vdwg.mxu0
    %v3420 = vld [vmem:[#allocation13] sm:$0xff]
    %v3421 = vld [vmem:[#allocation13 + $0x8] sm:$0xff]
    %v3422 = vld [vmem:[#allocation13 + $0x10] sm:$0xff]
    %v3423 = vld [vmem:[#allocation13 + $0x18] sm:$0xff]
    %v3424 = vld [vmem:[#allocation13 + $0x20] sm:$0xff]
    %v3425 = vld [vmem:[#allocation13 + $0x28] sm:$0xff]
    %v3426 = vld [vmem:[#allocation13 + $0x30] sm:$0xff]
    %v3427 = vld [vmem:[#allocation13 + $0x38] sm:$0xff]
    %v3428 = vld [vmem:[#allocation13 + $0x40] sm:$0xff]
    %v3429 = vld [vmem:[#allocation13 + $0x48] sm:$0xff]
    %v3430 = vld [vmem:[#allocation13 + $0x50] sm:$0xff]
    %v3431 = vld [vmem:[#allocation13 + $0x58] sm:$0xff]
    %v3432 = vld [vmem:[#allocation13 + $0x60] sm:$0xff]
    %v3433 = vld [vmem:[#allocation13 + $0x68] sm:$0xff]
    %v3434 = vld [vmem:[#allocation13 + $0x70] sm:$0xff]
    %v3435 = vld [vmem:[#allocation13 + $0x78] sm:$0xff]
    %v3436 = vld [vmem:[#allocation13 + $0x80] sm:$0xff]
    %v3437 = vld [vmem:[#allocation13 + $0x88] sm:$0xff]
    %v3438 = vld [vmem:[#allocation13 + $0x90] sm:$0xff]
    %v3439 = vld [vmem:[#allocation13 + $0x98] sm:$0xff]
    %v3440 = vld [vmem:[#allocation13 + $0xa0] sm:$0xff]
    %v3441 = vld [vmem:[#allocation13 + $0xa8] sm:$0xff]
    %v3442 = vld [vmem:[#allocation13 + $0xb0] sm:$0xff]
    %v3443 = vld [vmem:[#allocation13 + $0xb8] sm:$0xff]
    %v3444 = vld [vmem:[#allocation13 + $0xc0] sm:$0xff]
    %v3445 = vld [vmem:[#allocation13 + $0xc8] sm:$0xff]
    %v3446 = vld [vmem:[#allocation13 + $0xd0] sm:$0xff]
    %v3447 = vld [vmem:[#allocation13 + $0xd8] sm:$0xff]
    %v3448 = vld [vmem:[#allocation13 + $0xe0] sm:$0xff]
    %v3449 = vld [vmem:[#allocation13 + $0xe8] sm:$0xff]
    %v3450 = vld [vmem:[#allocation13 + $0xf0] sm:$0xff]
    %v3451 = vld [vmem:[#allocation13 + $0xf8] sm:$0xff]
    %v3452 = vld [vmem:[#allocation13 + $0x100] sm:$0xff]
    %v3453 = vld [vmem:[#allocation13 + $0x108] sm:$0xff]
    %v3454 = vld [vmem:[#allocation13 + $0x110] sm:$0xff]
    %v3455 = vld [vmem:[#allocation13 + $0x118] sm:$0xff]
    %v3456 = vld [vmem:[#allocation13 + $0x120] sm:$0xff]
    %v3457 = vld [vmem:[#allocation13 + $0x128] sm:$0xff]
    %v3458 = vld [vmem:[#allocation13 + $0x130] sm:$0xff]
    %v3459 = vld [vmem:[#allocation13 + $0x138] sm:$0xff]
    %v3460 = vld [vmem:[#allocation13 + $0x140] sm:$0xff]
    %v3461 = vld [vmem:[#allocation13 + $0x148] sm:$0xff]
    %v3462 = vld [vmem:[#allocation13 + $0x150] sm:$0xff]
    %v3463 = vld [vmem:[#allocation13 + $0x158] sm:$0xff]
    %v3464 = vld [vmem:[#allocation13 + $0x160] sm:$0xff]
    %v3465 = vld [vmem:[#allocation13 + $0x168] sm:$0xff]
    %v3466 = vld [vmem:[#allocation13 + $0x170] sm:$0xff]
    %v3467 = vld [vmem:[#allocation13 + $0x178] sm:$0xff]
    %v3468 = vld [vmem:[%s13] sm:$0x7]
    %s3469 = scalar_lea.vmem [#allocation13], 384
    %v3470 = vld [vmem:[%s3469] sm:$0xff]
    %v3471 = vld [vmem:[%s3469 + $0x8] sm:$0xff]
    %v3472 = vld [vmem:[%s3469 + $0x10] sm:$0xff]
    %v3473 = vld [vmem:[%s3469 + $0x18] sm:$0xff]
    %v3474 = vld [vmem:[%s3469 + $0x20] sm:$0xff]
    %v3475 = vld [vmem:[%s3469 + $0x28] sm:$0xff]
    %v3476 = vld [vmem:[%s3469 + $0x30] sm:$0xff]
    %v3477 = vld [vmem:[%s3469 + $0x38] sm:$0xff]
    %v3478 = vld [vmem:[%s3469 + $0x40] sm:$0xff]
    %v3479 = vld [vmem:[%s3469 + $0x48] sm:$0xff]
    %v3480 = vld [vmem:[%s3469 + $0x50] sm:$0xff]
    %v3481 = vld [vmem:[%s3469 + $0x58] sm:$0xff]
    %v3482 = vld [vmem:[%s3469 + $0x60] sm:$0xff]
    %v3483 = vld [vmem:[%s3469 + $0x68] sm:$0xff]
    %v3484 = vld [vmem:[%s3469 + $0x70] sm:$0xff]
    %v3485 = vld [vmem:[%s3469 + $0x78] sm:$0xff]
    %v3486 = vld [vmem:[%s3469 + $0x80] sm:$0xff]
    %v3487 = vld [vmem:[%s3469 + $0x88] sm:$0xff]
    %v3488 = vld [vmem:[%s3469 + $0x90] sm:$0xff]
    %v3489 = vld [vmem:[%s3469 + $0x98] sm:$0xff]
    %v3490 = vld [vmem:[%s3469 + $0xa0] sm:$0xff]
    %v3491 = vld [vmem:[%s3469 + $0xa8] sm:$0xff]
    %v3492 = vld [vmem:[%s3469 + $0xb0] sm:$0xff]
    %v3493 = vld [vmem:[%s3469 + $0xb8] sm:$0xff]
    %v3494 = vld [vmem:[%s3469 + $0xc0] sm:$0xff]
    %v3495 = vld [vmem:[%s3469 + $0xc8] sm:$0xff]
    %v3496 = vld [vmem:[%s3469 + $0xd0] sm:$0xff]
    %v3497 = vld [vmem:[%s3469 + $0xd8] sm:$0xff]
    %v3498 = vld [vmem:[%s3469 + $0xe0] sm:$0xff]
    %v3499 = vld [vmem:[%s3469 + $0xe8] sm:$0xff]
    %v3500 = vld [vmem:[%s3469 + $0xf0] sm:$0xff]
    %v3501 = vld [vmem:[%s3469 + $0xf8] sm:$0xff]
    %v3502 = vld [vmem:[%s3469 + $0x100] sm:$0xff]
    %v3503 = vld [vmem:[%s3469 + $0x108] sm:$0xff]
    %v3504 = vld [vmem:[%s3469 + $0x110] sm:$0xff]
    %v3505 = vld [vmem:[%s3469 + $0x118] sm:$0xff]
    %v3506 = vld [vmem:[%s3469 + $0x120] sm:$0xff]
    %v3507 = vld [vmem:[%s3469 + $0x128] sm:$0xff]
    %v3508 = vld [vmem:[%s3469 + $0x130] sm:$0xff]
    %v3509 = vld [vmem:[%s3469 + $0x138] sm:$0xff]
    %v3510 = vld [vmem:[%s3469 + $0x140] sm:$0xff]
    %v3511 = vld [vmem:[%s3469 + $0x148] sm:$0xff]
    %v3512 = vld [vmem:[%s3469 + $0x150] sm:$0xff]
    %v3513 = vld [vmem:[%s3469 + $0x158] sm:$0xff]
    %v3514 = vld [vmem:[%s3469 + $0x160] sm:$0xff]
    %v3515 = vld [vmem:[%s3469 + $0x168] sm:$0xff]
    %v3516 = vld [vmem:[%s3469 + $0x170] sm:$0xff]
    %v3517 = vld [vmem:[%s3469 + $0x178] sm:$0xff]
    %s3518 = scalar_lea.vmem %s13, 3
    %v3519 = vld [vmem:[%s3518] sm:$0x7]
    %v3521 = vperm.slane %v3468, 0
    %v3522 = vperm.slane %v3468, 1
    %v3523 = vperm.slane %v3468, 2
    %3527 = vmatpush.msra.mxu0 %v3465
    %3528 = vmatpush.msra.mxu0 %v3462
    %3529 = vmatpush.msra.mxu0 %v3459
    %3530 = vmatpush.msra.mxu0 %v3456
    %3531 = vmatpush.msra.mxu0 %v3453
    %3532 = vmatpush.msra.mxu0 %v3450
    %3533 = vmatpush.msra.mxu0 %v3447
    %3534 = vmatpush.msra.mxu0 %v3444
    %3535 = vmatpush.msra.mxu0 %v3441
    %3536 = vmatpush.msra.mxu0 %v3438
    %3537 = vmatpush.msra.mxu0 %v3435
    %3538 = vmatpush.msra.mxu0 %v3432
    %3539 = vmatpush.msra.mxu0 %v3429
    %3540 = vmatpush.msra.mxu0 %v3426
    %3541 = vmatpush.msra.mxu0 %v3423
    %3542 = vmatpush.msra.mxu0 %v3420
    %3543 = vmatmul.f32.gmra.mxu0 0.0
    %v3544 = vpop.f32.mrf.mxu0
    %v3545 = vadd.f32 %v3521, %v3544
    %3546 = vdwg.mxu0
    %3547 = vmatpush.msra.mxu0 %v3466
    %3548 = vmatpush.msra.mxu0 %v3463
    %3549 = vmatpush.msra.mxu0 %v3460
    %3550 = vmatpush.msra.mxu0 %v3457
    %3551 = vmatpush.msra.mxu0 %v3454
    %3552 = vmatpush.msra.mxu0 %v3451
    %3553 = vmatpush.msra.mxu0 %v3448
    %3554 = vmatpush.msra.mxu0 %v3445
    %3555 = vmatpush.msra.mxu0 %v3442
    %3556 = vmatpush.msra.mxu0 %v3439
    %3557 = vmatpush.msra.mxu0 %v3436
    %3558 = vmatpush.msra.mxu0 %v3433
    %3559 = vmatpush.msra.mxu0 %v3430
    %3560 = vmatpush.msra.mxu0 %v3427
    %3561 = vmatpush.msra.mxu0 %v3424
    %3562 = vmatpush.msra.mxu0 %v3421
    %3563 = vmatmul.f32.gmra.mxu0 0.0
    %v3564 = vpop.f32.mrf.mxu0
    %v3565 = vadd.f32 %v3522, %v3564
    %3566 = vdwg.mxu0
    %3567 = vmatpush.msra.mxu0 %v3467
    %3568 = vmatpush.msra.mxu0 %v3464
    %3569 = vmatpush.msra.mxu0 %v3461
    %3570 = vmatpush.msra.mxu0 %v3458
    %3571 = vmatpush.msra.mxu0 %v3455
    %3572 = vmatpush.msra.mxu0 %v3452
    %3573 = vmatpush.msra.mxu0 %v3449
    %3574 = vmatpush.msra.mxu0 %v3446
    %3575 = vmatpush.msra.mxu0 %v3443
    %3576 = vmatpush.msra.mxu0 %v3440
    %3577 = vmatpush.msra.mxu0 %v3437
    %3578 = vmatpush.msra.mxu0 %v3434
    %3579 = vmatpush.msra.mxu0 %v3431
    %3580 = vmatpush.msra.mxu0 %v3428
    %3581 = vmatpush.msra.mxu0 %v3425
    %3582 = vmatpush.msra.mxu0 %v3422
    %3583 = vmatmul.f32.gmra.mxu0 0.0
    %v3584 = vpop.f32.mrf.mxu0
    %v3585 = vadd.f32 %v3523, %v3584
    %3586 = vdwg.mxu0
    %v3587 = vadd.f32 %v3242, %v3545
    %v3588 = vxor.u32 %v3587, 2147483648
    %v3589 = vmul.f32 %v3588, 1.442695
    %v3590 = vpow.pop %v3589
    %v3591 = vadd.f32 %v3590, 1.0
    %v3592 = vrcp.pop %v3591
    %v3593 = vmul.f32 %v3591, %v3592
    %v3594 = vsub.f32 1.0, %v3593
    %v3595 = vmul.f32 %v3592, %v3594
    %v3596 = vadd.f32 %v3592, %v3595
    %vm3597 = vweird.f32 %v3591
    %vm3598 = vweird.f32 %v3592
    %vm3599 = vmor %vm3597, %vm3598
    %v3600 = vsel %vm3599, %v3592, %v3596
    %v3601 = vand.u32 2147483647, %v3591
    %vm3602 = vcmp.eq.f32.partialorder %v3601, 8.507059e+37
    %v3603 = vand.u32 %v3591, 2147483648
    %v3604 = vor.u32 1.1754944e-38, %v3603
    %v3605 = vsel %vm3602, %v3604, %v3600
    %v3606 = vmul.f32 1.0, %v3605
    %v3607 = vadd.f32 %v3265, %v3565
    %v3608 = vxor.u32 %v3607, 2147483648
    %v3609 = vmul.f32 %v3608, 1.442695
    %v3610 = vpow.pop %v3609
    %v3611 = vadd.f32 %v3610, 1.0
    %v3612 = vrcp.pop %v3611
    %v3613 = vmul.f32 %v3611, %v3612
    %v3614 = vsub.f32 1.0, %v3613
    %v3615 = vmul.f32 %v3612, %v3614
    %v3616 = vadd.f32 %v3612, %v3615
    %vm3617 = vweird.f32 %v3611
    %vm3618 = vweird.f32 %v3612
    %vm3619 = vmor %vm3617, %vm3618
    %v3620 = vsel %vm3619, %v3612, %v3616
    %v3621 = vand.u32 2147483647, %v3611
    %vm3622 = vcmp.eq.f32.partialorder %v3621, 8.507059e+37
    %v3623 = vand.u32 %v3611, 2147483648
    %v3624 = vor.u32 1.1754944e-38, %v3623
    %v3625 = vsel %vm3622, %v3624, %v3620
    %v3626 = vmul.f32 1.0, %v3625
    %v3627 = vmul.f32 %v3606, %v3585
    %v3628 = vadd.f32 %v3288, %v3627
    %v3629 = vtanh.pop %v3628
    %v3630 = vsub.f32 1.0, %v3626
    %v3631 = vmul.f32 %v3630, %v3629
    %v3632 = vmul.f32 %v3626, 0.0
    %v3633 = vadd.f32 %v3631, %v3632
    %3634 = vmatpush.msra.mxu0 %v3465
    %3635 = vmatpush.msra.mxu0 %v3462
    %3636 = vmatpush.msra.mxu0 %v3459
    %3637 = vmatpush.msra.mxu0 %v3456
    %3638 = vmatpush.msra.mxu0 %v3453
    %3639 = vmatpush.msra.mxu0 %v3450
    %3640 = vmatpush.msra.mxu0 %v3447
    %3641 = vmatpush.msra.mxu0 %v3444
    %3642 = vmatpush.msra.mxu0 %v3441
    %3643 = vmatpush.msra.mxu0 %v3438
    %3644 = vmatpush.msra.mxu0 %v3435
    %3645 = vmatpush.msra.mxu0 %v3432
    %3646 = vmatpush.msra.mxu0 %v3429
    %3647 = vmatpush.msra.mxu0 %v3426
    %3648 = vmatpush.msra.mxu0 %v3423
    %3649 = vmatpush.msra.mxu0 %v3420
    %3650 = vmatmul.f32.gmra.mxu0 %v3633
    %v3651 = vpop.f32.mrf.mxu0
    %v3652 = vadd.f32 %v3521, %v3651
    %3653 = vdwg.mxu0
    %3654 = vmatpush.msra.mxu0 %v3466
    %3655 = vmatpush.msra.mxu0 %v3463
    %3656 = vmatpush.msra.mxu0 %v3460
    %3657 = vmatpush.msra.mxu0 %v3457
    %3658 = vmatpush.msra.mxu0 %v3454
    %3659 = vmatpush.msra.mxu0 %v3451
    %3660 = vmatpush.msra.mxu0 %v3448
    %3661 = vmatpush.msra.mxu0 %v3445
    %3662 = vmatpush.msra.mxu0 %v3442
    %3663 = vmatpush.msra.mxu0 %v3439
    %3664 = vmatpush.msra.mxu0 %v3436
    %3665 = vmatpush.msra.mxu0 %v3433
    %3666 = vmatpush.msra.mxu0 %v3430
    %3667 = vmatpush.msra.mxu0 %v3427
    %3668 = vmatpush.msra.mxu0 %v3424
    %3669 = vmatpush.msra.mxu0 %v3421
    %3670 = vmatmul.f32.gmra.mxu0 %v3633
    %v3671 = vpop.f32.mrf.mxu0
    %v3672 = vadd.f32 %v3522, %v3671
    %3673 = vdwg.mxu0
    %3674 = vmatpush.msra.mxu0 %v3467
    %3675 = vmatpush.msra.mxu0 %v3464
    %3676 = vmatpush.msra.mxu0 %v3461
    %3677 = vmatpush.msra.mxu0 %v3458
    %3678 = vmatpush.msra.mxu0 %v3455
    %3679 = vmatpush.msra.mxu0 %v3452
    %3680 = vmatpush.msra.mxu0 %v3449
    %3681 = vmatpush.msra.mxu0 %v3446
    %3682 = vmatpush.msra.mxu0 %v3443
    %3683 = vmatpush.msra.mxu0 %v3440
    %3684 = vmatpush.msra.mxu0 %v3437
    %3685 = vmatpush.msra.mxu0 %v3434
    %3686 = vmatpush.msra.mxu0 %v3431
    %3687 = vmatpush.msra.mxu0 %v3428
    %3688 = vmatpush.msra.mxu0 %v3425
    %3689 = vmatpush.msra.mxu0 %v3422
    %3690 = vmatmul.f32.gmra.mxu0 %v3633
    %v3691 = vpop.f32.mrf.mxu0
    %v3692 = vadd.f32 %v3523, %v3691
    %3693 = vdwg.mxu0
    %v3695 = vrot.slane %v3652, 3
    %v3697 = vadd.f32 %v3242, %v3695
    %v3698 = vadd.f32 %v3245, %v3695
    %v3699 = vxor.u32 %v3697, 2147483648
    %v3700 = vxor.u32 %v3698, 2147483648
    %v3701 = vmul.f32 %v3699, 1.442695
    %v3702 = vpow.pop %v3701
    %v3703 = vmul.f32 %v3700, 1.442695
    %v3704 = vpow.pop %v3703
    %v3705 = vadd.f32 %v3702, 1.0
    %v3706 = vadd.f32 %v3704, 1.0
    %v3707 = vrcp.pop %v3705
    %v3708 = vmul.f32 %v3705, %v3707
    %v3709 = vsub.f32 1.0, %v3708
    %v3710 = vmul.f32 %v3707, %v3709
    %v3711 = vadd.f32 %v3707, %v3710
    %vm3712 = vweird.f32 %v3705
    %vm3713 = vweird.f32 %v3707
    %vm3714 = vmor %vm3712, %vm3713
    %v3715 = vsel %vm3714, %v3707, %v3711
    %v3716 = vand.u32 2147483647, %v3705
    %vm3717 = vcmp.eq.f32.partialorder %v3716, 8.507059e+37
    %v3718 = vand.u32 %v3705, 2147483648
    %v3719 = vor.u32 1.1754944e-38, %v3718
    %v3720 = vsel %vm3717, %v3719, %v3715
    %v3721 = vmul.f32 1.0, %v3720
    %v3722 = vrcp.pop %v3706
    %v3723 = vmul.f32 %v3706, %v3722
    %v3724 = vsub.f32 1.0, %v3723
    %v3725 = vmul.f32 %v3722, %v3724
    %v3726 = vadd.f32 %v3722, %v3725
    %vm3727 = vweird.f32 %v3706
    %vm3728 = vweird.f32 %v3722
    %vm3729 = vmor %vm3727, %vm3728
    %v3730 = vsel %vm3729, %v3722, %v3726
    %v3731 = vand.u32 2147483647, %v3706
    %vm3732 = vcmp.eq.f32.partialorder %v3731, 8.507059e+37
    %v3733 = vand.u32 %v3706, 2147483648
    %v3734 = vor.u32 1.1754944e-38, %v3733
    %v3735 = vsel %vm3732, %v3734, %v3730
    %v3736 = vmul.f32 1.0, %v3735
    %v3738 = vrot.slane %v3672, 3
    %v3740 = vadd.f32 %v3265, %v3738
    %v3741 = vadd.f32 %v3268, %v3738
    %v3742 = vxor.u32 %v3740, 2147483648
    %v3743 = vxor.u32 %v3741, 2147483648
    %v3744 = vmul.f32 %v3742, 1.442695
    %v3745 = vpow.pop %v3744
    %v3746 = vmul.f32 %v3743, 1.442695
    %v3747 = vpow.pop %v3746
    %v3748 = vadd.f32 %v3745, 1.0
    %v3749 = vadd.f32 %v3747, 1.0
    %v3750 = vrcp.pop %v3748
    %v3751 = vmul.f32 %v3748, %v3750
    %v3752 = vsub.f32 1.0, %v3751
    %v3753 = vmul.f32 %v3750, %v3752
    %v3754 = vadd.f32 %v3750, %v3753
    %vm3755 = vweird.f32 %v3748
    %vm3756 = vweird.f32 %v3750
    %vm3757 = vmor %vm3755, %vm3756
    %v3758 = vsel %vm3757, %v3750, %v3754
    %v3759 = vand.u32 2147483647, %v3748
    %vm3760 = vcmp.eq.f32.partialorder %v3759, 8.507059e+37
    %v3761 = vand.u32 %v3748, 2147483648
    %v3762 = vor.u32 1.1754944e-38, %v3761
    %v3763 = vsel %vm3760, %v3762, %v3758
    %v3764 = vmul.f32 1.0, %v3763
    %v3765 = vrcp.pop %v3749
    %v3766 = vmul.f32 %v3749, %v3765
    %v3767 = vsub.f32 1.0, %v3766
    %v3768 = vmul.f32 %v3765, %v3767
    %v3769 = vadd.f32 %v3765, %v3768
    %vm3770 = vweird.f32 %v3749
    %vm3771 = vweird.f32 %v3765
    %vm3772 = vmor %vm3770, %vm3771
    %v3773 = vsel %vm3772, %v3765, %v3769
    %v3774 = vand.u32 2147483647, %v3749
    %vm3775 = vcmp.eq.f32.partialorder %v3774, 8.507059e+37
    %v3776 = vand.u32 %v3749, 2147483648
    %v3777 = vor.u32 1.1754944e-38, %v3776
    %v3778 = vsel %vm3775, %v3777, %v3773
    %v3779 = vmul.f32 1.0, %v3778
    %v3781 = vrot.slane %v3692, 3
    %v3783 = vmul.f32 %v3721, %v3781
    %v3784 = vmul.f32 %v3736, %v3781
    %v3785 = vadd.f32 %v3288, %v3783
    %v3786 = vadd.f32 %v3291, %v3784
    %v3787 = vtanh.pop %v3785
    %v3788 = vtanh.pop %v3786
    %v3789 = vsub.f32 1.0, %v3764
    %v3790 = vsub.f32 1.0, %v3779
    %v3791 = vmul.f32 %v3789, %v3787
    %v3792 = vmul.f32 %v3790, %v3788
    %v3794 = vrot.slane %v3633, 3
    %v3796 = vmul.f32 %v3764, %v3794
    %v3797 = vmul.f32 %v3779, %v3794
    %v3798 = vadd.f32 %v3791, %v3796
    %v3799 = vadd.f32 %v3792, %v3797
    %vm3802 = vcmask 1042432
    %v3803 = vrot.slane %v3798, 5
    %v3804 = vrot.slane %v3799, 5
    %v3805 = vsel %vm3802, %v3803, %v3804
    %3807 = vmatpush.msra.mxu0 %v3465
    %3808 = vmatpush.msra.mxu0 %v3462
    %3809 = vmatpush.msra.mxu0 %v3459
    %3810 = vmatpush.msra.mxu0 %v3456
    %3811 = vmatpush.msra.mxu0 %v3453
    %3812 = vmatpush.msra.mxu0 %v3450
    %3813 = vmatpush.msra.mxu0 %v3447
    %3814 = vmatpush.msra.mxu0 %v3444
    %3815 = vmatpush.msra.mxu0 %v3441
    %3816 = vmatpush.msra.mxu0 %v3438
    %3817 = vmatpush.msra.mxu0 %v3435
    %3818 = vmatpush.msra.mxu0 %v3432
    %3819 = vmatpush.msra.mxu0 %v3429
    %3820 = vmatpush.msra.mxu0 %v3426
    %3821 = vmatpush.msra.mxu0 %v3423
    %3822 = vmatpush.msra.mxu0 %v3420
    %3823 = vmatmul.f32.gmra.mxu0 %v3805
    %v3824 = vpop.f32.mrf.mxu0
    %v3825 = vadd.f32 %v3521, %v3824
    %3826 = vdwg.mxu0
    %3827 = vmatpush.msra.mxu0 %v3466
    %3828 = vmatpush.msra.mxu0 %v3463
    %3829 = vmatpush.msra.mxu0 %v3460
    %3830 = vmatpush.msra.mxu0 %v3457
    %3831 = vmatpush.msra.mxu0 %v3454
    %3832 = vmatpush.msra.mxu0 %v3451
    %3833 = vmatpush.msra.mxu0 %v3448
    %3834 = vmatpush.msra.mxu0 %v3445
    %3835 = vmatpush.msra.mxu0 %v3442
    %3836 = vmatpush.msra.mxu0 %v3439
    %3837 = vmatpush.msra.mxu0 %v3436
    %3838 = vmatpush.msra.mxu0 %v3433
    %3839 = vmatpush.msra.mxu0 %v3430
    %3840 = vmatpush.msra.mxu0 %v3427
    %3841 = vmatpush.msra.mxu0 %v3424
    %3842 = vmatpush.msra.mxu0 %v3421
    %3843 = vmatmul.f32.gmra.mxu0 %v3805
    %v3844 = vpop.f32.mrf.mxu0
    %v3845 = vadd.f32 %v3522, %v3844
    %3846 = vdwg.mxu0
    %3847 = vmatpush.msra.mxu0 %v3467
    %3848 = vmatpush.msra.mxu0 %v3464
    %3849 = vmatpush.msra.mxu0 %v3461
    %3850 = vmatpush.msra.mxu0 %v3458
    %3851 = vmatpush.msra.mxu0 %v3455
    %3852 = vmatpush.msra.mxu0 %v3452
    %3853 = vmatpush.msra.mxu0 %v3449
    %3854 = vmatpush.msra.mxu0 %v3446
    %3855 = vmatpush.msra.mxu0 %v3443
    %3856 = vmatpush.msra.mxu0 %v3440
    %3857 = vmatpush.msra.mxu0 %v3437
    %3858 = vmatpush.msra.mxu0 %v3434
    %3859 = vmatpush.msra.mxu0 %v3431
    %3860 = vmatpush.msra.mxu0 %v3428
    %3861 = vmatpush.msra.mxu0 %v3425
    %3862 = vmatpush.msra.mxu0 %v3422
    %3863 = vmatmul.f32.gmra.mxu0 %v3805
    %v3864 = vpop.f32.mrf.mxu0
    %v3865 = vadd.f32 %v3523, %v3864
    %3866 = vdwg.mxu0
    %v3868 = vrot.slane %v3825, 6
    %v3870 = vadd.f32 %v3245, %v3868
    %v3871 = vxor.u32 %v3870, 2147483648
    %v3872 = vmul.f32 %v3871, 1.442695
    %v3873 = vpow.pop %v3872
    %v3874 = vadd.f32 %v3873, 1.0
    %v3875 = vrcp.pop %v3874
    %v3876 = vmul.f32 %v3874, %v3875
    %v3877 = vsub.f32 1.0, %v3876
    %v3878 = vmul.f32 %v3875, %v3877
    %v3879 = vadd.f32 %v3875, %v3878
    %vm3880 = vweird.f32 %v3874
    %vm3881 = vweird.f32 %v3875
    %vm3882 = vmor %vm3880, %vm3881
    %v3883 = vsel %vm3882, %v3875, %v3879
    %v3884 = vand.u32 2147483647, %v3874
    %vm3885 = vcmp.eq.f32.partialorder %v3884, 8.507059e+37
    %v3886 = vand.u32 %v3874, 2147483648
    %v3887 = vor.u32 1.1754944e-38, %v3886
    %v3888 = vsel %vm3885, %v3887, %v3883
    %v3889 = vmul.f32 1.0, %v3888
    %v3891 = vrot.slane %v3845, 6
    %v3893 = vadd.f32 %v3268, %v3891
    %v3894 = vxor.u32 %v3893, 2147483648
    %v3895 = vmul.f32 %v3894, 1.442695
    %v3896 = vpow.pop %v3895
    %v3897 = vadd.f32 %v3896, 1.0
    %v3898 = vrcp.pop %v3897
    %v3899 = vmul.f32 %v3897, %v3898
    %v3900 = vsub.f32 1.0, %v3899
    %v3901 = vmul.f32 %v3898, %v3900
    %v3902 = vadd.f32 %v3898, %v3901
    %vm3903 = vweird.f32 %v3897
    %vm3904 = vweird.f32 %v3898
    %vm3905 = vmor %vm3903, %vm3904
    %v3906 = vsel %vm3905, %v3898, %v3902
    %v3907 = vand.u32 2147483647, %v3897
    %vm3908 = vcmp.eq.f32.partialorder %v3907, 8.507059e+37
    %v3909 = vand.u32 %v3897, 2147483648
    %v3910 = vor.u32 1.1754944e-38, %v3909
    %v3911 = vsel %vm3908, %v3910, %v3906
    %v3912 = vmul.f32 1.0, %v3911
    %v3914 = vrot.slane %v3865, 6
    %v3916 = vmul.f32 %v3889, %v3914
    %v3917 = vadd.f32 %v3291, %v3916
    %v3918 = vtanh.pop %v3917
    %v3919 = vsub.f32 1.0, %v3912
    %v3920 = vmul.f32 %v3919, %v3918
    %vm3921 = vcmask 1044480
    %v3922 = vrot.slane %v3798, 3
    %v3923 = vrot.slane %v3799, 3
    %v3924 = vsel %vm3921, %v3922, %v3923
    %v3926 = vmul.f32 %v3912, %v3924
    %v3927 = vadd.f32 %v3920, %v3926
    %v3929 = vperm.slane %v3519, 0
    %v3930 = vperm.slane %v3519, 1
    %v3931 = vperm.slane %v3519, 2
    %3935 = vmatpush.msra.mxu0 %v3515
    %3936 = vmatpush.msra.mxu0 %v3512
    %3937 = vmatpush.msra.mxu0 %v3509
    %3938 = vmatpush.msra.mxu0 %v3506
    %3939 = vmatpush.msra.mxu0 %v3503
    %3940 = vmatpush.msra.mxu0 %v3500
    %3941 = vmatpush.msra.mxu0 %v3497
    %3942 = vmatpush.msra.mxu0 %v3494
    %3943 = vmatpush.msra.mxu0 %v3491
    %3944 = vmatpush.msra.mxu0 %v3488
    %3945 = vmatpush.msra.mxu0 %v3485
    %3946 = vmatpush.msra.mxu0 %v3482
    %3947 = vmatpush.msra.mxu0 %v3479
    %3948 = vmatpush.msra.mxu0 %v3476
    %3949 = vmatpush.msra.mxu0 %v3473
    %3950 = vmatpush.msra.mxu0 %v3470
    %3951 = vmatmul.f32.gmra.mxu0 0.0
    %v3952 = vpop.f32.mrf.mxu0
    %v3953 = vadd.f32 %v3929, %v3952
    %3954 = vdwg.mxu0
    %3955 = vmatpush.msra.mxu0 %v3516
    %3956 = vmatpush.msra.mxu0 %v3513
    %3957 = vmatpush.msra.mxu0 %v3510
    %3958 = vmatpush.msra.mxu0 %v3507
    %3959 = vmatpush.msra.mxu0 %v3504
    %3960 = vmatpush.msra.mxu0 %v3501
    %3961 = vmatpush.msra.mxu0 %v3498
    %3962 = vmatpush.msra.mxu0 %v3495
    %3963 = vmatpush.msra.mxu0 %v3492
    %3964 = vmatpush.msra.mxu0 %v3489
    %3965 = vmatpush.msra.mxu0 %v3486
    %3966 = vmatpush.msra.mxu0 %v3483
    %3967 = vmatpush.msra.mxu0 %v3480
    %3968 = vmatpush.msra.mxu0 %v3477
    %3969 = vmatpush.msra.mxu0 %v3474
    %3970 = vmatpush.msra.mxu0 %v3471
    %3971 = vmatmul.f32.gmra.mxu0 0.0
    %v3972 = vpop.f32.mrf.mxu0
    %v3973 = vadd.f32 %v3930, %v3972
    %3974 = vdwg.mxu0
    %3975 = vmatpush.msra.mxu0 %v3517
    %3976 = vmatpush.msra.mxu0 %v3514
    %3977 = vmatpush.msra.mxu0 %v3511
    %3978 = vmatpush.msra.mxu0 %v3508
    %3979 = vmatpush.msra.mxu0 %v3505
    %3980 = vmatpush.msra.mxu0 %v3502
    %3981 = vmatpush.msra.mxu0 %v3499
    %3982 = vmatpush.msra.mxu0 %v3496
    %3983 = vmatpush.msra.mxu0 %v3493
    %3984 = vmatpush.msra.mxu0 %v3490
    %3985 = vmatpush.msra.mxu0 %v3487
    %3986 = vmatpush.msra.mxu0 %v3484
    %3987 = vmatpush.msra.mxu0 %v3481
    %3988 = vmatpush.msra.mxu0 %v3478
    %3989 = vmatpush.msra.mxu0 %v3475
    %3990 = vmatpush.msra.mxu0 %v3472
    %3991 = vmatmul.f32.gmra.mxu0 0.0
    %v3992 = vpop.f32.mrf.mxu0
    %v3993 = vadd.f32 %v3931, %v3992
    %3994 = vdwg.mxu0
    %v3996 = vrot.slane %v3953, 6
    %v3998 = vadd.f32 %v3372, %v3996
    %v3999 = vxor.u32 %v3998, 2147483648
    %v4000 = vmul.f32 %v3999, 1.442695
    %v4001 = vpow.pop %v4000
    %v4002 = vadd.f32 %v4001, 1.0
    %v4003 = vrcp.pop %v4002
    %v4004 = vmul.f32 %v4002, %v4003
    %v4005 = vsub.f32 1.0, %v4004
    %v4006 = vmul.f32 %v4003, %v4005
    %v4007 = vadd.f32 %v4003, %v4006
    %vm4008 = vweird.f32 %v4002
    %vm4009 = vweird.f32 %v4003
    %vm4010 = vmor %vm4008, %vm4009
    %v4011 = vsel %vm4010, %v4003, %v4007
    %v4012 = vand.u32 2147483647, %v4002
    %vm4013 = vcmp.eq.f32.partialorder %v4012, 8.507059e+37
    %v4014 = vand.u32 %v4002, 2147483648
    %v4015 = vor.u32 1.1754944e-38, %v4014
    %v4016 = vsel %vm4013, %v4015, %v4011
    %v4017 = vmul.f32 1.0, %v4016
    %v4019 = vrot.slane %v3973, 6
    %v4021 = vadd.f32 %v3395, %v4019
    %v4022 = vxor.u32 %v4021, 2147483648
    %v4023 = vmul.f32 %v4022, 1.442695
    %v4024 = vpow.pop %v4023
    %v4025 = vadd.f32 %v4024, 1.0
    %v4026 = vrcp.pop %v4025
    %v4027 = vmul.f32 %v4025, %v4026
    %v4028 = vsub.f32 1.0, %v4027
    %v4029 = vmul.f32 %v4026, %v4028
    %v4030 = vadd.f32 %v4026, %v4029
    %vm4031 = vweird.f32 %v4025
    %vm4032 = vweird.f32 %v4026
    %vm4033 = vmor %vm4031, %vm4032
    %v4034 = vsel %vm4033, %v4026, %v4030
    %v4035 = vand.u32 2147483647, %v4025
    %vm4036 = vcmp.eq.f32.partialorder %v4035, 8.507059e+37
    %v4037 = vand.u32 %v4025, 2147483648
    %v4038 = vor.u32 1.1754944e-38, %v4037
    %v4039 = vsel %vm4036, %v4038, %v4034
    %v4040 = vmul.f32 1.0, %v4039
    %v4042 = vrot.slane %v3993, 6
    %v4044 = vmul.f32 %v4017, %v4042
    %v4045 = vadd.f32 %v3418, %v4044
    %v4046 = vtanh.pop %v4045
    %v4047 = vsub.f32 1.0, %v4040
    %v4048 = vmul.f32 %v4047, %v4046
    %v4049 = vmul.f32 %v4040, 0.0
    %v4050 = vadd.f32 %v4048, %v4049
    %v4052 = vrot.slane %v4050, 2
    %4054 = vmatpush.msra.mxu0 %v3515
    %4055 = vmatpush.msra.mxu0 %v3512
    %4056 = vmatpush.msra.mxu0 %v3509
    %4057 = vmatpush.msra.mxu0 %v3506
    %4058 = vmatpush.msra.mxu0 %v3503
    %4059 = vmatpush.msra.mxu0 %v3500
    %4060 = vmatpush.msra.mxu0 %v3497
    %4061 = vmatpush.msra.mxu0 %v3494
    %4062 = vmatpush.msra.mxu0 %v3491
    %4063 = vmatpush.msra.mxu0 %v3488
    %4064 = vmatpush.msra.mxu0 %v3485
    %4065 = vmatpush.msra.mxu0 %v3482
    %4066 = vmatpush.msra.mxu0 %v3479
    %4067 = vmatpush.msra.mxu0 %v3476
    %4068 = vmatpush.msra.mxu0 %v3473
    %4069 = vmatpush.msra.mxu0 %v3470
    %4070 = vmatmul.f32.gmra.mxu0 %v4052
    %v4071 = vpop.f32.mrf.mxu0
    %v4072 = vadd.f32 %v3929, %v4071
    %4073 = vdwg.mxu0
    %4074 = vmatpush.msra.mxu0 %v3516
    %4075 = vmatpush.msra.mxu0 %v3513
    %4076 = vmatpush.msra.mxu0 %v3510
    %4077 = vmatpush.msra.mxu0 %v3507
    %4078 = vmatpush.msra.mxu0 %v3504
    %4079 = vmatpush.msra.mxu0 %v3501
    %4080 = vmatpush.msra.mxu0 %v3498
    %4081 = vmatpush.msra.mxu0 %v3495
    %4082 = vmatpush.msra.mxu0 %v3492
    %4083 = vmatpush.msra.mxu0 %v3489
    %4084 = vmatpush.msra.mxu0 %v3486
    %4085 = vmatpush.msra.mxu0 %v3483
    %4086 = vmatpush.msra.mxu0 %v3480
    %4087 = vmatpush.msra.mxu0 %v3477
    %4088 = vmatpush.msra.mxu0 %v3474
    %4089 = vmatpush.msra.mxu0 %v3471
    %4090 = vmatmul.f32.gmra.mxu0 %v4052
    %v4091 = vpop.f32.mrf.mxu0
    %v4092 = vadd.f32 %v3930, %v4091
    %4093 = vdwg.mxu0
    %4094 = vmatpush.msra.mxu0 %v3517
    %4095 = vmatpush.msra.mxu0 %v3514
    %4096 = vmatpush.msra.mxu0 %v3511
    %4097 = vmatpush.msra.mxu0 %v3508
    %4098 = vmatpush.msra.mxu0 %v3505
    %4099 = vmatpush.msra.mxu0 %v3502
    %4100 = vmatpush.msra.mxu0 %v3499
    %4101 = vmatpush.msra.mxu0 %v3496
    %4102 = vmatpush.msra.mxu0 %v3493
    %4103 = vmatpush.msra.mxu0 %v3490
    %4104 = vmatpush.msra.mxu0 %v3487
    %4105 = vmatpush.msra.mxu0 %v3484
    %4106 = vmatpush.msra.mxu0 %v3481
    %4107 = vmatpush.msra.mxu0 %v3478
    %4108 = vmatpush.msra.mxu0 %v3475
    %4109 = vmatpush.msra.mxu0 %v3472
    %4110 = vmatmul.f32.gmra.mxu0 %v4052
    %v4111 = vpop.f32.mrf.mxu0
    %v4112 = vadd.f32 %v3931, %v4111
    %4113 = vdwg.mxu0
    %v4115 = vrot.slane %v4072, 3
    %v4117 = vadd.f32 %v3369, %v4115
    %v4118 = vadd.f32 %v3372, %v4115
    %v4119 = vxor.u32 %v4117, 2147483648
    %v4120 = vxor.u32 %v4118, 2147483648
    %v4121 = vmul.f32 %v4119, 1.442695
    %v4122 = vpow.pop %v4121
    %v4123 = vmul.f32 %v4120, 1.442695
    %v4124 = vpow.pop %v4123
    %v4125 = vadd.f32 %v4122, 1.0
    %v4126 = vadd.f32 %v4124, 1.0
    %v4127 = vrcp.pop %v4125
    %v4128 = vmul.f32 %v4125, %v4127
    %v4129 = vsub.f32 1.0, %v4128
    %v4130 = vmul.f32 %v4127, %v4129
    %v4131 = vadd.f32 %v4127, %v4130
    %vm4132 = vweird.f32 %v4125
    %vm4133 = vweird.f32 %v4127
    %vm4134 = vmor %vm4132, %vm4133
    %v4135 = vsel %vm4134, %v4127, %v4131
    %v4136 = vand.u32 2147483647, %v4125
    %vm4137 = vcmp.eq.f32.partialorder %v4136, 8.507059e+37
    %v4138 = vand.u32 %v4125, 2147483648
    %v4139 = vor.u32 1.1754944e-38, %v4138
    %v4140 = vsel %vm4137, %v4139, %v4135
    %v4141 = vmul.f32 1.0, %v4140
    %v4142 = vrcp.pop %v4126
    %v4143 = vmul.f32 %v4126, %v4142
    %v4144 = vsub.f32 1.0, %v4143
    %v4145 = vmul.f32 %v4142, %v4144
    %v4146 = vadd.f32 %v4142, %v4145
    %vm4147 = vweird.f32 %v4126
    %vm4148 = vweird.f32 %v4142
    %vm4149 = vmor %vm4147, %vm4148
    %v4150 = vsel %vm4149, %v4142, %v4146
    %v4151 = vand.u32 2147483647, %v4126
    %vm4152 = vcmp.eq.f32.partialorder %v4151, 8.507059e+37
    %v4153 = vand.u32 %v4126, 2147483648
    %v4154 = vor.u32 1.1754944e-38, %v4153
    %v4155 = vsel %vm4152, %v4154, %v4150
    %v4156 = vmul.f32 1.0, %v4155
    %v4158 = vrot.slane %v4092, 3
    %v4160 = vadd.f32 %v3392, %v4158
    %v4161 = vadd.f32 %v3395, %v4158
    %v4162 = vxor.u32 %v4160, 2147483648
    %v4163 = vxor.u32 %v4161, 2147483648
    %v4164 = vmul.f32 %v4162, 1.442695
    %v4165 = vpow.pop %v4164
    %v4166 = vmul.f32 %v4163, 1.442695
    %v4167 = vpow.pop %v4166
    %v4168 = vadd.f32 %v4165, 1.0
    %v4169 = vadd.f32 %v4167, 1.0
    %v4170 = vrcp.pop %v4168
    %v4171 = vmul.f32 %v4168, %v4170
    %v4172 = vsub.f32 1.0, %v4171
    %v4173 = vmul.f32 %v4170, %v4172
    %v4174 = vadd.f32 %v4170, %v4173
    %vm4175 = vweird.f32 %v4168
    %vm4176 = vweird.f32 %v4170
    %vm4177 = vmor %vm4175, %vm4176
    %v4178 = vsel %vm4177, %v4170, %v4174
    %v4179 = vand.u32 2147483647, %v4168
    %vm4180 = vcmp.eq.f32.partialorder %v4179, 8.507059e+37
    %v4181 = vand.u32 %v4168, 2147483648
    %v4182 = vor.u32 1.1754944e-38, %v4181
    %v4183 = vsel %vm4180, %v4182, %v4178
    %v4184 = vmul.f32 1.0, %v4183
    %v4185 = vrcp.pop %v4169
    %v4186 = vmul.f32 %v4169, %v4185
    %v4187 = vsub.f32 1.0, %v4186
    %v4188 = vmul.f32 %v4185, %v4187
    %v4189 = vadd.f32 %v4185, %v4188
    %vm4190 = vweird.f32 %v4169
    %vm4191 = vweird.f32 %v4185
    %vm4192 = vmor %vm4190, %vm4191
    %v4193 = vsel %vm4192, %v4185, %v4189
    %v4194 = vand.u32 2147483647, %v4169
    %vm4195 = vcmp.eq.f32.partialorder %v4194, 8.507059e+37
    %v4196 = vand.u32 %v4169, 2147483648
    %v4197 = vor.u32 1.1754944e-38, %v4196
    %v4198 = vsel %vm4195, %v4197, %v4193
    %v4199 = vmul.f32 1.0, %v4198
    %v4201 = vrot.slane %v4112, 3
    %v4203 = vmul.f32 %v4141, %v4201
    %v4204 = vmul.f32 %v4156, %v4201
    %v4205 = vadd.f32 %v3415, %v4203
    %v4206 = vadd.f32 %v3418, %v4204
    %v4207 = vtanh.pop %v4205
    %v4208 = vtanh.pop %v4206
    %v4209 = vsub.f32 1.0, %v4184
    %v4210 = vsub.f32 1.0, %v4199
    %v4211 = vmul.f32 %v4209, %v4207
    %v4212 = vmul.f32 %v4210, %v4208
    %v4213 = vrot.slane %v4050, 5
    %v4215 = vmul.f32 %v4184, %v4213
    %v4216 = vmul.f32 %v4199, %v4213
    %v4217 = vadd.f32 %v4211, %v4215
    %v4218 = vadd.f32 %v4212, %v4216
    %v4221 = vrot.slane %v4217, 5
    %v4222 = vrot.slane %v4218, 5
    %v4223 = vsel %vm3802, %v4221, %v4222
    %4225 = vmatpush.msra.mxu0 %v3515
    %4226 = vmatpush.msra.mxu0 %v3512
    %4227 = vmatpush.msra.mxu0 %v3509
    %4228 = vmatpush.msra.mxu0 %v3506
    %4229 = vmatpush.msra.mxu0 %v3503
    %4230 = vmatpush.msra.mxu0 %v3500
    %4231 = vmatpush.msra.mxu0 %v3497
    %4232 = vmatpush.msra.mxu0 %v3494
    %4233 = vmatpush.msra.mxu0 %v3491
    %4234 = vmatpush.msra.mxu0 %v3488
    %4235 = vmatpush.msra.mxu0 %v3485
    %4236 = vmatpush.msra.mxu0 %v3482
    %4237 = vmatpush.msra.mxu0 %v3479
    %4238 = vmatpush.msra.mxu0 %v3476
    %4239 = vmatpush.msra.mxu0 %v3473
    %4240 = vmatpush.msra.mxu0 %v3470
    %4241 = vmatmul.f32.gmra.mxu0 %v4223
    %v4242 = vpop.f32.mrf.mxu0
    %v4243 = vadd.f32 %v3929, %v4242
    %4244 = vdwg.mxu0
    %4245 = vmatpush.msra.mxu0 %v3516
    %4246 = vmatpush.msra.mxu0 %v3513
    %4247 = vmatpush.msra.mxu0 %v3510
    %4248 = vmatpush.msra.mxu0 %v3507
    %4249 = vmatpush.msra.mxu0 %v3504
    %4250 = vmatpush.msra.mxu0 %v3501
    %4251 = vmatpush.msra.mxu0 %v3498
    %4252 = vmatpush.msra.mxu0 %v3495
    %4253 = vmatpush.msra.mxu0 %v3492
    %4254 = vmatpush.msra.mxu0 %v3489
    %4255 = vmatpush.msra.mxu0 %v3486
    %4256 = vmatpush.msra.mxu0 %v3483
    %4257 = vmatpush.msra.mxu0 %v3480
    %4258 = vmatpush.msra.mxu0 %v3477
    %4259 = vmatpush.msra.mxu0 %v3474
    %4260 = vmatpush.msra.mxu0 %v3471
    %4261 = vmatmul.f32.gmra.mxu0 %v4223
    %v4262 = vpop.f32.mrf.mxu0
    %v4263 = vadd.f32 %v3930, %v4262
    %4264 = vdwg.mxu0
    %4265 = vmatpush.msra.mxu0 %v3517
    %4266 = vmatpush.msra.mxu0 %v3514
    %4267 = vmatpush.msra.mxu0 %v3511
    %4268 = vmatpush.msra.mxu0 %v3508
    %4269 = vmatpush.msra.mxu0 %v3505
    %4270 = vmatpush.msra.mxu0 %v3502
    %4271 = vmatpush.msra.mxu0 %v3499
    %4272 = vmatpush.msra.mxu0 %v3496
    %4273 = vmatpush.msra.mxu0 %v3493
    %4274 = vmatpush.msra.mxu0 %v3490
    %4275 = vmatpush.msra.mxu0 %v3487
    %4276 = vmatpush.msra.mxu0 %v3484
    %4277 = vmatpush.msra.mxu0 %v3481
    %4278 = vmatpush.msra.mxu0 %v3478
    %4279 = vmatpush.msra.mxu0 %v3475
    %4280 = vmatpush.msra.mxu0 %v3472
    %4281 = vmatmul.f32.gmra.mxu0 %v4223
    %v4282 = vpop.f32.mrf.mxu0
    %v4283 = vadd.f32 %v3931, %v4282
    %4284 = vdwg.mxu0
    %v4285 = vadd.f32 %v3369, %v4243
    %v4286 = vxor.u32 %v4285, 2147483648
    %v4287 = vmul.f32 %v4286, 1.442695
    %v4288 = vpow.pop %v4287
    %v4289 = vadd.f32 %v4288, 1.0
    %v4290 = vrcp.pop %v4289
    %v4291 = vmul.f32 %v4289, %v4290
    %v4292 = vsub.f32 1.0, %v4291
    %v4293 = vmul.f32 %v4290, %v4292
    %v4294 = vadd.f32 %v4290, %v4293
    %vm4295 = vweird.f32 %v4289
    %vm4296 = vweird.f32 %v4290
    %vm4297 = vmor %vm4295, %vm4296
    %v4298 = vsel %vm4297, %v4290, %v4294
    %v4299 = vand.u32 2147483647, %v4289
    %vm4300 = vcmp.eq.f32.partialorder %v4299, 8.507059e+37
    %v4301 = vand.u32 %v4289, 2147483648
    %v4302 = vor.u32 1.1754944e-38, %v4301
    %v4303 = vsel %vm4300, %v4302, %v4298
    %v4304 = vmul.f32 1.0, %v4303
    %v4305 = vadd.f32 %v3392, %v4263
    %v4306 = vxor.u32 %v4305, 2147483648
    %v4307 = vmul.f32 %v4306, 1.442695
    %v4308 = vpow.pop %v4307
    %v4309 = vadd.f32 %v4308, 1.0
    %v4310 = vrcp.pop %v4309
    %v4311 = vmul.f32 %v4309, %v4310
    %v4312 = vsub.f32 1.0, %v4311
    %v4313 = vmul.f32 %v4310, %v4312
    %v4314 = vadd.f32 %v4310, %v4313
    %vm4315 = vweird.f32 %v4309
    %vm4316 = vweird.f32 %v4310
    %vm4317 = vmor %vm4315, %vm4316
    %v4318 = vsel %vm4317, %v4310, %v4314
    %v4319 = vand.u32 2147483647, %v4309
    %vm4320 = vcmp.eq.f32.partialorder %v4319, 8.507059e+37
    %v4321 = vand.u32 %v4309, 2147483648
    %v4322 = vor.u32 1.1754944e-38, %v4321
    %v4323 = vsel %vm4320, %v4322, %v4318
    %v4324 = vmul.f32 1.0, %v4323
    %v4325 = vmul.f32 %v4304, %v4283
    %v4326 = vadd.f32 %v3415, %v4325
    %v4327 = vtanh.pop %v4326
    %v4328 = vsub.f32 1.0, %v4324
    %v4329 = vmul.f32 %v4328, %v4327
    %v4330 = vmul.f32 %v4324, %v4223
    %v4331 = vadd.f32 %v4329, %v4330
    %v4332 = vadd.f32 %v3166, %v3633
    %v4333 = vadd.f32 %v4332, %v4331
    %4334 = vst [vmem:[#allocation3] sm:$0x1f] %v4333
    %v4335 = vadd.f32 %v3166, %v3798
    %v4336 = vadd.f32 %v3167, %v3799
    %v4337 = vadd.f32 %v4335, %v4217
    %v4338 = vadd.f32 %v4336, %v4218
    %4339 = vst [vmem:[#allocation3] sm:$0xe0] %v4337
    %4340 = vst [vmem:[#allocation3 + $0x8] sm:$0x3] %v4338
    %v4341 = vadd.f32 %v3167, %v3927
    %v4342 = vadd.f32 %v4341, %v4050
    %4343 = vst [vmem:[#allocation3 + $0x8] sm:$0x7c] %v4342
    %v4344 = vld [vmem:[#allocation3] sm:$0xff]
    %v4345 = vld [vmem:[#allocation3 + $0x8] sm:$0x7f]
    %v4346 = vlaneseq
    %v4347 = vshrl.u32 %v4346, 7
    %v4349 = vrot.slane %v3160, 1
    %v4351 = vmul.f32 %v4333, %v4349
    %v4352 = vsel %vm3921, %v4351, 0.0
    %4353 = vadd.xlane.f32.xlu0 %v4352
    %v4354 = vpop.xlane.xlu0 %4353
    %vm4355 = vcmp.ge.s32.totalorder %v4347, 2
    %v4356 = vsel %vm4355, %v4354, -1e+10
    %v4357 = vrot.slane %v3160, 4
    %v4359 = vmul.f32 %v4337, %v4357
    %v4360 = vmul.f32 %v4338, %v4357
    %vm4361 = vcmask 1047557
    %v4362 = vsel %vm4361, %v4359, 0.0
    %4363 = vadd.xlane.f32.xlu0 %v4362
    %v4364 = vpop.xlane.xlu0 %4363
    %v4365 = vsel %vm279, %v4360, 0.0
    %4366 = vadd.xlane.f32.xlu0 %v4365
    %v4367 = vpop.xlane.xlu0 %4366
    %vm4368 = vcmp.ge.s32.totalorder %v4347, 1
    %v4371 = vrot.slane %v4364, 5
    %v4372 = vrot.slane %v4367, 5
    %v4373 = vsel %vm3802, %v4371, %v4372
    %v4375 = vsel %vm4368, %v4373, -1e+10
    %v4376 = vrot.slane %v3160, 7
    %v4378 = vmul.f32 %v4342, %v4376
    %vm4379 = vcmask 1046530
    %v4380 = vsel %vm4379, %v4378, 0.0
    %4381 = vadd.xlane.f32.xlu0 %v4380
    %v4382 = vpop.xlane.xlu0 %4381
    %vm4383 = vcmp.ge.s32.totalorder %v4347, 0
    %v4385 = vrot.slane %v4382, 2
    %v4387 = vsel %vm4383, %v4385, -1e+10
    %v4388 = vmax.f32 %v4356, %v4375
    %v4389 = vmax.f32 %v4388, %v4387
    %v4390 = vsub.f32 %v4356, %v4389
    %v4391 = vmul.f32 %v4390, 1.442695
    %v4392 = vpow.pop %v4391
    %v4393 = vsub.f32 %v4375, %v4389
    %v4394 = vmul.f32 %v4393, 1.442695
    %v4395 = vpow.pop %v4394
    %v4396 = vsub.f32 %v4387, %v4389
    %v4397 = vmul.f32 %v4396, 1.442695
    %v4398 = vpow.pop %v4397
    %v4399 = vadd.f32 %v4392, %v4395
    %v4400 = vadd.f32 %v4399, %v4398
    %v4401 = vrcp.pop %v4400
    %v4402 = vmul.f32 %v4400, %v4401
    %v4403 = vsub.f32 1.0, %v4402
    %v4404 = vmul.f32 %v4401, %v4403
    %v4405 = vadd.f32 %v4401, %v4404
    %vm4406 = vweird.f32 %v4400
    %vm4407 = vweird.f32 %v4401
    %vm4408 = vmor %vm4406, %vm4407
    %v4409 = vsel %vm4408, %v4401, %v4405
    %v4410 = vand.u32 2147483647, %v4400
    %vm4411 = vcmp.eq.f32.partialorder %v4410, 8.507059e+37
    %v4412 = vand.u32 %v4400, 2147483648
    %v4413 = vor.u32 1.1754944e-38, %v4412
    %v4414 = vsel %vm4411, %v4413, %v4409
    %v4415 = vmul.f32 %v4392, %v4414
    %v4416 = vmul.f32 %v4395, %v4414
    %v4417 = vmul.f32 %v4398, %v4414
    %vm4418 = vcmp.eq.s32.totalorder %v216, 0
    %4420 = vset.pattern.permute.xlu0 0
    %4421 = vperm.xlu0 %4420, %v4415
    %v4422 = vpop.permute.xlu0 %4421
    %v4424 = vsel %vm4418, %v4422, 0.0
    %v4425 = vadd.f32 %v4424, 0.0
    %vm4426 = vcmp.eq.s32.totalorder %v216, 1
    %4428 = vset.pattern.permute.xlu0 0
    %4429 = vperm.xlu0 %4428, %v4416
    %v4430 = vpop.permute.xlu0 %4429
    %v4432 = vsel %vm4426, %v4430, 0.0
    %v4433 = vadd.f32 %v4425, %v4432
    %vm4434 = vcmp.eq.s32.totalorder %v216, 2
    %4436 = vset.pattern.permute.xlu0 0
    %4437 = vperm.xlu0 %4436, %v4417
    %v4438 = vpop.permute.xlu0 %4437
    %v4440 = vsel %vm4434, %v4438, 0.0
    %v4441 = vadd.f32 %v4433, %v4440
    %4442 = vst [vmem:[%s21] sm:$0x1f] %v4441
    %v4443 = vld [vmem:[#allocation15] sm:$0xff]
    %v4444 = vld [vmem:[#allocation15 + $0x8] sm:$0xff]
    %v4445 = vld [vmem:[#allocation15 + $0x10] sm:$0xff]
    %v4446 = vld [vmem:[#allocation15 + $0x18] sm:$0xff]
    %v4447 = vld [vmem:[#allocation15 + $0x20] sm:$0xff]
    %v4448 = vld [vmem:[#allocation15 + $0x28] sm:$0xff]
    %v4449 = vld [vmem:[#allocation15 + $0x30] sm:$0xff]
    %v4450 = vld [vmem:[#allocation15 + $0x38] sm:$0xff]
    %v4451 = vld [vmem:[#allocation15 + $0x40] sm:$0xff]
    %v4452 = vld [vmem:[#allocation15 + $0x48] sm:$0xff]
    %v4453 = vld [vmem:[#allocation15 + $0x50] sm:$0xff]
    %v4454 = vld [vmem:[#allocation15 + $0x58] sm:$0xff]
    %v4455 = vld [vmem:[#allocation15 + $0x60] sm:$0xff]
    %v4456 = vld [vmem:[#allocation15 + $0x68] sm:$0xff]
    %v4457 = vld [vmem:[#allocation15 + $0x70] sm:$0xff]
    %v4458 = vld [vmem:[#allocation15 + $0x78] sm:$0xff]
    %v4459 = vld [vmem:[#allocation15 + $0x80] sm:$0xff]
    %v4460 = vld [vmem:[#allocation15 + $0x88] sm:$0xff]
    %v4461 = vld [vmem:[#allocation15 + $0x90] sm:$0xff]
    %v4462 = vld [vmem:[#allocation15 + $0x98] sm:$0xff]
    %v4463 = vld [vmem:[#allocation15 + $0xa0] sm:$0xff]
    %v4464 = vld [vmem:[#allocation15 + $0xa8] sm:$0xff]
    %v4465 = vld [vmem:[#allocation15 + $0xb0] sm:$0xff]
    %v4466 = vld [vmem:[#allocation15 + $0xb8] sm:$0xff]
    %v4467 = vld [vmem:[#allocation15 + $0xc0] sm:$0xff]
    %v4468 = vld [vmem:[#allocation15 + $0xc8] sm:$0xff]
    %v4469 = vld [vmem:[#allocation15 + $0xd0] sm:$0xff]
    %v4470 = vld [vmem:[#allocation15 + $0xd8] sm:$0xff]
    %v4471 = vld [vmem:[#allocation15 + $0xe0] sm:$0xff]
    %v4472 = vld [vmem:[#allocation15 + $0xe8] sm:$0xff]
    %v4473 = vld [vmem:[#allocation15 + $0xf0] sm:$0xff]
    %v4474 = vld [vmem:[#allocation15 + $0xf8] sm:$0xff]
    %v4475 = vld [vmem:[%s15] sm:$0x3]
    %v4476 = vld [vmem:[#allocation16] sm:$0xff]
    %v4477 = vld [vmem:[#allocation16 + $0x8] sm:$0xff]
    %v4478 = vld [vmem:[#allocation16 + $0x10] sm:$0xff]
    %v4479 = vld [vmem:[#allocation16 + $0x18] sm:$0xff]
    %v4480 = vld [vmem:[#allocation16 + $0x20] sm:$0xff]
    %v4481 = vld [vmem:[#allocation16 + $0x28] sm:$0xff]
    %v4482 = vld [vmem:[#allocation16 + $0x30] sm:$0xff]
    %v4483 = vld [vmem:[#allocation16 + $0x38] sm:$0xff]
    %v4484 = vld [vmem:[#allocation16 + $0x40] sm:$0xff]
    %v4485 = vld [vmem:[#allocation16 + $0x48] sm:$0xff]
    %v4486 = vld [vmem:[#allocation16 + $0x50] sm:$0xff]
    %v4487 = vld [vmem:[#allocation16 + $0x58] sm:$0xff]
    %v4488 = vld [vmem:[#allocation16 + $0x60] sm:$0xff]
    %v4489 = vld [vmem:[#allocation16 + $0x68] sm:$0xff]
    %v4490 = vld [vmem:[#allocation16 + $0x70] sm:$0xff]
    %v4491 = vld [vmem:[#allocation16 + $0x78] sm:$0xff]
    %v4492 = vld [vmem:[#allocation16 + $0x80] sm:$0xff]
    %v4493 = vld [vmem:[#allocation16 + $0x88] sm:$0xff]
    %v4494 = vld [vmem:[#allocation16 + $0x90] sm:$0xff]
    %v4495 = vld [vmem:[#allocation16 + $0x98] sm:$0xff]
    %v4496 = vld [vmem:[#allocation16 + $0xa0] sm:$0xff]
    %v4497 = vld [vmem:[#allocation16 + $0xa8] sm:$0xff]
    %v4498 = vld [vmem:[#allocation16 + $0xb0] sm:$0xff]
    %v4499 = vld [vmem:[#allocation16 + $0xb8] sm:$0xff]
    %v4500 = vld [vmem:[#allocation16 + $0xc0] sm:$0xff]
    %v4501 = vld [vmem:[#allocation16 + $0xc8] sm:$0xff]
    %v4502 = vld [vmem:[#allocation16 + $0xd0] sm:$0xff]
    %v4503 = vld [vmem:[#allocation16 + $0xd8] sm:$0xff]
    %v4504 = vld [vmem:[#allocation16 + $0xe0] sm:$0xff]
    %v4505 = vld [vmem:[#allocation16 + $0xe8] sm:$0xff]
    %v4506 = vld [vmem:[#allocation16 + $0xf0] sm:$0xff]
    %v4507 = vld [vmem:[#allocation16 + $0xf8] sm:$0xff]
    %v4508 = vld [vmem:[%s17] sm:$0x3]
    %v4510 = vperm.slane %v4475, 0
    %v4511 = vperm.slane %v4475, 1
    %4514 = vmatpush.msra.mxu0 %v4473
    %4515 = vmatpush.msra.mxu0 %v4471
    %4516 = vmatpush.msra.mxu0 %v4469
    %4517 = vmatpush.msra.mxu0 %v4467
    %4518 = vmatpush.msra.mxu0 %v4465
    %4519 = vmatpush.msra.mxu0 %v4463
    %4520 = vmatpush.msra.mxu0 %v4461
    %4521 = vmatpush.msra.mxu0 %v4459
    %4522 = vmatpush.msra.mxu0 %v4457
    %4523 = vmatpush.msra.mxu0 %v4455
    %4524 = vmatpush.msra.mxu0 %v4453
    %4525 = vmatpush.msra.mxu0 %v4451
    %4526 = vmatpush.msra.mxu0 %v4449
    %4527 = vmatpush.msra.mxu0 %v4447
    %4528 = vmatpush.msra.mxu0 %v4445
    %4529 = vmatpush.msra.mxu0 %v4443
    %4530 = vmatmul.f32.gmra.mxu0 %v4344
    %v4531 = vpop.f32.mrf.mxu0
    %v4532 = vadd.f32 %v4510, %v4531
    %4533 = vmatmul.f32.gmra.mxu0 %v4345
    %v4534 = vpop.f32.mrf.mxu0
    %v4535 = vadd.f32 %v4510, %v4534
    %4536 = vdwg.mxu0
    %4537 = vmatpush.msra.mxu0 %v4474
    %4538 = vmatpush.msra.mxu0 %v4472
    %4539 = vmatpush.msra.mxu0 %v4470
    %4540 = vmatpush.msra.mxu0 %v4468
    %4541 = vmatpush.msra.mxu0 %v4466
    %4542 = vmatpush.msra.mxu0 %v4464
    %4543 = vmatpush.msra.mxu0 %v4462
    %4544 = vmatpush.msra.mxu0 %v4460
    %4545 = vmatpush.msra.mxu0 %v4458
    %4546 = vmatpush.msra.mxu0 %v4456
    %4547 = vmatpush.msra.mxu0 %v4454
    %4548 = vmatpush.msra.mxu0 %v4452
    %4549 = vmatpush.msra.mxu0 %v4450
    %4550 = vmatpush.msra.mxu0 %v4448
    %4551 = vmatpush.msra.mxu0 %v4446
    %4552 = vmatpush.msra.mxu0 %v4444
    %4553 = vmatmul.f32.gmra.mxu0 %v4344
    %v4554 = vpop.f32.mrf.mxu0
    %v4555 = vadd.f32 %v4511, %v4554
    %4556 = vmatmul.f32.gmra.mxu0 %v4345
    %v4557 = vpop.f32.mrf.mxu0
    %v4558 = vadd.f32 %v4511, %v4557
    %4559 = vdwg.mxu0
    %v4561 = vperm.slane %v4508, 0
    %v4562 = vperm.slane %v4508, 1
    %4565 = vmatpush.msra.mxu0 %v4506
    %4566 = vmatpush.msra.mxu0 %v4504
    %4567 = vmatpush.msra.mxu0 %v4502
    %4568 = vmatpush.msra.mxu0 %v4500
    %4569 = vmatpush.msra.mxu0 %v4498
    %4570 = vmatpush.msra.mxu0 %v4496
    %4571 = vmatpush.msra.mxu0 %v4494
    %4572 = vmatpush.msra.mxu0 %v4492
    %4573 = vmatpush.msra.mxu0 %v4490
    %4574 = vmatpush.msra.mxu0 %v4488
    %4575 = vmatpush.msra.mxu0 %v4486
    %4576 = vmatpush.msra.mxu0 %v4484
    %4577 = vmatpush.msra.mxu0 %v4482
    %4578 = vmatpush.msra.mxu0 %v4480
    %4579 = vmatpush.msra.mxu0 %v4478
    %4580 = vmatpush.msra.mxu0 %v4476
    %4581 = vmatmul.f32.gmra.mxu0 0.0
    %v4582 = vpop.f32.mrf.mxu0
    %v4583 = vadd.f32 %v4561, %v4582
    %4584 = vdwg.mxu0
    %4585 = vmatpush.msra.mxu0 %v4507
    %4586 = vmatpush.msra.mxu0 %v4505
    %4587 = vmatpush.msra.mxu0 %v4503
    %4588 = vmatpush.msra.mxu0 %v4501
    %4589 = vmatpush.msra.mxu0 %v4499
    %4590 = vmatpush.msra.mxu0 %v4497
    %4591 = vmatpush.msra.mxu0 %v4495
    %4592 = vmatpush.msra.mxu0 %v4493
    %4593 = vmatpush.msra.mxu0 %v4491
    %4594 = vmatpush.msra.mxu0 %v4489
    %4595 = vmatpush.msra.mxu0 %v4487
    %4596 = vmatpush.msra.mxu0 %v4485
    %4597 = vmatpush.msra.mxu0 %v4483
    %4598 = vmatpush.msra.mxu0 %v4481
    %4599 = vmatpush.msra.mxu0 %v4479
    %4600 = vmatpush.msra.mxu0 %v4477
    %4601 = vmatmul.f32.gmra.mxu0 0.0
    %v4602 = vpop.f32.mrf.mxu0
    %v4603 = vadd.f32 %v4562, %v4602
    %4604 = vdwg.mxu0
    %v4605 = vadd.f32 %v4532, %v4583
    %v4606 = vxor.u32 %v4605, 2147483648
    %v4607 = vmul.f32 %v4606, 1.442695
    %v4608 = vpow.pop %v4607
    %v4609 = vadd.f32 %v4608, 1.0
    %v4610 = vrcp.pop %v4609
    %v4611 = vmul.f32 %v4609, %v4610
    %v4612 = vsub.f32 1.0, %v4611
    %v4613 = vmul.f32 %v4610, %v4612
    %v4614 = vadd.f32 %v4610, %v4613
    %vm4615 = vweird.f32 %v4609
    %vm4616 = vweird.f32 %v4610
    %vm4617 = vmor %vm4615, %vm4616
    %v4618 = vsel %vm4617, %v4610, %v4614
    %v4619 = vand.u32 2147483647, %v4609
    %vm4620 = vcmp.eq.f32.partialorder %v4619, 8.507059e+37
    %v4621 = vand.u32 %v4609, 2147483648
    %v4622 = vor.u32 1.1754944e-38, %v4621
    %v4623 = vsel %vm4620, %v4622, %v4618
    %v4624 = vmul.f32 1.0, %v4623
    %v4625 = vmul.f32 %v4624, %v4603
    %v4626 = vadd.f32 %v4555, %v4625
    %v4627 = vtanh.pop %v4626
    %v4628 = vmul.f32 %v4422, %v4627
    %v4629 = vsub.f32 1.0, %v4415
    %4631 = vset.pattern.permute.xlu0 0
    %4632 = vperm.xlu0 %4631, %v4629
    %v4633 = vpop.permute.xlu0 %4632
    %v4635 = vmul.f32 %v4633, 0.0
    %v4636 = vadd.f32 %v4628, %v4635
    %4637 = vmatpush.msra.mxu0 %v4506
    %4638 = vmatpush.msra.mxu0 %v4504
    %4639 = vmatpush.msra.mxu0 %v4502
    %4640 = vmatpush.msra.mxu0 %v4500
    %4641 = vmatpush.msra.mxu0 %v4498
    %4642 = vmatpush.msra.mxu0 %v4496
    %4643 = vmatpush.msra.mxu0 %v4494
    %4644 = vmatpush.msra.mxu0 %v4492
    %4645 = vmatpush.msra.mxu0 %v4490
    %4646 = vmatpush.msra.mxu0 %v4488
    %4647 = vmatpush.msra.mxu0 %v4486
    %4648 = vmatpush.msra.mxu0 %v4484
    %4649 = vmatpush.msra.mxu0 %v4482
    %4650 = vmatpush.msra.mxu0 %v4480
    %4651 = vmatpush.msra.mxu0 %v4478
    %4652 = vmatpush.msra.mxu0 %v4476
    %4653 = vmatmul.f32.gmra.mxu0 %v4636
    %v4654 = vpop.f32.mrf.mxu0
    %v4655 = vadd.f32 %v4561, %v4654
    %4656 = vdwg.mxu0
    %4657 = vmatpush.msra.mxu0 %v4507
    %4658 = vmatpush.msra.mxu0 %v4505
    %4659 = vmatpush.msra.mxu0 %v4503
    %4660 = vmatpush.msra.mxu0 %v4501
    %4661 = vmatpush.msra.mxu0 %v4499
    %4662 = vmatpush.msra.mxu0 %v4497
    %4663 = vmatpush.msra.mxu0 %v4495
    %4664 = vmatpush.msra.mxu0 %v4493
    %4665 = vmatpush.msra.mxu0 %v4491
    %4666 = vmatpush.msra.mxu0 %v4489
    %4667 = vmatpush.msra.mxu0 %v4487
    %4668 = vmatpush.msra.mxu0 %v4485
    %4669 = vmatpush.msra.mxu0 %v4483
    %4670 = vmatpush.msra.mxu0 %v4481
    %4671 = vmatpush.msra.mxu0 %v4479
    %4672 = vmatpush.msra.mxu0 %v4477
    %4673 = vmatmul.f32.gmra.mxu0 %v4636
    %v4674 = vpop.f32.mrf.mxu0
    %v4675 = vadd.f32 %v4562, %v4674
    %4676 = vdwg.mxu0
    %v4678 = vrot.slane %v4655, 3
    %v4680 = vadd.f32 %v4532, %v4678
    %v4681 = vadd.f32 %v4535, %v4678
    %v4682 = vxor.u32 %v4680, 2147483648
    %v4683 = vxor.u32 %v4681, 2147483648
    %v4684 = vmul.f32 %v4682, 1.442695
    %v4685 = vpow.pop %v4684
    %v4686 = vmul.f32 %v4683, 1.442695
    %v4687 = vpow.pop %v4686
    %v4688 = vadd.f32 %v4685, 1.0
    %v4689 = vadd.f32 %v4687, 1.0
    %v4690 = vrcp.pop %v4688
    %v4691 = vmul.f32 %v4688, %v4690
    %v4692 = vsub.f32 1.0, %v4691
    %v4693 = vmul.f32 %v4690, %v4692
    %v4694 = vadd.f32 %v4690, %v4693
    %vm4695 = vweird.f32 %v4688
    %vm4696 = vweird.f32 %v4690
    %vm4697 = vmor %vm4695, %vm4696
    %v4698 = vsel %vm4697, %v4690, %v4694
    %v4699 = vand.u32 2147483647, %v4688
    %vm4700 = vcmp.eq.f32.partialorder %v4699, 8.507059e+37
    %v4701 = vand.u32 %v4688, 2147483648
    %v4702 = vor.u32 1.1754944e-38, %v4701
    %v4703 = vsel %vm4700, %v4702, %v4698
    %v4704 = vmul.f32 1.0, %v4703
    %v4705 = vrcp.pop %v4689
    %v4706 = vmul.f32 %v4689, %v4705
    %v4707 = vsub.f32 1.0, %v4706
    %v4708 = vmul.f32 %v4705, %v4707
    %v4709 = vadd.f32 %v4705, %v4708
    %vm4710 = vweird.f32 %v4689
    %vm4711 = vweird.f32 %v4705
    %vm4712 = vmor %vm4710, %vm4711
    %v4713 = vsel %vm4712, %v4705, %v4709
    %v4714 = vand.u32 2147483647, %v4689
    %vm4715 = vcmp.eq.f32.partialorder %v4714, 8.507059e+37
    %v4716 = vand.u32 %v4689, 2147483648
    %v4717 = vor.u32 1.1754944e-38, %v4716
    %v4718 = vsel %vm4715, %v4717, %v4713
    %v4719 = vmul.f32 1.0, %v4718
    %v4721 = vrot.slane %v4675, 3
    %v4723 = vmul.f32 %v4704, %v4721
    %v4724 = vmul.f32 %v4719, %v4721
    %v4725 = vadd.f32 %v4555, %v4723
    %v4726 = vadd.f32 %v4558, %v4724
    %v4727 = vtanh.pop %v4725
    %v4728 = vtanh.pop %v4726
    %v4731 = vrot.slane %v4727, 5
    %v4732 = vrot.slane %v4728, 5
    %v4733 = vsel %vm3802, %v4731, %v4732
    %v4735 = vmul.f32 %v4430, %v4733
    %v4736 = vsub.f32 1.0, %v4416
    %4738 = vset.pattern.permute.xlu0 0
    %4739 = vperm.xlu0 %4738, %v4736
    %v4740 = vpop.permute.xlu0 %4739
    %v4742 = vmul.f32 %v4740, %v4636
    %v4743 = vadd.f32 %v4735, %v4742
    %4744 = vmatpush.msra.mxu0 %v4506
    %4745 = vmatpush.msra.mxu0 %v4504
    %4746 = vmatpush.msra.mxu0 %v4502
    %4747 = vmatpush.msra.mxu0 %v4500
    %4748 = vmatpush.msra.mxu0 %v4498
    %4749 = vmatpush.msra.mxu0 %v4496
    %4750 = vmatpush.msra.mxu0 %v4494
    %4751 = vmatpush.msra.mxu0 %v4492
    %4752 = vmatpush.msra.mxu0 %v4490
    %4753 = vmatpush.msra.mxu0 %v4488
    %4754 = vmatpush.msra.mxu0 %v4486
    %4755 = vmatpush.msra.mxu0 %v4484
    %4756 = vmatpush.msra.mxu0 %v4482
    %4757 = vmatpush.msra.mxu0 %v4480
    %4758 = vmatpush.msra.mxu0 %v4478
    %4759 = vmatpush.msra.mxu0 %v4476
    %4760 = vmatmul.f32.gmra.mxu0 %v4743
    %v4761 = vpop.f32.mrf.mxu0
    %v4762 = vadd.f32 %v4561, %v4761
    %4763 = vdwg.mxu0
    %4764 = vmatpush.msra.mxu0 %v4507
    %4765 = vmatpush.msra.mxu0 %v4505
    %4766 = vmatpush.msra.mxu0 %v4503
    %4767 = vmatpush.msra.mxu0 %v4501
    %4768 = vmatpush.msra.mxu0 %v4499
    %4769 = vmatpush.msra.mxu0 %v4497
    %4770 = vmatpush.msra.mxu0 %v4495
    %4771 = vmatpush.msra.mxu0 %v4493
    %4772 = vmatpush.msra.mxu0 %v4491
    %4773 = vmatpush.msra.mxu0 %v4489
    %4774 = vmatpush.msra.mxu0 %v4487
    %4775 = vmatpush.msra.mxu0 %v4485
    %4776 = vmatpush.msra.mxu0 %v4483
    %4777 = vmatpush.msra.mxu0 %v4481
    %4778 = vmatpush.msra.mxu0 %v4479
    %4779 = vmatpush.msra.mxu0 %v4477
    %4780 = vmatmul.f32.gmra.mxu0 %v4743
    %v4781 = vpop.f32.mrf.mxu0
    %v4782 = vadd.f32 %v4562, %v4781
    %4783 = vdwg.mxu0
    %v4785 = vrot.slane %v4762, 6
    %v4787 = vadd.f32 %v4535, %v4785
    %v4788 = vxor.u32 %v4787, 2147483648
    %v4789 = vmul.f32 %v4788, 1.442695
    %v4790 = vpow.pop %v4789
    %v4791 = vadd.f32 %v4790, 1.0
    %v4792 = vrcp.pop %v4791
    %v4793 = vmul.f32 %v4791, %v4792
    %v4794 = vsub.f32 1.0, %v4793
    %v4795 = vmul.f32 %v4792, %v4794
    %v4796 = vadd.f32 %v4792, %v4795
    %vm4797 = vweird.f32 %v4791
    %vm4798 = vweird.f32 %v4792
    %vm4799 = vmor %vm4797, %vm4798
    %v4800 = vsel %vm4799, %v4792, %v4796
    %v4801 = vand.u32 2147483647, %v4791
    %vm4802 = vcmp.eq.f32.partialorder %v4801, 8.507059e+37
    %v4803 = vand.u32 %v4791, 2147483648
    %v4804 = vor.u32 1.1754944e-38, %v4803
    %v4805 = vsel %vm4802, %v4804, %v4800
    %v4806 = vmul.f32 1.0, %v4805
    %v4808 = vrot.slane %v4782, 6
    %v4810 = vmul.f32 %v4806, %v4808
    %v4811 = vadd.f32 %v4558, %v4810
    %v4812 = vtanh.pop %v4811
    %v4814 = vrot.slane %v4812, 2
    %v4816 = vmul.f32 %v4438, %v4814
    %v4817 = vsub.f32 1.0, %v4417
    %4819 = vset.pattern.permute.xlu0 0
    %4820 = vperm.xlu0 %4819, %v4817
    %v4821 = vpop.permute.xlu0 %4820
    %v4823 = vmul.f32 %v4821, %v4743
    %v4824 = vadd.f32 %v4816, %v4823
    %v4826 = vrot.slane %v4824, 7
    %v4828 = vadd.f32 %v3160, %v4826
    %s4829 = scalar_lea.vmem [#allocation15], 256
    %v4830 = vld [vmem:[%s4829] sm:$0xff]
    %v4831 = vld [vmem:[%s4829 + $0x8] sm:$0xff]
    %v4832 = vld [vmem:[%s4829 + $0x10] sm:$0xff]
    %v4833 = vld [vmem:[%s4829 + $0x18] sm:$0xff]
    %v4834 = vld [vmem:[%s4829 + $0x20] sm:$0xff]
    %v4835 = vld [vmem:[%s4829 + $0x28] sm:$0xff]
    %v4836 = vld [vmem:[%s4829 + $0x30] sm:$0xff]
    %v4837 = vld [vmem:[%s4829 + $0x38] sm:$0xff]
    %v4838 = vld [vmem:[%s4829 + $0x40] sm:$0xff]
    %v4839 = vld [vmem:[%s4829 + $0x48] sm:$0xff]
    %v4840 = vld [vmem:[%s4829 + $0x50] sm:$0xff]
    %v4841 = vld [vmem:[%s4829 + $0x58] sm:$0xff]
    %v4842 = vld [vmem:[%s4829 + $0x60] sm:$0xff]
    %v4843 = vld [vmem:[%s4829 + $0x68] sm:$0xff]
    %v4844 = vld [vmem:[%s4829 + $0x70] sm:$0xff]
    %v4845 = vld [vmem:[%s4829 + $0x78] sm:$0xff]
    %v4846 = vld [vmem:[%s4829 + $0x80] sm:$0xff]
    %v4847 = vld [vmem:[%s4829 + $0x88] sm:$0xff]
    %v4848 = vld [vmem:[%s4829 + $0x90] sm:$0xff]
    %v4849 = vld [vmem:[%s4829 + $0x98] sm:$0xff]
    %v4850 = vld [vmem:[%s4829 + $0xa0] sm:$0xff]
    %v4851 = vld [vmem:[%s4829 + $0xa8] sm:$0xff]
    %v4852 = vld [vmem:[%s4829 + $0xb0] sm:$0xff]
    %v4853 = vld [vmem:[%s4829 + $0xb8] sm:$0xff]
    %v4854 = vld [vmem:[%s4829 + $0xc0] sm:$0xff]
    %v4855 = vld [vmem:[%s4829 + $0xc8] sm:$0xff]
    %v4856 = vld [vmem:[%s4829 + $0xd0] sm:$0xff]
    %v4857 = vld [vmem:[%s4829 + $0xd8] sm:$0xff]
    %v4858 = vld [vmem:[%s4829 + $0xe0] sm:$0xff]
    %v4859 = vld [vmem:[%s4829 + $0xe8] sm:$0xff]
    %v4860 = vld [vmem:[%s4829 + $0xf0] sm:$0xff]
    %v4861 = vld [vmem:[%s4829 + $0xf8] sm:$0xff]
    %s4862 = scalar_lea.vmem %s15, 2
    %v4863 = vld [vmem:[%s4862] sm:$0x3]
    %s4864 = scalar_lea.vmem [#allocation16], 256
    %v4865 = vld [vmem:[%s4864] sm:$0xff]
    %v4866 = vld [vmem:[%s4864 + $0x8] sm:$0xff]
    %v4867 = vld [vmem:[%s4864 + $0x10] sm:$0xff]
    %v4868 = vld [vmem:[%s4864 + $0x18] sm:$0xff]
    %v4869 = vld [vmem:[%s4864 + $0x20] sm:$0xff]
    %v4870 = vld [vmem:[%s4864 + $0x28] sm:$0xff]
    %v4871 = vld [vmem:[%s4864 + $0x30] sm:$0xff]
    %v4872 = vld [vmem:[%s4864 + $0x38] sm:$0xff]
    %v4873 = vld [vmem:[%s4864 + $0x40] sm:$0xff]
    %v4874 = vld [vmem:[%s4864 + $0x48] sm:$0xff]
    %v4875 = vld [vmem:[%s4864 + $0x50] sm:$0xff]
    %v4876 = vld [vmem:[%s4864 + $0x58] sm:$0xff]
    %v4877 = vld [vmem:[%s4864 + $0x60] sm:$0xff]
    %v4878 = vld [vmem:[%s4864 + $0x68] sm:$0xff]
    %v4879 = vld [vmem:[%s4864 + $0x70] sm:$0xff]
    %v4880 = vld [vmem:[%s4864 + $0x78] sm:$0xff]
    %v4881 = vld [vmem:[%s4864 + $0x80] sm:$0xff]
    %v4882 = vld [vmem:[%s4864 + $0x88] sm:$0xff]
    %v4883 = vld [vmem:[%s4864 + $0x90] sm:$0xff]
    %v4884 = vld [vmem:[%s4864 + $0x98] sm:$0xff]
    %v4885 = vld [vmem:[%s4864 + $0xa0] sm:$0xff]
    %v4886 = vld [vmem:[%s4864 + $0xa8] sm:$0xff]
    %v4887 = vld [vmem:[%s4864 + $0xb0] sm:$0xff]
    %v4888 = vld [vmem:[%s4864 + $0xb8] sm:$0xff]
    %v4889 = vld [vmem:[%s4864 + $0xc0] sm:$0xff]
    %v4890 = vld [vmem:[%s4864 + $0xc8] sm:$0xff]
    %v4891 = vld [vmem:[%s4864 + $0xd0] sm:$0xff]
    %v4892 = vld [vmem:[%s4864 + $0xd8] sm:$0xff]
    %v4893 = vld [vmem:[%s4864 + $0xe0] sm:$0xff]
    %v4894 = vld [vmem:[%s4864 + $0xe8] sm:$0xff]
    %v4895 = vld [vmem:[%s4864 + $0xf0] sm:$0xff]
    %v4896 = vld [vmem:[%s4864 + $0xf8] sm:$0xff]
    %s4897 = scalar_lea.vmem %s17, 2
    %v4898 = vld [vmem:[%s4897] sm:$0x3]
    %v4900 = vperm.slane %v4863, 0
    %v4901 = vperm.slane %v4863, 1
    %4904 = vmatpush.msra.mxu0 %v4860
    %4905 = vmatpush.msra.mxu0 %v4858
    %4906 = vmatpush.msra.mxu0 %v4856
    %4907 = vmatpush.msra.mxu0 %v4854
    %4908 = vmatpush.msra.mxu0 %v4852
    %4909 = vmatpush.msra.mxu0 %v4850
    %4910 = vmatpush.msra.mxu0 %v4848
    %4911 = vmatpush.msra.mxu0 %v4846
    %4912 = vmatpush.msra.mxu0 %v4844
    %4913 = vmatpush.msra.mxu0 %v4842
    %4914 = vmatpush.msra.mxu0 %v4840
    %4915 = vmatpush.msra.mxu0 %v4838
    %4916 = vmatpush.msra.mxu0 %v4836
    %4917 = vmatpush.msra.mxu0 %v4834
    %4918 = vmatpush.msra.mxu0 %v4832
    %4919 = vmatpush.msra.mxu0 %v4830
    %4920 = vmatmul.f32.gmra.mxu0 %v4344
    %v4921 = vpop.f32.mrf.mxu0
    %v4922 = vadd.f32 %v4900, %v4921
    %4923 = vmatmul.f32.gmra.mxu0 %v4345
    %v4924 = vpop.f32.mrf.mxu0
    %v4925 = vadd.f32 %v4900, %v4924
    %4926 = vdwg.mxu0
    %4927 = vmatpush.msra.mxu0 %v4861
    %4928 = vmatpush.msra.mxu0 %v4859
    %4929 = vmatpush.msra.mxu0 %v4857
    %4930 = vmatpush.msra.mxu0 %v4855
    %4931 = vmatpush.msra.mxu0 %v4853
    %4932 = vmatpush.msra.mxu0 %v4851
    %4933 = vmatpush.msra.mxu0 %v4849
    %4934 = vmatpush.msra.mxu0 %v4847
    %4935 = vmatpush.msra.mxu0 %v4845
    %4936 = vmatpush.msra.mxu0 %v4843
    %4937 = vmatpush.msra.mxu0 %v4841
    %4938 = vmatpush.msra.mxu0 %v4839
    %4939 = vmatpush.msra.mxu0 %v4837
    %4940 = vmatpush.msra.mxu0 %v4835
    %4941 = vmatpush.msra.mxu0 %v4833
    %4942 = vmatpush.msra.mxu0 %v4831
    %4943 = vmatmul.f32.gmra.mxu0 %v4344
    %v4944 = vpop.f32.mrf.mxu0
    %v4945 = vadd.f32 %v4901, %v4944
    %4946 = vmatmul.f32.gmra.mxu0 %v4345
    %v4947 = vpop.f32.mrf.mxu0
    %v4948 = vadd.f32 %v4901, %v4947
    %4949 = vdwg.mxu0
    %v4951 = vperm.slane %v4898, 0
    %v4952 = vperm.slane %v4898, 1
    %4955 = vmatpush.msra.mxu0 %v4895
    %4956 = vmatpush.msra.mxu0 %v4893
    %4957 = vmatpush.msra.mxu0 %v4891
    %4958 = vmatpush.msra.mxu0 %v4889
    %4959 = vmatpush.msra.mxu0 %v4887
    %4960 = vmatpush.msra.mxu0 %v4885
    %4961 = vmatpush.msra.mxu0 %v4883
    %4962 = vmatpush.msra.mxu0 %v4881
    %4963 = vmatpush.msra.mxu0 %v4879
    %4964 = vmatpush.msra.mxu0 %v4877
    %4965 = vmatpush.msra.mxu0 %v4875
    %4966 = vmatpush.msra.mxu0 %v4873
    %4967 = vmatpush.msra.mxu0 %v4871
    %4968 = vmatpush.msra.mxu0 %v4869
    %4969 = vmatpush.msra.mxu0 %v4867
    %4970 = vmatpush.msra.mxu0 %v4865
    %4971 = vmatmul.f32.gmra.mxu0 0.0
    %v4972 = vpop.f32.mrf.mxu0
    %v4973 = vadd.f32 %v4951, %v4972
    %4974 = vdwg.mxu0
    %4975 = vmatpush.msra.mxu0 %v4896
    %4976 = vmatpush.msra.mxu0 %v4894
    %4977 = vmatpush.msra.mxu0 %v4892
    %4978 = vmatpush.msra.mxu0 %v4890
    %4979 = vmatpush.msra.mxu0 %v4888
    %4980 = vmatpush.msra.mxu0 %v4886
    %4981 = vmatpush.msra.mxu0 %v4884
    %4982 = vmatpush.msra.mxu0 %v4882
    %4983 = vmatpush.msra.mxu0 %v4880
    %4984 = vmatpush.msra.mxu0 %v4878
    %4985 = vmatpush.msra.mxu0 %v4876
    %4986 = vmatpush.msra.mxu0 %v4874
    %4987 = vmatpush.msra.mxu0 %v4872
    %4988 = vmatpush.msra.mxu0 %v4870
    %4989 = vmatpush.msra.mxu0 %v4868
    %4990 = vmatpush.msra.mxu0 %v4866
    %4991 = vmatmul.f32.gmra.mxu0 0.0
    %v4992 = vpop.f32.mrf.mxu0
    %v4993 = vadd.f32 %v4952, %v4992
    %4994 = vdwg.mxu0
    %v4996 = vrot.slane %v4973, 6
    %v4998 = vadd.f32 %v4925, %v4996
    %v4999 = vxor.u32 %v4998, 2147483648
    %v5000 = vmul.f32 %v4999, 1.442695
    %v5001 = vpow.pop %v5000
    %v5002 = vadd.f32 %v5001, 1.0
    %v5003 = vrcp.pop %v5002
    %v5004 = vmul.f32 %v5002, %v5003
    %v5005 = vsub.f32 1.0, %v5004
    %v5006 = vmul.f32 %v5003, %v5005
    %v5007 = vadd.f32 %v5003, %v5006
    %vm5008 = vweird.f32 %v5002
    %vm5009 = vweird.f32 %v5003
    %vm5010 = vmor %vm5008, %vm5009
    %v5011 = vsel %vm5010, %v5003, %v5007
    %v5012 = vand.u32 2147483647, %v5002
    %vm5013 = vcmp.eq.f32.partialorder %v5012, 8.507059e+37
    %v5014 = vand.u32 %v5002, 2147483648
    %v5015 = vor.u32 1.1754944e-38, %v5014
    %v5016 = vsel %vm5013, %v5015, %v5011
    %v5017 = vmul.f32 1.0, %v5016
    %v5019 = vrot.slane %v4993, 6
    %v5021 = vmul.f32 %v5017, %v5019
    %v5022 = vadd.f32 %v4948, %v5021
    %v5023 = vtanh.pop %v5022
    %v5025 = vrot.slane %v5023, 2
    %v5027 = vmul.f32 %v4438, %v5025
    %v5028 = vmul.f32 %v4821, 0.0
    %v5029 = vadd.f32 %v5027, %v5028
    %5030 = vmatpush.msra.mxu0 %v4895
    %5031 = vmatpush.msra.mxu0 %v4893
    %5032 = vmatpush.msra.mxu0 %v4891
    %5033 = vmatpush.msra.mxu0 %v4889
    %5034 = vmatpush.msra.mxu0 %v4887
    %5035 = vmatpush.msra.mxu0 %v4885
    %5036 = vmatpush.msra.mxu0 %v4883
    %5037 = vmatpush.msra.mxu0 %v4881
    %5038 = vmatpush.msra.mxu0 %v4879
    %5039 = vmatpush.msra.mxu0 %v4877
    %5040 = vmatpush.msra.mxu0 %v4875
    %5041 = vmatpush.msra.mxu0 %v4873
    %5042 = vmatpush.msra.mxu0 %v4871
    %5043 = vmatpush.msra.mxu0 %v4869
    %5044 = vmatpush.msra.mxu0 %v4867
    %5045 = vmatpush.msra.mxu0 %v4865
    %5046 = vmatmul.f32.gmra.mxu0 %v5029
    %v5047 = vpop.f32.mrf.mxu0
    %v5048 = vadd.f32 %v4951, %v5047
    %5049 = vdwg.mxu0
    %5050 = vmatpush.msra.mxu0 %v4896
    %5051 = vmatpush.msra.mxu0 %v4894
    %5052 = vmatpush.msra.mxu0 %v4892
    %5053 = vmatpush.msra.mxu0 %v4890
    %5054 = vmatpush.msra.mxu0 %v4888
    %5055 = vmatpush.msra.mxu0 %v4886
    %5056 = vmatpush.msra.mxu0 %v4884
    %5057 = vmatpush.msra.mxu0 %v4882
    %5058 = vmatpush.msra.mxu0 %v4880
    %5059 = vmatpush.msra.mxu0 %v4878
    %5060 = vmatpush.msra.mxu0 %v4876
    %5061 = vmatpush.msra.mxu0 %v4874
    %5062 = vmatpush.msra.mxu0 %v4872
    %5063 = vmatpush.msra.mxu0 %v4870
    %5064 = vmatpush.msra.mxu0 %v4868
    %5065 = vmatpush.msra.mxu0 %v4866
    %5066 = vmatmul.f32.gmra.mxu0 %v5029
    %v5067 = vpop.f32.mrf.mxu0
    %v5068 = vadd.f32 %v4952, %v5067
    %5069 = vdwg.mxu0
    %v5071 = vrot.slane %v5048, 3
    %v5073 = vadd.f32 %v4922, %v5071
    %v5074 = vadd.f32 %v4925, %v5071
    %v5075 = vxor.u32 %v5073, 2147483648
    %v5076 = vxor.u32 %v5074, 2147483648
    %v5077 = vmul.f32 %v5075, 1.442695
    %v5078 = vpow.pop %v5077
    %v5079 = vmul.f32 %v5076, 1.442695
    %v5080 = vpow.pop %v5079
    %v5081 = vadd.f32 %v5078, 1.0
    %v5082 = vadd.f32 %v5080, 1.0
    %v5083 = vrcp.pop %v5081
    %v5084 = vmul.f32 %v5081, %v5083
    %v5085 = vsub.f32 1.0, %v5084
    %v5086 = vmul.f32 %v5083, %v5085
    %v5087 = vadd.f32 %v5083, %v5086
    %vm5088 = vweird.f32 %v5081
    %vm5089 = vweird.f32 %v5083
    %vm5090 = vmor %vm5088, %vm5089
    %v5091 = vsel %vm5090, %v5083, %v5087
    %v5092 = vand.u32 2147483647, %v5081
    %vm5093 = vcmp.eq.f32.partialorder %v5092, 8.507059e+37
    %v5094 = vand.u32 %v5081, 2147483648
    %v5095 = vor.u32 1.1754944e-38, %v5094
    %v5096 = vsel %vm5093, %v5095, %v5091
    %v5097 = vmul.f32 1.0, %v5096
    %v5098 = vrcp.pop %v5082
    %v5099 = vmul.f32 %v5082, %v5098
    %v5100 = vsub.f32 1.0, %v5099
    %v5101 = vmul.f32 %v5098, %v5100
    %v5102 = vadd.f32 %v5098, %v5101
    %vm5103 = vweird.f32 %v5082
    %vm5104 = vweird.f32 %v5098
    %vm5105 = vmor %vm5103, %vm5104
    %v5106 = vsel %vm5105, %v5098, %v5102
    %v5107 = vand.u32 2147483647, %v5082
    %vm5108 = vcmp.eq.f32.partialorder %v5107, 8.507059e+37
    %v5109 = vand.u32 %v5082, 2147483648
    %v5110 = vor.u32 1.1754944e-38, %v5109
    %v5111 = vsel %vm5108, %v5110, %v5106
    %v5112 = vmul.f32 1.0, %v5111
    %v5114 = vrot.slane %v5068, 3
    %v5116 = vmul.f32 %v5097, %v5114
    %v5117 = vmul.f32 %v5112, %v5114
    %v5118 = vadd.f32 %v4945, %v5116
    %v5119 = vadd.f32 %v4948, %v5117
    %v5120 = vtanh.pop %v5118
    %v5121 = vtanh.pop %v5119
    %v5124 = vrot.slane %v5120, 5
    %v5125 = vrot.slane %v5121, 5
    %v5126 = vsel %vm3802, %v5124, %v5125
    %v5128 = vmul.f32 %v4430, %v5126
    %v5129 = vmul.f32 %v4740, %v5029
    %v5130 = vadd.f32 %v5128, %v5129
    %5131 = vmatpush.msra.mxu0 %v4895
    %5132 = vmatpush.msra.mxu0 %v4893
    %5133 = vmatpush.msra.mxu0 %v4891
    %5134 = vmatpush.msra.mxu0 %v4889
    %5135 = vmatpush.msra.mxu0 %v4887
    %5136 = vmatpush.msra.mxu0 %v4885
    %5137 = vmatpush.msra.mxu0 %v4883
    %5138 = vmatpush.msra.mxu0 %v4881
    %5139 = vmatpush.msra.mxu0 %v4879
    %5140 = vmatpush.msra.mxu0 %v4877
    %5141 = vmatpush.msra.mxu0 %v4875
    %5142 = vmatpush.msra.mxu0 %v4873
    %5143 = vmatpush.msra.mxu0 %v4871
    %5144 = vmatpush.msra.mxu0 %v4869
    %5145 = vmatpush.msra.mxu0 %v4867
    %5146 = vmatpush.msra.mxu0 %v4865
    %5147 = vmatmul.f32.gmra.mxu0 %v5130
    %v5148 = vpop.f32.mrf.mxu0
    %v5149 = vadd.f32 %v4951, %v5148
    %5150 = vdwg.mxu0
    %5151 = vmatpush.msra.mxu0 %v4896
    %5152 = vmatpush.msra.mxu0 %v4894
    %5153 = vmatpush.msra.mxu0 %v4892
    %5154 = vmatpush.msra.mxu0 %v4890
    %5155 = vmatpush.msra.mxu0 %v4888
    %5156 = vmatpush.msra.mxu0 %v4886
    %5157 = vmatpush.msra.mxu0 %v4884
    %5158 = vmatpush.msra.mxu0 %v4882
    %5159 = vmatpush.msra.mxu0 %v4880
    %5160 = vmatpush.msra.mxu0 %v4878
    %5161 = vmatpush.msra.mxu0 %v4876
    %5162 = vmatpush.msra.mxu0 %v4874
    %5163 = vmatpush.msra.mxu0 %v4872
    %5164 = vmatpush.msra.mxu0 %v4870
    %5165 = vmatpush.msra.mxu0 %v4868
    %5166 = vmatpush.msra.mxu0 %v4866
    %5167 = vmatmul.f32.gmra.mxu0 %v5130
    %v5168 = vpop.f32.mrf.mxu0
    %v5169 = vadd.f32 %v4952, %v5168
    %5170 = vdwg.mxu0
    %v5171 = vadd.f32 %v4922, %v5149
    %v5172 = vxor.u32 %v5171, 2147483648
    %v5173 = vmul.f32 %v5172, 1.442695
    %v5174 = vpow.pop %v5173
    %v5175 = vadd.f32 %v5174, 1.0
    %v5176 = vrcp.pop %v5175
    %v5177 = vmul.f32 %v5175, %v5176
    %v5178 = vsub.f32 1.0, %v5177
    %v5179 = vmul.f32 %v5176, %v5178
    %v5180 = vadd.f32 %v5176, %v5179
    %vm5181 = vweird.f32 %v5175
    %vm5182 = vweird.f32 %v5176
    %vm5183 = vmor %vm5181, %vm5182
    %v5184 = vsel %vm5183, %v5176, %v5180
    %v5185 = vand.u32 2147483647, %v5175
    %vm5186 = vcmp.eq.f32.partialorder %v5185, 8.507059e+37
    %v5187 = vand.u32 %v5175, 2147483648
    %v5188 = vor.u32 1.1754944e-38, %v5187
    %v5189 = vsel %vm5186, %v5188, %v5184
    %v5190 = vmul.f32 1.0, %v5189
    %v5191 = vmul.f32 %v5190, %v5169
    %v5192 = vadd.f32 %v4945, %v5191
    %v5193 = vtanh.pop %v5192
    %v5194 = vmul.f32 %v4422, %v5193
    %v5195 = vmul.f32 %v4633, %v5130
    %v5196 = vadd.f32 %v5194, %v5195
    %v5198 = vrot.slane %v5196, 7
    %v5200 = vadd.f32 %v4828, %v5198
    %v5202 = vrot.slane %v5200, 1
    %v5204 = vmul.f32 %v4333, %v5202
    %v5205 = vsel %vm3921, %v5204, 0.0
    %5206 = vadd.xlane.f32.xlu0 %v5205
    %v5207 = vpop.xlane.xlu0 %5206
    %v5208 = vsel %vm4355, %v5207, -1e+10
    %v5209 = vrot.slane %v5200, 4
    %v5211 = vmul.f32 %v4337, %v5209
    %v5212 = vmul.f32 %v4338, %v5209
    %v5213 = vsel %vm4361, %v5211, 0.0
    %5214 = vadd.xlane.f32.xlu0 %v5213
    %v5215 = vpop.xlane.xlu0 %5214
    %v5216 = vsel %vm279, %v5212, 0.0
    %5217 = vadd.xlane.f32.xlu0 %v5216
    %v5218 = vpop.xlane.xlu0 %5217
    %v5221 = vrot.slane %v5215, 5
    %v5222 = vrot.slane %v5218, 5
    %v5223 = vsel %vm3802, %v5221, %v5222
    %v5225 = vsel %vm4368, %v5223, -1e+10
    %v5226 = vrot.slane %v5200, 7
    %v5228 = vmul.f32 %v4342, %v5226
    %v5229 = vsel %vm4379, %v5228, 0.0
    %5230 = vadd.xlane.f32.xlu0 %v5229
    %v5231 = vpop.xlane.xlu0 %5230
    %v5233 = vrot.slane %v5231, 2
    %v5235 = vsel %vm4383, %v5233, -1e+10
    %v5236 = vmax.f32 %v5208, %v5225
    %v5237 = vmax.f32 %v5236, %v5235
    %v5238 = vsub.f32 %v5208, %v5237
    %v5239 = vmul.f32 %v5238, 1.442695
    %v5240 = vpow.pop %v5239
    %v5241 = vsub.f32 %v5225, %v5237
    %v5242 = vmul.f32 %v5241, 1.442695
    %v5243 = vpow.pop %v5242
    %v5244 = vsub.f32 %v5235, %v5237
    %v5245 = vmul.f32 %v5244, 1.442695
    %v5246 = vpow.pop %v5245
    %v5247 = vadd.f32 %v5240, %v5243
    %v5248 = vadd.f32 %v5247, %v5246
    %v5249 = vrcp.pop %v5248
    %v5250 = vmul.f32 %v5248, %v5249
    %v5251 = vsub.f32 1.0, %v5250
    %v5252 = vmul.f32 %v5249, %v5251
    %v5253 = vadd.f32 %v5249, %v5252
    %vm5254 = vweird.f32 %v5248
    %vm5255 = vweird.f32 %v5249
    %vm5256 = vmor %vm5254, %vm5255
    %v5257 = vsel %vm5256, %v5249, %v5253
    %v5258 = vand.u32 2147483647, %v5248
    %vm5259 = vcmp.eq.f32.partialorder %v5258, 8.507059e+37
    %v5260 = vand.u32 %v5248, 2147483648
    %v5261 = vor.u32 1.1754944e-38, %v5260
    %v5262 = vsel %vm5259, %v5261, %v5257
    %v5263 = vmul.f32 %v5240, %v5262
    %v5264 = vmul.f32 %v5243, %v5262
    %v5265 = vmul.f32 %v5246, %v5262
    %5267 = vset.pattern.permute.xlu0 0
    %5268 = vperm.xlu0 %5267, %v5263
    %v5269 = vpop.permute.xlu0 %5268
    %v5271 = vsel %vm4418, %v5269, 0.0
    %v5272 = vadd.f32 %v5271, 0.0
    %5274 = vset.pattern.permute.xlu0 0
    %5275 = vperm.xlu0 %5274, %v5264
    %v5276 = vpop.permute.xlu0 %5275
    %v5278 = vsel %vm4426, %v5276, 0.0
    %v5279 = vadd.f32 %v5272, %v5278
    %5281 = vset.pattern.permute.xlu0 0
    %5282 = vperm.xlu0 %5281, %v5265
    %v5283 = vpop.permute.xlu0 %5282
    %v5285 = vsel %vm4434, %v5283, 0.0
    %v5286 = vadd.f32 %v5279, %v5285
    %s5287 = scalar_lea.vmem %s21, 8
    %5288 = vst [vmem:[%s5287] sm:$0x1f] %v5286
    %s5289 = scalar_lea.vmem [#allocation15], 512
    %v5290 = vld [vmem:[%s5289] sm:$0xff]
    %v5291 = vld [vmem:[%s5289 + $0x8] sm:$0xff]
    %v5292 = vld [vmem:[%s5289 + $0x10] sm:$0xff]
    %v5293 = vld [vmem:[%s5289 + $0x18] sm:$0xff]
    %v5294 = vld [vmem:[%s5289 + $0x20] sm:$0xff]
    %v5295 = vld [vmem:[%s5289 + $0x28] sm:$0xff]
    %v5296 = vld [vmem:[%s5289 + $0x30] sm:$0xff]
    %v5297 = vld [vmem:[%s5289 + $0x38] sm:$0xff]
    %v5298 = vld [vmem:[%s5289 + $0x40] sm:$0xff]
    %v5299 = vld [vmem:[%s5289 + $0x48] sm:$0xff]
    %v5300 = vld [vmem:[%s5289 + $0x50] sm:$0xff]
    %v5301 = vld [vmem:[%s5289 + $0x58] sm:$0xff]
    %v5302 = vld [vmem:[%s5289 + $0x60] sm:$0xff]
    %v5303 = vld [vmem:[%s5289 + $0x68] sm:$0xff]
    %v5304 = vld [vmem:[%s5289 + $0x70] sm:$0xff]
    %v5305 = vld [vmem:[%s5289 + $0x78] sm:$0xff]
    %v5306 = vld [vmem:[%s5289 + $0x80] sm:$0xff]
    %v5307 = vld [vmem:[%s5289 + $0x88] sm:$0xff]
    %v5308 = vld [vmem:[%s5289 + $0x90] sm:$0xff]
    %v5309 = vld [vmem:[%s5289 + $0x98] sm:$0xff]
    %v5310 = vld [vmem:[%s5289 + $0xa0] sm:$0xff]
    %v5311 = vld [vmem:[%s5289 + $0xa8] sm:$0xff]
    %v5312 = vld [vmem:[%s5289 + $0xb0] sm:$0xff]
    %v5313 = vld [vmem:[%s5289 + $0xb8] sm:$0xff]
    %v5314 = vld [vmem:[%s5289 + $0xc0] sm:$0xff]
    %v5315 = vld [vmem:[%s5289 + $0xc8] sm:$0xff]
    %v5316 = vld [vmem:[%s5289 + $0xd0] sm:$0xff]
    %v5317 = vld [vmem:[%s5289 + $0xd8] sm:$0xff]
    %v5318 = vld [vmem:[%s5289 + $0xe0] sm:$0xff]
    %v5319 = vld [vmem:[%s5289 + $0xe8] sm:$0xff]
    %v5320 = vld [vmem:[%s5289 + $0xf0] sm:$0xff]
    %v5321 = vld [vmem:[%s5289 + $0xf8] sm:$0xff]
    %s5322 = scalar_lea.vmem %s15, 4
    %v5323 = vld [vmem:[%s5322] sm:$0x3]
    %s5324 = scalar_lea.vmem [#allocation16], 512
    %v5325 = vld [vmem:[%s5324] sm:$0xff]
    %v5326 = vld [vmem:[%s5324 + $0x8] sm:$0xff]
    %v5327 = vld [vmem:[%s5324 + $0x10] sm:$0xff]
    %v5328 = vld [vmem:[%s5324 + $0x18] sm:$0xff]
    %v5329 = vld [vmem:[%s5324 + $0x20] sm:$0xff]
    %v5330 = vld [vmem:[%s5324 + $0x28] sm:$0xff]
    %v5331 = vld [vmem:[%s5324 + $0x30] sm:$0xff]
    %v5332 = vld [vmem:[%s5324 + $0x38] sm:$0xff]
    %v5333 = vld [vmem:[%s5324 + $0x40] sm:$0xff]
    %v5334 = vld [vmem:[%s5324 + $0x48] sm:$0xff]
    %v5335 = vld [vmem:[%s5324 + $0x50] sm:$0xff]
    %v5336 = vld [vmem:[%s5324 + $0x58] sm:$0xff]
    %v5337 = vld [vmem:[%s5324 + $0x60] sm:$0xff]
    %v5338 = vld [vmem:[%s5324 + $0x68] sm:$0xff]
    %v5339 = vld [vmem:[%s5324 + $0x70] sm:$0xff]
    %v5340 = vld [vmem:[%s5324 + $0x78] sm:$0xff]
    %v5341 = vld [vmem:[%s5324 + $0x80] sm:$0xff]
    %v5342 = vld [vmem:[%s5324 + $0x88] sm:$0xff]
    %v5343 = vld [vmem:[%s5324 + $0x90] sm:$0xff]
    %v5344 = vld [vmem:[%s5324 + $0x98] sm:$0xff]
    %v5345 = vld [vmem:[%s5324 + $0xa0] sm:$0xff]
    %v5346 = vld [vmem:[%s5324 + $0xa8] sm:$0xff]
    %v5347 = vld [vmem:[%s5324 + $0xb0] sm:$0xff]
    %v5348 = vld [vmem:[%s5324 + $0xb8] sm:$0xff]
    %v5349 = vld [vmem:[%s5324 + $0xc0] sm:$0xff]
    %v5350 = vld [vmem:[%s5324 + $0xc8] sm:$0xff]
    %v5351 = vld [vmem:[%s5324 + $0xd0] sm:$0xff]
    %v5352 = vld [vmem:[%s5324 + $0xd8] sm:$0xff]
    %v5353 = vld [vmem:[%s5324 + $0xe0] sm:$0xff]
    %v5354 = vld [vmem:[%s5324 + $0xe8] sm:$0xff]
    %v5355 = vld [vmem:[%s5324 + $0xf0] sm:$0xff]
    %v5356 = vld [vmem:[%s5324 + $0xf8] sm:$0xff]
    %s5357 = scalar_lea.vmem %s17, 4
    %v5358 = vld [vmem:[%s5357] sm:$0x3]
    %v5360 = vperm.slane %v5323, 0
    %v5361 = vperm.slane %v5323, 1
    %5364 = vmatpush.msra.mxu0 %v5320
    %5365 = vmatpush.msra.mxu0 %v5318
    %5366 = vmatpush.msra.mxu0 %v5316
    %5367 = vmatpush.msra.mxu0 %v5314
    %5368 = vmatpush.msra.mxu0 %v5312
    %5369 = vmatpush.msra.mxu0 %v5310
    %5370 = vmatpush.msra.mxu0 %v5308
    %5371 = vmatpush.msra.mxu0 %v5306
    %5372 = vmatpush.msra.mxu0 %v5304
    %5373 = vmatpush.msra.mxu0 %v5302
    %5374 = vmatpush.msra.mxu0 %v5300
    %5375 = vmatpush.msra.mxu0 %v5298
    %5376 = vmatpush.msra.mxu0 %v5296
    %5377 = vmatpush.msra.mxu0 %v5294
    %5378 = vmatpush.msra.mxu0 %v5292
    %5379 = vmatpush.msra.mxu0 %v5290
    %5380 = vmatmul.f32.gmra.mxu0 %v4344
    %v5381 = vpop.f32.mrf.mxu0
    %v5382 = vadd.f32 %v5360, %v5381
    %5383 = vmatmul.f32.gmra.mxu0 %v4345
    %v5384 = vpop.f32.mrf.mxu0
    %v5385 = vadd.f32 %v5360, %v5384
    %5386 = vdwg.mxu0
    %5387 = vmatpush.msra.mxu0 %v5321
    %5388 = vmatpush.msra.mxu0 %v5319
    %5389 = vmatpush.msra.mxu0 %v5317
    %5390 = vmatpush.msra.mxu0 %v5315
    %5391 = vmatpush.msra.mxu0 %v5313
    %5392 = vmatpush.msra.mxu0 %v5311
    %5393 = vmatpush.msra.mxu0 %v5309
    %5394 = vmatpush.msra.mxu0 %v5307
    %5395 = vmatpush.msra.mxu0 %v5305
    %5396 = vmatpush.msra.mxu0 %v5303
    %5397 = vmatpush.msra.mxu0 %v5301
    %5398 = vmatpush.msra.mxu0 %v5299
    %5399 = vmatpush.msra.mxu0 %v5297
    %5400 = vmatpush.msra.mxu0 %v5295
    %5401 = vmatpush.msra.mxu0 %v5293
    %5402 = vmatpush.msra.mxu0 %v5291
    %5403 = vmatmul.f32.gmra.mxu0 %v4344
    %v5404 = vpop.f32.mrf.mxu0
    %v5405 = vadd.f32 %v5361, %v5404
    %5406 = vmatmul.f32.gmra.mxu0 %v4345
    %v5407 = vpop.f32.mrf.mxu0
    %v5408 = vadd.f32 %v5361, %v5407
    %5409 = vdwg.mxu0
    %v5411 = vperm.slane %v5358, 0
    %v5412 = vperm.slane %v5358, 1
    %5415 = vmatpush.msra.mxu0 %v5355
    %5416 = vmatpush.msra.mxu0 %v5353
    %5417 = vmatpush.msra.mxu0 %v5351
    %5418 = vmatpush.msra.mxu0 %v5349
    %5419 = vmatpush.msra.mxu0 %v5347
    %5420 = vmatpush.msra.mxu0 %v5345
    %5421 = vmatpush.msra.mxu0 %v5343
    %5422 = vmatpush.msra.mxu0 %v5341
    %5423 = vmatpush.msra.mxu0 %v5339
    %5424 = vmatpush.msra.mxu0 %v5337
    %5425 = vmatpush.msra.mxu0 %v5335
    %5426 = vmatpush.msra.mxu0 %v5333
    %5427 = vmatpush.msra.mxu0 %v5331
    %5428 = vmatpush.msra.mxu0 %v5329
    %5429 = vmatpush.msra.mxu0 %v5327
    %5430 = vmatpush.msra.mxu0 %v5325
    %5431 = vmatmul.f32.gmra.mxu0 0.0
    %v5432 = vpop.f32.mrf.mxu0
    %v5433 = vadd.f32 %v5411, %v5432
    %5434 = vdwg.mxu0
    %5435 = vmatpush.msra.mxu0 %v5356
    %5436 = vmatpush.msra.mxu0 %v5354
    %5437 = vmatpush.msra.mxu0 %v5352
    %5438 = vmatpush.msra.mxu0 %v5350
    %5439 = vmatpush.msra.mxu0 %v5348
    %5440 = vmatpush.msra.mxu0 %v5346
    %5441 = vmatpush.msra.mxu0 %v5344
    %5442 = vmatpush.msra.mxu0 %v5342
    %5443 = vmatpush.msra.mxu0 %v5340
    %5444 = vmatpush.msra.mxu0 %v5338
    %5445 = vmatpush.msra.mxu0 %v5336
    %5446 = vmatpush.msra.mxu0 %v5334
    %5447 = vmatpush.msra.mxu0 %v5332
    %5448 = vmatpush.msra.mxu0 %v5330
    %5449 = vmatpush.msra.mxu0 %v5328
    %5450 = vmatpush.msra.mxu0 %v5326
    %5451 = vmatmul.f32.gmra.mxu0 0.0
    %v5452 = vpop.f32.mrf.mxu0
    %v5453 = vadd.f32 %v5412, %v5452
    %5454 = vdwg.mxu0
    %v5455 = vadd.f32 %v5382, %v5433
    %v5456 = vxor.u32 %v5455, 2147483648
    %v5457 = vmul.f32 %v5456, 1.442695
    %v5458 = vpow.pop %v5457
    %v5459 = vadd.f32 %v5458, 1.0
    %v5460 = vrcp.pop %v5459
    %v5461 = vmul.f32 %v5459, %v5460
    %v5462 = vsub.f32 1.0, %v5461
    %v5463 = vmul.f32 %v5460, %v5462
    %v5464 = vadd.f32 %v5460, %v5463
    %vm5465 = vweird.f32 %v5459
    %vm5466 = vweird.f32 %v5460
    %vm5467 = vmor %vm5465, %vm5466
    %v5468 = vsel %vm5467, %v5460, %v5464
    %v5469 = vand.u32 2147483647, %v5459
    %vm5470 = vcmp.eq.f32.partialorder %v5469, 8.507059e+37
    %v5471 = vand.u32 %v5459, 2147483648
    %v5472 = vor.u32 1.1754944e-38, %v5471
    %v5473 = vsel %vm5470, %v5472, %v5468
    %v5474 = vmul.f32 1.0, %v5473
    %v5475 = vmul.f32 %v5474, %v5453
    %v5476 = vadd.f32 %v5405, %v5475
    %v5477 = vtanh.pop %v5476
    %v5478 = vmul.f32 %v5269, %v5477
    %v5479 = vsub.f32 1.0, %v5263
    %5481 = vset.pattern.permute.xlu0 0
    %5482 = vperm.xlu0 %5481, %v5479
    %v5483 = vpop.permute.xlu0 %5482
    %v5485 = vmul.f32 %v5483, 0.0
    %v5486 = vadd.f32 %v5478, %v5485
    %5487 = vmatpush.msra.mxu0 %v5355
    %5488 = vmatpush.msra.mxu0 %v5353
    %5489 = vmatpush.msra.mxu0 %v5351
    %5490 = vmatpush.msra.mxu0 %v5349
    %5491 = vmatpush.msra.mxu0 %v5347
    %5492 = vmatpush.msra.mxu0 %v5345
    %5493 = vmatpush.msra.mxu0 %v5343
    %5494 = vmatpush.msra.mxu0 %v5341
    %5495 = vmatpush.msra.mxu0 %v5339
    %5496 = vmatpush.msra.mxu0 %v5337
    %5497 = vmatpush.msra.mxu0 %v5335
    %5498 = vmatpush.msra.mxu0 %v5333
    %5499 = vmatpush.msra.mxu0 %v5331
    %5500 = vmatpush.msra.mxu0 %v5329
    %5501 = vmatpush.msra.mxu0 %v5327
    %5502 = vmatpush.msra.mxu0 %v5325
    %5503 = vmatmul.f32.gmra.mxu0 %v5486
    %v5504 = vpop.f32.mrf.mxu0
    %v5505 = vadd.f32 %v5411, %v5504
    %5506 = vdwg.mxu0
    %5507 = vmatpush.msra.mxu0 %v5356
    %5508 = vmatpush.msra.mxu0 %v5354
    %5509 = vmatpush.msra.mxu0 %v5352
    %5510 = vmatpush.msra.mxu0 %v5350
    %5511 = vmatpush.msra.mxu0 %v5348
    %5512 = vmatpush.msra.mxu0 %v5346
    %5513 = vmatpush.msra.mxu0 %v5344
    %5514 = vmatpush.msra.mxu0 %v5342
    %5515 = vmatpush.msra.mxu0 %v5340
    %5516 = vmatpush.msra.mxu0 %v5338
    %5517 = vmatpush.msra.mxu0 %v5336
    %5518 = vmatpush.msra.mxu0 %v5334
    %5519 = vmatpush.msra.mxu0 %v5332
    %5520 = vmatpush.msra.mxu0 %v5330
    %5521 = vmatpush.msra.mxu0 %v5328
    %5522 = vmatpush.msra.mxu0 %v5326
    %5523 = vmatmul.f32.gmra.mxu0 %v5486
    %v5524 = vpop.f32.mrf.mxu0
    %v5525 = vadd.f32 %v5412, %v5524
    %5526 = vdwg.mxu0
    %v5528 = vrot.slane %v5505, 3
    %v5530 = vadd.f32 %v5382, %v5528
    %v5531 = vadd.f32 %v5385, %v5528
    %v5532 = vxor.u32 %v5530, 2147483648
    %v5533 = vxor.u32 %v5531, 2147483648
    %v5534 = vmul.f32 %v5532, 1.442695
    %v5535 = vpow.pop %v5534
    %v5536 = vmul.f32 %v5533, 1.442695
    %v5537 = vpow.pop %v5536
    %v5538 = vadd.f32 %v5535, 1.0
    %v5539 = vadd.f32 %v5537, 1.0
    %v5540 = vrcp.pop %v5538
    %v5541 = vmul.f32 %v5538, %v5540
    %v5542 = vsub.f32 1.0, %v5541
    %v5543 = vmul.f32 %v5540, %v5542
    %v5544 = vadd.f32 %v5540, %v5543
    %vm5545 = vweird.f32 %v5538
    %vm5546 = vweird.f32 %v5540
    %vm5547 = vmor %vm5545, %vm5546
    %v5548 = vsel %vm5547, %v5540, %v5544
    %v5549 = vand.u32 2147483647, %v5538
    %vm5550 = vcmp.eq.f32.partialorder %v5549, 8.507059e+37
    %v5551 = vand.u32 %v5538, 2147483648
    %v5552 = vor.u32 1.1754944e-38, %v5551
    %v5553 = vsel %vm5550, %v5552, %v5548
    %v5554 = vmul.f32 1.0, %v5553
    %v5555 = vrcp.pop %v5539
    %v5556 = vmul.f32 %v5539, %v5555
    %v5557 = vsub.f32 1.0, %v5556
    %v5558 = vmul.f32 %v5555, %v5557
    %v5559 = vadd.f32 %v5555, %v5558
    %vm5560 = vweird.f32 %v5539
    %vm5561 = vweird.f32 %v5555
    %vm5562 = vmor %vm5560, %vm5561
    %v5563 = vsel %vm5562, %v5555, %v5559
    %v5564 = vand.u32 2147483647, %v5539
    %vm5565 = vcmp.eq.f32.partialorder %v5564, 8.507059e+37
    %v5566 = vand.u32 %v5539, 2147483648
    %v5567 = vor.u32 1.1754944e-38, %v5566
    %v5568 = vsel %vm5565, %v5567, %v5563
    %v5569 = vmul.f32 1.0, %v5568
    %v5571 = vrot.slane %v5525, 3
    %v5573 = vmul.f32 %v5554, %v5571
    %v5574 = vmul.f32 %v5569, %v5571
    %v5575 = vadd.f32 %v5405, %v5573
    %v5576 = vadd.f32 %v5408, %v5574
    %v5577 = vtanh.pop %v5575
    %v5578 = vtanh.pop %v5576
    %v5581 = vrot.slane %v5577, 5
    %v5582 = vrot.slane %v5578, 5
    %v5583 = vsel %vm3802, %v5581, %v5582
    %v5585 = vmul.f32 %v5276, %v5583
    %v5586 = vsub.f32 1.0, %v5264
    %5588 = vset.pattern.permute.xlu0 0
    %5589 = vperm.xlu0 %5588, %v5586
    %v5590 = vpop.permute.xlu0 %5589
    %v5592 = vmul.f32 %v5590, %v5486
    %v5593 = vadd.f32 %v5585, %v5592
    %5594 = vmatpush.msra.mxu0 %v5355
    %5595 = vmatpush.msra.mxu0 %v5353
    %5596 = vmatpush.msra.mxu0 %v5351
    %5597 = vmatpush.msra.mxu0 %v5349
    %5598 = vmatpush.msra.mxu0 %v5347
    %5599 = vmatpush.msra.mxu0 %v5345
    %5600 = vmatpush.msra.mxu0 %v5343
    %5601 = vmatpush.msra.mxu0 %v5341
    %5602 = vmatpush.msra.mxu0 %v5339
    %5603 = vmatpush.msra.mxu0 %v5337
    %5604 = vmatpush.msra.mxu0 %v5335
    %5605 = vmatpush.msra.mxu0 %v5333
    %5606 = vmatpush.msra.mxu0 %v5331
    %5607 = vmatpush.msra.mxu0 %v5329
    %5608 = vmatpush.msra.mxu0 %v5327
    %5609 = vmatpush.msra.mxu0 %v5325
    %5610 = vmatmul.f32.gmra.mxu0 %v5593
    %v5611 = vpop.f32.mrf.mxu0
    %v5612 = vadd.f32 %v5411, %v5611
    %5613 = vdwg.mxu0
    %5614 = vmatpush.msra.mxu0 %v5356
    %5615 = vmatpush.msra.mxu0 %v5354
    %5616 = vmatpush.msra.mxu0 %v5352
    %5617 = vmatpush.msra.mxu0 %v5350
    %5618 = vmatpush.msra.mxu0 %v5348
    %5619 = vmatpush.msra.mxu0 %v5346
    %5620 = vmatpush.msra.mxu0 %v5344
    %5621 = vmatpush.msra.mxu0 %v5342
    %5622 = vmatpush.msra.mxu0 %v5340
    %5623 = vmatpush.msra.mxu0 %v5338
    %5624 = vmatpush.msra.mxu0 %v5336
    %5625 = vmatpush.msra.mxu0 %v5334
    %5626 = vmatpush.msra.mxu0 %v5332
    %5627 = vmatpush.msra.mxu0 %v5330
    %5628 = vmatpush.msra.mxu0 %v5328
    %5629 = vmatpush.msra.mxu0 %v5326
    %5630 = vmatmul.f32.gmra.mxu0 %v5593
    %v5631 = vpop.f32.mrf.mxu0
    %v5632 = vadd.f32 %v5412, %v5631
    %5633 = vdwg.mxu0
    %v5635 = vrot.slane %v5612, 6
    %v5637 = vadd.f32 %v5385, %v5635
    %v5638 = vxor.u32 %v5637, 2147483648
    %v5639 = vmul.f32 %v5638, 1.442695
    %v5640 = vpow.pop %v5639
    %v5641 = vadd.f32 %v5640, 1.0
    %v5642 = vrcp.pop %v5641
    %v5643 = vmul.f32 %v5641, %v5642
    %v5644 = vsub.f32 1.0, %v5643
    %v5645 = vmul.f32 %v5642, %v5644
    %v5646 = vadd.f32 %v5642, %v5645
    %vm5647 = vweird.f32 %v5641
    %vm5648 = vweird.f32 %v5642
    %vm5649 = vmor %vm5647, %vm5648
    %v5650 = vsel %vm5649, %v5642, %v5646
    %v5651 = vand.u32 2147483647, %v5641
    %vm5652 = vcmp.eq.f32.partialorder %v5651, 8.507059e+37
    %v5653 = vand.u32 %v5641, 2147483648
    %v5654 = vor.u32 1.1754944e-38, %v5653
    %v5655 = vsel %vm5652, %v5654, %v5650
    %v5656 = vmul.f32 1.0, %v5655
    %v5658 = vrot.slane %v5632, 6
    %v5660 = vmul.f32 %v5656, %v5658
    %v5661 = vadd.f32 %v5408, %v5660
    %v5662 = vtanh.pop %v5661
    %v5664 = vrot.slane %v5662, 2
    %v5666 = vmul.f32 %v5283, %v5664
    %v5667 = vsub.f32 1.0, %v5265
    %5669 = vset.pattern.permute.xlu0 0
    %5670 = vperm.xlu0 %5669, %v5667
    %v5671 = vpop.permute.xlu0 %5670
    %v5673 = vmul.f32 %v5671, %v5593
    %v5674 = vadd.f32 %v5666, %v5673
    %v5676 = vrot.slane %v5674, 7
    %v5678 = vadd.f32 %v5200, %v5676
    %s5679 = scalar_lea.vmem [#allocation15], 768
    %v5680 = vld [vmem:[%s5679] sm:$0xff]
    %v5681 = vld [vmem:[%s5679 + $0x8] sm:$0xff]
    %v5682 = vld [vmem:[%s5679 + $0x10] sm:$0xff]
    %v5683 = vld [vmem:[%s5679 + $0x18] sm:$0xff]
    %v5684 = vld [vmem:[%s5679 + $0x20] sm:$0xff]
    %v5685 = vld [vmem:[%s5679 + $0x28] sm:$0xff]
    %v5686 = vld [vmem:[%s5679 + $0x30] sm:$0xff]
    %v5687 = vld [vmem:[%s5679 + $0x38] sm:$0xff]
    %v5688 = vld [vmem:[%s5679 + $0x40] sm:$0xff]
    %v5689 = vld [vmem:[%s5679 + $0x48] sm:$0xff]
    %v5690 = vld [vmem:[%s5679 + $0x50] sm:$0xff]
    %v5691 = vld [vmem:[%s5679 + $0x58] sm:$0xff]
    %v5692 = vld [vmem:[%s5679 + $0x60] sm:$0xff]
    %v5693 = vld [vmem:[%s5679 + $0x68] sm:$0xff]
    %v5694 = vld [vmem:[%s5679 + $0x70] sm:$0xff]
    %v5695 = vld [vmem:[%s5679 + $0x78] sm:$0xff]
    %v5696 = vld [vmem:[%s5679 + $0x80] sm:$0xff]
    %v5697 = vld [vmem:[%s5679 + $0x88] sm:$0xff]
    %v5698 = vld [vmem:[%s5679 + $0x90] sm:$0xff]
    %v5699 = vld [vmem:[%s5679 + $0x98] sm:$0xff]
    %v5700 = vld [vmem:[%s5679 + $0xa0] sm:$0xff]
    %v5701 = vld [vmem:[%s5679 + $0xa8] sm:$0xff]
    %v5702 = vld [vmem:[%s5679 + $0xb0] sm:$0xff]
    %v5703 = vld [vmem:[%s5679 + $0xb8] sm:$0xff]
    %v5704 = vld [vmem:[%s5679 + $0xc0] sm:$0xff]
    %v5705 = vld [vmem:[%s5679 + $0xc8] sm:$0xff]
    %v5706 = vld [vmem:[%s5679 + $0xd0] sm:$0xff]
    %v5707 = vld [vmem:[%s5679 + $0xd8] sm:$0xff]
    %v5708 = vld [vmem:[%s5679 + $0xe0] sm:$0xff]
    %v5709 = vld [vmem:[%s5679 + $0xe8] sm:$0xff]
    %v5710 = vld [vmem:[%s5679 + $0xf0] sm:$0xff]
    %v5711 = vld [vmem:[%s5679 + $0xf8] sm:$0xff]
    %s5712 = scalar_lea.vmem %s15, 6
    %v5713 = vld [vmem:[%s5712] sm:$0x3]
    %s5714 = scalar_lea.vmem [#allocation16], 768
    %v5715 = vld [vmem:[%s5714] sm:$0xff]
    %v5716 = vld [vmem:[%s5714 + $0x8] sm:$0xff]
    %v5717 = vld [vmem:[%s5714 + $0x10] sm:$0xff]
    %v5718 = vld [vmem:[%s5714 + $0x18] sm:$0xff]
    %v5719 = vld [vmem:[%s5714 + $0x20] sm:$0xff]
    %v5720 = vld [vmem:[%s5714 + $0x28] sm:$0xff]
    %v5721 = vld [vmem:[%s5714 + $0x30] sm:$0xff]
    %v5722 = vld [vmem:[%s5714 + $0x38] sm:$0xff]
    %v5723 = vld [vmem:[%s5714 + $0x40] sm:$0xff]
    %v5724 = vld [vmem:[%s5714 + $0x48] sm:$0xff]
    %v5725 = vld [vmem:[%s5714 + $0x50] sm:$0xff]
    %v5726 = vld [vmem:[%s5714 + $0x58] sm:$0xff]
    %v5727 = vld [vmem:[%s5714 + $0x60] sm:$0xff]
    %v5728 = vld [vmem:[%s5714 + $0x68] sm:$0xff]
    %v5729 = vld [vmem:[%s5714 + $0x70] sm:$0xff]
    %v5730 = vld [vmem:[%s5714 + $0x78] sm:$0xff]
    %v5731 = vld [vmem:[%s5714 + $0x80] sm:$0xff]
    %v5732 = vld [vmem:[%s5714 + $0x88] sm:$0xff]
    %v5733 = vld [vmem:[%s5714 + $0x90] sm:$0xff]
    %v5734 = vld [vmem:[%s5714 + $0x98] sm:$0xff]
    %v5735 = vld [vmem:[%s5714 + $0xa0] sm:$0xff]
    %v5736 = vld [vmem:[%s5714 + $0xa8] sm:$0xff]
    %v5737 = vld [vmem:[%s5714 + $0xb0] sm:$0xff]
    %v5738 = vld [vmem:[%s5714 + $0xb8] sm:$0xff]
    %v5739 = vld [vmem:[%s5714 + $0xc0] sm:$0xff]
    %v5740 = vld [vmem:[%s5714 + $0xc8] sm:$0xff]
    %v5741 = vld [vmem:[%s5714 + $0xd0] sm:$0xff]
    %v5742 = vld [vmem:[%s5714 + $0xd8] sm:$0xff]
    %v5743 = vld [vmem:[%s5714 + $0xe0] sm:$0xff]
    %v5744 = vld [vmem:[%s5714 + $0xe8] sm:$0xff]
    %v5745 = vld [vmem:[%s5714 + $0xf0] sm:$0xff]
    %v5746 = vld [vmem:[%s5714 + $0xf8] sm:$0xff]
    %s5747 = scalar_lea.vmem %s17, 6
    %v5748 = vld [vmem:[%s5747] sm:$0x3]
    %v5750 = vperm.slane %v5713, 0
    %v5751 = vperm.slane %v5713, 1
    %5754 = vmatpush.msra.mxu0 %v5710
    %5755 = vmatpush.msra.mxu0 %v5708
    %5756 = vmatpush.msra.mxu0 %v5706
    %5757 = vmatpush.msra.mxu0 %v5704
    %5758 = vmatpush.msra.mxu0 %v5702
    %5759 = vmatpush.msra.mxu0 %v5700
    %5760 = vmatpush.msra.mxu0 %v5698
    %5761 = vmatpush.msra.mxu0 %v5696
    %5762 = vmatpush.msra.mxu0 %v5694
    %5763 = vmatpush.msra.mxu0 %v5692
    %5764 = vmatpush.msra.mxu0 %v5690
    %5765 = vmatpush.msra.mxu0 %v5688
    %5766 = vmatpush.msra.mxu0 %v5686
    %5767 = vmatpush.msra.mxu0 %v5684
    %5768 = vmatpush.msra.mxu0 %v5682
    %5769 = vmatpush.msra.mxu0 %v5680
    %5770 = vmatmul.f32.gmra.mxu0 %v4344
    %v5771 = vpop.f32.mrf.mxu0
    %v5772 = vadd.f32 %v5750, %v5771
    %5773 = vmatmul.f32.gmra.mxu0 %v4345
    %v5774 = vpop.f32.mrf.mxu0
    %v5775 = vadd.f32 %v5750, %v5774
    %5776 = vdwg.mxu0
    %5777 = vmatpush.msra.mxu0 %v5711
    %5778 = vmatpush.msra.mxu0 %v5709
    %5779 = vmatpush.msra.mxu0 %v5707
    %5780 = vmatpush.msra.mxu0 %v5705
    %5781 = vmatpush.msra.mxu0 %v5703
    %5782 = vmatpush.msra.mxu0 %v5701
    %5783 = vmatpush.msra.mxu0 %v5699
    %5784 = vmatpush.msra.mxu0 %v5697
    %5785 = vmatpush.msra.mxu0 %v5695
    %5786 = vmatpush.msra.mxu0 %v5693
    %5787 = vmatpush.msra.mxu0 %v5691
    %5788 = vmatpush.msra.mxu0 %v5689
    %5789 = vmatpush.msra.mxu0 %v5687
    %5790 = vmatpush.msra.mxu0 %v5685
    %5791 = vmatpush.msra.mxu0 %v5683
    %5792 = vmatpush.msra.mxu0 %v5681
    %5793 = vmatmul.f32.gmra.mxu0 %v4344
    %v5794 = vpop.f32.mrf.mxu0
    %v5795 = vadd.f32 %v5751, %v5794
    %5796 = vmatmul.f32.gmra.mxu0 %v4345
    %v5797 = vpop.f32.mrf.mxu0
    %v5798 = vadd.f32 %v5751, %v5797
    %5799 = vdwg.mxu0
    %v5801 = vperm.slane %v5748, 0
    %v5802 = vperm.slane %v5748, 1
    %5805 = vmatpush.msra.mxu0 %v5745
    %5806 = vmatpush.msra.mxu0 %v5743
    %5807 = vmatpush.msra.mxu0 %v5741
    %5808 = vmatpush.msra.mxu0 %v5739
    %5809 = vmatpush.msra.mxu0 %v5737
    %5810 = vmatpush.msra.mxu0 %v5735
    %5811 = vmatpush.msra.mxu0 %v5733
    %5812 = vmatpush.msra.mxu0 %v5731
    %5813 = vmatpush.msra.mxu0 %v5729
    %5814 = vmatpush.msra.mxu0 %v5727
    %5815 = vmatpush.msra.mxu0 %v5725
    %5816 = vmatpush.msra.mxu0 %v5723
    %5817 = vmatpush.msra.mxu0 %v5721
    %5818 = vmatpush.msra.mxu0 %v5719
    %5819 = vmatpush.msra.mxu0 %v5717
    %5820 = vmatpush.msra.mxu0 %v5715
    %5821 = vmatmul.f32.gmra.mxu0 0.0
    %v5822 = vpop.f32.mrf.mxu0
    %v5823 = vadd.f32 %v5801, %v5822
    %5824 = vdwg.mxu0
    %5825 = vmatpush.msra.mxu0 %v5746
    %5826 = vmatpush.msra.mxu0 %v5744
    %5827 = vmatpush.msra.mxu0 %v5742
    %5828 = vmatpush.msra.mxu0 %v5740
    %5829 = vmatpush.msra.mxu0 %v5738
    %5830 = vmatpush.msra.mxu0 %v5736
    %5831 = vmatpush.msra.mxu0 %v5734
    %5832 = vmatpush.msra.mxu0 %v5732
    %5833 = vmatpush.msra.mxu0 %v5730
    %5834 = vmatpush.msra.mxu0 %v5728
    %5835 = vmatpush.msra.mxu0 %v5726
    %5836 = vmatpush.msra.mxu0 %v5724
    %5837 = vmatpush.msra.mxu0 %v5722
    %5838 = vmatpush.msra.mxu0 %v5720
    %5839 = vmatpush.msra.mxu0 %v5718
    %5840 = vmatpush.msra.mxu0 %v5716
    %5841 = vmatmul.f32.gmra.mxu0 0.0
    %v5842 = vpop.f32.mrf.mxu0
    %v5843 = vadd.f32 %v5802, %v5842
    %5844 = vdwg.mxu0
    %v5846 = vrot.slane %v5823, 6
    %v5848 = vadd.f32 %v5775, %v5846
    %v5849 = vxor.u32 %v5848, 2147483648
    %v5850 = vmul.f32 %v5849, 1.442695
    %v5851 = vpow.pop %v5850
    %v5852 = vadd.f32 %v5851, 1.0
    %v5853 = vrcp.pop %v5852
    %v5854 = vmul.f32 %v5852, %v5853
    %v5855 = vsub.f32 1.0, %v5854
    %v5856 = vmul.f32 %v5853, %v5855
    %v5857 = vadd.f32 %v5853, %v5856
    %vm5858 = vweird.f32 %v5852
    %vm5859 = vweird.f32 %v5853
    %vm5860 = vmor %vm5858, %vm5859
    %v5861 = vsel %vm5860, %v5853, %v5857
    %v5862 = vand.u32 2147483647, %v5852
    %vm5863 = vcmp.eq.f32.partialorder %v5862, 8.507059e+37
    %v5864 = vand.u32 %v5852, 2147483648
    %v5865 = vor.u32 1.1754944e-38, %v5864
    %v5866 = vsel %vm5863, %v5865, %v5861
    %v5867 = vmul.f32 1.0, %v5866
    %v5869 = vrot.slane %v5843, 6
    %v5871 = vmul.f32 %v5867, %v5869
    %v5872 = vadd.f32 %v5798, %v5871
    %v5873 = vtanh.pop %v5872
    %v5875 = vrot.slane %v5873, 2
    %v5877 = vmul.f32 %v5283, %v5875
    %v5878 = vmul.f32 %v5671, 0.0
    %v5879 = vadd.f32 %v5877, %v5878
    %5880 = vmatpush.msra.mxu0 %v5745
    %5881 = vmatpush.msra.mxu0 %v5743
    %5882 = vmatpush.msra.mxu0 %v5741
    %5883 = vmatpush.msra.mxu0 %v5739
    %5884 = vmatpush.msra.mxu0 %v5737
    %5885 = vmatpush.msra.mxu0 %v5735
    %5886 = vmatpush.msra.mxu0 %v5733
    %5887 = vmatpush.msra.mxu0 %v5731
    %5888 = vmatpush.msra.mxu0 %v5729
    %5889 = vmatpush.msra.mxu0 %v5727
    %5890 = vmatpush.msra.mxu0 %v5725
    %5891 = vmatpush.msra.mxu0 %v5723
    %5892 = vmatpush.msra.mxu0 %v5721
    %5893 = vmatpush.msra.mxu0 %v5719
    %5894 = vmatpush.msra.mxu0 %v5717
    %5895 = vmatpush.msra.mxu0 %v5715
    %5896 = vmatmul.f32.gmra.mxu0 %v5879
    %v5897 = vpop.f32.mrf.mxu0
    %v5898 = vadd.f32 %v5801, %v5897
    %5899 = vdwg.mxu0
    %5900 = vmatpush.msra.mxu0 %v5746
    %5901 = vmatpush.msra.mxu0 %v5744
    %5902 = vmatpush.msra.mxu0 %v5742
    %5903 = vmatpush.msra.mxu0 %v5740
    %5904 = vmatpush.msra.mxu0 %v5738
    %5905 = vmatpush.msra.mxu0 %v5736
    %5906 = vmatpush.msra.mxu0 %v5734
    %5907 = vmatpush.msra.mxu0 %v5732
    %5908 = vmatpush.msra.mxu0 %v5730
    %5909 = vmatpush.msra.mxu0 %v5728
    %5910 = vmatpush.msra.mxu0 %v5726
    %5911 = vmatpush.msra.mxu0 %v5724
    %5912 = vmatpush.msra.mxu0 %v5722
    %5913 = vmatpush.msra.mxu0 %v5720
    %5914 = vmatpush.msra.mxu0 %v5718
    %5915 = vmatpush.msra.mxu0 %v5716
    %5916 = vmatmul.f32.gmra.mxu0 %v5879
    %v5917 = vpop.f32.mrf.mxu0
    %v5918 = vadd.f32 %v5802, %v5917
    %5919 = vdwg.mxu0
    %v5921 = vrot.slane %v5898, 3
    %v5923 = vadd.f32 %v5772, %v5921
    %v5924 = vadd.f32 %v5775, %v5921
    %v5925 = vxor.u32 %v5923, 2147483648
    %v5926 = vxor.u32 %v5924, 2147483648
    %v5927 = vmul.f32 %v5925, 1.442695
    %v5928 = vpow.pop %v5927
    %v5929 = vmul.f32 %v5926, 1.442695
    %v5930 = vpow.pop %v5929
    %v5931 = vadd.f32 %v5928, 1.0
    %v5932 = vadd.f32 %v5930, 1.0
    %v5933 = vrcp.pop %v5931
    %v5934 = vmul.f32 %v5931, %v5933
    %v5935 = vsub.f32 1.0, %v5934
    %v5936 = vmul.f32 %v5933, %v5935
    %v5937 = vadd.f32 %v5933, %v5936
    %vm5938 = vweird.f32 %v5931
    %vm5939 = vweird.f32 %v5933
    %vm5940 = vmor %vm5938, %vm5939
    %v5941 = vsel %vm5940, %v5933, %v5937
    %v5942 = vand.u32 2147483647, %v5931
    %vm5943 = vcmp.eq.f32.partialorder %v5942, 8.507059e+37
    %v5944 = vand.u32 %v5931, 2147483648
    %v5945 = vor.u32 1.1754944e-38, %v5944
    %v5946 = vsel %vm5943, %v5945, %v5941
    %v5947 = vmul.f32 1.0, %v5946
    %v5948 = vrcp.pop %v5932
    %v5949 = vmul.f32 %v5932, %v5948
    %v5950 = vsub.f32 1.0, %v5949
    %v5951 = vmul.f32 %v5948, %v5950
    %v5952 = vadd.f32 %v5948, %v5951
    %vm5953 = vweird.f32 %v5932
    %vm5954 = vweird.f32 %v5948
    %vm5955 = vmor %vm5953, %vm5954
    %v5956 = vsel %vm5955, %v5948, %v5952
    %v5957 = vand.u32 2147483647, %v5932
    %vm5958 = vcmp.eq.f32.partialorder %v5957, 8.507059e+37
    %v5959 = vand.u32 %v5932, 2147483648
    %v5960 = vor.u32 1.1754944e-38, %v5959
    %v5961 = vsel %vm5958, %v5960, %v5956
    %v5962 = vmul.f32 1.0, %v5961
    %v5964 = vrot.slane %v5918, 3
    %v5966 = vmul.f32 %v5947, %v5964
    %v5967 = vmul.f32 %v5962, %v5964
    %v5968 = vadd.f32 %v5795, %v5966
    %v5969 = vadd.f32 %v5798, %v5967
    %v5970 = vtanh.pop %v5968
    %v5971 = vtanh.pop %v5969
    %v5974 = vrot.slane %v5970, 5
    %v5975 = vrot.slane %v5971, 5
    %v5976 = vsel %vm3802, %v5974, %v5975
    %v5978 = vmul.f32 %v5276, %v5976
    %v5979 = vmul.f32 %v5590, %v5879
    %v5980 = vadd.f32 %v5978, %v5979
    %5981 = vmatpush.msra.mxu0 %v5745
    %5982 = vmatpush.msra.mxu0 %v5743
    %5983 = vmatpush.msra.mxu0 %v5741
    %5984 = vmatpush.msra.mxu0 %v5739
    %5985 = vmatpush.msra.mxu0 %v5737
    %5986 = vmatpush.msra.mxu0 %v5735
    %5987 = vmatpush.msra.mxu0 %v5733
    %5988 = vmatpush.msra.mxu0 %v5731
    %5989 = vmatpush.msra.mxu0 %v5729
    %5990 = vmatpush.msra.mxu0 %v5727
    %5991 = vmatpush.msra.mxu0 %v5725
    %5992 = vmatpush.msra.mxu0 %v5723
    %5993 = vmatpush.msra.mxu0 %v5721
    %5994 = vmatpush.msra.mxu0 %v5719
    %5995 = vmatpush.msra.mxu0 %v5717
    %5996 = vmatpush.msra.mxu0 %v5715
    %5997 = vmatmul.f32.gmra.mxu0 %v5980
    %v5998 = vpop.f32.mrf.mxu0
    %v5999 = vadd.f32 %v5801, %v5998
    %6000 = vdwg.mxu0
    %6001 = vmatpush.msra.mxu0 %v5746
    %6002 = vmatpush.msra.mxu0 %v5744
    %6003 = vmatpush.msra.mxu0 %v5742
    %6004 = vmatpush.msra.mxu0 %v5740
    %6005 = vmatpush.msra.mxu0 %v5738
    %6006 = vmatpush.msra.mxu0 %v5736
    %6007 = vmatpush.msra.mxu0 %v5734
    %6008 = vmatpush.msra.mxu0 %v5732
    %6009 = vmatpush.msra.mxu0 %v5730
    %6010 = vmatpush.msra.mxu0 %v5728
    %6011 = vmatpush.msra.mxu0 %v5726
    %6012 = vmatpush.msra.mxu0 %v5724
    %6013 = vmatpush.msra.mxu0 %v5722
    %6014 = vmatpush.msra.mxu0 %v5720
    %6015 = vmatpush.msra.mxu0 %v5718
    %6016 = vmatpush.msra.mxu0 %v5716
    %6017 = vmatmul.f32.gmra.mxu0 %v5980
    %v6018 = vpop.f32.mrf.mxu0
    %v6019 = vadd.f32 %v5802, %v6018
    %6020 = vdwg.mxu0
    %v6021 = vadd.f32 %v5772, %v5999
    %v6022 = vxor.u32 %v6021, 2147483648
    %v6023 = vmul.f32 %v6022, 1.442695
    %v6024 = vpow.pop %v6023
    %v6025 = vadd.f32 %v6024, 1.0
    %v6026 = vrcp.pop %v6025
    %v6027 = vmul.f32 %v6025, %v6026
    %v6028 = vsub.f32 1.0, %v6027
    %v6029 = vmul.f32 %v6026, %v6028
    %v6030 = vadd.f32 %v6026, %v6029
    %vm6031 = vweird.f32 %v6025
    %vm6032 = vweird.f32 %v6026
    %vm6033 = vmor %vm6031, %vm6032
    %v6034 = vsel %vm6033, %v6026, %v6030
    %v6035 = vand.u32 2147483647, %v6025
    %vm6036 = vcmp.eq.f32.partialorder %v6035, 8.507059e+37
    %v6037 = vand.u32 %v6025, 2147483648
    %v6038 = vor.u32 1.1754944e-38, %v6037
    %v6039 = vsel %vm6036, %v6038, %v6034
    %v6040 = vmul.f32 1.0, %v6039
    %v6041 = vmul.f32 %v6040, %v6019
    %v6042 = vadd.f32 %v5795, %v6041
    %v6043 = vtanh.pop %v6042
    %v6044 = vmul.f32 %v5269, %v6043
    %v6045 = vmul.f32 %v5483, %v5980
    %v6046 = vadd.f32 %v6044, %v6045
    %v6048 = vrot.slane %v6046, 7
    %v6050 = vadd.f32 %v5678, %v6048
    %v6051 = vld [vmem:[#allocation18] sm:$0xff]
    %v6052 = vld [vmem:[#allocation18 + $0x8] sm:$0xff]
    %v6053 = vld [vmem:[#allocation18 + $0x10] sm:$0xff]
    %v6054 = vld [vmem:[#allocation18 + $0x18] sm:$0xff]
    %v6055 = vld [vmem:[#allocation18 + $0x20] sm:$0xff]
    %v6056 = vld [vmem:[#allocation18 + $0x28] sm:$0xff]
    %v6057 = vld [vmem:[#allocation18 + $0x30] sm:$0xff]
    %v6058 = vld [vmem:[#allocation18 + $0x38] sm:$0xff]
    %v6059 = vld [vmem:[#allocation18 + $0x40] sm:$0xff]
    %v6060 = vld [vmem:[#allocation18 + $0x48] sm:$0xff]
    %v6061 = vld [vmem:[#allocation18 + $0x50] sm:$0xff]
    %v6062 = vld [vmem:[#allocation18 + $0x58] sm:$0xff]
    %v6063 = vld [vmem:[#allocation18 + $0x60] sm:$0xff]
    %v6064 = vld [vmem:[#allocation18 + $0x68] sm:$0xff]
    %v6065 = vld [vmem:[#allocation18 + $0x70] sm:$0xff]
    %v6066 = vld [vmem:[#allocation18 + $0x78] sm:$0xff]
    %v6067 = vld [vmem:[%s19] sm:$0x1]
    %6068 = vmatpush.msra.mxu0 %v6066
    %6069 = vmatpush.msra.mxu0 %v6065
    %6070 = vmatpush.msra.mxu0 %v6064
    %6071 = vmatpush.msra.mxu0 %v6063
    %6072 = vmatpush.msra.mxu0 %v6062
    %6073 = vmatpush.msra.mxu0 %v6061
    %6074 = vmatpush.msra.mxu0 %v6060
    %6075 = vmatpush.msra.mxu0 %v6059
    %6076 = vmatpush.msra.mxu0 %v6058
    %6077 = vmatpush.msra.mxu0 %v6057
    %6078 = vmatpush.msra.mxu0 %v6056
    %6079 = vmatpush.msra.mxu0 %v6055
    %6080 = vmatpush.msra.mxu0 %v6054
    %6081 = vmatpush.msra.mxu0 %v6053
    %6082 = vmatpush.msra.mxu0 %v6052
    %6083 = vmatpush.msra.mxu0 %v6051
    %6084 = vmatmul.f32.gmra.mxu0 %v3160
    %v6085 = vpop.f32.mrf.mxu0
    %v6086 = vadd.f32 %v6067, %v6085
    %6087 = vdwg.mxu0
    %v6089 = vperm.slane %v6067, 0
    %v6092 = vrot.slane %v6050, 1
    %6094 = vmatpush.msra.mxu0 %v6066
    %6095 = vmatpush.msra.mxu0 %v6065
    %6096 = vmatpush.msra.mxu0 %v6064
    %6097 = vmatpush.msra.mxu0 %v6063
    %6098 = vmatpush.msra.mxu0 %v6062
    %6099 = vmatpush.msra.mxu0 %v6061
    %6100 = vmatpush.msra.mxu0 %v6060
    %6101 = vmatpush.msra.mxu0 %v6059
    %6102 = vmatpush.msra.mxu0 %v6058
    %6103 = vmatpush.msra.mxu0 %v6057
    %6104 = vmatpush.msra.mxu0 %v6056
    %6105 = vmatpush.msra.mxu0 %v6055
    %6106 = vmatpush.msra.mxu0 %v6054
    %6107 = vmatpush.msra.mxu0 %v6053
    %6108 = vmatpush.msra.mxu0 %v6052
    %6109 = vmatpush.msra.mxu0 %v6051
    %6110 = vmatmul.f32.gmra.mxu0 %v6092
    %v6111 = vpop.f32.mrf.mxu0
    %v6112 = vadd.f32 %v6089, %v6111
    %6113 = vdwg.mxu0
    %vm6114 = vcmask 1040384
    %v6115 = vsel %vm6114, %v6086, -inf
    %6116 = vmax.xlane.f32.xlu0 %v6115
    %v6117 = vpop.xlane.xlu0 %6116
    %v6118 = vsub.f32 %v6086, %v6117
    %v6119 = vmul.f32 %v6118, 1.442695
    %v6120 = vpow.pop %v6119
    %v6121 = vsel %vm6114, %v6120, 0.0
    %6122 = vadd.xlane.f32.xlu0 %v6121
    %v6123 = vpop.xlane.xlu0 %6122
    %v6124 = vlog2.pop %v6123
    %v6125 = vmul.f32 %v6124, 0.6931472
    %v6126 = vadd.f32 %v6117, %v6125
    %v6127 = vsub.f32 %v6086, %v6126
    %6128 = vst [vmem:[#allocation19] sm:$0x1] %v6127
    %v6129 = vsel %vm3921, %v6112, -inf
    %6130 = vmax.xlane.f32.xlu0 %v6129
    %v6131 = vpop.xlane.xlu0 %6130
    %v6132 = vsub.f32 %v6112, %v6131
    %v6133 = vmul.f32 %v6132, 1.442695
    %v6134 = vpow.pop %v6133
    %v6135 = vsel %vm3921, %v6134, 0.0
    %6136 = vadd.xlane.f32.xlu0 %v6135
    %v6137 = vpop.xlane.xlu0 %6136
    %v6138 = vlog2.pop %v6137
    %v6139 = vmul.f32 %v6138, 0.6931472
    %v6140 = vadd.f32 %v6131, %v6139
    %v6141 = vsub.f32 %v6112, %v6140
    %6142 = vst [vmem:[#allocation19 + $0x1] sm:$0x1f] %v6141
    // Predicated region
    $region118: #{bif_biagru_forward.1} parent=1 // pred_check
      _
    $region119: #{bif_biagru_forward.1} parent=1 // pred_check_branch
      %6144 = sbr.rel (0) target = $region121
    $region120: #{bif_biagru_forward.1} parent=1 // pred_region
      %6146 = vsyncadd [#allocation6], 0
      %s6148 = sshll.u32 [#allocation19], 4
      %s6149 = int_to_ptr.vmem [resolvable:$true] %s6148
      %s6150 = sshll.u32 %s20, 4
      %s6151 = int_to_ptr.hbm [resolvable:$true] %s6150
      %6153 = dma.vmem_to_hbm [thread:$0]  %s6149, 128, %s6151, [#allocation6]
    $region121: #{bif_biagru_forward.1} parent=1 // pred_fallthru
      _
    // Predicated region
    $region122: #{bif_biagru_forward.1} parent=1 // pred_check
      _
    $region123: #{bif_biagru_forward.1} parent=1 // pred_check_branch
      %6155 = sbr.rel (0) target = $region125
    $region124: #{bif_biagru_forward.1} parent=1 // pred_region
      _
    $region125: #{bif_biagru_forward.1} parent=1 // pred_fallthru
      _
    // Predicated region
    $region126: #{bif_biagru_forward.1} parent=1 // pred_check
      _
    $region127: #{bif_biagru_forward.1} parent=1 // pred_check_branch
      %6157 = sbr.rel (0) target = $region129
    $region128: #{bif_biagru_forward.1} parent=1 // pred_region
      %6159 = dma.done [#allocation6], 128
    $region129: #{bif_biagru_forward.1} parent=1 // pred_fallthru
      _
    // Predicated region
    $region130: #{bif_biagru_forward.1} parent=1 // pred_check
      _
    $region131: #{bif_biagru_forward.1} parent=1 // pred_check_branch
      %6161 = sbr.rel (0) target = $region133
    $region132: #{bif_biagru_forward.1} parent=1 // pred_region
      _
    $region133: #{bif_biagru_forward.1} parent=1 // pred_fallthru
      _
    %6162 = vsyncpa [#allocation5], 1
    %6163 = vsyncpa [#allocation8], 1
    %6164 = vsyncpa [#allocation11], 1
    %6165 = vsyncpa [#allocation14], 1
    %6166 = vsyncpa [#allocation17], 1
    %6167 = vsyncpa [#allocation6], 1

</llo_original>
